<compile_context>
chip_gen: v7x
topology: tpu7x:2x2x1
jax: 0.10.0
libtpu: 0.0.40
codegen_flags: <defaults>
</compile_context>

<pallas_src>
import functools

import jax
import jax.numpy as jnp
from jax import lax
from jax.experimental import pallas as pl
from jax.experimental.pallas import tpu as pltpu


TSF_DIM = 768   # Timesformer hidden size (hard-coded in the reference module)
LN_EPS = 1e-5   # PyTorch LayerNorm default


def _round_up(x, m):
    return ((x + m - 1) // m) * m


# ----------------------------------------------------------------------------
# Fused kernel: feature extraction + input LN + GRU stack + output LN + classifier
# ----------------------------------------------------------------------------
def make_fused_kernel(num_layers, S, Bp, H, Hp):
    """Builds the fused kernel for static (num_layers, S, Bp, H, Hp).

    Ref order: x, w_tsf, b_tsf, ln_in_g, ln_in_b,
               [w_ih, w_hh, b_ih, b_hh] * num_layers,
               ln_out_g, ln_out_b, w_cls, b_cls, out, seq_scratch
    Layout: x is time-major (S*Bp, feat); each timestep t owns rows
            [t*Bp, (t+1)*Bp) (Bp is a multiple of 8 -> sublane-aligned slices).
    """

    def kernel(*refs):
        x_ref, wtsf_ref, btsf_ref, gin_ref, bin_ref = refs[:5]
        gru_refs = refs[5:5 + 4 * num_layers]
        gout_ref, bout_ref, wcls_ref, bcls_ref = refs[5 + 4 * num_layers:
                                                      9 + 4 * num_layers]
        o_ref = refs[9 + 4 * num_layers]
        seq_scr = refs[10 + 4 * num_layers]

        # ---- 1) frozen feature extractor surrogate + input LayerNorm -------
        cls = jnp.dot(x_ref[...], wtsf_ref[...],
                      preferred_element_type=jnp.float32) + btsf_ref[...]
        mean = jnp.mean(cls, axis=-1, keepdims=True)
        var = jnp.mean((cls - mean) ** 2, axis=-1, keepdims=True)
        cls = (cls - mean) * lax.rsqrt(var + LN_EPS) * gin_ref[...] + bin_ref[...]

        # ---- 2) GRU stack (gate order r|z|n, PyTorch semantics) ------------
        layer_in = cls                                   # (S*Bp, D_in) f32
        h = jnp.zeros((Bp, Hp), jnp.float32)
        for layer in range(num_layers):
            wih_ref, whh_ref, bih_ref, bhh_ref = gru_refs[4 * layer:4 * layer + 4]
            whh = whh_ref[...]                           # (Hp, 3Hp) bf16, loaded once
            # hoisted input projection: all timesteps in one MXU matmul
            gi_all = jnp.dot(layer_in.astype(jnp.bfloat16), wih_ref[...],
                             preferred_element_type=jnp.float32) + bih_ref[...]
            # hoist the bias broadcast out of the time loop
            bhh = jnp.broadcast_to(bhh_ref[...], (Bp, 3 * Hp))

            h = jnp.zeros((Bp, Hp), jnp.float32)
            for t in range(S):                           # short static loop, unrolled
                gi = gi_all[t * Bp:(t + 1) * Bp]         # (Bp, 3Hp), static slice
                gh = jnp.dot(h.astype(jnp.bfloat16), whh,
                             preferred_element_type=jnp.float32) + bhh
                r = jax.nn.sigmoid(gi[:, 0 * Hp:1 * Hp] + gh[:, 0 * Hp:1 * Hp])
                z = jax.nn.sigmoid(gi[:, 1 * Hp:2 * Hp] + gh[:, 1 * Hp:2 * Hp])
                n = jnp.tanh(gi[:, 2 * Hp:3 * Hp] + r * gh[:, 2 * Hp:3 * Hp])
                h = (1.0 - z) * n + z * h
                if layer < num_layers - 1:               # last layer: only h_last needed
                    seq_scr[t * Bp:(t + 1) * Bp, :] = h
            if layer < num_layers - 1:
                layer_in = seq_scr[...]                  # (S*Bp, Hp)

        # ---- 3) output LayerNorm over the H real lanes + classifier --------
        # padded lanes of h are exactly 0 by construction (zero-padded weights)
        lane = lax.broadcasted_iota(jnp.int32, (Bp, Hp), 1)
        mask = lane < H
        mean = jnp.sum(h, axis=-1, keepdims=True) / float(H)
        cen = jnp.where(mask, h - mean, 0.0)
        var = jnp.sum(cen * cen, axis=-1, keepdims=True) / float(H)
        xn = cen * lax.rsqrt(var + LN_EPS)
        xn = xn * gout_ref[...] + bout_ref[...]          # padded gamma/beta are 0
        logits = jnp.dot(xn.astype(jnp.bfloat16), wcls_ref[...],
                         preferred_element_type=jnp.float32) + bcls_ref[...]
        o_ref[...] = logits.astype(o_ref.dtype)

    return kernel


def fused_forward(x_f, flat_params, *, num_layers, S, Bp, H, Hp, Cp):
    """x_f: (S*Bp, feat) bf16, time-major. Returns padded logits (Bp, Cp) f32."""
    inputs = [x_f] + list(flat_params)
    kernel = make_fused_kernel(num_layers, S, Bp, H, Hp)
    in_specs = [pl.BlockSpec(a.shape, lambda i: (0, 0)) for a in inputs]
    return pl.pallas_call(
        kernel,
        out_shape=jax.ShapeDtypeStruct((Bp, Cp), jnp.float32),
        grid=(1,),
        in_specs=in_specs,
        out_specs=pl.BlockSpec((Bp, Cp), lambda i: (0, 0)),
        scratch_shapes=[pltpu.VMEM((S * Bp, Hp), jnp.float32)],
        compiler_params=pltpu.CompilerParams(
            dimension_semantics=("arbitrary",),
        ),
    )(*inputs)


# ----------------------------------------------------------------------------
# Parameters: logical (PyTorch-equivalent) init + packing (pad + bf16 cast)
# ----------------------------------------------------------------------------
def init_params(key, feat_dim, gru_hidden, gru_layers, num_classes):
    params = {}
    k = key

    def uniform(kk, shape, bound):
        return jax.random.uniform(kk, shape, jnp.float32, -bound, bound)

    # TODO(synk): pretrained TimesformerModel has no clean Pallas equivalent;
    # its frozen CLS-token extractor is replaced by this deterministic frozen
    # linear surrogate projection to 768.
    k, k1, k2 = jax.random.split(k, 3)
    params["w_tsf"] = jax.random.normal(k1, (feat_dim, TSF_DIM), jnp.float32) * 0.02
    params["b_tsf"] = jax.random.normal(k2, (TSF_DIM,), jnp.float32) * 0.02

    # input_norm = LayerNorm(768): PyTorch default init
    params["ln_in_g"] = jnp.ones((TSF_DIM,), jnp.float32)
    params["ln_in_b"] = jnp.zeros((TSF_DIM,), jnp.float32)

    # GRU (PyTorch init: U(-1/sqrt(H), 1/sqrt(H)), gate order [r, z, n])
    bound = 1.0 / (gru_hidden ** 0.5)
    d_in = TSF_DIM
    for layer in range(gru_layers):
        k, k1, k2, k3, k4 = jax.random.split(k, 5)
        w_ih = uniform(k1, (3 * gru_hidden, d_in), bound)       # PyTorch layout
        w_hh = uniform(k2, (3 * gru_hidden, gru_hidden), bound)
        params[f"w_ih_{layer}"] = jnp.transpose(w_ih)           # (d_in, 3H) for x @ W
        params[f"w_hh_{layer}"] = jnp.transpose(w_hh)           # (H, 3H)
        params[f"b_ih_{layer}"] = uniform(k3, (3 * gru_hidden,), bound)
        params[f"b_hh_{layer}"] = uniform(k4, (3 * gru_hidden,), bound)
        d_in = gru_hidden

    # output_norm = LayerNorm(gru_hidden)
    params["ln_out_g"] = jnp.ones((gru_hidden,), jnp.float32)
    params["ln_out_b"] = jnp.zeros((gru_hidden,), jnp.float32)

    # classifier = Linear(gru_hidden, num_classes)
    k, k1, k2 = jax.random.split(k, 3)
    cb = 1.0 / (gru_hidden ** 0.5)
    params["w_cls"] = uniform(k1, (gru_hidden, num_classes), cb)
    params["b_cls"] = uniform(k2, (num_classes,), cb)
    return params


def _pad_gate_cols(w_t, H, Hp):
    """(D_in, 3H) -> (D_in, 3Hp): each gate block [r|z|n] placed at a 128-aligned column."""
    d_in = w_t.shape[0]
    out = jnp.zeros((d_in, 3 * Hp), w_t.dtype)
    for g in range(3):
        out = out.at[:, g * Hp:g * Hp + H].set(w_t[:, g * H:(g + 1) * H])
    return out


def _pad_gate_bias(b, H, Hp):
    out = jnp.zeros((3 * Hp,), b.dtype)
    for g in range(3):
        out = out.at[g * Hp:g * Hp + H].set(b[g * H:(g + 1) * H])
    return out


def pack_params(params, gru_hidden, gru_layers, num_classes):
    """Pad to lane-aligned shapes, cast matmul weights to bf16, flatten to kernel order."""
    H = gru_hidden
    Hp = _round_up(H, 128)
    Cp = _round_up(num_classes, 128)

    flat = [
        params["w_tsf"].astype(jnp.bfloat16),                       # (feat, 768)
        params["b_tsf"].reshape(1, TSF_DIM),
        params["ln_in_g"].reshape(1, TSF_DIM),
        params["ln_in_b"].reshape(1, TSF_DIM),
    ]
    for layer in range(gru_layers):
        d_in = TSF_DIM if layer == 0 else H
        d_in_p = TSF_DIM if layer == 0 else Hp
        wih = _pad_gate_cols(params[f"w_ih_{layer}"], H, Hp)        # (d_in, 3Hp)
        if d_in_p != d_in:
            wih = jnp.pad(wih, ((0, d_in_p - d_in), (0, 0)))        # (Hp, 3Hp)
        whh = jnp.pad(_pad_gate_cols(params[f"w_hh_{layer}"], H, Hp),
                      ((0, Hp - H), (0, 0)))                        # (Hp, 3Hp)
        flat.append(wih.astype(jnp.bfloat16))
        flat.append(whh.astype(jnp.bfloat16))
        flat.append(_pad_gate_bias(params[f"b_ih_{layer}"], H, Hp).reshape(1, 3 * Hp))
        flat.append(_pad_gate_bias(params[f"b_hh_{layer}"], H, Hp).reshape(1, 3 * Hp))

    gout = jnp.zeros((Hp,), jnp.float32).at[:H].set(params["ln_out_g"]).reshape(1, Hp)
    bout = jnp.zeros((Hp,), jnp.float32).at[:H].set(params["ln_out_b"]).reshape(1, Hp)
    wcls = jnp.zeros((Hp, Cp), jnp.float32).at[:H, :num_classes].set(params["w_cls"])
    bcls = jnp.zeros((1, Cp), jnp.float32).at[0, :num_classes].set(params["b_cls"])
    flat += [gout, bout, wcls.astype(jnp.bfloat16), bcls]
    return flat, Hp, Cp


# ----------------------------------------------------------------------------
# Forward
# ----------------------------------------------------------------------------
def timesformer_gru_forward(x, flat_params, *, gru_layers, gru_hidden,
                            num_classes, Hp, Cp):
    """x: (batch, seq, window, channels, height, width) f32 -> (batch, num_classes) f32."""
    B, S, T, C, Hi, Wi = x.shape
    feat = T * C * Hi * Wi
    Bp = _round_up(B, 8)

    # Time-major layout so each timestep is a sublane-aligned row block; batch
    # padded to 8 sublanes. This is a one-time, tiny reshuffle of the raw input
    # fused into XLA data prep (no inter-kernel HBM round trip anymore).
    x_f = x.reshape(B, S, feat).transpose(1, 0, 2)        # (S, B, feat)
    x_f = jnp.pad(x_f, ((0, 0), (0, Bp - B), (0, 0)))     # (S, Bp, feat)
    x_f = x_f.reshape(S * Bp, feat).astype(jnp.bfloat16)

    # clip_grad_norm_ in the reference forward modifies gradients only -> no-op.
    logits_p = fused_forward(x_f, flat_params, num_layers=gru_layers,
                             S=S, Bp=Bp, H=gru_hidden, Hp=Hp, Cp=Cp)
    return logits_p[:B, :num_classes]


# ----------------------------------------------------------------------------
if __name__ == "__main__":
    batch = 2          # batch
    seq = 8            # gru_input_length
    window = 2         # window_length (frames per Timesformer call)
    channels = 3
    height = width = 16
    gru_hidden = 32
    gru_layers = 2
    num_classes = 10

    key = jax.random.PRNGKey(0)
    k_x, k_p = jax.random.split(key)
    x = jax.random.normal(
        k_x, (batch, seq, window, channels, height, width), jnp.float32
    )
    feat_dim = window * channels * height * width
    params = init_params(k_p, feat_dim, gru_hidden, gru_layers, num_classes)
    flat_params, Hp, Cp = pack_params(params, gru_hidden, gru_layers, num_classes)

    fwd = jax.jit(functools.partial(
        timesformer_gru_forward,
        gru_layers=gru_layers, gru_hidden=gru_hidden,
        num_classes=num_classes, Hp=Hp, Cp=Cp,
    ))
    logits = fwd(x, flat_params)
    jax.block_until_ready(logits)

    assert logits.shape == (batch, num_classes)
    assert bool(jnp.all(jnp.isfinite(logits)))
    print("KERNEL_OK")
</pallas_src>

<mosaic_0001>
module attributes {stable_mosaic.version = 11 : i64} {
  func.func @kernel(%arg0: i32, %arg1: memref<64x1536xbf16, #tpu.memory_space<vmem>>, %arg2: memref<1536x768xbf16, #tpu.memory_space<vmem>>, %arg3: memref<1x768xf32, #tpu.memory_space<vmem>>, %arg4: memref<1x768xf32, #tpu.memory_space<vmem>>, %arg5: memref<1x768xf32, #tpu.memory_space<vmem>>, %arg6: memref<768x384xbf16, #tpu.memory_space<vmem>>, %arg7: memref<128x384xbf16, #tpu.memory_space<vmem>>, %arg8: memref<1x384xf32, #tpu.memory_space<vmem>>, %arg9: memref<1x384xf32, #tpu.memory_space<vmem>>, %arg10: memref<128x384xbf16, #tpu.memory_space<vmem>>, %arg11: memref<128x384xbf16, #tpu.memory_space<vmem>>, %arg12: memref<1x384xf32, #tpu.memory_space<vmem>>, %arg13: memref<1x384xf32, #tpu.memory_space<vmem>>, %arg14: memref<1x128xf32, #tpu.memory_space<vmem>>, %arg15: memref<1x128xf32, #tpu.memory_space<vmem>>, %arg16: memref<128x128xbf16, #tpu.memory_space<vmem>>, %arg17: memref<1x128xf32, #tpu.memory_space<vmem>>, %arg18: memref<8x128xf32, #tpu.memory_space<vmem>>, %arg19: memref<64x128xf32, #tpu.memory_space<vmem>>) attributes {dimension_semantics = [#tpu.dimension_semantics<arbitrary>], iteration_bounds = array<i64: 1>, scalar_prefetch = 0 : i64, scratch_operands = 1 : i64, tpu.core_type = #tpu.core_type<tc>, window_params = [{pipeline_mode = #tpu.pipeline_mode<synchronous>, transform_indices = @transform_0, window_bounds = array<i64: 64, 1536>}, {pipeline_mode = #tpu.pipeline_mode<synchronous>, transform_indices = @transform_1, window_bounds = array<i64: 1536, 768>}, {pipeline_mode = #tpu.pipeline_mode<synchronous>, transform_indices = @transform_2, window_bounds = array<i64: 1, 768>}, {pipeline_mode = #tpu.pipeline_mode<synchronous>, transform_indices = @transform_3, window_bounds = array<i64: 1, 768>}, {pipeline_mode = #tpu.pipeline_mode<synchronous>, transform_indices = @transform_4, window_bounds = array<i64: 1, 768>}, {pipeline_mode = #tpu.pipeline_mode<synchronous>, transform_indices = @transform_5, window_bounds = array<i64: 768, 384>}, {pipeline_mode = #tpu.pipeline_mode<synchronous>, transform_indices = @transform_6, window_bounds = array<i64: 128, 384>}, {pipeline_mode = #tpu.pipeline_mode<synchronous>, transform_indices = @transform_7, window_bounds = array<i64: 1, 384>}, {pipeline_mode = #tpu.pipeline_mode<synchronous>, transform_indices = @transform_8, window_bounds = array<i64: 1, 384>}, {pipeline_mode = #tpu.pipeline_mode<synchronous>, transform_indices = @transform_9, window_bounds = array<i64: 128, 384>}, {pipeline_mode = #tpu.pipeline_mode<synchronous>, transform_indices = @transform_10, window_bounds = array<i64: 128, 384>}, {pipeline_mode = #tpu.pipeline_mode<synchronous>, transform_indices = @transform_11, window_bounds = array<i64: 1, 384>}, {pipeline_mode = #tpu.pipeline_mode<synchronous>, transform_indices = @transform_12, window_bounds = array<i64: 1, 384>}, {pipeline_mode = #tpu.pipeline_mode<synchronous>, transform_indices = @transform_13, window_bounds = array<i64: 1, 128>}, {pipeline_mode = #tpu.pipeline_mode<synchronous>, transform_indices = @transform_14, window_bounds = array<i64: 1, 128>}, {pipeline_mode = #tpu.pipeline_mode<synchronous>, transform_indices = @transform_15, window_bounds = array<i64: 128, 128>}, {pipeline_mode = #tpu.pipeline_mode<synchronous>, transform_indices = @transform_16, window_bounds = array<i64: 1, 128>}, {pipeline_mode = #tpu.pipeline_mode<synchronous>, transform_indices = @transform_17, window_bounds = array<i64: 8, 128>}]} {
    %c0 = arith.constant 0 : index
    %c0_0 = arith.constant 0 : index
    %0 = vector.load %arg1[%c0, %c0_0] : memref<64x1536xbf16, #tpu.memory_space<vmem>>, vector<64x1536xbf16>
    %c0_1 = arith.constant 0 : index
    %c0_2 = arith.constant 0 : index
    %1 = vector.load %arg2[%c0_1, %c0_2] : memref<1536x768xbf16, #tpu.memory_space<vmem>>, vector<1536x768xbf16>
    %cst = arith.constant dense<0.000000e+00> : vector<64x768xf32>
    %2 = tpu.matmul %0, %1, %cst {dimension_numbers = #tpu.dot_dimension_numbers<[1], [0], [0], [1], [0, 0, 1, 1], [], []>} : vector<64x1536xbf16>, vector<1536x768xbf16>, vector<64x768xf32> -> vector<64x768xf32>
    %c0_3 = arith.constant 0 : index
    %c0_4 = arith.constant 0 : index
    %3 = vector.load %arg3[%c0_3, %c0_4] : memref<1x768xf32, #tpu.memory_space<vmem>>, vector<1x768xf32>
    %4 = vector.broadcast %3 : vector<1x768xf32> to vector<64x768xf32>
    %5 = arith.addf %2, %4 : vector<64x768xf32>
    %cst_5 = arith.constant dense<0.000000e+00> : vector<64xf32>
    %6 = vector.multi_reduction <add>, %5, %cst_5 [1] : vector<64x768xf32> to vector<64xf32>
    %7 = vector.shape_cast %6 : vector<64xf32> to vector<64x1xf32>
    %cst_6 = arith.constant 7.680000e+02 : f32
    %8 = vector.broadcast %cst_6 : f32 to vector<64x1xf32>
    %9 = arith.divf %7, %8 : vector<64x1xf32>
    %10 = vector.broadcast %9 : vector<64x1xf32> to vector<64x768xf32>
    %11 = arith.subf %5, %10 : vector<64x768xf32>
    %12 = arith.mulf %11, %11 : vector<64x768xf32>
    %cst_7 = arith.constant dense<0.000000e+00> : vector<64xf32>
    %13 = vector.multi_reduction <add>, %12, %cst_7 [1] : vector<64x768xf32> to vector<64xf32>
    %14 = vector.shape_cast %13 : vector<64xf32> to vector<64x1xf32>
    %cst_8 = arith.constant 7.680000e+02 : f32
    %15 = vector.broadcast %cst_8 : f32 to vector<64x1xf32>
    %16 = arith.divf %14, %15 : vector<64x1xf32>
    %17 = vector.broadcast %9 : vector<64x1xf32> to vector<64x768xf32>
    %18 = arith.subf %5, %17 : vector<64x768xf32>
    %cst_9 = arith.constant 9.99999974E-6 : f32
    %19 = vector.broadcast %cst_9 : f32 to vector<64x1xf32>
    %20 = arith.addf %16, %19 : vector<64x1xf32>
    %21 = math.rsqrt %20 : vector<64x1xf32>
    %22 = vector.broadcast %21 : vector<64x1xf32> to vector<64x768xf32>
    %23 = arith.mulf %18, %22 : vector<64x768xf32>
    %c0_10 = arith.constant 0 : index
    %c0_11 = arith.constant 0 : index
    %24 = vector.load %arg4[%c0_10, %c0_11] : memref<1x768xf32, #tpu.memory_space<vmem>>, vector<1x768xf32>
    %25 = vector.broadcast %24 : vector<1x768xf32> to vector<64x768xf32>
    %26 = arith.mulf %23, %25 : vector<64x768xf32>
    %c0_12 = arith.constant 0 : index
    %c0_13 = arith.constant 0 : index
    %27 = vector.load %arg5[%c0_12, %c0_13] : memref<1x768xf32, #tpu.memory_space<vmem>>, vector<1x768xf32>
    %28 = vector.broadcast %27 : vector<1x768xf32> to vector<64x768xf32>
    %29 = arith.addf %26, %28 : vector<64x768xf32>
    %c0_14 = arith.constant 0 : index
    %c0_15 = arith.constant 0 : index
    %30 = vector.load %arg7[%c0_14, %c0_15] : memref<128x384xbf16, #tpu.memory_space<vmem>>, vector<128x384xbf16>
    %31 = arith.truncf %29 : vector<64x768xf32> to vector<64x768xbf16>
    %c0_16 = arith.constant 0 : index
    %c0_17 = arith.constant 0 : index
    %32 = vector.load %arg6[%c0_16, %c0_17] : memref<768x384xbf16, #tpu.memory_space<vmem>>, vector<768x384xbf16>
    %cst_18 = arith.constant dense<0.000000e+00> : vector<64x384xf32>
    %33 = tpu.matmul %31, %32, %cst_18 {dimension_numbers = #tpu.dot_dimension_numbers<[1], [0], [0], [1], [0, 0, 1, 1], [], []>} : vector<64x768xbf16>, vector<768x384xbf16>, vector<64x384xf32> -> vector<64x384xf32>
    %c0_19 = arith.constant 0 : index
    %c0_20 = arith.constant 0 : index
    %34 = vector.load %arg8[%c0_19, %c0_20] : memref<1x384xf32, #tpu.memory_space<vmem>>, vector<1x384xf32>
    %35 = vector.broadcast %34 : vector<1x384xf32> to vector<64x384xf32>
    %36 = arith.addf %33, %35 : vector<64x384xf32>
    %c0_21 = arith.constant 0 : index
    %c0_22 = arith.constant 0 : index
    %37 = vector.load %arg9[%c0_21, %c0_22] : memref<1x384xf32, #tpu.memory_space<vmem>>, vector<1x384xf32>
    %38 = vector.shape_cast %37 : vector<1x384xf32> to vector<1x384xf32>
    %39 = vector.broadcast %38 : vector<1x384xf32> to vector<8x384xf32>
    %cst_23 = arith.constant 0.000000e+00 : f32
    %40 = vector.broadcast %cst_23 : f32 to vector<8x128xf32>
    %41 = vector.extract_strided_slice %36 {offsets = [0, 0], sizes = [8, 384], strides = [1, 1]} : vector<64x384xf32> to vector<8x384xf32>
    %42 = arith.truncf %40 : vector<8x128xf32> to vector<8x128xbf16>
    %cst_24 = arith.constant dense<0.000000e+00> : vector<8x384xf32>
    %43 = tpu.matmul %42, %30, %cst_24 {dimension_numbers = #tpu.dot_dimension_numbers<[1], [0], [0], [1], [0, 0, 1, 1], [], []>} : vector<8x128xbf16>, vector<128x384xbf16>, vector<8x384xf32> -> vector<8x384xf32>
    %44 = arith.addf %43, %39 : vector<8x384xf32>
    %45 = vector.extract_strided_slice %41 {offsets = [0, 0], sizes = [8, 128], strides = [1, 1]} : vector<8x384xf32> to vector<8x128xf32>
    %46 = vector.extract_strided_slice %44 {offsets = [0, 0], sizes = [8, 128], strides = [1, 1]} : vector<8x384xf32> to vector<8x128xf32>
    %47 = arith.addf %45, %46 : vector<8x128xf32>
    %48 = arith.negf %47 : vector<8x128xf32>
    %49 = math.exp %48 : vector<8x128xf32>
    %cst_25 = arith.constant 1.000000e+00 : f32
    %50 = vector.broadcast %cst_25 : f32 to vector<8x128xf32>
    %51 = arith.addf %50, %49 : vector<8x128xf32>
    %52 = arith.divf %50, %51 : vector<8x128xf32>
    %53 = vector.extract_strided_slice %41 {offsets = [0, 128], sizes = [8, 128], strides = [1, 1]} : vector<8x384xf32> to vector<8x128xf32>
    %54 = vector.extract_strided_slice %44 {offsets = [0, 128], sizes = [8, 128], strides = [1, 1]} : vector<8x384xf32> to vector<8x128xf32>
    %55 = arith.addf %53, %54 : vector<8x128xf32>
    %56 = arith.negf %55 : vector<8x128xf32>
    %57 = math.exp %56 : vector<8x128xf32>
    %cst_26 = arith.constant 1.000000e+00 : f32
    %58 = vector.broadcast %cst_26 : f32 to vector<8x128xf32>
    %59 = arith.addf %58, %57 : vector<8x128xf32>
    %60 = arith.divf %58, %59 : vector<8x128xf32>
    %61 = vector.extract_strided_slice %41 {offsets = [0, 256], sizes = [8, 128], strides = [1, 1]} : vector<8x384xf32> to vector<8x128xf32>
    %62 = vector.extract_strided_slice %44 {offsets = [0, 256], sizes = [8, 128], strides = [1, 1]} : vector<8x384xf32> to vector<8x128xf32>
    %63 = arith.mulf %52, %62 : vector<8x128xf32>
    %64 = arith.addf %61, %63 : vector<8x128xf32>
    %65 = math.tanh %64 : vector<8x128xf32>
    %cst_27 = arith.constant 1.000000e+00 : f32
    %66 = vector.broadcast %cst_27 : f32 to vector<8x128xf32>
    %67 = arith.subf %66, %60 : vector<8x128xf32>
    %68 = arith.mulf %67, %65 : vector<8x128xf32>
    %69 = arith.mulf %60, %40 : vector<8x128xf32>
    %70 = arith.addf %68, %69 : vector<8x128xf32>
    %c0_28 = arith.constant 0 : index
    %c0_29 = arith.constant 0 : index
    %71 = vector.load %arg19[%c0_28, %c0_29] : memref<64x128xf32, #tpu.memory_space<vmem>>, vector<8x128xf32>
    tpu.vector_store %arg19[%c0_28, %c0_29], %70 {strides = array<i32>} : memref<64x128xf32, #tpu.memory_space<vmem>>, vector<8x128xf32>,
    %72 = vector.extract_strided_slice %36 {offsets = [8, 0], sizes = [8, 384], strides = [1, 1]} : vector<64x384xf32> to vector<8x384xf32>
    %73 = arith.truncf %70 : vector<8x128xf32> to vector<8x128xbf16>
    %cst_30 = arith.constant dense<0.000000e+00> : vector<8x384xf32>
    %74 = tpu.matmul %73, %30, %cst_30 {dimension_numbers = #tpu.dot_dimension_numbers<[1], [0], [0], [1], [0, 0, 1, 1], [], []>} : vector<8x128xbf16>, vector<128x384xbf16>, vector<8x384xf32> -> vector<8x384xf32>
    %75 = arith.addf %74, %39 : vector<8x384xf32>
    %76 = vector.extract_strided_slice %72 {offsets = [0, 0], sizes = [8, 128], strides = [1, 1]} : vector<8x384xf32> to vector<8x128xf32>
    %77 = vector.extract_strided_slice %75 {offsets = [0, 0], sizes = [8, 128], strides = [1, 1]} : vector<8x384xf32> to vector<8x128xf32>
    %78 = arith.addf %76, %77 : vector<8x128xf32>
    %79 = arith.negf %78 : vector<8x128xf32>
    %80 = math.exp %79 : vector<8x128xf32>
    %cst_31 = arith.constant 1.000000e+00 : f32
    %81 = vector.broadcast %cst_31 : f32 to vector<8x128xf32>
    %82 = arith.addf %81, %80 : vector<8x128xf32>
    %83 = arith.divf %81, %82 : vector<8x128xf32>
    %84 = vector.extract_strided_slice %72 {offsets = [0, 128], sizes = [8, 128], strides = [1, 1]} : vector<8x384xf32> to vector<8x128xf32>
    %85 = vector.extract_strided_slice %75 {offsets = [0, 128], sizes = [8, 128], strides = [1, 1]} : vector<8x384xf32> to vector<8x128xf32>
    %86 = arith.addf %84, %85 : vector<8x128xf32>
    %87 = arith.negf %86 : vector<8x128xf32>
    %88 = math.exp %87 : vector<8x128xf32>
    %cst_32 = arith.constant 1.000000e+00 : f32
    %89 = vector.broadcast %cst_32 : f32 to vector<8x128xf32>
    %90 = arith.addf %89, %88 : vector<8x128xf32>
    %91 = arith.divf %89, %90 : vector<8x128xf32>
    %92 = vector.extract_strided_slice %72 {offsets = [0, 256], sizes = [8, 128], strides = [1, 1]} : vector<8x384xf32> to vector<8x128xf32>
    %93 = vector.extract_strided_slice %75 {offsets = [0, 256], sizes = [8, 128], strides = [1, 1]} : vector<8x384xf32> to vector<8x128xf32>
    %94 = arith.mulf %83, %93 : vector<8x128xf32>
    %95 = arith.addf %92, %94 : vector<8x128xf32>
    %96 = math.tanh %95 : vector<8x128xf32>
    %cst_33 = arith.constant 1.000000e+00 : f32
    %97 = vector.broadcast %cst_33 : f32 to vector<8x128xf32>
    %98 = arith.subf %97, %91 : vector<8x128xf32>
    %99 = arith.mulf %98, %96 : vector<8x128xf32>
    %100 = arith.mulf %91, %70 : vector<8x128xf32>
    %101 = arith.addf %99, %100 : vector<8x128xf32>
    %c8 = arith.constant 8 : index
    %c0_34 = arith.constant 0 : index
    %102 = vector.load %arg19[%c8, %c0_34] : memref<64x128xf32, #tpu.memory_space<vmem>>, vector<8x128xf32>
    tpu.vector_store %arg19[%c8, %c0_34], %101 {strides = array<i32>} : memref<64x128xf32, #tpu.memory_space<vmem>>, vector<8x128xf32>,
    %103 = vector.extract_strided_slice %36 {offsets = [16, 0], sizes = [8, 384], strides = [1, 1]} : vector<64x384xf32> to vector<8x384xf32>
    %104 = arith.truncf %101 : vector<8x128xf32> to vector<8x128xbf16>
    %cst_35 = arith.constant dense<0.000000e+00> : vector<8x384xf32>
    %105 = tpu.matmul %104, %30, %cst_35 {dimension_numbers = #tpu.dot_dimension_numbers<[1], [0], [0], [1], [0, 0, 1, 1], [], []>} : vector<8x128xbf16>, vector<128x384xbf16>, vector<8x384xf32> -> vector<8x384xf32>
    %106 = arith.addf %105, %39 : vector<8x384xf32>
    %107 = vector.extract_strided_slice %103 {offsets = [0, 0], sizes = [8, 128], strides = [1, 1]} : vector<8x384xf32> to vector<8x128xf32>
    %108 = vector.extract_strided_slice %106 {offsets = [0, 0], sizes = [8, 128], strides = [1, 1]} : vector<8x384xf32> to vector<8x128xf32>
    %109 = arith.addf %107, %108 : vector<8x128xf32>
    %110 = arith.negf %109 : vector<8x128xf32>
    %111 = math.exp %110 : vector<8x128xf32>
    %cst_36 = arith.constant 1.000000e+00 : f32
    %112 = vector.broadcast %cst_36 : f32 to vector<8x128xf32>
    %113 = arith.addf %112, %111 : vector<8x128xf32>
    %114 = arith.divf %112, %113 : vector<8x128xf32>
    %115 = vector.extract_strided_slice %103 {offsets = [0, 128], sizes = [8, 128], strides = [1, 1]} : vector<8x384xf32> to vector<8x128xf32>
    %116 = vector.extract_strided_slice %106 {offsets = [0, 128], sizes = [8, 128], strides = [1, 1]} : vector<8x384xf32> to vector<8x128xf32>
    %117 = arith.addf %115, %116 : vector<8x128xf32>
    %118 = arith.negf %117 : vector<8x128xf32>
    %119 = math.exp %118 : vector<8x128xf32>
    %cst_37 = arith.constant 1.000000e+00 : f32
    %120 = vector.broadcast %cst_37 : f32 to vector<8x128xf32>
    %121 = arith.addf %120, %119 : vector<8x128xf32>
    %122 = arith.divf %120, %121 : vector<8x128xf32>
    %123 = vector.extract_strided_slice %103 {offsets = [0, 256], sizes = [8, 128], strides = [1, 1]} : vector<8x384xf32> to vector<8x128xf32>
    %124 = vector.extract_strided_slice %106 {offsets = [0, 256], sizes = [8, 128], strides = [1, 1]} : vector<8x384xf32> to vector<8x128xf32>
    %125 = arith.mulf %114, %124 : vector<8x128xf32>
    %126 = arith.addf %123, %125 : vector<8x128xf32>
    %127 = math.tanh %126 : vector<8x128xf32>
    %cst_38 = arith.constant 1.000000e+00 : f32
    %128 = vector.broadcast %cst_38 : f32 to vector<8x128xf32>
    %129 = arith.subf %128, %122 : vector<8x128xf32>
    %130 = arith.mulf %129, %127 : vector<8x128xf32>
    %131 = arith.mulf %122, %101 : vector<8x128xf32>
    %132 = arith.addf %130, %131 : vector<8x128xf32>
    %c16 = arith.constant 16 : index
    %c0_39 = arith.constant 0 : index
    %133 = vector.load %arg19[%c16, %c0_39] : memref<64x128xf32, #tpu.memory_space<vmem>>, vector<8x128xf32>
    tpu.vector_store %arg19[%c16, %c0_39], %132 {strides = array<i32>} : memref<64x128xf32, #tpu.memory_space<vmem>>, vector<8x128xf32>,
    %134 = vector.extract_strided_slice %36 {offsets = [24, 0], sizes = [8, 384], strides = [1, 1]} : vector<64x384xf32> to vector<8x384xf32>
    %135 = arith.truncf %132 : vector<8x128xf32> to vector<8x128xbf16>
    %cst_40 = arith.constant dense<0.000000e+00> : vector<8x384xf32>
    %136 = tpu.matmul %135, %30, %cst_40 {dimension_numbers = #tpu.dot_dimension_numbers<[1], [0], [0], [1], [0, 0, 1, 1], [], []>} : vector<8x128xbf16>, vector<128x384xbf16>, vector<8x384xf32> -> vector<8x384xf32>
    %137 = arith.addf %136, %39 : vector<8x384xf32>
    %138 = vector.extract_strided_slice %134 {offsets = [0, 0], sizes = [8, 128], strides = [1, 1]} : vector<8x384xf32> to vector<8x128xf32>
    %139 = vector.extract_strided_slice %137 {offsets = [0, 0], sizes = [8, 128], strides = [1, 1]} : vector<8x384xf32> to vector<8x128xf32>
    %140 = arith.addf %138, %139 : vector<8x128xf32>
    %141 = arith.negf %140 : vector<8x128xf32>
    %142 = math.exp %141 : vector<8x128xf32>
    %cst_41 = arith.constant 1.000000e+00 : f32
    %143 = vector.broadcast %cst_41 : f32 to vector<8x128xf32>
    %144 = arith.addf %143, %142 : vector<8x128xf32>
    %145 = arith.divf %143, %144 : vector<8x128xf32>
    %146 = vector.extract_strided_slice %134 {offsets = [0, 128], sizes = [8, 128], strides = [1, 1]} : vector<8x384xf32> to vector<8x128xf32>
    %147 = vector.extract_strided_slice %137 {offsets = [0, 128], sizes = [8, 128], strides = [1, 1]} : vector<8x384xf32> to vector<8x128xf32>
    %148 = arith.addf %146, %147 : vector<8x128xf32>
    %149 = arith.negf %148 : vector<8x128xf32>
    %150 = math.exp %149 : vector<8x128xf32>
    %cst_42 = arith.constant 1.000000e+00 : f32
    %151 = vector.broadcast %cst_42 : f32 to vector<8x128xf32>
    %152 = arith.addf %151, %150 : vector<8x128xf32>
    %153 = arith.divf %151, %152 : vector<8x128xf32>
    %154 = vector.extract_strided_slice %134 {offsets = [0, 256], sizes = [8, 128], strides = [1, 1]} : vector<8x384xf32> to vector<8x128xf32>
    %155 = vector.extract_strided_slice %137 {offsets = [0, 256], sizes = [8, 128], strides = [1, 1]} : vector<8x384xf32> to vector<8x128xf32>
    %156 = arith.mulf %145, %155 : vector<8x128xf32>
    %157 = arith.addf %154, %156 : vector<8x128xf32>
    %158 = math.tanh %157 : vector<8x128xf32>
    %cst_43 = arith.constant 1.000000e+00 : f32
    %159 = vector.broadcast %cst_43 : f32 to vector<8x128xf32>
    %160 = arith.subf %159, %153 : vector<8x128xf32>
    %161 = arith.mulf %160, %158 : vector<8x128xf32>
    %162 = arith.mulf %153, %132 : vector<8x128xf32>
    %163 = arith.addf %161, %162 : vector<8x128xf32>
    %c24 = arith.constant 24 : index
    %c0_44 = arith.constant 0 : index
    %164 = vector.load %arg19[%c24, %c0_44] : memref<64x128xf32, #tpu.memory_space<vmem>>, vector<8x128xf32>
    tpu.vector_store %arg19[%c24, %c0_44], %163 {strides = array<i32>} : memref<64x128xf32, #tpu.memory_space<vmem>>, vector<8x128xf32>,
    %165 = vector.extract_strided_slice %36 {offsets = [32, 0], sizes = [8, 384], strides = [1, 1]} : vector<64x384xf32> to vector<8x384xf32>
    %166 = arith.truncf %163 : vector<8x128xf32> to vector<8x128xbf16>
    %cst_45 = arith.constant dense<0.000000e+00> : vector<8x384xf32>
    %167 = tpu.matmul %166, %30, %cst_45 {dimension_numbers = #tpu.dot_dimension_numbers<[1], [0], [0], [1], [0, 0, 1, 1], [], []>} : vector<8x128xbf16>, vector<128x384xbf16>, vector<8x384xf32> -> vector<8x384xf32>
    %168 = arith.addf %167, %39 : vector<8x384xf32>
    %169 = vector.extract_strided_slice %165 {offsets = [0, 0], sizes = [8, 128], strides = [1, 1]} : vector<8x384xf32> to vector<8x128xf32>
    %170 = vector.extract_strided_slice %168 {offsets = [0, 0], sizes = [8, 128], strides = [1, 1]} : vector<8x384xf32> to vector<8x128xf32>
    %171 = arith.addf %169, %170 : vector<8x128xf32>
    %172 = arith.negf %171 : vector<8x128xf32>
    %173 = math.exp %172 : vector<8x128xf32>
    %cst_46 = arith.constant 1.000000e+00 : f32
    %174 = vector.broadcast %cst_46 : f32 to vector<8x128xf32>
    %175 = arith.addf %174, %173 : vector<8x128xf32>
    %176 = arith.divf %174, %175 : vector<8x128xf32>
    %177 = vector.extract_strided_slice %165 {offsets = [0, 128], sizes = [8, 128], strides = [1, 1]} : vector<8x384xf32> to vector<8x128xf32>
    %178 = vector.extract_strided_slice %168 {offsets = [0, 128], sizes = [8, 128], strides = [1, 1]} : vector<8x384xf32> to vector<8x128xf32>
    %179 = arith.addf %177, %178 : vector<8x128xf32>
    %180 = arith.negf %179 : vector<8x128xf32>
    %181 = math.exp %180 : vector<8x128xf32>
    %cst_47 = arith.constant 1.000000e+00 : f32
    %182 = vector.broadcast %cst_47 : f32 to vector<8x128xf32>
    %183 = arith.addf %182, %181 : vector<8x128xf32>
    %184 = arith.divf %182, %183 : vector<8x128xf32>
    %185 = vector.extract_strided_slice %165 {offsets = [0, 256], sizes = [8, 128], strides = [1, 1]} : vector<8x384xf32> to vector<8x128xf32>
    %186 = vector.extract_strided_slice %168 {offsets = [0, 256], sizes = [8, 128], strides = [1, 1]} : vector<8x384xf32> to vector<8x128xf32>
    %187 = arith.mulf %176, %186 : vector<8x128xf32>
    %188 = arith.addf %185, %187 : vector<8x128xf32>
    %189 = math.tanh %188 : vector<8x128xf32>
    %cst_48 = arith.constant 1.000000e+00 : f32
    %190 = vector.broadcast %cst_48 : f32 to vector<8x128xf32>
    %191 = arith.subf %190, %184 : vector<8x128xf32>
    %192 = arith.mulf %191, %189 : vector<8x128xf32>
    %193 = arith.mulf %184, %163 : vector<8x128xf32>
    %194 = arith.addf %192, %193 : vector<8x128xf32>
    %c32 = arith.constant 32 : index
    %c0_49 = arith.constant 0 : index
    %195 = vector.load %arg19[%c32, %c0_49] : memref<64x128xf32, #tpu.memory_space<vmem>>, vector<8x128xf32>
    tpu.vector_store %arg19[%c32, %c0_49], %194 {strides = array<i32>} : memref<64x128xf32, #tpu.memory_space<vmem>>, vector<8x128xf32>,
    %196 = vector.extract_strided_slice %36 {offsets = [40, 0], sizes = [8, 384], strides = [1, 1]} : vector<64x384xf32> to vector<8x384xf32>
    %197 = arith.truncf %194 : vector<8x128xf32> to vector<8x128xbf16>
    %cst_50 = arith.constant dense<0.000000e+00> : vector<8x384xf32>
    %198 = tpu.matmul %197, %30, %cst_50 {dimension_numbers = #tpu.dot_dimension_numbers<[1], [0], [0], [1], [0, 0, 1, 1], [], []>} : vector<8x128xbf16>, vector<128x384xbf16>, vector<8x384xf32> -> vector<8x384xf32>
    %199 = arith.addf %198, %39 : vector<8x384xf32>
    %200 = vector.extract_strided_slice %196 {offsets = [0, 0], sizes = [8, 128], strides = [1, 1]} : vector<8x384xf32> to vector<8x128xf32>
    %201 = vector.extract_strided_slice %199 {offsets = [0, 0], sizes = [8, 128], strides = [1, 1]} : vector<8x384xf32> to vector<8x128xf32>
    %202 = arith.addf %200, %201 : vector<8x128xf32>
    %203 = arith.negf %202 : vector<8x128xf32>
    %204 = math.exp %203 : vector<8x128xf32>
    %cst_51 = arith.constant 1.000000e+00 : f32
    %205 = vector.broadcast %cst_51 : f32 to vector<8x128xf32>
    %206 = arith.addf %205, %204 : vector<8x128xf32>
    %207 = arith.divf %205, %206 : vector<8x128xf32>
    %208 = vector.extract_strided_slice %196 {offsets = [0, 128], sizes = [8, 128], strides = [1, 1]} : vector<8x384xf32> to vector<8x128xf32>
    %209 = vector.extract_strided_slice %199 {offsets = [0, 128], sizes = [8, 128], strides = [1, 1]} : vector<8x384xf32> to vector<8x128xf32>
    %210 = arith.addf %208, %209 : vector<8x128xf32>
    %211 = arith.negf %210 : vector<8x128xf32>
    %212 = math.exp %211 : vector<8x128xf32>
    %cst_52 = arith.constant 1.000000e+00 : f32
    %213 = vector.broadcast %cst_52 : f32 to vector<8x128xf32>
    %214 = arith.addf %213, %212 : vector<8x128xf32>
    %215 = arith.divf %213, %214 : vector<8x128xf32>
    %216 = vector.extract_strided_slice %196 {offsets = [0, 256], sizes = [8, 128], strides = [1, 1]} : vector<8x384xf32> to vector<8x128xf32>
    %217 = vector.extract_strided_slice %199 {offsets = [0, 256], sizes = [8, 128], strides = [1, 1]} : vector<8x384xf32> to vector<8x128xf32>
    %218 = arith.mulf %207, %217 : vector<8x128xf32>
    %219 = arith.addf %216, %218 : vector<8x128xf32>
    %220 = math.tanh %219 : vector<8x128xf32>
    %cst_53 = arith.constant 1.000000e+00 : f32
    %221 = vector.broadcast %cst_53 : f32 to vector<8x128xf32>
    %222 = arith.subf %221, %215 : vector<8x128xf32>
    %223 = arith.mulf %222, %220 : vector<8x128xf32>
    %224 = arith.mulf %215, %194 : vector<8x128xf32>
    %225 = arith.addf %223, %224 : vector<8x128xf32>
    %c40 = arith.constant 40 : index
    %c0_54 = arith.constant 0 : index
    %226 = vector.load %arg19[%c40, %c0_54] : memref<64x128xf32, #tpu.memory_space<vmem>>, vector<8x128xf32>
    tpu.vector_store %arg19[%c40, %c0_54], %225 {strides = array<i32>} : memref<64x128xf32, #tpu.memory_space<vmem>>, vector<8x128xf32>,
    %227 = vector.extract_strided_slice %36 {offsets = [48, 0], sizes = [8, 384], strides = [1, 1]} : vector<64x384xf32> to vector<8x384xf32>
    %228 = arith.truncf %225 : vector<8x128xf32> to vector<8x128xbf16>
    %cst_55 = arith.constant dense<0.000000e+00> : vector<8x384xf32>
    %229 = tpu.matmul %228, %30, %cst_55 {dimension_numbers = #tpu.dot_dimension_numbers<[1], [0], [0], [1], [0, 0, 1, 1], [], []>} : vector<8x128xbf16>, vector<128x384xbf16>, vector<8x384xf32> -> vector<8x384xf32>
    %230 = arith.addf %229, %39 : vector<8x384xf32>
    %231 = vector.extract_strided_slice %227 {offsets = [0, 0], sizes = [8, 128], strides = [1, 1]} : vector<8x384xf32> to vector<8x128xf32>
    %232 = vector.extract_strided_slice %230 {offsets = [0, 0], sizes = [8, 128], strides = [1, 1]} : vector<8x384xf32> to vector<8x128xf32>
    %233 = arith.addf %231, %232 : vector<8x128xf32>
    %234 = arith.negf %233 : vector<8x128xf32>
    %235 = math.exp %234 : vector<8x128xf32>
    %cst_56 = arith.constant 1.000000e+00 : f32
    %236 = vector.broadcast %cst_56 : f32 to vector<8x128xf32>
    %237 = arith.addf %236, %235 : vector<8x128xf32>
    %238 = arith.divf %236, %237 : vector<8x128xf32>
    %239 = vector.extract_strided_slice %227 {offsets = [0, 128], sizes = [8, 128], strides = [1, 1]} : vector<8x384xf32> to vector<8x128xf32>
    %240 = vector.extract_strided_slice %230 {offsets = [0, 128], sizes = [8, 128], strides = [1, 1]} : vector<8x384xf32> to vector<8x128xf32>
    %241 = arith.addf %239, %240 : vector<8x128xf32>
    %242 = arith.negf %241 : vector<8x128xf32>
    %243 = math.exp %242 : vector<8x128xf32>
    %cst_57 = arith.constant 1.000000e+00 : f32
    %244 = vector.broadcast %cst_57 : f32 to vector<8x128xf32>
    %245 = arith.addf %244, %243 : vector<8x128xf32>
    %246 = arith.divf %244, %245 : vector<8x128xf32>
    %247 = vector.extract_strided_slice %227 {offsets = [0, 256], sizes = [8, 128], strides = [1, 1]} : vector<8x384xf32> to vector<8x128xf32>
    %248 = vector.extract_strided_slice %230 {offsets = [0, 256], sizes = [8, 128], strides = [1, 1]} : vector<8x384xf32> to vector<8x128xf32>
    %249 = arith.mulf %238, %248 : vector<8x128xf32>
    %250 = arith.addf %247, %249 : vector<8x128xf32>
    %251 = math.tanh %250 : vector<8x128xf32>
    %cst_58 = arith.constant 1.000000e+00 : f32
    %252 = vector.broadcast %cst_58 : f32 to vector<8x128xf32>
    %253 = arith.subf %252, %246 : vector<8x128xf32>
    %254 = arith.mulf %253, %251 : vector<8x128xf32>
    %255 = arith.mulf %246, %225 : vector<8x128xf32>
    %256 = arith.addf %254, %255 : vector<8x128xf32>
    %c48 = arith.constant 48 : index
    %c0_59 = arith.constant 0 : index
    %257 = vector.load %arg19[%c48, %c0_59] : memref<64x128xf32, #tpu.memory_space<vmem>>, vector<8x128xf32>
    tpu.vector_store %arg19[%c48, %c0_59], %256 {strides = array<i32>} : memref<64x128xf32, #tpu.memory_space<vmem>>, vector<8x128xf32>,
    %258 = vector.extract_strided_slice %36 {offsets = [56, 0], sizes = [8, 384], strides = [1, 1]} : vector<64x384xf32> to vector<8x384xf32>
    %259 = arith.truncf %256 : vector<8x128xf32> to vector<8x128xbf16>
    %cst_60 = arith.constant dense<0.000000e+00> : vector<8x384xf32>
    %260 = tpu.matmul %259, %30, %cst_60 {dimension_numbers = #tpu.dot_dimension_numbers<[1], [0], [0], [1], [0, 0, 1, 1], [], []>} : vector<8x128xbf16>, vector<128x384xbf16>, vector<8x384xf32> -> vector<8x384xf32>
    %261 = arith.addf %260, %39 : vector<8x384xf32>
    %262 = vector.extract_strided_slice %258 {offsets = [0, 0], sizes = [8, 128], strides = [1, 1]} : vector<8x384xf32> to vector<8x128xf32>
    %263 = vector.extract_strided_slice %261 {offsets = [0, 0], sizes = [8, 128], strides = [1, 1]} : vector<8x384xf32> to vector<8x128xf32>
    %264 = arith.addf %262, %263 : vector<8x128xf32>
    %265 = arith.negf %264 : vector<8x128xf32>
    %266 = math.exp %265 : vector<8x128xf32>
    %cst_61 = arith.constant 1.000000e+00 : f32
    %267 = vector.broadcast %cst_61 : f32 to vector<8x128xf32>
    %268 = arith.addf %267, %266 : vector<8x128xf32>
    %269 = arith.divf %267, %268 : vector<8x128xf32>
    %270 = vector.extract_strided_slice %258 {offsets = [0, 128], sizes = [8, 128], strides = [1, 1]} : vector<8x384xf32> to vector<8x128xf32>
    %271 = vector.extract_strided_slice %261 {offsets = [0, 128], sizes = [8, 128], strides = [1, 1]} : vector<8x384xf32> to vector<8x128xf32>
    %272 = arith.addf %270, %271 : vector<8x128xf32>
    %273 = arith.negf %272 : vector<8x128xf32>
    %274 = math.exp %273 : vector<8x128xf32>
    %cst_62 = arith.constant 1.000000e+00 : f32
    %275 = vector.broadcast %cst_62 : f32 to vector<8x128xf32>
    %276 = arith.addf %275, %274 : vector<8x128xf32>
    %277 = arith.divf %275, %276 : vector<8x128xf32>
    %278 = vector.extract_strided_slice %258 {offsets = [0, 256], sizes = [8, 128], strides = [1, 1]} : vector<8x384xf32> to vector<8x128xf32>
    %279 = vector.extract_strided_slice %261 {offsets = [0, 256], sizes = [8, 128], strides = [1, 1]} : vector<8x384xf32> to vector<8x128xf32>
    %280 = arith.mulf %269, %279 : vector<8x128xf32>
    %281 = arith.addf %278, %280 : vector<8x128xf32>
    %282 = math.tanh %281 : vector<8x128xf32>
    %cst_63 = arith.constant 1.000000e+00 : f32
    %283 = vector.broadcast %cst_63 : f32 to vector<8x128xf32>
    %284 = arith.subf %283, %277 : vector<8x128xf32>
    %285 = arith.mulf %284, %282 : vector<8x128xf32>
    %286 = arith.mulf %277, %256 : vector<8x128xf32>
    %287 = arith.addf %285, %286 : vector<8x128xf32>
    %c56 = arith.constant 56 : index
    %c0_64 = arith.constant 0 : index
    %288 = vector.load %arg19[%c56, %c0_64] : memref<64x128xf32, #tpu.memory_space<vmem>>, vector<8x128xf32>
    tpu.vector_store %arg19[%c56, %c0_64], %287 {strides = array<i32>} : memref<64x128xf32, #tpu.memory_space<vmem>>, vector<8x128xf32>,
    %c0_65 = arith.constant 0 : index
    %c0_66 = arith.constant 0 : index
    %289 = vector.load %arg19[%c0_65, %c0_66] : memref<64x128xf32, #tpu.memory_space<vmem>>, vector<64x128xf32>
    %c0_67 = arith.constant 0 : index
    %c0_68 = arith.constant 0 : index
    %290 = vector.load %arg11[%c0_67, %c0_68] : memref<128x384xbf16, #tpu.memory_space<vmem>>, vector<128x384xbf16>
    %291 = arith.truncf %289 : vector<64x128xf32> to vector<64x128xbf16>
    %c0_69 = arith.constant 0 : index
    %c0_70 = arith.constant 0 : index
    %292 = vector.load %arg10[%c0_69, %c0_70] : memref<128x384xbf16, #tpu.memory_space<vmem>>, vector<128x384xbf16>
    %cst_71 = arith.constant dense<0.000000e+00> : vector<64x384xf32>
    %293 = tpu.matmul %291, %292, %cst_71 {dimension_numbers = #tpu.dot_dimension_numbers<[1], [0], [0], [1], [0, 0, 1, 1], [], []>} : vector<64x128xbf16>, vector<128x384xbf16>, vector<64x384xf32> -> vector<64x384xf32>
    %c0_72 = arith.constant 0 : index
    %c0_73 = arith.constant 0 : index
    %294 = vector.load %arg12[%c0_72, %c0_73] : memref<1x384xf32, #tpu.memory_space<vmem>>, vector<1x384xf32>
    %295 = vector.broadcast %294 : vector<1x384xf32> to vector<64x384xf32>
    %296 = arith.addf %293, %295 : vector<64x384xf32>
    %c0_74 = arith.constant 0 : index
    %c0_75 = arith.constant 0 : index
    %297 = vector.load %arg13[%c0_74, %c0_75] : memref<1x384xf32, #tpu.memory_space<vmem>>, vector<1x384xf32>
    %298 = vector.shape_cast %297 : vector<1x384xf32> to vector<1x384xf32>
    %299 = vector.broadcast %298 : vector<1x384xf32> to vector<8x384xf32>
    %cst_76 = arith.constant 0.000000e+00 : f32
    %300 = vector.broadcast %cst_76 : f32 to vector<8x128xf32>
    %301 = vector.extract_strided_slice %296 {offsets = [0, 0], sizes = [8, 384], strides = [1, 1]} : vector<64x384xf32> to vector<8x384xf32>
    %302 = arith.truncf %300 : vector<8x128xf32> to vector<8x128xbf16>
    %cst_77 = arith.constant dense<0.000000e+00> : vector<8x384xf32>
    %303 = tpu.matmul %302, %290, %cst_77 {dimension_numbers = #tpu.dot_dimension_numbers<[1], [0], [0], [1], [0, 0, 1, 1], [], []>} : vector<8x128xbf16>, vector<128x384xbf16>, vector<8x384xf32> -> vector<8x384xf32>
    %304 = arith.addf %303, %299 : vector<8x384xf32>
    %305 = vector.extract_strided_slice %301 {offsets = [0, 0], sizes = [8, 128], strides = [1, 1]} : vector<8x384xf32> to vector<8x128xf32>
    %306 = vector.extract_strided_slice %304 {offsets = [0, 0], sizes = [8, 128], strides = [1, 1]} : vector<8x384xf32> to vector<8x128xf32>
    %307 = arith.addf %305, %306 : vector<8x128xf32>
    %308 = arith.negf %307 : vector<8x128xf32>
    %309 = math.exp %308 : vector<8x128xf32>
    %cst_78 = arith.constant 1.000000e+00 : f32
    %310 = vector.broadcast %cst_78 : f32 to vector<8x128xf32>
    %311 = arith.addf %310, %309 : vector<8x128xf32>
    %312 = arith.divf %310, %311 : vector<8x128xf32>
    %313 = vector.extract_strided_slice %301 {offsets = [0, 128], sizes = [8, 128], strides = [1, 1]} : vector<8x384xf32> to vector<8x128xf32>
    %314 = vector.extract_strided_slice %304 {offsets = [0, 128], sizes = [8, 128], strides = [1, 1]} : vector<8x384xf32> to vector<8x128xf32>
    %315 = arith.addf %313, %314 : vector<8x128xf32>
    %316 = arith.negf %315 : vector<8x128xf32>
    %317 = math.exp %316 : vector<8x128xf32>
    %cst_79 = arith.constant 1.000000e+00 : f32
    %318 = vector.broadcast %cst_79 : f32 to vector<8x128xf32>
    %319 = arith.addf %318, %317 : vector<8x128xf32>
    %320 = arith.divf %318, %319 : vector<8x128xf32>
    %321 = vector.extract_strided_slice %301 {offsets = [0, 256], sizes = [8, 128], strides = [1, 1]} : vector<8x384xf32> to vector<8x128xf32>
    %322 = vector.extract_strided_slice %304 {offsets = [0, 256], sizes = [8, 128], strides = [1, 1]} : vector<8x384xf32> to vector<8x128xf32>
    %323 = arith.mulf %312, %322 : vector<8x128xf32>
    %324 = arith.addf %321, %323 : vector<8x128xf32>
    %325 = math.tanh %324 : vector<8x128xf32>
    %cst_80 = arith.constant 1.000000e+00 : f32
    %326 = vector.broadcast %cst_80 : f32 to vector<8x128xf32>
    %327 = arith.subf %326, %320 : vector<8x128xf32>
    %328 = arith.mulf %327, %325 : vector<8x128xf32>
    %329 = arith.mulf %320, %300 : vector<8x128xf32>
    %330 = arith.addf %328, %329 : vector<8x128xf32>
    %331 = vector.extract_strided_slice %296 {offsets = [8, 0], sizes = [8, 384], strides = [1, 1]} : vector<64x384xf32> to vector<8x384xf32>
    %332 = arith.truncf %330 : vector<8x128xf32> to vector<8x128xbf16>
    %cst_81 = arith.constant dense<0.000000e+00> : vector<8x384xf32>
    %333 = tpu.matmul %332, %290, %cst_81 {dimension_numbers = #tpu.dot_dimension_numbers<[1], [0], [0], [1], [0, 0, 1, 1], [], []>} : vector<8x128xbf16>, vector<128x384xbf16>, vector<8x384xf32> -> vector<8x384xf32>
    %334 = arith.addf %333, %299 : vector<8x384xf32>
    %335 = vector.extract_strided_slice %331 {offsets = [0, 0], sizes = [8, 128], strides = [1, 1]} : vector<8x384xf32> to vector<8x128xf32>
    %336 = vector.extract_strided_slice %334 {offsets = [0, 0], sizes = [8, 128], strides = [1, 1]} : vector<8x384xf32> to vector<8x128xf32>
    %337 = arith.addf %335, %336 : vector<8x128xf32>
    %338 = arith.negf %337 : vector<8x128xf32>
    %339 = math.exp %338 : vector<8x128xf32>
    %cst_82 = arith.constant 1.000000e+00 : f32
    %340 = vector.broadcast %cst_82 : f32 to vector<8x128xf32>
    %341 = arith.addf %340, %339 : vector<8x128xf32>
    %342 = arith.divf %340, %341 : vector<8x128xf32>
    %343 = vector.extract_strided_slice %331 {offsets = [0, 128], sizes = [8, 128], strides = [1, 1]} : vector<8x384xf32> to vector<8x128xf32>
    %344 = vector.extract_strided_slice %334 {offsets = [0, 128], sizes = [8, 128], strides = [1, 1]} : vector<8x384xf32> to vector<8x128xf32>
    %345 = arith.addf %343, %344 : vector<8x128xf32>
    %346 = arith.negf %345 : vector<8x128xf32>
    %347 = math.exp %346 : vector<8x128xf32>
    %cst_83 = arith.constant 1.000000e+00 : f32
    %348 = vector.broadcast %cst_83 : f32 to vector<8x128xf32>
    %349 = arith.addf %348, %347 : vector<8x128xf32>
    %350 = arith.divf %348, %349 : vector<8x128xf32>
    %351 = vector.extract_strided_slice %331 {offsets = [0, 256], sizes = [8, 128], strides = [1, 1]} : vector<8x384xf32> to vector<8x128xf32>
    %352 = vector.extract_strided_slice %334 {offsets = [0, 256], sizes = [8, 128], strides = [1, 1]} : vector<8x384xf32> to vector<8x128xf32>
    %353 = arith.mulf %342, %352 : vector<8x128xf32>
    %354 = arith.addf %351, %353 : vector<8x128xf32>
    %355 = math.tanh %354 : vector<8x128xf32>
    %cst_84 = arith.constant 1.000000e+00 : f32
    %356 = vector.broadcast %cst_84 : f32 to vector<8x128xf32>
    %357 = arith.subf %356, %350 : vector<8x128xf32>
    %358 = arith.mulf %357, %355 : vector<8x128xf32>
    %359 = arith.mulf %350, %330 : vector<8x128xf32>
    %360 = arith.addf %358, %359 : vector<8x128xf32>
    %361 = vector.extract_strided_slice %296 {offsets = [16, 0], sizes = [8, 384], strides = [1, 1]} : vector<64x384xf32> to vector<8x384xf32>
    %362 = arith.truncf %360 : vector<8x128xf32> to vector<8x128xbf16>
    %cst_85 = arith.constant dense<0.000000e+00> : vector<8x384xf32>
    %363 = tpu.matmul %362, %290, %cst_85 {dimension_numbers = #tpu.dot_dimension_numbers<[1], [0], [0], [1], [0, 0, 1, 1], [], []>} : vector<8x128xbf16>, vector<128x384xbf16>, vector<8x384xf32> -> vector<8x384xf32>
    %364 = arith.addf %363, %299 : vector<8x384xf32>
    %365 = vector.extract_strided_slice %361 {offsets = [0, 0], sizes = [8, 128], strides = [1, 1]} : vector<8x384xf32> to vector<8x128xf32>
    %366 = vector.extract_strided_slice %364 {offsets = [0, 0], sizes = [8, 128], strides = [1, 1]} : vector<8x384xf32> to vector<8x128xf32>
    %367 = arith.addf %365, %366 : vector<8x128xf32>
    %368 = arith.negf %367 : vector<8x128xf32>
    %369 = math.exp %368 : vector<8x128xf32>
    %cst_86 = arith.constant 1.000000e+00 : f32
    %370 = vector.broadcast %cst_86 : f32 to vector<8x128xf32>
    %371 = arith.addf %370, %369 : vector<8x128xf32>
    %372 = arith.divf %370, %371 : vector<8x128xf32>
    %373 = vector.extract_strided_slice %361 {offsets = [0, 128], sizes = [8, 128], strides = [1, 1]} : vector<8x384xf32> to vector<8x128xf32>
    %374 = vector.extract_strided_slice %364 {offsets = [0, 128], sizes = [8, 128], strides = [1, 1]} : vector<8x384xf32> to vector<8x128xf32>
    %375 = arith.addf %373, %374 : vector<8x128xf32>
    %376 = arith.negf %375 : vector<8x128xf32>
    %377 = math.exp %376 : vector<8x128xf32>
    %cst_87 = arith.constant 1.000000e+00 : f32
    %378 = vector.broadcast %cst_87 : f32 to vector<8x128xf32>
    %379 = arith.addf %378, %377 : vector<8x128xf32>
    %380 = arith.divf %378, %379 : vector<8x128xf32>
    %381 = vector.extract_strided_slice %361 {offsets = [0, 256], sizes = [8, 128], strides = [1, 1]} : vector<8x384xf32> to vector<8x128xf32>
    %382 = vector.extract_strided_slice %364 {offsets = [0, 256], sizes = [8, 128], strides = [1, 1]} : vector<8x384xf32> to vector<8x128xf32>
    %383 = arith.mulf %372, %382 : vector<8x128xf32>
    %384 = arith.addf %381, %383 : vector<8x128xf32>
    %385 = math.tanh %384 : vector<8x128xf32>
    %cst_88 = arith.constant 1.000000e+00 : f32
    %386 = vector.broadcast %cst_88 : f32 to vector<8x128xf32>
    %387 = arith.subf %386, %380 : vector<8x128xf32>
    %388 = arith.mulf %387, %385 : vector<8x128xf32>
    %389 = arith.mulf %380, %360 : vector<8x128xf32>
    %390 = arith.addf %388, %389 : vector<8x128xf32>
    %391 = vector.extract_strided_slice %296 {offsets = [24, 0], sizes = [8, 384], strides = [1, 1]} : vector<64x384xf32> to vector<8x384xf32>
    %392 = arith.truncf %390 : vector<8x128xf32> to vector<8x128xbf16>
    %cst_89 = arith.constant dense<0.000000e+00> : vector<8x384xf32>
    %393 = tpu.matmul %392, %290, %cst_89 {dimension_numbers = #tpu.dot_dimension_numbers<[1], [0], [0], [1], [0, 0, 1, 1], [], []>} : vector<8x128xbf16>, vector<128x384xbf16>, vector<8x384xf32> -> vector<8x384xf32>
    %394 = arith.addf %393, %299 : vector<8x384xf32>
    %395 = vector.extract_strided_slice %391 {offsets = [0, 0], sizes = [8, 128], strides = [1, 1]} : vector<8x384xf32> to vector<8x128xf32>
    %396 = vector.extract_strided_slice %394 {offsets = [0, 0], sizes = [8, 128], strides = [1, 1]} : vector<8x384xf32> to vector<8x128xf32>
    %397 = arith.addf %395, %396 : vector<8x128xf32>
    %398 = arith.negf %397 : vector<8x128xf32>
    %399 = math.exp %398 : vector<8x128xf32>
    %cst_90 = arith.constant 1.000000e+00 : f32
    %400 = vector.broadcast %cst_90 : f32 to vector<8x128xf32>
    %401 = arith.addf %400, %399 : vector<8x128xf32>
    %402 = arith.divf %400, %401 : vector<8x128xf32>
    %403 = vector.extract_strided_slice %391 {offsets = [0, 128], sizes = [8, 128], strides = [1, 1]} : vector<8x384xf32> to vector<8x128xf32>
    %404 = vector.extract_strided_slice %394 {offsets = [0, 128], sizes = [8, 128], strides = [1, 1]} : vector<8x384xf32> to vector<8x128xf32>
    %405 = arith.addf %403, %404 : vector<8x128xf32>
    %406 = arith.negf %405 : vector<8x128xf32>
    %407 = math.exp %406 : vector<8x128xf32>
    %cst_91 = arith.constant 1.000000e+00 : f32
    %408 = vector.broadcast %cst_91 : f32 to vector<8x128xf32>
    %409 = arith.addf %408, %407 : vector<8x128xf32>
    %410 = arith.divf %408, %409 : vector<8x128xf32>
    %411 = vector.extract_strided_slice %391 {offsets = [0, 256], sizes = [8, 128], strides = [1, 1]} : vector<8x384xf32> to vector<8x128xf32>
    %412 = vector.extract_strided_slice %394 {offsets = [0, 256], sizes = [8, 128], strides = [1, 1]} : vector<8x384xf32> to vector<8x128xf32>
    %413 = arith.mulf %402, %412 : vector<8x128xf32>
    %414 = arith.addf %411, %413 : vector<8x128xf32>
    %415 = math.tanh %414 : vector<8x128xf32>
    %cst_92 = arith.constant 1.000000e+00 : f32
    %416 = vector.broadcast %cst_92 : f32 to vector<8x128xf32>
    %417 = arith.subf %416, %410 : vector<8x128xf32>
    %418 = arith.mulf %417, %415 : vector<8x128xf32>
    %419 = arith.mulf %410, %390 : vector<8x128xf32>
    %420 = arith.addf %418, %419 : vector<8x128xf32>
    %421 = vector.extract_strided_slice %296 {offsets = [32, 0], sizes = [8, 384], strides = [1, 1]} : vector<64x384xf32> to vector<8x384xf32>
    %422 = arith.truncf %420 : vector<8x128xf32> to vector<8x128xbf16>
    %cst_93 = arith.constant dense<0.000000e+00> : vector<8x384xf32>
    %423 = tpu.matmul %422, %290, %cst_93 {dimension_numbers = #tpu.dot_dimension_numbers<[1], [0], [0], [1], [0, 0, 1, 1], [], []>} : vector<8x128xbf16>, vector<128x384xbf16>, vector<8x384xf32> -> vector<8x384xf32>
    %424 = arith.addf %423, %299 : vector<8x384xf32>
    %425 = vector.extract_strided_slice %421 {offsets = [0, 0], sizes = [8, 128], strides = [1, 1]} : vector<8x384xf32> to vector<8x128xf32>
    %426 = vector.extract_strided_slice %424 {offsets = [0, 0], sizes = [8, 128], strides = [1, 1]} : vector<8x384xf32> to vector<8x128xf32>
    %427 = arith.addf %425, %426 : vector<8x128xf32>
    %428 = arith.negf %427 : vector<8x128xf32>
    %429 = math.exp %428 : vector<8x128xf32>
    %cst_94 = arith.constant 1.000000e+00 : f32
    %430 = vector.broadcast %cst_94 : f32 to vector<8x128xf32>
    %431 = arith.addf %430, %429 : vector<8x128xf32>
    %432 = arith.divf %430, %431 : vector<8x128xf32>
    %433 = vector.extract_strided_slice %421 {offsets = [0, 128], sizes = [8, 128], strides = [1, 1]} : vector<8x384xf32> to vector<8x128xf32>
    %434 = vector.extract_strided_slice %424 {offsets = [0, 128], sizes = [8, 128], strides = [1, 1]} : vector<8x384xf32> to vector<8x128xf32>
    %435 = arith.addf %433, %434 : vector<8x128xf32>
    %436 = arith.negf %435 : vector<8x128xf32>
    %437 = math.exp %436 : vector<8x128xf32>
    %cst_95 = arith.constant 1.000000e+00 : f32
    %438 = vector.broadcast %cst_95 : f32 to vector<8x128xf32>
    %439 = arith.addf %438, %437 : vector<8x128xf32>
    %440 = arith.divf %438, %439 : vector<8x128xf32>
    %441 = vector.extract_strided_slice %421 {offsets = [0, 256], sizes = [8, 128], strides = [1, 1]} : vector<8x384xf32> to vector<8x128xf32>
    %442 = vector.extract_strided_slice %424 {offsets = [0, 256], sizes = [8, 128], strides = [1, 1]} : vector<8x384xf32> to vector<8x128xf32>
    %443 = arith.mulf %432, %442 : vector<8x128xf32>
    %444 = arith.addf %441, %443 : vector<8x128xf32>
    %445 = math.tanh %444 : vector<8x128xf32>
    %cst_96 = arith.constant 1.000000e+00 : f32
    %446 = vector.broadcast %cst_96 : f32 to vector<8x128xf32>
    %447 = arith.subf %446, %440 : vector<8x128xf32>
    %448 = arith.mulf %447, %445 : vector<8x128xf32>
    %449 = arith.mulf %440, %420 : vector<8x128xf32>
    %450 = arith.addf %448, %449 : vector<8x128xf32>
    %451 = vector.extract_strided_slice %296 {offsets = [40, 0], sizes = [8, 384], strides = [1, 1]} : vector<64x384xf32> to vector<8x384xf32>
    %452 = arith.truncf %450 : vector<8x128xf32> to vector<8x128xbf16>
    %cst_97 = arith.constant dense<0.000000e+00> : vector<8x384xf32>
    %453 = tpu.matmul %452, %290, %cst_97 {dimension_numbers = #tpu.dot_dimension_numbers<[1], [0], [0], [1], [0, 0, 1, 1], [], []>} : vector<8x128xbf16>, vector<128x384xbf16>, vector<8x384xf32> -> vector<8x384xf32>
    %454 = arith.addf %453, %299 : vector<8x384xf32>
    %455 = vector.extract_strided_slice %451 {offsets = [0, 0], sizes = [8, 128], strides = [1, 1]} : vector<8x384xf32> to vector<8x128xf32>
    %456 = vector.extract_strided_slice %454 {offsets = [0, 0], sizes = [8, 128], strides = [1, 1]} : vector<8x384xf32> to vector<8x128xf32>
    %457 = arith.addf %455, %456 : vector<8x128xf32>
    %458 = arith.negf %457 : vector<8x128xf32>
    %459 = math.exp %458 : vector<8x128xf32>
    %cst_98 = arith.constant 1.000000e+00 : f32
    %460 = vector.broadcast %cst_98 : f32 to vector<8x128xf32>
    %461 = arith.addf %460, %459 : vector<8x128xf32>
    %462 = arith.divf %460, %461 : vector<8x128xf32>
    %463 = vector.extract_strided_slice %451 {offsets = [0, 128], sizes = [8, 128], strides = [1, 1]} : vector<8x384xf32> to vector<8x128xf32>
    %464 = vector.extract_strided_slice %454 {offsets = [0, 128], sizes = [8, 128], strides = [1, 1]} : vector<8x384xf32> to vector<8x128xf32>
    %465 = arith.addf %463, %464 : vector<8x128xf32>
    %466 = arith.negf %465 : vector<8x128xf32>
    %467 = math.exp %466 : vector<8x128xf32>
    %cst_99 = arith.constant 1.000000e+00 : f32
    %468 = vector.broadcast %cst_99 : f32 to vector<8x128xf32>
    %469 = arith.addf %468, %467 : vector<8x128xf32>
    %470 = arith.divf %468, %469 : vector<8x128xf32>
    %471 = vector.extract_strided_slice %451 {offsets = [0, 256], sizes = [8, 128], strides = [1, 1]} : vector<8x384xf32> to vector<8x128xf32>
    %472 = vector.extract_strided_slice %454 {offsets = [0, 256], sizes = [8, 128], strides = [1, 1]} : vector<8x384xf32> to vector<8x128xf32>
    %473 = arith.mulf %462, %472 : vector<8x128xf32>
    %474 = arith.addf %471, %473 : vector<8x128xf32>
    %475 = math.tanh %474 : vector<8x128xf32>
    %cst_100 = arith.constant 1.000000e+00 : f32
    %476 = vector.broadcast %cst_100 : f32 to vector<8x128xf32>
    %477 = arith.subf %476, %470 : vector<8x128xf32>
    %478 = arith.mulf %477, %475 : vector<8x128xf32>
    %479 = arith.mulf %470, %450 : vector<8x128xf32>
    %480 = arith.addf %478, %479 : vector<8x128xf32>
    %481 = vector.extract_strided_slice %296 {offsets = [48, 0], sizes = [8, 384], strides = [1, 1]} : vector<64x384xf32> to vector<8x384xf32>
    %482 = arith.truncf %480 : vector<8x128xf32> to vector<8x128xbf16>
    %cst_101 = arith.constant dense<0.000000e+00> : vector<8x384xf32>
    %483 = tpu.matmul %482, %290, %cst_101 {dimension_numbers = #tpu.dot_dimension_numbers<[1], [0], [0], [1], [0, 0, 1, 1], [], []>} : vector<8x128xbf16>, vector<128x384xbf16>, vector<8x384xf32> -> vector<8x384xf32>
    %484 = arith.addf %483, %299 : vector<8x384xf32>
    %485 = vector.extract_strided_slice %481 {offsets = [0, 0], sizes = [8, 128], strides = [1, 1]} : vector<8x384xf32> to vector<8x128xf32>
    %486 = vector.extract_strided_slice %484 {offsets = [0, 0], sizes = [8, 128], strides = [1, 1]} : vector<8x384xf32> to vector<8x128xf32>
    %487 = arith.addf %485, %486 : vector<8x128xf32>
    %488 = arith.negf %487 : vector<8x128xf32>
    %489 = math.exp %488 : vector<8x128xf32>
    %cst_102 = arith.constant 1.000000e+00 : f32
    %490 = vector.broadcast %cst_102 : f32 to vector<8x128xf32>
    %491 = arith.addf %490, %489 : vector<8x128xf32>
    %492 = arith.divf %490, %491 : vector<8x128xf32>
    %493 = vector.extract_strided_slice %481 {offsets = [0, 128], sizes = [8, 128], strides = [1, 1]} : vector<8x384xf32> to vector<8x128xf32>
    %494 = vector.extract_strided_slice %484 {offsets = [0, 128], sizes = [8, 128], strides = [1, 1]} : vector<8x384xf32> to vector<8x128xf32>
    %495 = arith.addf %493, %494 : vector<8x128xf32>
    %496 = arith.negf %495 : vector<8x128xf32>
    %497 = math.exp %496 : vector<8x128xf32>
    %cst_103 = arith.constant 1.000000e+00 : f32
    %498 = vector.broadcast %cst_103 : f32 to vector<8x128xf32>
    %499 = arith.addf %498, %497 : vector<8x128xf32>
    %500 = arith.divf %498, %499 : vector<8x128xf32>
    %501 = vector.extract_strided_slice %481 {offsets = [0, 256], sizes = [8, 128], strides = [1, 1]} : vector<8x384xf32> to vector<8x128xf32>
    %502 = vector.extract_strided_slice %484 {offsets = [0, 256], sizes = [8, 128], strides = [1, 1]} : vector<8x384xf32> to vector<8x128xf32>
    %503 = arith.mulf %492, %502 : vector<8x128xf32>
    %504 = arith.addf %501, %503 : vector<8x128xf32>
    %505 = math.tanh %504 : vector<8x128xf32>
    %cst_104 = arith.constant 1.000000e+00 : f32
    %506 = vector.broadcast %cst_104 : f32 to vector<8x128xf32>
    %507 = arith.subf %506, %500 : vector<8x128xf32>
    %508 = arith.mulf %507, %505 : vector<8x128xf32>
    %509 = arith.mulf %500, %480 : vector<8x128xf32>
    %510 = arith.addf %508, %509 : vector<8x128xf32>
    %511 = vector.extract_strided_slice %296 {offsets = [56, 0], sizes = [8, 384], strides = [1, 1]} : vector<64x384xf32> to vector<8x384xf32>
    %512 = arith.truncf %510 : vector<8x128xf32> to vector<8x128xbf16>
    %cst_105 = arith.constant dense<0.000000e+00> : vector<8x384xf32>
    %513 = tpu.matmul %512, %290, %cst_105 {dimension_numbers = #tpu.dot_dimension_numbers<[1], [0], [0], [1], [0, 0, 1, 1], [], []>} : vector<8x128xbf16>, vector<128x384xbf16>, vector<8x384xf32> -> vector<8x384xf32>
    %514 = arith.addf %513, %299 : vector<8x384xf32>
    %515 = vector.extract_strided_slice %511 {offsets = [0, 0], sizes = [8, 128], strides = [1, 1]} : vector<8x384xf32> to vector<8x128xf32>
    %516 = vector.extract_strided_slice %514 {offsets = [0, 0], sizes = [8, 128], strides = [1, 1]} : vector<8x384xf32> to vector<8x128xf32>
    %517 = arith.addf %515, %516 : vector<8x128xf32>
    %518 = arith.negf %517 : vector<8x128xf32>
    %519 = math.exp %518 : vector<8x128xf32>
    %cst_106 = arith.constant 1.000000e+00 : f32
    %520 = vector.broadcast %cst_106 : f32 to vector<8x128xf32>
    %521 = arith.addf %520, %519 : vector<8x128xf32>
    %522 = arith.divf %520, %521 : vector<8x128xf32>
    %523 = vector.extract_strided_slice %511 {offsets = [0, 128], sizes = [8, 128], strides = [1, 1]} : vector<8x384xf32> to vector<8x128xf32>
    %524 = vector.extract_strided_slice %514 {offsets = [0, 128], sizes = [8, 128], strides = [1, 1]} : vector<8x384xf32> to vector<8x128xf32>
    %525 = arith.addf %523, %524 : vector<8x128xf32>
    %526 = arith.negf %525 : vector<8x128xf32>
    %527 = math.exp %526 : vector<8x128xf32>
    %cst_107 = arith.constant 1.000000e+00 : f32
    %528 = vector.broadcast %cst_107 : f32 to vector<8x128xf32>
    %529 = arith.addf %528, %527 : vector<8x128xf32>
    %530 = arith.divf %528, %529 : vector<8x128xf32>
    %531 = vector.extract_strided_slice %511 {offsets = [0, 256], sizes = [8, 128], strides = [1, 1]} : vector<8x384xf32> to vector<8x128xf32>
    %532 = vector.extract_strided_slice %514 {offsets = [0, 256], sizes = [8, 128], strides = [1, 1]} : vector<8x384xf32> to vector<8x128xf32>
    %533 = arith.mulf %522, %532 : vector<8x128xf32>
    %534 = arith.addf %531, %533 : vector<8x128xf32>
    %535 = math.tanh %534 : vector<8x128xf32>
    %cst_108 = arith.constant 1.000000e+00 : f32
    %536 = vector.broadcast %cst_108 : f32 to vector<8x128xf32>
    %537 = arith.subf %536, %530 : vector<8x128xf32>
    %538 = arith.mulf %537, %535 : vector<8x128xf32>
    %539 = arith.mulf %530, %510 : vector<8x128xf32>
    %540 = arith.addf %538, %539 : vector<8x128xf32>
    %541 = tpu.iota {dimensions = array<i32: 1>} : vector<8x128xi32>
    %c32_i32 = arith.constant 32 : i32
    %542 = vector.broadcast %c32_i32 : i32 to vector<8x128xi32>
    %543 = arith.cmpi slt, %541, %542 : vector<8x128xi32>
    %cst_109 = arith.constant dense<0.000000e+00> : vector<8xf32>
    %544 = vector.multi_reduction <add>, %540, %cst_109 [1] : vector<8x128xf32> to vector<8xf32>
    %545 = vector.shape_cast %544 : vector<8xf32> to vector<8x1xf32>
    %cst_110 = arith.constant 3.200000e+01 : f32
    %546 = vector.broadcast %cst_110 : f32 to vector<8x1xf32>
    %547 = arith.divf %545, %546 : vector<8x1xf32>
    %548 = vector.broadcast %547 : vector<8x1xf32> to vector<8x128xf32>
    %549 = arith.subf %540, %548 : vector<8x128xf32>
    %cst_111 = arith.constant 0.000000e+00 : f32
    %550 = vector.broadcast %cst_111 : f32 to vector<8x128xf32>
    %551 = arith.select %543, %549, %550 : vector<8x128xi1>, vector<8x128xf32>
    %552 = arith.mulf %551, %551 : vector<8x128xf32>
    %cst_112 = arith.constant dense<0.000000e+00> : vector<8xf32>
    %553 = vector.multi_reduction <add>, %552, %cst_112 [1] : vector<8x128xf32> to vector<8xf32>
    %554 = vector.shape_cast %553 : vector<8xf32> to vector<8x1xf32>
    %cst_113 = arith.constant 3.200000e+01 : f32
    %555 = vector.broadcast %cst_113 : f32 to vector<8x1xf32>
    %556 = arith.divf %554, %555 : vector<8x1xf32>
    %cst_114 = arith.constant 9.99999974E-6 : f32
    %557 = vector.broadcast %cst_114 : f32 to vector<8x1xf32>
    %558 = arith.addf %556, %557 : vector<8x1xf32>
    %559 = math.rsqrt %558 : vector<8x1xf32>
    %560 = vector.broadcast %559 : vector<8x1xf32> to vector<8x128xf32>
    %561 = arith.mulf %551, %560 : vector<8x128xf32>
    %c0_115 = arith.constant 0 : index
    %c0_116 = arith.constant 0 : index
    %562 = vector.load %arg14[%c0_115, %c0_116] : memref<1x128xf32, #tpu.memory_space<vmem>>, vector<1x128xf32>
    %563 = vector.broadcast %562 : vector<1x128xf32> to vector<8x128xf32>
    %564 = arith.mulf %561, %563 : vector<8x128xf32>
    %c0_117 = arith.constant 0 : index
    %c0_118 = arith.constant 0 : index
    %565 = vector.load %arg15[%c0_117, %c0_118] : memref<1x128xf32, #tpu.memory_space<vmem>>, vector<1x128xf32>
    %566 = vector.broadcast %565 : vector<1x128xf32> to vector<8x128xf32>
    %567 = arith.addf %564, %566 : vector<8x128xf32>
    %568 = arith.truncf %567 : vector<8x128xf32> to vector<8x128xbf16>
    %c0_119 = arith.constant 0 : index
    %c0_120 = arith.constant 0 : index
    %569 = vector.load %arg16[%c0_119, %c0_120] : memref<128x128xbf16, #tpu.memory_space<vmem>>, vector<128x128xbf16>
    %cst_121 = arith.constant dense<0.000000e+00> : vector<8x128xf32>
    %570 = tpu.matmul %568, %569, %cst_121 {dimension_numbers = #tpu.dot_dimension_numbers<[1], [0], [0], [1], [0, 0, 1, 1], [], []>} : vector<8x128xbf16>, vector<128x128xbf16>, vector<8x128xf32> -> vector<8x128xf32>
    %c0_122 = arith.constant 0 : index
    %c0_123 = arith.constant 0 : index
    %571 = vector.load %arg17[%c0_122, %c0_123] : memref<1x128xf32, #tpu.memory_space<vmem>>, vector<1x128xf32>
    %572 = vector.broadcast %571 : vector<1x128xf32> to vector<8x128xf32>
    %573 = arith.addf %570, %572 : vector<8x128xf32>
    %c0_124 = arith.constant 0 : index
    %c0_125 = arith.constant 0 : index
    %574 = vector.load %arg18[%c0_124, %c0_125] : memref<8x128xf32, #tpu.memory_space<vmem>>, vector<8x128xf32>
    tpu.vector_store %arg18[%c0_124, %c0_125], %573 {strides = array<i32>} : memref<8x128xf32, #tpu.memory_space<vmem>>, vector<8x128xf32>,
    return
  }
  func.func @transform_0(%arg0: i32) -> (i32, i32) {
    %c0_i32 = arith.constant 0 : i32
    %c0_i32_0 = arith.constant 0 : i32
    %c0_i32_1 = arith.constant 0 : i32
    return %c0_i32, %c0_i32_0 : i32, i32
  }
  func.func @transform_1(%arg0: i32) -> (i32, i32) {
    %c0_i32 = arith.constant 0 : i32
    %c0_i32_0 = arith.constant 0 : i32
    %c0_i32_1 = arith.constant 0 : i32
    return %c0_i32, %c0_i32_0 : i32, i32
  }
  func.func @transform_2(%arg0: i32) -> (i32, i32) {
    %c0_i32 = arith.constant 0 : i32
    %c0_i32_0 = arith.constant 0 : i32
    %c0_i32_1 = arith.constant 0 : i32
    return %c0_i32, %c0_i32_0 : i32, i32
  }
  func.func @transform_3(%arg0: i32) -> (i32, i32) {
    %c0_i32 = arith.constant 0 : i32
    %c0_i32_0 = arith.constant 0 : i32
    %c0_i32_1 = arith.constant 0 : i32
    return %c0_i32, %c0_i32_0 : i32, i32
  }
  func.func @transform_4(%arg0: i32) -> (i32, i32) {
    %c0_i32 = arith.constant 0 : i32
    %c0_i32_0 = arith.constant 0 : i32
    %c0_i32_1 = arith.constant 0 : i32
    return %c0_i32, %c0_i32_0 : i32, i32
  }
  func.func @transform_5(%arg0: i32) -> (i32, i32) {
    %c0_i32 = arith.constant 0 : i32
    %c0_i32_0 = arith.constant 0 : i32
    %c0_i32_1 = arith.constant 0 : i32
    return %c0_i32, %c0_i32_0 : i32, i32
  }
  func.func @transform_6(%arg0: i32) -> (i32, i32) {
    %c0_i32 = arith.constant 0 : i32
    %c0_i32_0 = arith.constant 0 : i32
    %c0_i32_1 = arith.constant 0 : i32
    return %c0_i32, %c0_i32_0 : i32, i32
  }
  func.func @transform_7(%arg0: i32) -> (i32, i32) {
    %c0_i32 = arith.constant 0 : i32
    %c0_i32_0 = arith.constant 0 : i32
    %c0_i32_1 = arith.constant 0 : i32
    return %c0_i32, %c0_i32_0 : i32, i32
  }
  func.func @transform_8(%arg0: i32) -> (i32, i32) {
    %c0_i32 = arith.constant 0 : i32
    %c0_i32_0 = arith.constant 0 : i32
    %c0_i32_1 = arith.constant 0 : i32
    return %c0_i32, %c0_i32_0 : i32, i32
  }
  func.func @transform_9(%arg0: i32) -> (i32, i32) {
    %c0_i32 = arith.constant 0 : i32
    %c0_i32_0 = arith.constant 0 : i32
    %c0_i32_1 = arith.constant 0 : i32
    return %c0_i32, %c0_i32_0 : i32, i32
  }
  func.func @transform_10(%arg0: i32) -> (i32, i32) {
    %c0_i32 = arith.constant 0 : i32
    %c0_i32_0 = arith.constant 0 : i32
    %c0_i32_1 = arith.constant 0 : i32
    return %c0_i32, %c0_i32_0 : i32, i32
  }
  func.func @transform_11(%arg0: i32) -> (i32, i32) {
    %c0_i32 = arith.constant 0 : i32
    %c0_i32_0 = arith.constant 0 : i32
    %c0_i32_1 = arith.constant 0 : i32
    return %c0_i32, %c0_i32_0 : i32, i32
  }
  func.func @transform_12(%arg0: i32) -> (i32, i32) {
    %c0_i32 = arith.constant 0 : i32
    %c0_i32_0 = arith.constant 0 : i32
    %c0_i32_1 = arith.constant 0 : i32
    return %c0_i32, %c0_i32_0 : i32, i32
  }
  func.func @transform_13(%arg0: i32) -> (i32, i32) {
    %c0_i32 = arith.constant 0 : i32
    %c0_i32_0 = arith.constant 0 : i32
    %c0_i32_1 = arith.constant 0 : i32
    return %c0_i32, %c0_i32_0 : i32, i32
  }
  func.func @transform_14(%arg0: i32) -> (i32, i32) {
    %c0_i32 = arith.constant 0 : i32
    %c0_i32_0 = arith.constant 0 : i32
    %c0_i32_1 = arith.constant 0 : i32
    return %c0_i32, %c0_i32_0 : i32, i32
  }
  func.func @transform_15(%arg0: i32) -> (i32, i32) {
    %c0_i32 = arith.constant 0 : i32
    %c0_i32_0 = arith.constant 0 : i32
    %c0_i32_1 = arith.constant 0 : i32
    return %c0_i32, %c0_i32_0 : i32, i32
  }
  func.func @transform_16(%arg0: i32) -> (i32, i32) {
    %c0_i32 = arith.constant 0 : i32
    %c0_i32_0 = arith.constant 0 : i32
    %c0_i32_1 = arith.constant 0 : i32
    return %c0_i32, %c0_i32_0 : i32, i32
  }
  func.func @transform_17(%arg0: i32) -> (i32, i32) {
    %c0_i32 = arith.constant 0 : i32
    %c0_i32_0 = arith.constant 0 : i32
    %c0_i32_1 = arith.constant 0 : i32
    return %c0_i32, %c0_i32_0 : i32, i32
  }
}

</mosaic_0001>

<llo_original>
// kernel: timesformer_gru_forward.1
$region0: #{timesformer_gru_forward.1}
  #allocation0 [shape = 'u32[]', space=smem, size = 0x4, offset = 0x4, fixed_abs, tag = 'smem constant byte address 0x4 - core index']
  #allocation1 [shape = 'u32[144,128]{1,0:T(1,128)}', space=vmem, size = 0x12000, scoped, tag = 'internal scratch']
  #allocation2 [shape = 'f32[64,128]{1,0:T(8,128)}', space=vmem, size = 0x8000, scoped, tag = 'scratch operand']
  %s0 = inlined_call_operand.vmem [shape: bf16[64,1536], index: 0, kind: input, shape index: {}]
  %s1 = inlined_call_operand.hbm [shape: bf16[1536,768], index: 1, kind: input, shape index: {}]
  %s2 = inlined_call_operand.hbm [shape: f32[1,768], index: 2, kind: input, shape index: {}]
  %s3 = inlined_call_operand.hbm [shape: f32[1,768], index: 3, kind: input, shape index: {}]
  %s4 = inlined_call_operand.hbm [shape: f32[1,768], index: 4, kind: input, shape index: {}]
  %s5 = inlined_call_operand.vmem [shape: bf16[768,384], index: 5, kind: input, shape index: {}]
  %s6 = inlined_call_operand.hbm [shape: bf16[128,384], index: 6, kind: input, shape index: {}]
  %s7 = inlined_call_operand.hbm [shape: f32[1,384], index: 7, kind: input, shape index: {}]
  %s8 = inlined_call_operand.hbm [shape: f32[1,384], index: 8, kind: input, shape index: {}]
  %s9 = inlined_call_operand.hbm [shape: bf16[128,384], index: 9, kind: input, shape index: {}]
  %s10 = inlined_call_operand.hbm [shape: bf16[128,384], index: 10, kind: input, shape index: {}]
  %s11 = inlined_call_operand.hbm [shape: f32[1,384], index: 11, kind: input, shape index: {}]
  %s12 = inlined_call_operand.hbm [shape: f32[1,384], index: 12, kind: input, shape index: {}]
  %s13 = inlined_call_operand.hbm [shape: f32[1,128], index: 13, kind: input, shape index: {}]
  %s14 = inlined_call_operand.hbm [shape: f32[1,128], index: 14, kind: input, shape index: {}]
  %s15 = inlined_call_operand.hbm [shape: bf16[128,128], index: 15, kind: input, shape index: {}]
  %s16 = inlined_call_operand.hbm [shape: f32[1,128], index: 16, kind: input, shape index: {}]
  %s17 = inlined_call_operand.vmem [shape: f32[8,128], index: 17, kind: output, shape index: {}]
  %s18 = sld [smem:[#allocation0]]
  $region138: #{timesformer_gru_forward.1} parent=0
    _
  %s20 = ssub.s32 1, %s18
  %s21 = scalar_select 0, %s20, %s18
  $region1: #{timesformer_gru_forward.1} parent=0
    #allocation3 [shape = 'u8[2359296]{0}', space=vmem, size = 0x240000, scoped, tag = 'input window, operand 1, single buffered']
    #allocation4 [shape = 's32[1]{0}', space=sflag, size = 0x4, scoped, tag = 'scoped memory for timesformer_gru_forward.1']
    #allocation5 [shape = 'u8[3072]{0}', space=vmem, size = 0xc00, scoped, tag = 'input window, operand 2, single buffered']
    #allocation6 [shape = 's32[1]{0}', space=sflag, size = 0x4, scoped, tag = 'scoped memory for timesformer_gru_forward.1']
    #allocation7 [shape = 'u8[3072]{0}', space=vmem, size = 0xc00, scoped, tag = 'input window, operand 3, single buffered']
    #allocation8 [shape = 'u8[3072]{0}', space=vmem, size = 0xc00, scoped, tag = 'input window, operand 4, single buffered']
    #allocation9 [shape = 's32[1]{0}', space=sflag, size = 0x4, scoped, tag = 'scoped memory for timesformer_gru_forward.1']
    #allocation10 [shape = 'u8[98304]{0}', space=vmem, size = 0x18000, scoped, tag = 'input window, operand 6, single buffered']
    #allocation11 [shape = 'u8[1536]{0}', space=vmem, size = 0x800, scoped, tag = 'input window, operand 7, single buffered']
    #allocation12 [shape = 's32[1]{0}', space=sflag, size = 0x4, scoped, tag = 'scoped memory for timesformer_gru_forward.1']
    #allocation13 [shape = 'u8[1536]{0}', space=vmem, size = 0x800, scoped, tag = 'input window, operand 8, single buffered']
    #allocation14 [shape = 'u8[98304]{0}', space=vmem, size = 0x18000, scoped, tag = 'input window, operand 9, single buffered']
    #allocation15 [shape = 's32[1]{0}', space=sflag, size = 0x4, scoped, tag = 'scoped memory for timesformer_gru_forward.1']
    #allocation16 [shape = 'u8[98304]{0}', space=vmem, size = 0x18000, scoped, tag = 'input window, operand 10, single buffered']
    #allocation17 [shape = 'u8[1536]{0}', space=vmem, size = 0x800, scoped, tag = 'input window, operand 11, single buffered']
    #allocation18 [shape = 's32[1]{0}', space=sflag, size = 0x4, scoped, tag = 'scoped memory for timesformer_gru_forward.1']
    #allocation19 [shape = 'u8[1536]{0}', space=vmem, size = 0x800, scoped, tag = 'input window, operand 12, single buffered']
    #allocation20 [shape = 'u8[512]{0}', space=vmem, size = 0x400, scoped, tag = 'input window, operand 13, single buffered']
    #allocation21 [shape = 's32[1]{0}', space=sflag, size = 0x4, scoped, tag = 'scoped memory for timesformer_gru_forward.1']
    #allocation22 [shape = 'u8[512]{0}', space=vmem, size = 0x400, scoped, tag = 'input window, operand 14, single buffered']
    #allocation23 [shape = 'u8[32768]{0}', space=vmem, size = 0x8000, scoped, tag = 'input window, operand 15, single buffered']
    #allocation24 [shape = 's32[1]{0}', space=sflag, size = 0x4, scoped, tag = 'scoped memory for timesformer_gru_forward.1']
    #allocation25 [shape = 'u8[512]{0}', space=vmem, size = 0x400, scoped, tag = 'input window, operand 16, single buffered']
    %22 = vsyncpa [#allocation4], 0
    %23 = vsyncpa [#allocation6], 0
    %24 = vsyncpa [#allocation9], 0
    %25 = vsyncpa [#allocation12], 0
    %26 = vsyncpa [#allocation15], 0
    %27 = vsyncpa [#allocation18], 0
    %28 = vsyncpa [#allocation21], 0
    %29 = vsyncpa [#allocation24], 0
    // Predicated region
    $region2: #{timesformer_gru_forward.1} parent=1 // pred_check
      _
    $region3: #{timesformer_gru_forward.1} parent=1 // pred_check_branch
      %31 = sbr.rel (0) target = $region5
    $region4: #{timesformer_gru_forward.1} parent=1 // pred_region
      _
    $region5: #{timesformer_gru_forward.1} parent=1 // pred_fallthru
      _
    // Predicated region
    $region6: #{timesformer_gru_forward.1} parent=1 // pred_check
      _
    $region7: #{timesformer_gru_forward.1} parent=1 // pred_check_branch
      %33 = sbr.rel (0) target = $region9
    $region8: #{timesformer_gru_forward.1} parent=1 // pred_region
      %s35 = ssub.s32 73728, 73728
      %36 = vsyncadd [#allocation4], %s35
      %s37 = sshll.u32 [#allocation3], 4
      %s38 = int_to_ptr.vmem [resolvable:$true] %s37
      %43 = dma.hbm_to_vmem [thread:$0]  %s1, 73728, %s38, [#allocation4], 384, 384, 24
    $region9: #{timesformer_gru_forward.1} parent=1 // pred_fallthru
      _
    // Predicated region
    $region10: #{timesformer_gru_forward.1} parent=1 // pred_check
      _
    $region11: #{timesformer_gru_forward.1} parent=1 // pred_check_branch
      %45 = sbr.rel (0) target = $region13
    $region12: #{timesformer_gru_forward.1} parent=1 // pred_region
      %s47 = ssub.s32 96, 96
      %48 = vsyncadd [#allocation6], %s47
      %s50 = sshll.u32 [#allocation5], 4
      %s51 = int_to_ptr.vmem [resolvable:$true] %s50
      %53 = dma.hbm_to_vmem [thread:$0]  %s2, 96, %s51, [#allocation6]
    $region13: #{timesformer_gru_forward.1} parent=1 // pred_fallthru
      _
    // Predicated region
    $region14: #{timesformer_gru_forward.1} parent=1 // pred_check
      _
    $region15: #{timesformer_gru_forward.1} parent=1 // pred_check_branch
      %55 = sbr.rel (0) target = $region17
    $region16: #{timesformer_gru_forward.1} parent=1 // pred_region
      %s57 = ssub.s32 96, 96
      %58 = vsyncadd [#allocation6], %s57
      %s60 = sshll.u32 [#allocation7], 4
      %s61 = int_to_ptr.vmem [resolvable:$true] %s60
      %63 = dma.hbm_to_vmem [thread:$0]  %s3, 96, %s61, [#allocation6]
    $region17: #{timesformer_gru_forward.1} parent=1 // pred_fallthru
      _
    // Predicated region
    $region18: #{timesformer_gru_forward.1} parent=1 // pred_check
      _
    $region19: #{timesformer_gru_forward.1} parent=1 // pred_check_branch
      %65 = sbr.rel (0) target = $region21
    $region20: #{timesformer_gru_forward.1} parent=1 // pred_region
      %s67 = ssub.s32 96, 96
      %68 = vsyncadd [#allocation9], %s67
      %s70 = sshll.u32 [#allocation8], 4
      %s71 = int_to_ptr.vmem [resolvable:$true] %s70
      %73 = dma.hbm_to_vmem [thread:$0]  %s4, 96, %s71, [#allocation9]
    $region21: #{timesformer_gru_forward.1} parent=1 // pred_fallthru
      _
    // Predicated region
    $region22: #{timesformer_gru_forward.1} parent=1 // pred_check
      _
    $region23: #{timesformer_gru_forward.1} parent=1 // pred_check_branch
      %75 = sbr.rel (0) target = $region25
    $region24: #{timesformer_gru_forward.1} parent=1 // pred_region
      _
    $region25: #{timesformer_gru_forward.1} parent=1 // pred_fallthru
      _
    // Predicated region
    $region26: #{timesformer_gru_forward.1} parent=1 // pred_check
      _
    $region27: #{timesformer_gru_forward.1} parent=1 // pred_check_branch
      %77 = sbr.rel (0) target = $region29
    $region28: #{timesformer_gru_forward.1} parent=1 // pred_region
      %s79 = ssub.s32 3072, 3072
      %80 = vsyncadd [#allocation9], %s79
      %s81 = sshll.u32 [#allocation10], 4
      %s82 = int_to_ptr.vmem [resolvable:$true] %s81
      %87 = dma.hbm_to_vmem [thread:$0]  %s6, 3072, %s82, [#allocation9], 192, 192, 12
    $region29: #{timesformer_gru_forward.1} parent=1 // pred_fallthru
      _
    // Predicated region
    $region30: #{timesformer_gru_forward.1} parent=1 // pred_check
      _
    $region31: #{timesformer_gru_forward.1} parent=1 // pred_check_branch
      %89 = sbr.rel (0) target = $region33
    $region32: #{timesformer_gru_forward.1} parent=1 // pred_region
      %s91 = ssub.s32 48, 48
      %92 = vsyncadd [#allocation12], %s91
      %s94 = sshll.u32 [#allocation11], 4
      %s95 = int_to_ptr.vmem [resolvable:$true] %s94
      %97 = dma.hbm_to_vmem [thread:$0]  %s7, 48, %s95, [#allocation12]
    $region33: #{timesformer_gru_forward.1} parent=1 // pred_fallthru
      _
    // Predicated region
    $region34: #{timesformer_gru_forward.1} parent=1 // pred_check
      _
    $region35: #{timesformer_gru_forward.1} parent=1 // pred_check_branch
      %99 = sbr.rel (0) target = $region37
    $region36: #{timesformer_gru_forward.1} parent=1 // pred_region
      %s101 = ssub.s32 48, 48
      %102 = vsyncadd [#allocation12], %s101
      %s104 = sshll.u32 [#allocation13], 4
      %s105 = int_to_ptr.vmem [resolvable:$true] %s104
      %107 = dma.hbm_to_vmem [thread:$0]  %s8, 48, %s105, [#allocation12]
    $region37: #{timesformer_gru_forward.1} parent=1 // pred_fallthru
      _
    // Predicated region
    $region38: #{timesformer_gru_forward.1} parent=1 // pred_check
      _
    $region39: #{timesformer_gru_forward.1} parent=1 // pred_check_branch
      %109 = sbr.rel (0) target = $region41
    $region40: #{timesformer_gru_forward.1} parent=1 // pred_region
      %s111 = ssub.s32 3072, 3072
      %112 = vsyncadd [#allocation15], %s111
      %s113 = sshll.u32 [#allocation14], 4
      %s114 = int_to_ptr.vmem [resolvable:$true] %s113
      %119 = dma.hbm_to_vmem [thread:$0]  %s9, 3072, %s114, [#allocation15], 192, 192, 12
    $region41: #{timesformer_gru_forward.1} parent=1 // pred_fallthru
      _
    // Predicated region
    $region42: #{timesformer_gru_forward.1} parent=1 // pred_check
      _
    $region43: #{timesformer_gru_forward.1} parent=1 // pred_check_branch
      %121 = sbr.rel (0) target = $region45
    $region44: #{timesformer_gru_forward.1} parent=1 // pred_region
      %s123 = ssub.s32 3072, 3072
      %124 = vsyncadd [#allocation15], %s123
      %s125 = sshll.u32 [#allocation16], 4
      %s126 = int_to_ptr.vmem [resolvable:$true] %s125
      %131 = dma.hbm_to_vmem [thread:$0]  %s10, 3072, %s126, [#allocation15], 192, 192, 12
    $region45: #{timesformer_gru_forward.1} parent=1 // pred_fallthru
      _
    // Predicated region
    $region46: #{timesformer_gru_forward.1} parent=1 // pred_check
      _
    $region47: #{timesformer_gru_forward.1} parent=1 // pred_check_branch
      %133 = sbr.rel (0) target = $region49
    $region48: #{timesformer_gru_forward.1} parent=1 // pred_region
      %s135 = ssub.s32 48, 48
      %136 = vsyncadd [#allocation18], %s135
      %s138 = sshll.u32 [#allocation17], 4
      %s139 = int_to_ptr.vmem [resolvable:$true] %s138
      %141 = dma.hbm_to_vmem [thread:$0]  %s11, 48, %s139, [#allocation18]
    $region49: #{timesformer_gru_forward.1} parent=1 // pred_fallthru
      _
    // Predicated region
    $region50: #{timesformer_gru_forward.1} parent=1 // pred_check
      _
    $region51: #{timesformer_gru_forward.1} parent=1 // pred_check_branch
      %143 = sbr.rel (0) target = $region53
    $region52: #{timesformer_gru_forward.1} parent=1 // pred_region
      %s145 = ssub.s32 48, 48
      %146 = vsyncadd [#allocation18], %s145
      %s148 = sshll.u32 [#allocation19], 4
      %s149 = int_to_ptr.vmem [resolvable:$true] %s148
      %151 = dma.hbm_to_vmem [thread:$0]  %s12, 48, %s149, [#allocation18]
    $region53: #{timesformer_gru_forward.1} parent=1 // pred_fallthru
      _
    // Predicated region
    $region54: #{timesformer_gru_forward.1} parent=1 // pred_check
      _
    $region55: #{timesformer_gru_forward.1} parent=1 // pred_check_branch
      %153 = sbr.rel (0) target = $region57
    $region56: #{timesformer_gru_forward.1} parent=1 // pred_region
      %s155 = ssub.s32 16, 16
      %156 = vsyncadd [#allocation21], %s155
      %s158 = sshll.u32 [#allocation20], 4
      %s159 = int_to_ptr.vmem [resolvable:$true] %s158
      %161 = dma.hbm_to_vmem [thread:$0]  %s13, 16, %s159, [#allocation21]
    $region57: #{timesformer_gru_forward.1} parent=1 // pred_fallthru
      _
    // Predicated region
    $region58: #{timesformer_gru_forward.1} parent=1 // pred_check
      _
    $region59: #{timesformer_gru_forward.1} parent=1 // pred_check_branch
      %163 = sbr.rel (0) target = $region61
    $region60: #{timesformer_gru_forward.1} parent=1 // pred_region
      %s165 = ssub.s32 16, 16
      %166 = vsyncadd [#allocation21], %s165
      %s168 = sshll.u32 [#allocation22], 4
      %s169 = int_to_ptr.vmem [resolvable:$true] %s168
      %171 = dma.hbm_to_vmem [thread:$0]  %s14, 16, %s169, [#allocation21]
    $region61: #{timesformer_gru_forward.1} parent=1 // pred_fallthru
      _
    // Predicated region
    $region62: #{timesformer_gru_forward.1} parent=1 // pred_check
      _
    $region63: #{timesformer_gru_forward.1} parent=1 // pred_check_branch
      %173 = sbr.rel (0) target = $region65
    $region64: #{timesformer_gru_forward.1} parent=1 // pred_region
      %s175 = ssub.s32 1024, 1024
      %176 = vsyncadd [#allocation24], %s175
      %s177 = sshll.u32 [#allocation23], 4
      %s178 = int_to_ptr.vmem [resolvable:$true] %s177
      %183 = dma.hbm_to_vmem [thread:$0]  %s15, 1024, %s178, [#allocation24], 64, 64, 4
    $region65: #{timesformer_gru_forward.1} parent=1 // pred_fallthru
      _
    // Predicated region
    $region66: #{timesformer_gru_forward.1} parent=1 // pred_check
      _
    $region67: #{timesformer_gru_forward.1} parent=1 // pred_check_branch
      %185 = sbr.rel (0) target = $region69
    $region68: #{timesformer_gru_forward.1} parent=1 // pred_region
      %s187 = ssub.s32 16, 16
      %188 = vsyncadd [#allocation24], %s187
      %s190 = sshll.u32 [#allocation25], 4
      %s191 = int_to_ptr.vmem [resolvable:$true] %s190
      %193 = dma.hbm_to_vmem [thread:$0]  %s16, 16, %s191, [#allocation24]
    $region69: #{timesformer_gru_forward.1} parent=1 // pred_fallthru
      _
    // Predicated region
    $region70: #{timesformer_gru_forward.1} parent=1 // pred_check
      _
    $region71: #{timesformer_gru_forward.1} parent=1 // pred_check_branch
      %195 = sbr.rel (0) target = $region73
    $region72: #{timesformer_gru_forward.1} parent=1 // pred_region
      %196 = dma.done [#allocation4], 73728
    $region73: #{timesformer_gru_forward.1} parent=1 // pred_fallthru
      _
    // Predicated region
    $region74: #{timesformer_gru_forward.1} parent=1 // pred_check
      _
    $region75: #{timesformer_gru_forward.1} parent=1 // pred_check_branch
      %198 = sbr.rel (0) target = $region77
    $region76: #{timesformer_gru_forward.1} parent=1 // pred_region
      %199 = dma.done [#allocation6], 96
    $region77: #{timesformer_gru_forward.1} parent=1 // pred_fallthru
      _
    // Predicated region
    $region78: #{timesformer_gru_forward.1} parent=1 // pred_check
      _
    $region79: #{timesformer_gru_forward.1} parent=1 // pred_check_branch
      %201 = sbr.rel (0) target = $region81
    $region80: #{timesformer_gru_forward.1} parent=1 // pred_region
      %202 = dma.done [#allocation6], 96
    $region81: #{timesformer_gru_forward.1} parent=1 // pred_fallthru
      _
    // Predicated region
    $region82: #{timesformer_gru_forward.1} parent=1 // pred_check
      _
    $region83: #{timesformer_gru_forward.1} parent=1 // pred_check_branch
      %204 = sbr.rel (0) target = $region85
    $region84: #{timesformer_gru_forward.1} parent=1 // pred_region
      %205 = dma.done [#allocation9], 96
    $region85: #{timesformer_gru_forward.1} parent=1 // pred_fallthru
      _
    // Predicated region
    $region86: #{timesformer_gru_forward.1} parent=1 // pred_check
      _
    $region87: #{timesformer_gru_forward.1} parent=1 // pred_check_branch
      %207 = sbr.rel (0) target = $region89
    $region88: #{timesformer_gru_forward.1} parent=1 // pred_region
      %208 = dma.done [#allocation9], 3072
    $region89: #{timesformer_gru_forward.1} parent=1 // pred_fallthru
      _
    // Predicated region
    $region90: #{timesformer_gru_forward.1} parent=1 // pred_check
      _
    $region91: #{timesformer_gru_forward.1} parent=1 // pred_check_branch
      %210 = sbr.rel (0) target = $region93
    $region92: #{timesformer_gru_forward.1} parent=1 // pred_region
      %211 = dma.done [#allocation12], 48
    $region93: #{timesformer_gru_forward.1} parent=1 // pred_fallthru
      _
    // Predicated region
    $region94: #{timesformer_gru_forward.1} parent=1 // pred_check
      _
    $region95: #{timesformer_gru_forward.1} parent=1 // pred_check_branch
      %213 = sbr.rel (0) target = $region97
    $region96: #{timesformer_gru_forward.1} parent=1 // pred_region
      %214 = dma.done [#allocation12], 48
    $region97: #{timesformer_gru_forward.1} parent=1 // pred_fallthru
      _
    // Predicated region
    $region98: #{timesformer_gru_forward.1} parent=1 // pred_check
      _
    $region99: #{timesformer_gru_forward.1} parent=1 // pred_check_branch
      %216 = sbr.rel (0) target = $region101
    $region100: #{timesformer_gru_forward.1} parent=1 // pred_region
      %217 = dma.done [#allocation15], 3072
    $region101: #{timesformer_gru_forward.1} parent=1 // pred_fallthru
      _
    // Predicated region
    $region102: #{timesformer_gru_forward.1} parent=1 // pred_check
      _
    $region103: #{timesformer_gru_forward.1} parent=1 // pred_check_branch
      %219 = sbr.rel (0) target = $region105
    $region104: #{timesformer_gru_forward.1} parent=1 // pred_region
      %220 = dma.done [#allocation15], 3072
    $region105: #{timesformer_gru_forward.1} parent=1 // pred_fallthru
      _
    // Predicated region
    $region106: #{timesformer_gru_forward.1} parent=1 // pred_check
      _
    $region107: #{timesformer_gru_forward.1} parent=1 // pred_check_branch
      %222 = sbr.rel (0) target = $region109
    $region108: #{timesformer_gru_forward.1} parent=1 // pred_region
      %223 = dma.done [#allocation18], 48
    $region109: #{timesformer_gru_forward.1} parent=1 // pred_fallthru
      _
    // Predicated region
    $region110: #{timesformer_gru_forward.1} parent=1 // pred_check
      _
    $region111: #{timesformer_gru_forward.1} parent=1 // pred_check_branch
      %225 = sbr.rel (0) target = $region113
    $region112: #{timesformer_gru_forward.1} parent=1 // pred_region
      %226 = dma.done [#allocation18], 48
    $region113: #{timesformer_gru_forward.1} parent=1 // pred_fallthru
      _
    // Predicated region
    $region114: #{timesformer_gru_forward.1} parent=1 // pred_check
      _
    $region115: #{timesformer_gru_forward.1} parent=1 // pred_check_branch
      %228 = sbr.rel (0) target = $region117
    $region116: #{timesformer_gru_forward.1} parent=1 // pred_region
      %229 = dma.done [#allocation21], 16
    $region117: #{timesformer_gru_forward.1} parent=1 // pred_fallthru
      _
    // Predicated region
    $region118: #{timesformer_gru_forward.1} parent=1 // pred_check
      _
    $region119: #{timesformer_gru_forward.1} parent=1 // pred_check_branch
      %231 = sbr.rel (0) target = $region121
    $region120: #{timesformer_gru_forward.1} parent=1 // pred_region
      %232 = dma.done [#allocation21], 16
    $region121: #{timesformer_gru_forward.1} parent=1 // pred_fallthru
      _
    // Predicated region
    $region122: #{timesformer_gru_forward.1} parent=1 // pred_check
      _
    $region123: #{timesformer_gru_forward.1} parent=1 // pred_check_branch
      %234 = sbr.rel (0) target = $region125
    $region124: #{timesformer_gru_forward.1} parent=1 // pred_region
      %235 = dma.done [#allocation24], 1024
    $region125: #{timesformer_gru_forward.1} parent=1 // pred_fallthru
      _
    // Predicated region
    $region126: #{timesformer_gru_forward.1} parent=1 // pred_check
      _
    $region127: #{timesformer_gru_forward.1} parent=1 // pred_check_branch
      %237 = sbr.rel (0) target = $region129
    $region128: #{timesformer_gru_forward.1} parent=1 // pred_region
      %238 = dma.done [#allocation24], 16
    $region129: #{timesformer_gru_forward.1} parent=1 // pred_fallthru
      _
    %v240 = vld [vmem:[%s0] sm:$0xff]
    %v241 = vld [vmem:[%s0 + $0x8] sm:$0xff]
    %v242 = vld [vmem:[%s0 + $0x10] sm:$0xff]
    %v243 = vld [vmem:[%s0 + $0x18] sm:$0xff]
    %v244 = vld [vmem:[%s0 + $0x20] sm:$0xff]
    %v245 = vld [vmem:[%s0 + $0x28] sm:$0xff]
    %v246 = vld [vmem:[%s0 + $0x30] sm:$0xff]
    %v247 = vld [vmem:[%s0 + $0x38] sm:$0xff]
    %v248 = vld [vmem:[%s0 + $0x40] sm:$0xff]
    %v249 = vld [vmem:[%s0 + $0x48] sm:$0xff]
    %v250 = vld [vmem:[%s0 + $0x50] sm:$0xff]
    %v251 = vld [vmem:[%s0 + $0x58] sm:$0xff]
    %v252 = vld [vmem:[%s0 + $0x60] sm:$0xff]
    %v253 = vld [vmem:[%s0 + $0x68] sm:$0xff]
    %v254 = vld [vmem:[%s0 + $0x70] sm:$0xff]
    %v255 = vld [vmem:[%s0 + $0x78] sm:$0xff]
    %v256 = vld [vmem:[%s0 + $0x80] sm:$0xff]
    %v257 = vld [vmem:[%s0 + $0x88] sm:$0xff]
    %v258 = vld [vmem:[%s0 + $0x90] sm:$0xff]
    %v259 = vld [vmem:[%s0 + $0x98] sm:$0xff]
    %v260 = vld [vmem:[%s0 + $0xa0] sm:$0xff]
    %v261 = vld [vmem:[%s0 + $0xa8] sm:$0xff]
    %v262 = vld [vmem:[%s0 + $0xb0] sm:$0xff]
    %v263 = vld [vmem:[%s0 + $0xb8] sm:$0xff]
    %v264 = vld [vmem:[%s0 + $0xc0] sm:$0xff]
    %v265 = vld [vmem:[%s0 + $0xc8] sm:$0xff]
    %v266 = vld [vmem:[%s0 + $0xd0] sm:$0xff]
    %v267 = vld [vmem:[%s0 + $0xd8] sm:$0xff]
    %v268 = vld [vmem:[%s0 + $0xe0] sm:$0xff]
    %v269 = vld [vmem:[%s0 + $0xe8] sm:$0xff]
    %v270 = vld [vmem:[%s0 + $0xf0] sm:$0xff]
    %v271 = vld [vmem:[%s0 + $0xf8] sm:$0xff]
    %v272 = vld [vmem:[%s0 + $0x100] sm:$0xff]
    %v273 = vld [vmem:[%s0 + $0x108] sm:$0xff]
    %v274 = vld [vmem:[%s0 + $0x110] sm:$0xff]
    %v275 = vld [vmem:[%s0 + $0x118] sm:$0xff]
    %v276 = vld [vmem:[%s0 + $0x120] sm:$0xff]
    %v277 = vld [vmem:[%s0 + $0x128] sm:$0xff]
    %v278 = vld [vmem:[%s0 + $0x130] sm:$0xff]
    %v279 = vld [vmem:[%s0 + $0x138] sm:$0xff]
    %v280 = vld [vmem:[%s0 + $0x140] sm:$0xff]
    %v281 = vld [vmem:[%s0 + $0x148] sm:$0xff]
    %v282 = vld [vmem:[%s0 + $0x150] sm:$0xff]
    %v283 = vld [vmem:[%s0 + $0x158] sm:$0xff]
    %v284 = vld [vmem:[%s0 + $0x160] sm:$0xff]
    %v285 = vld [vmem:[%s0 + $0x168] sm:$0xff]
    %v286 = vld [vmem:[%s0 + $0x170] sm:$0xff]
    %v287 = vld [vmem:[%s0 + $0x178] sm:$0xff]
    %v288 = vld [vmem:[#allocation3] sm:$0xff]
    %v289 = vld [vmem:[#allocation3 + $0x8] sm:$0xff]
    %v290 = vld [vmem:[#allocation3 + $0x10] sm:$0xff]
    %v291 = vld [vmem:[#allocation3 + $0x18] sm:$0xff]
    %v292 = vld [vmem:[#allocation3 + $0x20] sm:$0xff]
    %v293 = vld [vmem:[#allocation3 + $0x28] sm:$0xff]
    %v294 = vld [vmem:[#allocation3 + $0x30] sm:$0xff]
    %v295 = vld [vmem:[#allocation3 + $0x38] sm:$0xff]
    %v296 = vld [vmem:[#allocation3 + $0x40] sm:$0xff]
    %v297 = vld [vmem:[#allocation3 + $0x48] sm:$0xff]
    %v298 = vld [vmem:[#allocation3 + $0x50] sm:$0xff]
    %v299 = vld [vmem:[#allocation3 + $0x58] sm:$0xff]
    %v300 = vld [vmem:[#allocation3 + $0x60] sm:$0xff]
    %v301 = vld [vmem:[#allocation3 + $0x68] sm:$0xff]
    %v302 = vld [vmem:[#allocation3 + $0x70] sm:$0xff]
    %v303 = vld [vmem:[#allocation3 + $0x78] sm:$0xff]
    %v304 = vld [vmem:[#allocation3 + $0x80] sm:$0xff]
    %v305 = vld [vmem:[#allocation3 + $0x88] sm:$0xff]
    %v306 = vld [vmem:[#allocation3 + $0x90] sm:$0xff]
    %v307 = vld [vmem:[#allocation3 + $0x98] sm:$0xff]
    %v308 = vld [vmem:[#allocation3 + $0xa0] sm:$0xff]
    %v309 = vld [vmem:[#allocation3 + $0xa8] sm:$0xff]
    %v310 = vld [vmem:[#allocation3 + $0xb0] sm:$0xff]
    %v311 = vld [vmem:[#allocation3 + $0xb8] sm:$0xff]
    %v312 = vld [vmem:[#allocation3 + $0xc0] sm:$0xff]
    %v313 = vld [vmem:[#allocation3 + $0xc8] sm:$0xff]
    %v314 = vld [vmem:[#allocation3 + $0xd0] sm:$0xff]
    %v315 = vld [vmem:[#allocation3 + $0xd8] sm:$0xff]
    %v316 = vld [vmem:[#allocation3 + $0xe0] sm:$0xff]
    %v317 = vld [vmem:[#allocation3 + $0xe8] sm:$0xff]
    %v318 = vld [vmem:[#allocation3 + $0xf0] sm:$0xff]
    %v319 = vld [vmem:[#allocation3 + $0xf8] sm:$0xff]
    %v320 = vld [vmem:[#allocation3 + $0x100] sm:$0xff]
    %v321 = vld [vmem:[#allocation3 + $0x108] sm:$0xff]
    %v322 = vld [vmem:[#allocation3 + $0x110] sm:$0xff]
    %v323 = vld [vmem:[#allocation3 + $0x118] sm:$0xff]
    %v324 = vld [vmem:[#allocation3 + $0x120] sm:$0xff]
    %v325 = vld [vmem:[#allocation3 + $0x128] sm:$0xff]
    %v326 = vld [vmem:[#allocation3 + $0x130] sm:$0xff]
    %v327 = vld [vmem:[#allocation3 + $0x138] sm:$0xff]
    %v328 = vld [vmem:[#allocation3 + $0x140] sm:$0xff]
    %v329 = vld [vmem:[#allocation3 + $0x148] sm:$0xff]
    %v330 = vld [vmem:[#allocation3 + $0x150] sm:$0xff]
    %v331 = vld [vmem:[#allocation3 + $0x158] sm:$0xff]
    %v332 = vld [vmem:[#allocation3 + $0x160] sm:$0xff]
    %v333 = vld [vmem:[#allocation3 + $0x168] sm:$0xff]
    %v334 = vld [vmem:[#allocation3 + $0x170] sm:$0xff]
    %v335 = vld [vmem:[#allocation3 + $0x178] sm:$0xff]
    %v336 = vld [vmem:[#allocation3 + $0x180] sm:$0xff]
    %v337 = vld [vmem:[#allocation3 + $0x188] sm:$0xff]
    %v338 = vld [vmem:[#allocation3 + $0x190] sm:$0xff]
    %v339 = vld [vmem:[#allocation3 + $0x198] sm:$0xff]
    %v340 = vld [vmem:[#allocation3 + $0x1a0] sm:$0xff]
    %v341 = vld [vmem:[#allocation3 + $0x1a8] sm:$0xff]
    %v342 = vld [vmem:[#allocation3 + $0x1b0] sm:$0xff]
    %v343 = vld [vmem:[#allocation3 + $0x1b8] sm:$0xff]
    %v344 = vld [vmem:[#allocation3 + $0x1c0] sm:$0xff]
    %v345 = vld [vmem:[#allocation3 + $0x1c8] sm:$0xff]
    %v346 = vld [vmem:[#allocation3 + $0x1d0] sm:$0xff]
    %v347 = vld [vmem:[#allocation3 + $0x1d8] sm:$0xff]
    %v348 = vld [vmem:[#allocation3 + $0x1e0] sm:$0xff]
    %v349 = vld [vmem:[#allocation3 + $0x1e8] sm:$0xff]
    %v350 = vld [vmem:[#allocation3 + $0x1f0] sm:$0xff]
    %v351 = vld [vmem:[#allocation3 + $0x1f8] sm:$0xff]
    %v352 = vld [vmem:[#allocation3 + $0x200] sm:$0xff]
    %v353 = vld [vmem:[#allocation3 + $0x208] sm:$0xff]
    %v354 = vld [vmem:[#allocation3 + $0x210] sm:$0xff]
    %v355 = vld [vmem:[#allocation3 + $0x218] sm:$0xff]
    %v356 = vld [vmem:[#allocation3 + $0x220] sm:$0xff]
    %v357 = vld [vmem:[#allocation3 + $0x228] sm:$0xff]
    %v358 = vld [vmem:[#allocation3 + $0x230] sm:$0xff]
    %v359 = vld [vmem:[#allocation3 + $0x238] sm:$0xff]
    %v360 = vld [vmem:[#allocation3 + $0x240] sm:$0xff]
    %v361 = vld [vmem:[#allocation3 + $0x248] sm:$0xff]
    %v362 = vld [vmem:[#allocation3 + $0x250] sm:$0xff]
    %v363 = vld [vmem:[#allocation3 + $0x258] sm:$0xff]
    %v364 = vld [vmem:[#allocation3 + $0x260] sm:$0xff]
    %v365 = vld [vmem:[#allocation3 + $0x268] sm:$0xff]
    %v366 = vld [vmem:[#allocation3 + $0x270] sm:$0xff]
    %v367 = vld [vmem:[#allocation3 + $0x278] sm:$0xff]
    %v368 = vld [vmem:[#allocation3 + $0x280] sm:$0xff]
    %v369 = vld [vmem:[#allocation3 + $0x288] sm:$0xff]
    %v370 = vld [vmem:[#allocation3 + $0x290] sm:$0xff]
    %v371 = vld [vmem:[#allocation3 + $0x298] sm:$0xff]
    %v372 = vld [vmem:[#allocation3 + $0x2a0] sm:$0xff]
    %v373 = vld [vmem:[#allocation3 + $0x2a8] sm:$0xff]
    %v374 = vld [vmem:[#allocation3 + $0x2b0] sm:$0xff]
    %v375 = vld [vmem:[#allocation3 + $0x2b8] sm:$0xff]
    %v376 = vld [vmem:[#allocation3 + $0x2c0] sm:$0xff]
    %v377 = vld [vmem:[#allocation3 + $0x2c8] sm:$0xff]
    %v378 = vld [vmem:[#allocation3 + $0x2d0] sm:$0xff]
    %v379 = vld [vmem:[#allocation3 + $0x2d8] sm:$0xff]
    %v380 = vld [vmem:[#allocation3 + $0x2e0] sm:$0xff]
    %v381 = vld [vmem:[#allocation3 + $0x2e8] sm:$0xff]
    %v382 = vld [vmem:[#allocation3 + $0x2f0] sm:$0xff]
    %v383 = vld [vmem:[#allocation3 + $0x2f8] sm:$0xff]
    %v384 = vld [vmem:[#allocation3 + $0x300] sm:$0xff]
    %v385 = vld [vmem:[#allocation3 + $0x308] sm:$0xff]
    %v386 = vld [vmem:[#allocation3 + $0x310] sm:$0xff]
    %v387 = vld [vmem:[#allocation3 + $0x318] sm:$0xff]
    %v388 = vld [vmem:[#allocation3 + $0x320] sm:$0xff]
    %v389 = vld [vmem:[#allocation3 + $0x328] sm:$0xff]
    %v390 = vld [vmem:[#allocation3 + $0x330] sm:$0xff]
    %v391 = vld [vmem:[#allocation3 + $0x338] sm:$0xff]
    %v392 = vld [vmem:[#allocation3 + $0x340] sm:$0xff]
    %v393 = vld [vmem:[#allocation3 + $0x348] sm:$0xff]
    %v394 = vld [vmem:[#allocation3 + $0x350] sm:$0xff]
    %v395 = vld [vmem:[#allocation3 + $0x358] sm:$0xff]
    %v396 = vld [vmem:[#allocation3 + $0x360] sm:$0xff]
    %v397 = vld [vmem:[#allocation3 + $0x368] sm:$0xff]
    %v398 = vld [vmem:[#allocation3 + $0x370] sm:$0xff]
    %v399 = vld [vmem:[#allocation3 + $0x378] sm:$0xff]
    %v400 = vld [vmem:[#allocation3 + $0x380] sm:$0xff]
    %v401 = vld [vmem:[#allocation3 + $0x388] sm:$0xff]
    %v402 = vld [vmem:[#allocation3 + $0x390] sm:$0xff]
    %v403 = vld [vmem:[#allocation3 + $0x398] sm:$0xff]
    %v404 = vld [vmem:[#allocation3 + $0x3a0] sm:$0xff]
    %v405 = vld [vmem:[#allocation3 + $0x3a8] sm:$0xff]
    %v406 = vld [vmem:[#allocation3 + $0x3b0] sm:$0xff]
    %v407 = vld [vmem:[#allocation3 + $0x3b8] sm:$0xff]
    %v408 = vld [vmem:[#allocation3 + $0x3c0] sm:$0xff]
    %v409 = vld [vmem:[#allocation3 + $0x3c8] sm:$0xff]
    %v410 = vld [vmem:[#allocation3 + $0x3d0] sm:$0xff]
    %v411 = vld [vmem:[#allocation3 + $0x3d8] sm:$0xff]
    %v412 = vld [vmem:[#allocation3 + $0x3e0] sm:$0xff]
    %v413 = vld [vmem:[#allocation3 + $0x3e8] sm:$0xff]
    %v414 = vld [vmem:[#allocation3 + $0x3f0] sm:$0xff]
    %v415 = vld [vmem:[#allocation3 + $0x3f8] sm:$0xff]
    %v416 = vld [vmem:[#allocation3 + $0x400] sm:$0xff]
    %v417 = vld [vmem:[#allocation3 + $0x408] sm:$0xff]
    %v418 = vld [vmem:[#allocation3 + $0x410] sm:$0xff]
    %v419 = vld [vmem:[#allocation3 + $0x418] sm:$0xff]
    %v420 = vld [vmem:[#allocation3 + $0x420] sm:$0xff]
    %v421 = vld [vmem:[#allocation3 + $0x428] sm:$0xff]
    %v422 = vld [vmem:[#allocation3 + $0x430] sm:$0xff]
    %v423 = vld [vmem:[#allocation3 + $0x438] sm:$0xff]
    %v424 = vld [vmem:[#allocation3 + $0x440] sm:$0xff]
    %v425 = vld [vmem:[#allocation3 + $0x448] sm:$0xff]
    %v426 = vld [vmem:[#allocation3 + $0x450] sm:$0xff]
    %v427 = vld [vmem:[#allocation3 + $0x458] sm:$0xff]
    %v428 = vld [vmem:[#allocation3 + $0x460] sm:$0xff]
    %v429 = vld [vmem:[#allocation3 + $0x468] sm:$0xff]
    %v430 = vld [vmem:[#allocation3 + $0x470] sm:$0xff]
    %v431 = vld [vmem:[#allocation3 + $0x478] sm:$0xff]
    %v432 = vld [vmem:[#allocation3 + $0x480] sm:$0xff]
    %v433 = vld [vmem:[#allocation3 + $0x488] sm:$0xff]
    %v434 = vld [vmem:[#allocation3 + $0x490] sm:$0xff]
    %v435 = vld [vmem:[#allocation3 + $0x498] sm:$0xff]
    %v436 = vld [vmem:[#allocation3 + $0x4a0] sm:$0xff]
    %v437 = vld [vmem:[#allocation3 + $0x4a8] sm:$0xff]
    %v438 = vld [vmem:[#allocation3 + $0x4b0] sm:$0xff]
    %v439 = vld [vmem:[#allocation3 + $0x4b8] sm:$0xff]
    %v440 = vld [vmem:[#allocation3 + $0x4c0] sm:$0xff]
    %v441 = vld [vmem:[#allocation3 + $0x4c8] sm:$0xff]
    %v442 = vld [vmem:[#allocation3 + $0x4d0] sm:$0xff]
    %v443 = vld [vmem:[#allocation3 + $0x4d8] sm:$0xff]
    %v444 = vld [vmem:[#allocation3 + $0x4e0] sm:$0xff]
    %v445 = vld [vmem:[#allocation3 + $0x4e8] sm:$0xff]
    %v446 = vld [vmem:[#allocation3 + $0x4f0] sm:$0xff]
    %v447 = vld [vmem:[#allocation3 + $0x4f8] sm:$0xff]
    %v448 = vld [vmem:[#allocation3 + $0x500] sm:$0xff]
    %v449 = vld [vmem:[#allocation3 + $0x508] sm:$0xff]
    %v450 = vld [vmem:[#allocation3 + $0x510] sm:$0xff]
    %v451 = vld [vmem:[#allocation3 + $0x518] sm:$0xff]
    %v452 = vld [vmem:[#allocation3 + $0x520] sm:$0xff]
    %v453 = vld [vmem:[#allocation3 + $0x528] sm:$0xff]
    %v454 = vld [vmem:[#allocation3 + $0x530] sm:$0xff]
    %v455 = vld [vmem:[#allocation3 + $0x538] sm:$0xff]
    %v456 = vld [vmem:[#allocation3 + $0x540] sm:$0xff]
    %v457 = vld [vmem:[#allocation3 + $0x548] sm:$0xff]
    %v458 = vld [vmem:[#allocation3 + $0x550] sm:$0xff]
    %v459 = vld [vmem:[#allocation3 + $0x558] sm:$0xff]
    %v460 = vld [vmem:[#allocation3 + $0x560] sm:$0xff]
    %v461 = vld [vmem:[#allocation3 + $0x568] sm:$0xff]
    %v462 = vld [vmem:[#allocation3 + $0x570] sm:$0xff]
    %v463 = vld [vmem:[#allocation3 + $0x578] sm:$0xff]
    %v464 = vld [vmem:[#allocation3 + $0x580] sm:$0xff]
    %v465 = vld [vmem:[#allocation3 + $0x588] sm:$0xff]
    %v466 = vld [vmem:[#allocation3 + $0x590] sm:$0xff]
    %v467 = vld [vmem:[#allocation3 + $0x598] sm:$0xff]
    %v468 = vld [vmem:[#allocation3 + $0x5a0] sm:$0xff]
    %v469 = vld [vmem:[#allocation3 + $0x5a8] sm:$0xff]
    %v470 = vld [vmem:[#allocation3 + $0x5b0] sm:$0xff]
    %v471 = vld [vmem:[#allocation3 + $0x5b8] sm:$0xff]
    %v472 = vld [vmem:[#allocation3 + $0x5c0] sm:$0xff]
    %v473 = vld [vmem:[#allocation3 + $0x5c8] sm:$0xff]
    %v474 = vld [vmem:[#allocation3 + $0x5d0] sm:$0xff]
    %v475 = vld [vmem:[#allocation3 + $0x5d8] sm:$0xff]
    %v476 = vld [vmem:[#allocation3 + $0x5e0] sm:$0xff]
    %v477 = vld [vmem:[#allocation3 + $0x5e8] sm:$0xff]
    %v478 = vld [vmem:[#allocation3 + $0x5f0] sm:$0xff]
    %v479 = vld [vmem:[#allocation3 + $0x5f8] sm:$0xff]
    %v480 = vld [vmem:[#allocation3 + $0x600] sm:$0xff]
    %v481 = vld [vmem:[#allocation3 + $0x608] sm:$0xff]
    %v482 = vld [vmem:[#allocation3 + $0x610] sm:$0xff]
    %v483 = vld [vmem:[#allocation3 + $0x618] sm:$0xff]
    %v484 = vld [vmem:[#allocation3 + $0x620] sm:$0xff]
    %v485 = vld [vmem:[#allocation3 + $0x628] sm:$0xff]
    %v486 = vld [vmem:[#allocation3 + $0x630] sm:$0xff]
    %v487 = vld [vmem:[#allocation3 + $0x638] sm:$0xff]
    %v488 = vld [vmem:[#allocation3 + $0x640] sm:$0xff]
    %v489 = vld [vmem:[#allocation3 + $0x648] sm:$0xff]
    %v490 = vld [vmem:[#allocation3 + $0x650] sm:$0xff]
    %v491 = vld [vmem:[#allocation3 + $0x658] sm:$0xff]
    %v492 = vld [vmem:[#allocation3 + $0x660] sm:$0xff]
    %v493 = vld [vmem:[#allocation3 + $0x668] sm:$0xff]
    %v494 = vld [vmem:[#allocation3 + $0x670] sm:$0xff]
    %v495 = vld [vmem:[#allocation3 + $0x678] sm:$0xff]
    %v496 = vld [vmem:[#allocation3 + $0x680] sm:$0xff]
    %v497 = vld [vmem:[#allocation3 + $0x688] sm:$0xff]
    %v498 = vld [vmem:[#allocation3 + $0x690] sm:$0xff]
    %v499 = vld [vmem:[#allocation3 + $0x698] sm:$0xff]
    %v500 = vld [vmem:[#allocation3 + $0x6a0] sm:$0xff]
    %v501 = vld [vmem:[#allocation3 + $0x6a8] sm:$0xff]
    %v502 = vld [vmem:[#allocation3 + $0x6b0] sm:$0xff]
    %v503 = vld [vmem:[#allocation3 + $0x6b8] sm:$0xff]
    %v504 = vld [vmem:[#allocation3 + $0x6c0] sm:$0xff]
    %v505 = vld [vmem:[#allocation3 + $0x6c8] sm:$0xff]
    %v506 = vld [vmem:[#allocation3 + $0x6d0] sm:$0xff]
    %v507 = vld [vmem:[#allocation3 + $0x6d8] sm:$0xff]
    %v508 = vld [vmem:[#allocation3 + $0x6e0] sm:$0xff]
    %v509 = vld [vmem:[#allocation3 + $0x6e8] sm:$0xff]
    %v510 = vld [vmem:[#allocation3 + $0x6f0] sm:$0xff]
    %v511 = vld [vmem:[#allocation3 + $0x6f8] sm:$0xff]
    %v512 = vld [vmem:[#allocation3 + $0x700] sm:$0xff]
    %v513 = vld [vmem:[#allocation3 + $0x708] sm:$0xff]
    %v514 = vld [vmem:[#allocation3 + $0x710] sm:$0xff]
    %v515 = vld [vmem:[#allocation3 + $0x718] sm:$0xff]
    %v516 = vld [vmem:[#allocation3 + $0x720] sm:$0xff]
    %v517 = vld [vmem:[#allocation3 + $0x728] sm:$0xff]
    %v518 = vld [vmem:[#allocation3 + $0x730] sm:$0xff]
    %v519 = vld [vmem:[#allocation3 + $0x738] sm:$0xff]
    %v520 = vld [vmem:[#allocation3 + $0x740] sm:$0xff]
    %v521 = vld [vmem:[#allocation3 + $0x748] sm:$0xff]
    %v522 = vld [vmem:[#allocation3 + $0x750] sm:$0xff]
    %v523 = vld [vmem:[#allocation3 + $0x758] sm:$0xff]
    %v524 = vld [vmem:[#allocation3 + $0x760] sm:$0xff]
    %v525 = vld [vmem:[#allocation3 + $0x768] sm:$0xff]
    %v526 = vld [vmem:[#allocation3 + $0x770] sm:$0xff]
    %v527 = vld [vmem:[#allocation3 + $0x778] sm:$0xff]
    %v528 = vld [vmem:[#allocation3 + $0x780] sm:$0xff]
    %v529 = vld [vmem:[#allocation3 + $0x788] sm:$0xff]
    %v530 = vld [vmem:[#allocation3 + $0x790] sm:$0xff]
    %v531 = vld [vmem:[#allocation3 + $0x798] sm:$0xff]
    %v532 = vld [vmem:[#allocation3 + $0x7a0] sm:$0xff]
    %v533 = vld [vmem:[#allocation3 + $0x7a8] sm:$0xff]
    %v534 = vld [vmem:[#allocation3 + $0x7b0] sm:$0xff]
    %v535 = vld [vmem:[#allocation3 + $0x7b8] sm:$0xff]
    %v536 = vld [vmem:[#allocation3 + $0x7c0] sm:$0xff]
    %v537 = vld [vmem:[#allocation3 + $0x7c8] sm:$0xff]
    %v538 = vld [vmem:[#allocation3 + $0x7d0] sm:$0xff]
    %v539 = vld [vmem:[#allocation3 + $0x7d8] sm:$0xff]
    %v540 = vld [vmem:[#allocation3 + $0x7e0] sm:$0xff]
    %v541 = vld [vmem:[#allocation3 + $0x7e8] sm:$0xff]
    %v542 = vld [vmem:[#allocation3 + $0x7f0] sm:$0xff]
    %v543 = vld [vmem:[#allocation3 + $0x7f8] sm:$0xff]
    %v544 = vld [vmem:[#allocation3 + $0x800] sm:$0xff]
    %v545 = vld [vmem:[#allocation3 + $0x808] sm:$0xff]
    %v546 = vld [vmem:[#allocation3 + $0x810] sm:$0xff]
    %v547 = vld [vmem:[#allocation3 + $0x818] sm:$0xff]
    %v548 = vld [vmem:[#allocation3 + $0x820] sm:$0xff]
    %v549 = vld [vmem:[#allocation3 + $0x828] sm:$0xff]
    %v550 = vld [vmem:[#allocation3 + $0x830] sm:$0xff]
    %v551 = vld [vmem:[#allocation3 + $0x838] sm:$0xff]
    %v552 = vld [vmem:[#allocation3 + $0x840] sm:$0xff]
    %v553 = vld [vmem:[#allocation3 + $0x848] sm:$0xff]
    %v554 = vld [vmem:[#allocation3 + $0x850] sm:$0xff]
    %v555 = vld [vmem:[#allocation3 + $0x858] sm:$0xff]
    %v556 = vld [vmem:[#allocation3 + $0x860] sm:$0xff]
    %v557 = vld [vmem:[#allocation3 + $0x868] sm:$0xff]
    %v558 = vld [vmem:[#allocation3 + $0x870] sm:$0xff]
    %v559 = vld [vmem:[#allocation3 + $0x878] sm:$0xff]
    %v560 = vld [vmem:[#allocation3 + $0x880] sm:$0xff]
    %v561 = vld [vmem:[#allocation3 + $0x888] sm:$0xff]
    %v562 = vld [vmem:[#allocation3 + $0x890] sm:$0xff]
    %v563 = vld [vmem:[#allocation3 + $0x898] sm:$0xff]
    %v564 = vld [vmem:[#allocation3 + $0x8a0] sm:$0xff]
    %v565 = vld [vmem:[#allocation3 + $0x8a8] sm:$0xff]
    %v566 = vld [vmem:[#allocation3 + $0x8b0] sm:$0xff]
    %v567 = vld [vmem:[#allocation3 + $0x8b8] sm:$0xff]
    %v568 = vld [vmem:[#allocation3 + $0x8c0] sm:$0xff]
    %v569 = vld [vmem:[#allocation3 + $0x8c8] sm:$0xff]
    %v570 = vld [vmem:[#allocation3 + $0x8d0] sm:$0xff]
    %v571 = vld [vmem:[#allocation3 + $0x8d8] sm:$0xff]
    %v572 = vld [vmem:[#allocation3 + $0x8e0] sm:$0xff]
    %v573 = vld [vmem:[#allocation3 + $0x8e8] sm:$0xff]
    %v574 = vld [vmem:[#allocation3 + $0x8f0] sm:$0xff]
    %v575 = vld [vmem:[#allocation3 + $0x8f8] sm:$0xff]
    %v576 = vld [vmem:[#allocation3 + $0x900] sm:$0xff]
    %v577 = vld [vmem:[#allocation3 + $0x908] sm:$0xff]
    %v578 = vld [vmem:[#allocation3 + $0x910] sm:$0xff]
    %v579 = vld [vmem:[#allocation3 + $0x918] sm:$0xff]
    %v580 = vld [vmem:[#allocation3 + $0x920] sm:$0xff]
    %v581 = vld [vmem:[#allocation3 + $0x928] sm:$0xff]
    %v582 = vld [vmem:[#allocation3 + $0x930] sm:$0xff]
    %v583 = vld [vmem:[#allocation3 + $0x938] sm:$0xff]
    %v584 = vld [vmem:[#allocation3 + $0x940] sm:$0xff]
    %v585 = vld [vmem:[#allocation3 + $0x948] sm:$0xff]
    %v586 = vld [vmem:[#allocation3 + $0x950] sm:$0xff]
    %v587 = vld [vmem:[#allocation3 + $0x958] sm:$0xff]
    %v588 = vld [vmem:[#allocation3 + $0x960] sm:$0xff]
    %v589 = vld [vmem:[#allocation3 + $0x968] sm:$0xff]
    %v590 = vld [vmem:[#allocation3 + $0x970] sm:$0xff]
    %v591 = vld [vmem:[#allocation3 + $0x978] sm:$0xff]
    %v592 = vld [vmem:[#allocation3 + $0x980] sm:$0xff]
    %v593 = vld [vmem:[#allocation3 + $0x988] sm:$0xff]
    %v594 = vld [vmem:[#allocation3 + $0x990] sm:$0xff]
    %v595 = vld [vmem:[#allocation3 + $0x998] sm:$0xff]
    %v596 = vld [vmem:[#allocation3 + $0x9a0] sm:$0xff]
    %v597 = vld [vmem:[#allocation3 + $0x9a8] sm:$0xff]
    %v598 = vld [vmem:[#allocation3 + $0x9b0] sm:$0xff]
    %v599 = vld [vmem:[#allocation3 + $0x9b8] sm:$0xff]
    %v600 = vld [vmem:[#allocation3 + $0x9c0] sm:$0xff]
    %v601 = vld [vmem:[#allocation3 + $0x9c8] sm:$0xff]
    %v602 = vld [vmem:[#allocation3 + $0x9d0] sm:$0xff]
    %v603 = vld [vmem:[#allocation3 + $0x9d8] sm:$0xff]
    %v604 = vld [vmem:[#allocation3 + $0x9e0] sm:$0xff]
    %v605 = vld [vmem:[#allocation3 + $0x9e8] sm:$0xff]
    %v606 = vld [vmem:[#allocation3 + $0x9f0] sm:$0xff]
    %v607 = vld [vmem:[#allocation3 + $0x9f8] sm:$0xff]
    %v608 = vld [vmem:[#allocation3 + $0xa00] sm:$0xff]
    %v609 = vld [vmem:[#allocation3 + $0xa08] sm:$0xff]
    %v610 = vld [vmem:[#allocation3 + $0xa10] sm:$0xff]
    %v611 = vld [vmem:[#allocation3 + $0xa18] sm:$0xff]
    %v612 = vld [vmem:[#allocation3 + $0xa20] sm:$0xff]
    %v613 = vld [vmem:[#allocation3 + $0xa28] sm:$0xff]
    %v614 = vld [vmem:[#allocation3 + $0xa30] sm:$0xff]
    %v615 = vld [vmem:[#allocation3 + $0xa38] sm:$0xff]
    %v616 = vld [vmem:[#allocation3 + $0xa40] sm:$0xff]
    %v617 = vld [vmem:[#allocation3 + $0xa48] sm:$0xff]
    %v618 = vld [vmem:[#allocation3 + $0xa50] sm:$0xff]
    %v619 = vld [vmem:[#allocation3 + $0xa58] sm:$0xff]
    %v620 = vld [vmem:[#allocation3 + $0xa60] sm:$0xff]
    %v621 = vld [vmem:[#allocation3 + $0xa68] sm:$0xff]
    %v622 = vld [vmem:[#allocation3 + $0xa70] sm:$0xff]
    %v623 = vld [vmem:[#allocation3 + $0xa78] sm:$0xff]
    %v624 = vld [vmem:[#allocation3 + $0xa80] sm:$0xff]
    %v625 = vld [vmem:[#allocation3 + $0xa88] sm:$0xff]
    %v626 = vld [vmem:[#allocation3 + $0xa90] sm:$0xff]
    %v627 = vld [vmem:[#allocation3 + $0xa98] sm:$0xff]
    %v628 = vld [vmem:[#allocation3 + $0xaa0] sm:$0xff]
    %v629 = vld [vmem:[#allocation3 + $0xaa8] sm:$0xff]
    %v630 = vld [vmem:[#allocation3 + $0xab0] sm:$0xff]
    %v631 = vld [vmem:[#allocation3 + $0xab8] sm:$0xff]
    %v632 = vld [vmem:[#allocation3 + $0xac0] sm:$0xff]
    %v633 = vld [vmem:[#allocation3 + $0xac8] sm:$0xff]
    %v634 = vld [vmem:[#allocation3 + $0xad0] sm:$0xff]
    %v635 = vld [vmem:[#allocation3 + $0xad8] sm:$0xff]
    %v636 = vld [vmem:[#allocation3 + $0xae0] sm:$0xff]
    %v637 = vld [vmem:[#allocation3 + $0xae8] sm:$0xff]
    %v638 = vld [vmem:[#allocation3 + $0xaf0] sm:$0xff]
    %v639 = vld [vmem:[#allocation3 + $0xaf8] sm:$0xff]
    %v640 = vld [vmem:[#allocation3 + $0xb00] sm:$0xff]
    %v641 = vld [vmem:[#allocation3 + $0xb08] sm:$0xff]
    %v642 = vld [vmem:[#allocation3 + $0xb10] sm:$0xff]
    %v643 = vld [vmem:[#allocation3 + $0xb18] sm:$0xff]
    %v644 = vld [vmem:[#allocation3 + $0xb20] sm:$0xff]
    %v645 = vld [vmem:[#allocation3 + $0xb28] sm:$0xff]
    %v646 = vld [vmem:[#allocation3 + $0xb30] sm:$0xff]
    %v647 = vld [vmem:[#allocation3 + $0xb38] sm:$0xff]
    %v648 = vld [vmem:[#allocation3 + $0xb40] sm:$0xff]
    %v649 = vld [vmem:[#allocation3 + $0xb48] sm:$0xff]
    %v650 = vld [vmem:[#allocation3 + $0xb50] sm:$0xff]
    %v651 = vld [vmem:[#allocation3 + $0xb58] sm:$0xff]
    %v652 = vld [vmem:[#allocation3 + $0xb60] sm:$0xff]
    %v653 = vld [vmem:[#allocation3 + $0xb68] sm:$0xff]
    %v654 = vld [vmem:[#allocation3 + $0xb70] sm:$0xff]
    %v655 = vld [vmem:[#allocation3 + $0xb78] sm:$0xff]
    %v656 = vld [vmem:[#allocation3 + $0xb80] sm:$0xff]
    %v657 = vld [vmem:[#allocation3 + $0xb88] sm:$0xff]
    %v658 = vld [vmem:[#allocation3 + $0xb90] sm:$0xff]
    %v659 = vld [vmem:[#allocation3 + $0xb98] sm:$0xff]
    %v660 = vld [vmem:[#allocation3 + $0xba0] sm:$0xff]
    %v661 = vld [vmem:[#allocation3 + $0xba8] sm:$0xff]
    %v662 = vld [vmem:[#allocation3 + $0xbb0] sm:$0xff]
    %v663 = vld [vmem:[#allocation3 + $0xbb8] sm:$0xff]
    %v664 = vld [vmem:[#allocation3 + $0xbc0] sm:$0xff]
    %v665 = vld [vmem:[#allocation3 + $0xbc8] sm:$0xff]
    %v666 = vld [vmem:[#allocation3 + $0xbd0] sm:$0xff]
    %v667 = vld [vmem:[#allocation3 + $0xbd8] sm:$0xff]
    %v668 = vld [vmem:[#allocation3 + $0xbe0] sm:$0xff]
    %v669 = vld [vmem:[#allocation3 + $0xbe8] sm:$0xff]
    %v670 = vld [vmem:[#allocation3 + $0xbf0] sm:$0xff]
    %v671 = vld [vmem:[#allocation3 + $0xbf8] sm:$0xff]
    %v672 = vld [vmem:[#allocation3 + $0xc00] sm:$0xff]
    %v673 = vld [vmem:[#allocation3 + $0xc08] sm:$0xff]
    %v674 = vld [vmem:[#allocation3 + $0xc10] sm:$0xff]
    %v675 = vld [vmem:[#allocation3 + $0xc18] sm:$0xff]
    %v676 = vld [vmem:[#allocation3 + $0xc20] sm:$0xff]
    %v677 = vld [vmem:[#allocation3 + $0xc28] sm:$0xff]
    %v678 = vld [vmem:[#allocation3 + $0xc30] sm:$0xff]
    %v679 = vld [vmem:[#allocation3 + $0xc38] sm:$0xff]
    %v680 = vld [vmem:[#allocation3 + $0xc40] sm:$0xff]
    %v681 = vld [vmem:[#allocation3 + $0xc48] sm:$0xff]
    %v682 = vld [vmem:[#allocation3 + $0xc50] sm:$0xff]
    %v683 = vld [vmem:[#allocation3 + $0xc58] sm:$0xff]
    %v684 = vld [vmem:[#allocation3 + $0xc60] sm:$0xff]
    %v685 = vld [vmem:[#allocation3 + $0xc68] sm:$0xff]
    %v686 = vld [vmem:[#allocation3 + $0xc70] sm:$0xff]
    %v687 = vld [vmem:[#allocation3 + $0xc78] sm:$0xff]
    %v688 = vld [vmem:[#allocation3 + $0xc80] sm:$0xff]
    %v689 = vld [vmem:[#allocation3 + $0xc88] sm:$0xff]
    %v690 = vld [vmem:[#allocation3 + $0xc90] sm:$0xff]
    %v691 = vld [vmem:[#allocation3 + $0xc98] sm:$0xff]
    %v692 = vld [vmem:[#allocation3 + $0xca0] sm:$0xff]
    %v693 = vld [vmem:[#allocation3 + $0xca8] sm:$0xff]
    %v694 = vld [vmem:[#allocation3 + $0xcb0] sm:$0xff]
    %v695 = vld [vmem:[#allocation3 + $0xcb8] sm:$0xff]
    %v696 = vld [vmem:[#allocation3 + $0xcc0] sm:$0xff]
    %v697 = vld [vmem:[#allocation3 + $0xcc8] sm:$0xff]
    %v698 = vld [vmem:[#allocation3 + $0xcd0] sm:$0xff]
    %v699 = vld [vmem:[#allocation3 + $0xcd8] sm:$0xff]
    %v700 = vld [vmem:[#allocation3 + $0xce0] sm:$0xff]
    %v701 = vld [vmem:[#allocation3 + $0xce8] sm:$0xff]
    %v702 = vld [vmem:[#allocation3 + $0xcf0] sm:$0xff]
    %v703 = vld [vmem:[#allocation3 + $0xcf8] sm:$0xff]
    %v704 = vld [vmem:[#allocation3 + $0xd00] sm:$0xff]
    %v705 = vld [vmem:[#allocation3 + $0xd08] sm:$0xff]
    %v706 = vld [vmem:[#allocation3 + $0xd10] sm:$0xff]
    %v707 = vld [vmem:[#allocation3 + $0xd18] sm:$0xff]
    %v708 = vld [vmem:[#allocation3 + $0xd20] sm:$0xff]
    %v709 = vld [vmem:[#allocation3 + $0xd28] sm:$0xff]
    %v710 = vld [vmem:[#allocation3 + $0xd30] sm:$0xff]
    %v711 = vld [vmem:[#allocation3 + $0xd38] sm:$0xff]
    %v712 = vld [vmem:[#allocation3 + $0xd40] sm:$0xff]
    %v713 = vld [vmem:[#allocation3 + $0xd48] sm:$0xff]
    %v714 = vld [vmem:[#allocation3 + $0xd50] sm:$0xff]
    %v715 = vld [vmem:[#allocation3 + $0xd58] sm:$0xff]
    %v716 = vld [vmem:[#allocation3 + $0xd60] sm:$0xff]
    %v717 = vld [vmem:[#allocation3 + $0xd68] sm:$0xff]
    %v718 = vld [vmem:[#allocation3 + $0xd70] sm:$0xff]
    %v719 = vld [vmem:[#allocation3 + $0xd78] sm:$0xff]
    %v720 = vld [vmem:[#allocation3 + $0xd80] sm:$0xff]
    %v721 = vld [vmem:[#allocation3 + $0xd88] sm:$0xff]
    %v722 = vld [vmem:[#allocation3 + $0xd90] sm:$0xff]
    %v723 = vld [vmem:[#allocation3 + $0xd98] sm:$0xff]
    %v724 = vld [vmem:[#allocation3 + $0xda0] sm:$0xff]
    %v725 = vld [vmem:[#allocation3 + $0xda8] sm:$0xff]
    %v726 = vld [vmem:[#allocation3 + $0xdb0] sm:$0xff]
    %v727 = vld [vmem:[#allocation3 + $0xdb8] sm:$0xff]
    %v728 = vld [vmem:[#allocation3 + $0xdc0] sm:$0xff]
    %v729 = vld [vmem:[#allocation3 + $0xdc8] sm:$0xff]
    %v730 = vld [vmem:[#allocation3 + $0xdd0] sm:$0xff]
    %v731 = vld [vmem:[#allocation3 + $0xdd8] sm:$0xff]
    %v732 = vld [vmem:[#allocation3 + $0xde0] sm:$0xff]
    %v733 = vld [vmem:[#allocation3 + $0xde8] sm:$0xff]
    %v734 = vld [vmem:[#allocation3 + $0xdf0] sm:$0xff]
    %v735 = vld [vmem:[#allocation3 + $0xdf8] sm:$0xff]
    %v736 = vld [vmem:[#allocation3 + $0xe00] sm:$0xff]
    %v737 = vld [vmem:[#allocation3 + $0xe08] sm:$0xff]
    %v738 = vld [vmem:[#allocation3 + $0xe10] sm:$0xff]
    %v739 = vld [vmem:[#allocation3 + $0xe18] sm:$0xff]
    %v740 = vld [vmem:[#allocation3 + $0xe20] sm:$0xff]
    %v741 = vld [vmem:[#allocation3 + $0xe28] sm:$0xff]
    %v742 = vld [vmem:[#allocation3 + $0xe30] sm:$0xff]
    %v743 = vld [vmem:[#allocation3 + $0xe38] sm:$0xff]
    %v744 = vld [vmem:[#allocation3 + $0xe40] sm:$0xff]
    %v745 = vld [vmem:[#allocation3 + $0xe48] sm:$0xff]
    %v746 = vld [vmem:[#allocation3 + $0xe50] sm:$0xff]
    %v747 = vld [vmem:[#allocation3 + $0xe58] sm:$0xff]
    %v748 = vld [vmem:[#allocation3 + $0xe60] sm:$0xff]
    %v749 = vld [vmem:[#allocation3 + $0xe68] sm:$0xff]
    %v750 = vld [vmem:[#allocation3 + $0xe70] sm:$0xff]
    %v751 = vld [vmem:[#allocation3 + $0xe78] sm:$0xff]
    %v752 = vld [vmem:[#allocation3 + $0xe80] sm:$0xff]
    %v753 = vld [vmem:[#allocation3 + $0xe88] sm:$0xff]
    %v754 = vld [vmem:[#allocation3 + $0xe90] sm:$0xff]
    %v755 = vld [vmem:[#allocation3 + $0xe98] sm:$0xff]
    %v756 = vld [vmem:[#allocation3 + $0xea0] sm:$0xff]
    %v757 = vld [vmem:[#allocation3 + $0xea8] sm:$0xff]
    %v758 = vld [vmem:[#allocation3 + $0xeb0] sm:$0xff]
    %v759 = vld [vmem:[#allocation3 + $0xeb8] sm:$0xff]
    %v760 = vld [vmem:[#allocation3 + $0xec0] sm:$0xff]
    %v761 = vld [vmem:[#allocation3 + $0xec8] sm:$0xff]
    %v762 = vld [vmem:[#allocation3 + $0xed0] sm:$0xff]
    %v763 = vld [vmem:[#allocation3 + $0xed8] sm:$0xff]
    %v764 = vld [vmem:[#allocation3 + $0xee0] sm:$0xff]
    %v765 = vld [vmem:[#allocation3 + $0xee8] sm:$0xff]
    %v766 = vld [vmem:[#allocation3 + $0xef0] sm:$0xff]
    %v767 = vld [vmem:[#allocation3 + $0xef8] sm:$0xff]
    %v768 = vld [vmem:[#allocation3 + $0xf00] sm:$0xff]
    %v769 = vld [vmem:[#allocation3 + $0xf08] sm:$0xff]
    %v770 = vld [vmem:[#allocation3 + $0xf10] sm:$0xff]
    %v771 = vld [vmem:[#allocation3 + $0xf18] sm:$0xff]
    %v772 = vld [vmem:[#allocation3 + $0xf20] sm:$0xff]
    %v773 = vld [vmem:[#allocation3 + $0xf28] sm:$0xff]
    %v774 = vld [vmem:[#allocation3 + $0xf30] sm:$0xff]
    %v775 = vld [vmem:[#allocation3 + $0xf38] sm:$0xff]
    %v776 = vld [vmem:[#allocation3 + $0xf40] sm:$0xff]
    %v777 = vld [vmem:[#allocation3 + $0xf48] sm:$0xff]
    %v778 = vld [vmem:[#allocation3 + $0xf50] sm:$0xff]
    %v779 = vld [vmem:[#allocation3 + $0xf58] sm:$0xff]
    %v780 = vld [vmem:[#allocation3 + $0xf60] sm:$0xff]
    %v781 = vld [vmem:[#allocation3 + $0xf68] sm:$0xff]
    %v782 = vld [vmem:[#allocation3 + $0xf70] sm:$0xff]
    %v783 = vld [vmem:[#allocation3 + $0xf78] sm:$0xff]
    %v784 = vld [vmem:[#allocation3 + $0xf80] sm:$0xff]
    %v785 = vld [vmem:[#allocation3 + $0xf88] sm:$0xff]
    %v786 = vld [vmem:[#allocation3 + $0xf90] sm:$0xff]
    %v787 = vld [vmem:[#allocation3 + $0xf98] sm:$0xff]
    %v788 = vld [vmem:[#allocation3 + $0xfa0] sm:$0xff]
    %v789 = vld [vmem:[#allocation3 + $0xfa8] sm:$0xff]
    %v790 = vld [vmem:[#allocation3 + $0xfb0] sm:$0xff]
    %v791 = vld [vmem:[#allocation3 + $0xfb8] sm:$0xff]
    %v792 = vld [vmem:[#allocation3 + $0xfc0] sm:$0xff]
    %v793 = vld [vmem:[#allocation3 + $0xfc8] sm:$0xff]
    %v794 = vld [vmem:[#allocation3 + $0xfd0] sm:$0xff]
    %v795 = vld [vmem:[#allocation3 + $0xfd8] sm:$0xff]
    %v796 = vld [vmem:[#allocation3 + $0xfe0] sm:$0xff]
    %v797 = vld [vmem:[#allocation3 + $0xfe8] sm:$0xff]
    %v798 = vld [vmem:[#allocation3 + $0xff0] sm:$0xff]
    %v799 = vld [vmem:[#allocation3 + $0xff8] sm:$0xff]
    %v800 = vld [vmem:[#allocation3 + $0x1000] sm:$0xff]
    %v801 = vld [vmem:[#allocation3 + $0x1008] sm:$0xff]
    %v802 = vld [vmem:[#allocation3 + $0x1010] sm:$0xff]
    %v803 = vld [vmem:[#allocation3 + $0x1018] sm:$0xff]
    %v804 = vld [vmem:[#allocation3 + $0x1020] sm:$0xff]
    %v805 = vld [vmem:[#allocation3 + $0x1028] sm:$0xff]
    %v806 = vld [vmem:[#allocation3 + $0x1030] sm:$0xff]
    %v807 = vld [vmem:[#allocation3 + $0x1038] sm:$0xff]
    %v808 = vld [vmem:[#allocation3 + $0x1040] sm:$0xff]
    %v809 = vld [vmem:[#allocation3 + $0x1048] sm:$0xff]
    %v810 = vld [vmem:[#allocation3 + $0x1050] sm:$0xff]
    %v811 = vld [vmem:[#allocation3 + $0x1058] sm:$0xff]
    %v812 = vld [vmem:[#allocation3 + $0x1060] sm:$0xff]
    %v813 = vld [vmem:[#allocation3 + $0x1068] sm:$0xff]
    %v814 = vld [vmem:[#allocation3 + $0x1070] sm:$0xff]
    %v815 = vld [vmem:[#allocation3 + $0x1078] sm:$0xff]
    %v816 = vld [vmem:[#allocation3 + $0x1080] sm:$0xff]
    %v817 = vld [vmem:[#allocation3 + $0x1088] sm:$0xff]
    %v818 = vld [vmem:[#allocation3 + $0x1090] sm:$0xff]
    %v819 = vld [vmem:[#allocation3 + $0x1098] sm:$0xff]
    %v820 = vld [vmem:[#allocation3 + $0x10a0] sm:$0xff]
    %v821 = vld [vmem:[#allocation3 + $0x10a8] sm:$0xff]
    %v822 = vld [vmem:[#allocation3 + $0x10b0] sm:$0xff]
    %v823 = vld [vmem:[#allocation3 + $0x10b8] sm:$0xff]
    %v824 = vld [vmem:[#allocation3 + $0x10c0] sm:$0xff]
    %v825 = vld [vmem:[#allocation3 + $0x10c8] sm:$0xff]
    %v826 = vld [vmem:[#allocation3 + $0x10d0] sm:$0xff]
    %v827 = vld [vmem:[#allocation3 + $0x10d8] sm:$0xff]
    %v828 = vld [vmem:[#allocation3 + $0x10e0] sm:$0xff]
    %v829 = vld [vmem:[#allocation3 + $0x10e8] sm:$0xff]
    %v830 = vld [vmem:[#allocation3 + $0x10f0] sm:$0xff]
    %v831 = vld [vmem:[#allocation3 + $0x10f8] sm:$0xff]
    %v832 = vld [vmem:[#allocation3 + $0x1100] sm:$0xff]
    %v833 = vld [vmem:[#allocation3 + $0x1108] sm:$0xff]
    %v834 = vld [vmem:[#allocation3 + $0x1110] sm:$0xff]
    %v835 = vld [vmem:[#allocation3 + $0x1118] sm:$0xff]
    %v836 = vld [vmem:[#allocation3 + $0x1120] sm:$0xff]
    %v837 = vld [vmem:[#allocation3 + $0x1128] sm:$0xff]
    %v838 = vld [vmem:[#allocation3 + $0x1130] sm:$0xff]
    %v839 = vld [vmem:[#allocation3 + $0x1138] sm:$0xff]
    %v840 = vld [vmem:[#allocation3 + $0x1140] sm:$0xff]
    %v841 = vld [vmem:[#allocation3 + $0x1148] sm:$0xff]
    %v842 = vld [vmem:[#allocation3 + $0x1150] sm:$0xff]
    %v843 = vld [vmem:[#allocation3 + $0x1158] sm:$0xff]
    %v844 = vld [vmem:[#allocation3 + $0x1160] sm:$0xff]
    %v845 = vld [vmem:[#allocation3 + $0x1168] sm:$0xff]
    %v846 = vld [vmem:[#allocation3 + $0x1170] sm:$0xff]
    %v847 = vld [vmem:[#allocation3 + $0x1178] sm:$0xff]
    %v848 = vld [vmem:[#allocation3 + $0x1180] sm:$0xff]
    %v849 = vld [vmem:[#allocation3 + $0x1188] sm:$0xff]
    %v850 = vld [vmem:[#allocation3 + $0x1190] sm:$0xff]
    %v851 = vld [vmem:[#allocation3 + $0x1198] sm:$0xff]
    %v852 = vld [vmem:[#allocation3 + $0x11a0] sm:$0xff]
    %v853 = vld [vmem:[#allocation3 + $0x11a8] sm:$0xff]
    %v854 = vld [vmem:[#allocation3 + $0x11b0] sm:$0xff]
    %v855 = vld [vmem:[#allocation3 + $0x11b8] sm:$0xff]
    %v856 = vld [vmem:[#allocation3 + $0x11c0] sm:$0xff]
    %v857 = vld [vmem:[#allocation3 + $0x11c8] sm:$0xff]
    %v858 = vld [vmem:[#allocation3 + $0x11d0] sm:$0xff]
    %v859 = vld [vmem:[#allocation3 + $0x11d8] sm:$0xff]
    %v860 = vld [vmem:[#allocation3 + $0x11e0] sm:$0xff]
    %v861 = vld [vmem:[#allocation3 + $0x11e8] sm:$0xff]
    %v862 = vld [vmem:[#allocation3 + $0x11f0] sm:$0xff]
    %v863 = vld [vmem:[#allocation3 + $0x11f8] sm:$0xff]
    %v864 = vld [vmem:[#allocation5] sm:$0x3f]
    %v866 = vlaneseq
    %v867 = vshrl.u32 %v866, 7
    %v868 = vsub.s32 0, %v867
    %v869 = vrot.slane %v864, %v868
    %v870 = vlaneseq
    %v871 = vshrl.u32 %v870, 7
    %v872 = vsub.s32 1, %v871
    %v873 = vrot.slane %v864, %v872
    %v874 = vlaneseq
    %v875 = vshrl.u32 %v874, 7
    %v876 = vsub.s32 2, %v875
    %v877 = vrot.slane %v864, %v876
    %v878 = vlaneseq
    %v879 = vshrl.u32 %v878, 7
    %v880 = vsub.s32 3, %v879
    %v881 = vrot.slane %v864, %v880
    %v882 = vlaneseq
    %v883 = vshrl.u32 %v882, 7
    %v884 = vsub.s32 4, %v883
    %v885 = vrot.slane %v864, %v884
    %v886 = vlaneseq
    %v887 = vshrl.u32 %v886, 7
    %v888 = vsub.s32 5, %v887
    %v889 = vrot.slane %v864, %v888
    %v944 = vunpack.c.l.b16 %v240
    %v945 = vunpack.c.h.b16 %v240
    %v946 = vunpack.c.l.b16 %v241
    %v947 = vunpack.c.h.b16 %v241
    %v948 = vunpack.c.l.b16 %v242
    %v949 = vunpack.c.h.b16 %v242
    %v950 = vunpack.c.l.b16 %v243
    %v951 = vunpack.c.h.b16 %v243
    %v952 = vunpack.c.l.b16 %v244
    %v953 = vunpack.c.h.b16 %v244
    %v954 = vunpack.c.l.b16 %v245
    %v955 = vunpack.c.h.b16 %v245
    %v956 = vunpack.c.l.b16 %v246
    %v957 = vunpack.c.h.b16 %v246
    %v958 = vunpack.c.l.b16 %v247
    %v959 = vunpack.c.h.b16 %v247
    %v960 = vunpack.c.l.b16 %v248
    %v961 = vunpack.c.h.b16 %v248
    %v962 = vunpack.c.l.b16 %v249
    %v963 = vunpack.c.h.b16 %v249
    %v964 = vunpack.c.l.b16 %v250
    %v965 = vunpack.c.h.b16 %v250
    %v966 = vunpack.c.l.b16 %v251
    %v967 = vunpack.c.h.b16 %v251
    %v968 = vunpack.c.l.b16 %v252
    %v969 = vunpack.c.h.b16 %v252
    %v970 = vunpack.c.l.b16 %v253
    %v971 = vunpack.c.h.b16 %v253
    %v972 = vunpack.c.l.b16 %v254
    %v973 = vunpack.c.h.b16 %v254
    %v974 = vunpack.c.l.b16 %v255
    %v975 = vunpack.c.h.b16 %v255
    %v976 = vunpack.c.l.b16 %v256
    %v977 = vunpack.c.h.b16 %v256
    %v978 = vunpack.c.l.b16 %v257
    %v979 = vunpack.c.h.b16 %v257
    %v980 = vunpack.c.l.b16 %v258
    %v981 = vunpack.c.h.b16 %v258
    %v982 = vunpack.c.l.b16 %v259
    %v983 = vunpack.c.h.b16 %v259
    %v984 = vunpack.c.l.b16 %v260
    %v985 = vunpack.c.h.b16 %v260
    %v986 = vunpack.c.l.b16 %v261
    %v987 = vunpack.c.h.b16 %v261
    %v988 = vunpack.c.l.b16 %v262
    %v989 = vunpack.c.h.b16 %v262
    %v990 = vunpack.c.l.b16 %v263
    %v991 = vunpack.c.h.b16 %v263
    %v992 = vunpack.c.l.b16 %v264
    %v993 = vunpack.c.h.b16 %v264
    %v994 = vunpack.c.l.b16 %v265
    %v995 = vunpack.c.h.b16 %v265
    %v996 = vunpack.c.l.b16 %v266
    %v997 = vunpack.c.h.b16 %v266
    %v998 = vunpack.c.l.b16 %v267
    %v999 = vunpack.c.h.b16 %v267
    %v1000 = vunpack.c.l.b16 %v268
    %v1001 = vunpack.c.h.b16 %v268
    %v1002 = vunpack.c.l.b16 %v269
    %v1003 = vunpack.c.h.b16 %v269
    %v1004 = vunpack.c.l.b16 %v270
    %v1005 = vunpack.c.h.b16 %v270
    %v1006 = vunpack.c.l.b16 %v271
    %v1007 = vunpack.c.h.b16 %v271
    %v1008 = vunpack.c.l.b16 %v272
    %v1009 = vunpack.c.h.b16 %v272
    %v1010 = vunpack.c.l.b16 %v273
    %v1011 = vunpack.c.h.b16 %v273
    %v1012 = vunpack.c.l.b16 %v274
    %v1013 = vunpack.c.h.b16 %v274
    %v1014 = vunpack.c.l.b16 %v275
    %v1015 = vunpack.c.h.b16 %v275
    %v1016 = vunpack.c.l.b16 %v276
    %v1017 = vunpack.c.h.b16 %v276
    %v1018 = vunpack.c.l.b16 %v277
    %v1019 = vunpack.c.h.b16 %v277
    %v1020 = vunpack.c.l.b16 %v278
    %v1021 = vunpack.c.h.b16 %v278
    %v1022 = vunpack.c.l.b16 %v279
    %v1023 = vunpack.c.h.b16 %v279
    %v1024 = vunpack.c.l.b16 %v280
    %v1025 = vunpack.c.h.b16 %v280
    %v1026 = vunpack.c.l.b16 %v281
    %v1027 = vunpack.c.h.b16 %v281
    %v1028 = vunpack.c.l.b16 %v282
    %v1029 = vunpack.c.h.b16 %v282
    %v1030 = vunpack.c.l.b16 %v283
    %v1031 = vunpack.c.h.b16 %v283
    %v1032 = vunpack.c.l.b16 %v284
    %v1033 = vunpack.c.h.b16 %v284
    %v1034 = vunpack.c.l.b16 %v285
    %v1035 = vunpack.c.h.b16 %v285
    %v1036 = vunpack.c.l.b16 %v286
    %v1037 = vunpack.c.h.b16 %v286
    %v1038 = vunpack.c.l.b16 %v287
    %v1039 = vunpack.c.h.b16 %v287
    %v1040 = vpack.c.b16 %v956, %v944
    %v1041 = vpack.c.b16 %v957, %v945
    %v1042 = vpack.c.b16 %v958, %v946
    %v1043 = vpack.c.b16 %v959, %v947
    %v1044 = vpack.c.b16 %v960, %v948
    %v1045 = vpack.c.b16 %v961, %v949
    %v1046 = vpack.c.b16 %v962, %v950
    %v1047 = vpack.c.b16 %v963, %v951
    %v1048 = vpack.c.b16 %v964, %v952
    %v1049 = vpack.c.b16 %v965, %v953
    %v1050 = vpack.c.b16 %v966, %v954
    %v1051 = vpack.c.b16 %v967, %v955
    %v1052 = vpack.c.b16 %v980, %v968
    %v1053 = vpack.c.b16 %v981, %v969
    %v1054 = vpack.c.b16 %v982, %v970
    %v1055 = vpack.c.b16 %v983, %v971
    %v1056 = vpack.c.b16 %v984, %v972
    %v1057 = vpack.c.b16 %v985, %v973
    %v1058 = vpack.c.b16 %v986, %v974
    %v1059 = vpack.c.b16 %v987, %v975
    %v1060 = vpack.c.b16 %v988, %v976
    %v1061 = vpack.c.b16 %v989, %v977
    %v1062 = vpack.c.b16 %v990, %v978
    %v1063 = vpack.c.b16 %v991, %v979
    %v1064 = vpack.c.b16 %v1004, %v992
    %v1065 = vpack.c.b16 %v1005, %v993
    %v1066 = vpack.c.b16 %v1006, %v994
    %v1067 = vpack.c.b16 %v1007, %v995
    %v1068 = vpack.c.b16 %v1008, %v996
    %v1069 = vpack.c.b16 %v1009, %v997
    %v1070 = vpack.c.b16 %v1010, %v998
    %v1071 = vpack.c.b16 %v1011, %v999
    %v1072 = vpack.c.b16 %v1012, %v1000
    %v1073 = vpack.c.b16 %v1013, %v1001
    %v1074 = vpack.c.b16 %v1014, %v1002
    %v1075 = vpack.c.b16 %v1015, %v1003
    %v1076 = vpack.c.b16 %v1028, %v1016
    %v1077 = vpack.c.b16 %v1029, %v1017
    %v1078 = vpack.c.b16 %v1030, %v1018
    %v1079 = vpack.c.b16 %v1031, %v1019
    %v1080 = vpack.c.b16 %v1032, %v1020
    %v1081 = vpack.c.b16 %v1033, %v1021
    %v1082 = vpack.c.b16 %v1034, %v1022
    %v1083 = vpack.c.b16 %v1035, %v1023
    %v1084 = vpack.c.b16 %v1036, %v1024
    %v1085 = vpack.c.b16 %v1037, %v1025
    %v1086 = vpack.c.b16 %v1038, %v1026
    %v1087 = vpack.c.b16 %v1039, %v1027
    %v1712 = vunpack.c.l.b16 %v288
    %v1713 = vunpack.c.h.b16 %v288
    %v1714 = vunpack.c.l.b16 %v289
    %v1715 = vunpack.c.h.b16 %v289
    %v1716 = vunpack.c.l.b16 %v290
    %v1717 = vunpack.c.h.b16 %v290
    %v1718 = vunpack.c.l.b16 %v291
    %v1719 = vunpack.c.h.b16 %v291
    %v1720 = vunpack.c.l.b16 %v292
    %v1721 = vunpack.c.h.b16 %v292
    %v1722 = vunpack.c.l.b16 %v293
    %v1723 = vunpack.c.h.b16 %v293
    %v1724 = vunpack.c.l.b16 %v294
    %v1725 = vunpack.c.h.b16 %v294
    %v1726 = vunpack.c.l.b16 %v295
    %v1727 = vunpack.c.h.b16 %v295
    %v1728 = vunpack.c.l.b16 %v296
    %v1729 = vunpack.c.h.b16 %v296
    %v1730 = vunpack.c.l.b16 %v297
    %v1731 = vunpack.c.h.b16 %v297
    %v1732 = vunpack.c.l.b16 %v298
    %v1733 = vunpack.c.h.b16 %v298
    %v1734 = vunpack.c.l.b16 %v299
    %v1735 = vunpack.c.h.b16 %v299
    %v1736 = vunpack.c.l.b16 %v300
    %v1737 = vunpack.c.h.b16 %v300
    %v1738 = vunpack.c.l.b16 %v301
    %v1739 = vunpack.c.h.b16 %v301
    %v1740 = vunpack.c.l.b16 %v302
    %v1741 = vunpack.c.h.b16 %v302
    %v1742 = vunpack.c.l.b16 %v303
    %v1743 = vunpack.c.h.b16 %v303
    %v1744 = vunpack.c.l.b16 %v304
    %v1745 = vunpack.c.h.b16 %v304
    %v1746 = vunpack.c.l.b16 %v305
    %v1747 = vunpack.c.h.b16 %v305
    %v1748 = vunpack.c.l.b16 %v306
    %v1749 = vunpack.c.h.b16 %v306
    %v1750 = vunpack.c.l.b16 %v307
    %v1751 = vunpack.c.h.b16 %v307
    %v1752 = vunpack.c.l.b16 %v308
    %v1753 = vunpack.c.h.b16 %v308
    %v1754 = vunpack.c.l.b16 %v309
    %v1755 = vunpack.c.h.b16 %v309
    %v1756 = vunpack.c.l.b16 %v310
    %v1757 = vunpack.c.h.b16 %v310
    %v1758 = vunpack.c.l.b16 %v311
    %v1759 = vunpack.c.h.b16 %v311
    %v1760 = vunpack.c.l.b16 %v312
    %v1761 = vunpack.c.h.b16 %v312
    %v1762 = vunpack.c.l.b16 %v313
    %v1763 = vunpack.c.h.b16 %v313
    %v1764 = vunpack.c.l.b16 %v314
    %v1765 = vunpack.c.h.b16 %v314
    %v1766 = vunpack.c.l.b16 %v315
    %v1767 = vunpack.c.h.b16 %v315
    %v1768 = vunpack.c.l.b16 %v316
    %v1769 = vunpack.c.h.b16 %v316
    %v1770 = vunpack.c.l.b16 %v317
    %v1771 = vunpack.c.h.b16 %v317
    %v1772 = vunpack.c.l.b16 %v318
    %v1773 = vunpack.c.h.b16 %v318
    %v1774 = vunpack.c.l.b16 %v319
    %v1775 = vunpack.c.h.b16 %v319
    %v1776 = vunpack.c.l.b16 %v320
    %v1777 = vunpack.c.h.b16 %v320
    %v1778 = vunpack.c.l.b16 %v321
    %v1779 = vunpack.c.h.b16 %v321
    %v1780 = vunpack.c.l.b16 %v322
    %v1781 = vunpack.c.h.b16 %v322
    %v1782 = vunpack.c.l.b16 %v323
    %v1783 = vunpack.c.h.b16 %v323
    %v1784 = vunpack.c.l.b16 %v324
    %v1785 = vunpack.c.h.b16 %v324
    %v1786 = vunpack.c.l.b16 %v325
    %v1787 = vunpack.c.h.b16 %v325
    %v1788 = vunpack.c.l.b16 %v326
    %v1789 = vunpack.c.h.b16 %v326
    %v1790 = vunpack.c.l.b16 %v327
    %v1791 = vunpack.c.h.b16 %v327
    %v1792 = vunpack.c.l.b16 %v328
    %v1793 = vunpack.c.h.b16 %v328
    %v1794 = vunpack.c.l.b16 %v329
    %v1795 = vunpack.c.h.b16 %v329
    %v1796 = vunpack.c.l.b16 %v330
    %v1797 = vunpack.c.h.b16 %v330
    %v1798 = vunpack.c.l.b16 %v331
    %v1799 = vunpack.c.h.b16 %v331
    %v1800 = vunpack.c.l.b16 %v332
    %v1801 = vunpack.c.h.b16 %v332
    %v1802 = vunpack.c.l.b16 %v333
    %v1803 = vunpack.c.h.b16 %v333
    %v1804 = vunpack.c.l.b16 %v334
    %v1805 = vunpack.c.h.b16 %v334
    %v1806 = vunpack.c.l.b16 %v335
    %v1807 = vunpack.c.h.b16 %v335
    %v1808 = vunpack.c.l.b16 %v336
    %v1809 = vunpack.c.h.b16 %v336
    %v1810 = vunpack.c.l.b16 %v337
    %v1811 = vunpack.c.h.b16 %v337
    %v1812 = vunpack.c.l.b16 %v338
    %v1813 = vunpack.c.h.b16 %v338
    %v1814 = vunpack.c.l.b16 %v339
    %v1815 = vunpack.c.h.b16 %v339
    %v1816 = vunpack.c.l.b16 %v340
    %v1817 = vunpack.c.h.b16 %v340
    %v1818 = vunpack.c.l.b16 %v341
    %v1819 = vunpack.c.h.b16 %v341
    %v1820 = vunpack.c.l.b16 %v342
    %v1821 = vunpack.c.h.b16 %v342
    %v1822 = vunpack.c.l.b16 %v343
    %v1823 = vunpack.c.h.b16 %v343
    %v1824 = vunpack.c.l.b16 %v344
    %v1825 = vunpack.c.h.b16 %v344
    %v1826 = vunpack.c.l.b16 %v345
    %v1827 = vunpack.c.h.b16 %v345
    %v1828 = vunpack.c.l.b16 %v346
    %v1829 = vunpack.c.h.b16 %v346
    %v1830 = vunpack.c.l.b16 %v347
    %v1831 = vunpack.c.h.b16 %v347
    %v1832 = vunpack.c.l.b16 %v348
    %v1833 = vunpack.c.h.b16 %v348
    %v1834 = vunpack.c.l.b16 %v349
    %v1835 = vunpack.c.h.b16 %v349
    %v1836 = vunpack.c.l.b16 %v350
    %v1837 = vunpack.c.h.b16 %v350
    %v1838 = vunpack.c.l.b16 %v351
    %v1839 = vunpack.c.h.b16 %v351
    %v1840 = vunpack.c.l.b16 %v352
    %v1841 = vunpack.c.h.b16 %v352
    %v1842 = vunpack.c.l.b16 %v353
    %v1843 = vunpack.c.h.b16 %v353
    %v1844 = vunpack.c.l.b16 %v354
    %v1845 = vunpack.c.h.b16 %v354
    %v1846 = vunpack.c.l.b16 %v355
    %v1847 = vunpack.c.h.b16 %v355
    %v1848 = vunpack.c.l.b16 %v356
    %v1849 = vunpack.c.h.b16 %v356
    %v1850 = vunpack.c.l.b16 %v357
    %v1851 = vunpack.c.h.b16 %v357
    %v1852 = vunpack.c.l.b16 %v358
    %v1853 = vunpack.c.h.b16 %v358
    %v1854 = vunpack.c.l.b16 %v359
    %v1855 = vunpack.c.h.b16 %v359
    %v1856 = vunpack.c.l.b16 %v360
    %v1857 = vunpack.c.h.b16 %v360
    %v1858 = vunpack.c.l.b16 %v361
    %v1859 = vunpack.c.h.b16 %v361
    %v1860 = vunpack.c.l.b16 %v362
    %v1861 = vunpack.c.h.b16 %v362
    %v1862 = vunpack.c.l.b16 %v363
    %v1863 = vunpack.c.h.b16 %v363
    %v1864 = vunpack.c.l.b16 %v364
    %v1865 = vunpack.c.h.b16 %v364
    %v1866 = vunpack.c.l.b16 %v365
    %v1867 = vunpack.c.h.b16 %v365
    %v1868 = vunpack.c.l.b16 %v366
    %v1869 = vunpack.c.h.b16 %v366
    %v1870 = vunpack.c.l.b16 %v367
    %v1871 = vunpack.c.h.b16 %v367
    %v1872 = vunpack.c.l.b16 %v368
    %v1873 = vunpack.c.h.b16 %v368
    %v1874 = vunpack.c.l.b16 %v369
    %v1875 = vunpack.c.h.b16 %v369
    %v1876 = vunpack.c.l.b16 %v370
    %v1877 = vunpack.c.h.b16 %v370
    %v1878 = vunpack.c.l.b16 %v371
    %v1879 = vunpack.c.h.b16 %v371
    %v1880 = vunpack.c.l.b16 %v372
    %v1881 = vunpack.c.h.b16 %v372
    %v1882 = vunpack.c.l.b16 %v373
    %v1883 = vunpack.c.h.b16 %v373
    %v1884 = vunpack.c.l.b16 %v374
    %v1885 = vunpack.c.h.b16 %v374
    %v1886 = vunpack.c.l.b16 %v375
    %v1887 = vunpack.c.h.b16 %v375
    %v1888 = vunpack.c.l.b16 %v376
    %v1889 = vunpack.c.h.b16 %v376
    %v1890 = vunpack.c.l.b16 %v377
    %v1891 = vunpack.c.h.b16 %v377
    %v1892 = vunpack.c.l.b16 %v378
    %v1893 = vunpack.c.h.b16 %v378
    %v1894 = vunpack.c.l.b16 %v379
    %v1895 = vunpack.c.h.b16 %v379
    %v1896 = vunpack.c.l.b16 %v380
    %v1897 = vunpack.c.h.b16 %v380
    %v1898 = vunpack.c.l.b16 %v381
    %v1899 = vunpack.c.h.b16 %v381
    %v1900 = vunpack.c.l.b16 %v382
    %v1901 = vunpack.c.h.b16 %v382
    %v1902 = vunpack.c.l.b16 %v383
    %v1903 = vunpack.c.h.b16 %v383
    %v1904 = vunpack.c.l.b16 %v384
    %v1905 = vunpack.c.h.b16 %v384
    %v1906 = vunpack.c.l.b16 %v385
    %v1907 = vunpack.c.h.b16 %v385
    %v1908 = vunpack.c.l.b16 %v386
    %v1909 = vunpack.c.h.b16 %v386
    %v1910 = vunpack.c.l.b16 %v387
    %v1911 = vunpack.c.h.b16 %v387
    %v1912 = vunpack.c.l.b16 %v388
    %v1913 = vunpack.c.h.b16 %v388
    %v1914 = vunpack.c.l.b16 %v389
    %v1915 = vunpack.c.h.b16 %v389
    %v1916 = vunpack.c.l.b16 %v390
    %v1917 = vunpack.c.h.b16 %v390
    %v1918 = vunpack.c.l.b16 %v391
    %v1919 = vunpack.c.h.b16 %v391
    %v1920 = vunpack.c.l.b16 %v392
    %v1921 = vunpack.c.h.b16 %v392
    %v1922 = vunpack.c.l.b16 %v393
    %v1923 = vunpack.c.h.b16 %v393
    %v1924 = vunpack.c.l.b16 %v394
    %v1925 = vunpack.c.h.b16 %v394
    %v1926 = vunpack.c.l.b16 %v395
    %v1927 = vunpack.c.h.b16 %v395
    %v1928 = vunpack.c.l.b16 %v396
    %v1929 = vunpack.c.h.b16 %v396
    %v1930 = vunpack.c.l.b16 %v397
    %v1931 = vunpack.c.h.b16 %v397
    %v1932 = vunpack.c.l.b16 %v398
    %v1933 = vunpack.c.h.b16 %v398
    %v1934 = vunpack.c.l.b16 %v399
    %v1935 = vunpack.c.h.b16 %v399
    %v1936 = vunpack.c.l.b16 %v400
    %v1937 = vunpack.c.h.b16 %v400
    %v1938 = vunpack.c.l.b16 %v401
    %v1939 = vunpack.c.h.b16 %v401
    %v1940 = vunpack.c.l.b16 %v402
    %v1941 = vunpack.c.h.b16 %v402
    %v1942 = vunpack.c.l.b16 %v403
    %v1943 = vunpack.c.h.b16 %v403
    %v1944 = vunpack.c.l.b16 %v404
    %v1945 = vunpack.c.h.b16 %v404
    %v1946 = vunpack.c.l.b16 %v405
    %v1947 = vunpack.c.h.b16 %v405
    %v1948 = vunpack.c.l.b16 %v406
    %v1949 = vunpack.c.h.b16 %v406
    %v1950 = vunpack.c.l.b16 %v407
    %v1951 = vunpack.c.h.b16 %v407
    %v1952 = vunpack.c.l.b16 %v408
    %v1953 = vunpack.c.h.b16 %v408
    %v1954 = vunpack.c.l.b16 %v409
    %v1955 = vunpack.c.h.b16 %v409
    %v1956 = vunpack.c.l.b16 %v410
    %v1957 = vunpack.c.h.b16 %v410
    %v1958 = vunpack.c.l.b16 %v411
    %v1959 = vunpack.c.h.b16 %v411
    %v1960 = vunpack.c.l.b16 %v412
    %v1961 = vunpack.c.h.b16 %v412
    %v1962 = vunpack.c.l.b16 %v413
    %v1963 = vunpack.c.h.b16 %v413
    %v1964 = vunpack.c.l.b16 %v414
    %v1965 = vunpack.c.h.b16 %v414
    %v1966 = vunpack.c.l.b16 %v415
    %v1967 = vunpack.c.h.b16 %v415
    %v1968 = vunpack.c.l.b16 %v416
    %v1969 = vunpack.c.h.b16 %v416
    %v1970 = vunpack.c.l.b16 %v417
    %v1971 = vunpack.c.h.b16 %v417
    %v1972 = vunpack.c.l.b16 %v418
    %v1973 = vunpack.c.h.b16 %v418
    %v1974 = vunpack.c.l.b16 %v419
    %v1975 = vunpack.c.h.b16 %v419
    %v1976 = vunpack.c.l.b16 %v420
    %v1977 = vunpack.c.h.b16 %v420
    %v1978 = vunpack.c.l.b16 %v421
    %v1979 = vunpack.c.h.b16 %v421
    %v1980 = vunpack.c.l.b16 %v422
    %v1981 = vunpack.c.h.b16 %v422
    %v1982 = vunpack.c.l.b16 %v423
    %v1983 = vunpack.c.h.b16 %v423
    %v1984 = vunpack.c.l.b16 %v424
    %v1985 = vunpack.c.h.b16 %v424
    %v1986 = vunpack.c.l.b16 %v425
    %v1987 = vunpack.c.h.b16 %v425
    %v1988 = vunpack.c.l.b16 %v426
    %v1989 = vunpack.c.h.b16 %v426
    %v1990 = vunpack.c.l.b16 %v427
    %v1991 = vunpack.c.h.b16 %v427
    %v1992 = vunpack.c.l.b16 %v428
    %v1993 = vunpack.c.h.b16 %v428
    %v1994 = vunpack.c.l.b16 %v429
    %v1995 = vunpack.c.h.b16 %v429
    %v1996 = vunpack.c.l.b16 %v430
    %v1997 = vunpack.c.h.b16 %v430
    %v1998 = vunpack.c.l.b16 %v431
    %v1999 = vunpack.c.h.b16 %v431
    %v2000 = vunpack.c.l.b16 %v432
    %v2001 = vunpack.c.h.b16 %v432
    %v2002 = vunpack.c.l.b16 %v433
    %v2003 = vunpack.c.h.b16 %v433
    %v2004 = vunpack.c.l.b16 %v434
    %v2005 = vunpack.c.h.b16 %v434
    %v2006 = vunpack.c.l.b16 %v435
    %v2007 = vunpack.c.h.b16 %v435
    %v2008 = vunpack.c.l.b16 %v436
    %v2009 = vunpack.c.h.b16 %v436
    %v2010 = vunpack.c.l.b16 %v437
    %v2011 = vunpack.c.h.b16 %v437
    %v2012 = vunpack.c.l.b16 %v438
    %v2013 = vunpack.c.h.b16 %v438
    %v2014 = vunpack.c.l.b16 %v439
    %v2015 = vunpack.c.h.b16 %v439
    %v2016 = vunpack.c.l.b16 %v440
    %v2017 = vunpack.c.h.b16 %v440
    %v2018 = vunpack.c.l.b16 %v441
    %v2019 = vunpack.c.h.b16 %v441
    %v2020 = vunpack.c.l.b16 %v442
    %v2021 = vunpack.c.h.b16 %v442
    %v2022 = vunpack.c.l.b16 %v443
    %v2023 = vunpack.c.h.b16 %v443
    %v2024 = vunpack.c.l.b16 %v444
    %v2025 = vunpack.c.h.b16 %v444
    %v2026 = vunpack.c.l.b16 %v445
    %v2027 = vunpack.c.h.b16 %v445
    %v2028 = vunpack.c.l.b16 %v446
    %v2029 = vunpack.c.h.b16 %v446
    %v2030 = vunpack.c.l.b16 %v447
    %v2031 = vunpack.c.h.b16 %v447
    %v2032 = vunpack.c.l.b16 %v448
    %v2033 = vunpack.c.h.b16 %v448
    %v2034 = vunpack.c.l.b16 %v449
    %v2035 = vunpack.c.h.b16 %v449
    %v2036 = vunpack.c.l.b16 %v450
    %v2037 = vunpack.c.h.b16 %v450
    %v2038 = vunpack.c.l.b16 %v451
    %v2039 = vunpack.c.h.b16 %v451
    %v2040 = vunpack.c.l.b16 %v452
    %v2041 = vunpack.c.h.b16 %v452
    %v2042 = vunpack.c.l.b16 %v453
    %v2043 = vunpack.c.h.b16 %v453
    %v2044 = vunpack.c.l.b16 %v454
    %v2045 = vunpack.c.h.b16 %v454
    %v2046 = vunpack.c.l.b16 %v455
    %v2047 = vunpack.c.h.b16 %v455
    %v2048 = vunpack.c.l.b16 %v456
    %v2049 = vunpack.c.h.b16 %v456
    %v2050 = vunpack.c.l.b16 %v457
    %v2051 = vunpack.c.h.b16 %v457
    %v2052 = vunpack.c.l.b16 %v458
    %v2053 = vunpack.c.h.b16 %v458
    %v2054 = vunpack.c.l.b16 %v459
    %v2055 = vunpack.c.h.b16 %v459
    %v2056 = vunpack.c.l.b16 %v460
    %v2057 = vunpack.c.h.b16 %v460
    %v2058 = vunpack.c.l.b16 %v461
    %v2059 = vunpack.c.h.b16 %v461
    %v2060 = vunpack.c.l.b16 %v462
    %v2061 = vunpack.c.h.b16 %v462
    %v2062 = vunpack.c.l.b16 %v463
    %v2063 = vunpack.c.h.b16 %v463
    %v2064 = vunpack.c.l.b16 %v464
    %v2065 = vunpack.c.h.b16 %v464
    %v2066 = vunpack.c.l.b16 %v465
    %v2067 = vunpack.c.h.b16 %v465
    %v2068 = vunpack.c.l.b16 %v466
    %v2069 = vunpack.c.h.b16 %v466
    %v2070 = vunpack.c.l.b16 %v467
    %v2071 = vunpack.c.h.b16 %v467
    %v2072 = vunpack.c.l.b16 %v468
    %v2073 = vunpack.c.h.b16 %v468
    %v2074 = vunpack.c.l.b16 %v469
    %v2075 = vunpack.c.h.b16 %v469
    %v2076 = vunpack.c.l.b16 %v470
    %v2077 = vunpack.c.h.b16 %v470
    %v2078 = vunpack.c.l.b16 %v471
    %v2079 = vunpack.c.h.b16 %v471
    %v2080 = vunpack.c.l.b16 %v472
    %v2081 = vunpack.c.h.b16 %v472
    %v2082 = vunpack.c.l.b16 %v473
    %v2083 = vunpack.c.h.b16 %v473
    %v2084 = vunpack.c.l.b16 %v474
    %v2085 = vunpack.c.h.b16 %v474
    %v2086 = vunpack.c.l.b16 %v475
    %v2087 = vunpack.c.h.b16 %v475
    %v2088 = vunpack.c.l.b16 %v476
    %v2089 = vunpack.c.h.b16 %v476
    %v2090 = vunpack.c.l.b16 %v477
    %v2091 = vunpack.c.h.b16 %v477
    %v2092 = vunpack.c.l.b16 %v478
    %v2093 = vunpack.c.h.b16 %v478
    %v2094 = vunpack.c.l.b16 %v479
    %v2095 = vunpack.c.h.b16 %v479
    %v2096 = vunpack.c.l.b16 %v480
    %v2097 = vunpack.c.h.b16 %v480
    %v2098 = vunpack.c.l.b16 %v481
    %v2099 = vunpack.c.h.b16 %v481
    %v2100 = vunpack.c.l.b16 %v482
    %v2101 = vunpack.c.h.b16 %v482
    %v2102 = vunpack.c.l.b16 %v483
    %v2103 = vunpack.c.h.b16 %v483
    %v2104 = vunpack.c.l.b16 %v484
    %v2105 = vunpack.c.h.b16 %v484
    %v2106 = vunpack.c.l.b16 %v485
    %v2107 = vunpack.c.h.b16 %v485
    %v2108 = vunpack.c.l.b16 %v486
    %v2109 = vunpack.c.h.b16 %v486
    %v2110 = vunpack.c.l.b16 %v487
    %v2111 = vunpack.c.h.b16 %v487
    %v2112 = vunpack.c.l.b16 %v488
    %v2113 = vunpack.c.h.b16 %v488
    %v2114 = vunpack.c.l.b16 %v489
    %v2115 = vunpack.c.h.b16 %v489
    %v2116 = vunpack.c.l.b16 %v490
    %v2117 = vunpack.c.h.b16 %v490
    %v2118 = vunpack.c.l.b16 %v491
    %v2119 = vunpack.c.h.b16 %v491
    %v2120 = vunpack.c.l.b16 %v492
    %v2121 = vunpack.c.h.b16 %v492
    %v2122 = vunpack.c.l.b16 %v493
    %v2123 = vunpack.c.h.b16 %v493
    %v2124 = vunpack.c.l.b16 %v494
    %v2125 = vunpack.c.h.b16 %v494
    %v2126 = vunpack.c.l.b16 %v495
    %v2127 = vunpack.c.h.b16 %v495
    %v2128 = vunpack.c.l.b16 %v496
    %v2129 = vunpack.c.h.b16 %v496
    %v2130 = vunpack.c.l.b16 %v497
    %v2131 = vunpack.c.h.b16 %v497
    %v2132 = vunpack.c.l.b16 %v498
    %v2133 = vunpack.c.h.b16 %v498
    %v2134 = vunpack.c.l.b16 %v499
    %v2135 = vunpack.c.h.b16 %v499
    %v2136 = vunpack.c.l.b16 %v500
    %v2137 = vunpack.c.h.b16 %v500
    %v2138 = vunpack.c.l.b16 %v501
    %v2139 = vunpack.c.h.b16 %v501
    %v2140 = vunpack.c.l.b16 %v502
    %v2141 = vunpack.c.h.b16 %v502
    %v2142 = vunpack.c.l.b16 %v503
    %v2143 = vunpack.c.h.b16 %v503
    %v2144 = vunpack.c.l.b16 %v504
    %v2145 = vunpack.c.h.b16 %v504
    %v2146 = vunpack.c.l.b16 %v505
    %v2147 = vunpack.c.h.b16 %v505
    %v2148 = vunpack.c.l.b16 %v506
    %v2149 = vunpack.c.h.b16 %v506
    %v2150 = vunpack.c.l.b16 %v507
    %v2151 = vunpack.c.h.b16 %v507
    %v2152 = vunpack.c.l.b16 %v508
    %v2153 = vunpack.c.h.b16 %v508
    %v2154 = vunpack.c.l.b16 %v509
    %v2155 = vunpack.c.h.b16 %v509
    %v2156 = vunpack.c.l.b16 %v510
    %v2157 = vunpack.c.h.b16 %v510
    %v2158 = vunpack.c.l.b16 %v511
    %v2159 = vunpack.c.h.b16 %v511
    %v2160 = vunpack.c.l.b16 %v512
    %v2161 = vunpack.c.h.b16 %v512
    %v2162 = vunpack.c.l.b16 %v513
    %v2163 = vunpack.c.h.b16 %v513
    %v2164 = vunpack.c.l.b16 %v514
    %v2165 = vunpack.c.h.b16 %v514
    %v2166 = vunpack.c.l.b16 %v515
    %v2167 = vunpack.c.h.b16 %v515
    %v2168 = vunpack.c.l.b16 %v516
    %v2169 = vunpack.c.h.b16 %v516
    %v2170 = vunpack.c.l.b16 %v517
    %v2171 = vunpack.c.h.b16 %v517
    %v2172 = vunpack.c.l.b16 %v518
    %v2173 = vunpack.c.h.b16 %v518
    %v2174 = vunpack.c.l.b16 %v519
    %v2175 = vunpack.c.h.b16 %v519
    %v2176 = vunpack.c.l.b16 %v520
    %v2177 = vunpack.c.h.b16 %v520
    %v2178 = vunpack.c.l.b16 %v521
    %v2179 = vunpack.c.h.b16 %v521
    %v2180 = vunpack.c.l.b16 %v522
    %v2181 = vunpack.c.h.b16 %v522
    %v2182 = vunpack.c.l.b16 %v523
    %v2183 = vunpack.c.h.b16 %v523
    %v2184 = vunpack.c.l.b16 %v524
    %v2185 = vunpack.c.h.b16 %v524
    %v2186 = vunpack.c.l.b16 %v525
    %v2187 = vunpack.c.h.b16 %v525
    %v2188 = vunpack.c.l.b16 %v526
    %v2189 = vunpack.c.h.b16 %v526
    %v2190 = vunpack.c.l.b16 %v527
    %v2191 = vunpack.c.h.b16 %v527
    %v2192 = vunpack.c.l.b16 %v528
    %v2193 = vunpack.c.h.b16 %v528
    %v2194 = vunpack.c.l.b16 %v529
    %v2195 = vunpack.c.h.b16 %v529
    %v2196 = vunpack.c.l.b16 %v530
    %v2197 = vunpack.c.h.b16 %v530
    %v2198 = vunpack.c.l.b16 %v531
    %v2199 = vunpack.c.h.b16 %v531
    %v2200 = vunpack.c.l.b16 %v532
    %v2201 = vunpack.c.h.b16 %v532
    %v2202 = vunpack.c.l.b16 %v533
    %v2203 = vunpack.c.h.b16 %v533
    %v2204 = vunpack.c.l.b16 %v534
    %v2205 = vunpack.c.h.b16 %v534
    %v2206 = vunpack.c.l.b16 %v535
    %v2207 = vunpack.c.h.b16 %v535
    %v2208 = vunpack.c.l.b16 %v536
    %v2209 = vunpack.c.h.b16 %v536
    %v2210 = vunpack.c.l.b16 %v537
    %v2211 = vunpack.c.h.b16 %v537
    %v2212 = vunpack.c.l.b16 %v538
    %v2213 = vunpack.c.h.b16 %v538
    %v2214 = vunpack.c.l.b16 %v539
    %v2215 = vunpack.c.h.b16 %v539
    %v2216 = vunpack.c.l.b16 %v540
    %v2217 = vunpack.c.h.b16 %v540
    %v2218 = vunpack.c.l.b16 %v541
    %v2219 = vunpack.c.h.b16 %v541
    %v2220 = vunpack.c.l.b16 %v542
    %v2221 = vunpack.c.h.b16 %v542
    %v2222 = vunpack.c.l.b16 %v543
    %v2223 = vunpack.c.h.b16 %v543
    %v2224 = vunpack.c.l.b16 %v544
    %v2225 = vunpack.c.h.b16 %v544
    %v2226 = vunpack.c.l.b16 %v545
    %v2227 = vunpack.c.h.b16 %v545
    %v2228 = vunpack.c.l.b16 %v546
    %v2229 = vunpack.c.h.b16 %v546
    %v2230 = vunpack.c.l.b16 %v547
    %v2231 = vunpack.c.h.b16 %v547
    %v2232 = vunpack.c.l.b16 %v548
    %v2233 = vunpack.c.h.b16 %v548
    %v2234 = vunpack.c.l.b16 %v549
    %v2235 = vunpack.c.h.b16 %v549
    %v2236 = vunpack.c.l.b16 %v550
    %v2237 = vunpack.c.h.b16 %v550
    %v2238 = vunpack.c.l.b16 %v551
    %v2239 = vunpack.c.h.b16 %v551
    %v2240 = vunpack.c.l.b16 %v552
    %v2241 = vunpack.c.h.b16 %v552
    %v2242 = vunpack.c.l.b16 %v553
    %v2243 = vunpack.c.h.b16 %v553
    %v2244 = vunpack.c.l.b16 %v554
    %v2245 = vunpack.c.h.b16 %v554
    %v2246 = vunpack.c.l.b16 %v555
    %v2247 = vunpack.c.h.b16 %v555
    %v2248 = vunpack.c.l.b16 %v556
    %v2249 = vunpack.c.h.b16 %v556
    %v2250 = vunpack.c.l.b16 %v557
    %v2251 = vunpack.c.h.b16 %v557
    %v2252 = vunpack.c.l.b16 %v558
    %v2253 = vunpack.c.h.b16 %v558
    %v2254 = vunpack.c.l.b16 %v559
    %v2255 = vunpack.c.h.b16 %v559
    %v2256 = vunpack.c.l.b16 %v560
    %v2257 = vunpack.c.h.b16 %v560
    %v2258 = vunpack.c.l.b16 %v561
    %v2259 = vunpack.c.h.b16 %v561
    %v2260 = vunpack.c.l.b16 %v562
    %v2261 = vunpack.c.h.b16 %v562
    %v2262 = vunpack.c.l.b16 %v563
    %v2263 = vunpack.c.h.b16 %v563
    %v2264 = vunpack.c.l.b16 %v564
    %v2265 = vunpack.c.h.b16 %v564
    %v2266 = vunpack.c.l.b16 %v565
    %v2267 = vunpack.c.h.b16 %v565
    %v2268 = vunpack.c.l.b16 %v566
    %v2269 = vunpack.c.h.b16 %v566
    %v2270 = vunpack.c.l.b16 %v567
    %v2271 = vunpack.c.h.b16 %v567
    %v2272 = vunpack.c.l.b16 %v568
    %v2273 = vunpack.c.h.b16 %v568
    %v2274 = vunpack.c.l.b16 %v569
    %v2275 = vunpack.c.h.b16 %v569
    %v2276 = vunpack.c.l.b16 %v570
    %v2277 = vunpack.c.h.b16 %v570
    %v2278 = vunpack.c.l.b16 %v571
    %v2279 = vunpack.c.h.b16 %v571
    %v2280 = vunpack.c.l.b16 %v572
    %v2281 = vunpack.c.h.b16 %v572
    %v2282 = vunpack.c.l.b16 %v573
    %v2283 = vunpack.c.h.b16 %v573
    %v2284 = vunpack.c.l.b16 %v574
    %v2285 = vunpack.c.h.b16 %v574
    %v2286 = vunpack.c.l.b16 %v575
    %v2287 = vunpack.c.h.b16 %v575
    %v2288 = vunpack.c.l.b16 %v576
    %v2289 = vunpack.c.h.b16 %v576
    %v2290 = vunpack.c.l.b16 %v577
    %v2291 = vunpack.c.h.b16 %v577
    %v2292 = vunpack.c.l.b16 %v578
    %v2293 = vunpack.c.h.b16 %v578
    %v2294 = vunpack.c.l.b16 %v579
    %v2295 = vunpack.c.h.b16 %v579
    %v2296 = vunpack.c.l.b16 %v580
    %v2297 = vunpack.c.h.b16 %v580
    %v2298 = vunpack.c.l.b16 %v581
    %v2299 = vunpack.c.h.b16 %v581
    %v2300 = vunpack.c.l.b16 %v582
    %v2301 = vunpack.c.h.b16 %v582
    %v2302 = vunpack.c.l.b16 %v583
    %v2303 = vunpack.c.h.b16 %v583
    %v2304 = vunpack.c.l.b16 %v584
    %v2305 = vunpack.c.h.b16 %v584
    %v2306 = vunpack.c.l.b16 %v585
    %v2307 = vunpack.c.h.b16 %v585
    %v2308 = vunpack.c.l.b16 %v586
    %v2309 = vunpack.c.h.b16 %v586
    %v2310 = vunpack.c.l.b16 %v587
    %v2311 = vunpack.c.h.b16 %v587
    %v2312 = vunpack.c.l.b16 %v588
    %v2313 = vunpack.c.h.b16 %v588
    %v2314 = vunpack.c.l.b16 %v589
    %v2315 = vunpack.c.h.b16 %v589
    %v2316 = vunpack.c.l.b16 %v590
    %v2317 = vunpack.c.h.b16 %v590
    %v2318 = vunpack.c.l.b16 %v591
    %v2319 = vunpack.c.h.b16 %v591
    %v2320 = vunpack.c.l.b16 %v592
    %v2321 = vunpack.c.h.b16 %v592
    %v2322 = vunpack.c.l.b16 %v593
    %v2323 = vunpack.c.h.b16 %v593
    %v2324 = vunpack.c.l.b16 %v594
    %v2325 = vunpack.c.h.b16 %v594
    %v2326 = vunpack.c.l.b16 %v595
    %v2327 = vunpack.c.h.b16 %v595
    %v2328 = vunpack.c.l.b16 %v596
    %v2329 = vunpack.c.h.b16 %v596
    %v2330 = vunpack.c.l.b16 %v597
    %v2331 = vunpack.c.h.b16 %v597
    %v2332 = vunpack.c.l.b16 %v598
    %v2333 = vunpack.c.h.b16 %v598
    %v2334 = vunpack.c.l.b16 %v599
    %v2335 = vunpack.c.h.b16 %v599
    %v2336 = vunpack.c.l.b16 %v600
    %v2337 = vunpack.c.h.b16 %v600
    %v2338 = vunpack.c.l.b16 %v601
    %v2339 = vunpack.c.h.b16 %v601
    %v2340 = vunpack.c.l.b16 %v602
    %v2341 = vunpack.c.h.b16 %v602
    %v2342 = vunpack.c.l.b16 %v603
    %v2343 = vunpack.c.h.b16 %v603
    %v2344 = vunpack.c.l.b16 %v604
    %v2345 = vunpack.c.h.b16 %v604
    %v2346 = vunpack.c.l.b16 %v605
    %v2347 = vunpack.c.h.b16 %v605
    %v2348 = vunpack.c.l.b16 %v606
    %v2349 = vunpack.c.h.b16 %v606
    %v2350 = vunpack.c.l.b16 %v607
    %v2351 = vunpack.c.h.b16 %v607
    %v2352 = vunpack.c.l.b16 %v608
    %v2353 = vunpack.c.h.b16 %v608
    %v2354 = vunpack.c.l.b16 %v609
    %v2355 = vunpack.c.h.b16 %v609
    %v2356 = vunpack.c.l.b16 %v610
    %v2357 = vunpack.c.h.b16 %v610
    %v2358 = vunpack.c.l.b16 %v611
    %v2359 = vunpack.c.h.b16 %v611
    %v2360 = vunpack.c.l.b16 %v612
    %v2361 = vunpack.c.h.b16 %v612
    %v2362 = vunpack.c.l.b16 %v613
    %v2363 = vunpack.c.h.b16 %v613
    %v2364 = vunpack.c.l.b16 %v614
    %v2365 = vunpack.c.h.b16 %v614
    %v2366 = vunpack.c.l.b16 %v615
    %v2367 = vunpack.c.h.b16 %v615
    %v2368 = vunpack.c.l.b16 %v616
    %v2369 = vunpack.c.h.b16 %v616
    %v2370 = vunpack.c.l.b16 %v617
    %v2371 = vunpack.c.h.b16 %v617
    %v2372 = vunpack.c.l.b16 %v618
    %v2373 = vunpack.c.h.b16 %v618
    %v2374 = vunpack.c.l.b16 %v619
    %v2375 = vunpack.c.h.b16 %v619
    %v2376 = vunpack.c.l.b16 %v620
    %v2377 = vunpack.c.h.b16 %v620
    %v2378 = vunpack.c.l.b16 %v621
    %v2379 = vunpack.c.h.b16 %v621
    %v2380 = vunpack.c.l.b16 %v622
    %v2381 = vunpack.c.h.b16 %v622
    %v2382 = vunpack.c.l.b16 %v623
    %v2383 = vunpack.c.h.b16 %v623
    %v2384 = vunpack.c.l.b16 %v624
    %v2385 = vunpack.c.h.b16 %v624
    %v2386 = vunpack.c.l.b16 %v625
    %v2387 = vunpack.c.h.b16 %v625
    %v2388 = vunpack.c.l.b16 %v626
    %v2389 = vunpack.c.h.b16 %v626
    %v2390 = vunpack.c.l.b16 %v627
    %v2391 = vunpack.c.h.b16 %v627
    %v2392 = vunpack.c.l.b16 %v628
    %v2393 = vunpack.c.h.b16 %v628
    %v2394 = vunpack.c.l.b16 %v629
    %v2395 = vunpack.c.h.b16 %v629
    %v2396 = vunpack.c.l.b16 %v630
    %v2397 = vunpack.c.h.b16 %v630
    %v2398 = vunpack.c.l.b16 %v631
    %v2399 = vunpack.c.h.b16 %v631
    %v2400 = vunpack.c.l.b16 %v632
    %v2401 = vunpack.c.h.b16 %v632
    %v2402 = vunpack.c.l.b16 %v633
    %v2403 = vunpack.c.h.b16 %v633
    %v2404 = vunpack.c.l.b16 %v634
    %v2405 = vunpack.c.h.b16 %v634
    %v2406 = vunpack.c.l.b16 %v635
    %v2407 = vunpack.c.h.b16 %v635
    %v2408 = vunpack.c.l.b16 %v636
    %v2409 = vunpack.c.h.b16 %v636
    %v2410 = vunpack.c.l.b16 %v637
    %v2411 = vunpack.c.h.b16 %v637
    %v2412 = vunpack.c.l.b16 %v638
    %v2413 = vunpack.c.h.b16 %v638
    %v2414 = vunpack.c.l.b16 %v639
    %v2415 = vunpack.c.h.b16 %v639
    %v2416 = vunpack.c.l.b16 %v640
    %v2417 = vunpack.c.h.b16 %v640
    %v2418 = vunpack.c.l.b16 %v641
    %v2419 = vunpack.c.h.b16 %v641
    %v2420 = vunpack.c.l.b16 %v642
    %v2421 = vunpack.c.h.b16 %v642
    %v2422 = vunpack.c.l.b16 %v643
    %v2423 = vunpack.c.h.b16 %v643
    %v2424 = vunpack.c.l.b16 %v644
    %v2425 = vunpack.c.h.b16 %v644
    %v2426 = vunpack.c.l.b16 %v645
    %v2427 = vunpack.c.h.b16 %v645
    %v2428 = vunpack.c.l.b16 %v646
    %v2429 = vunpack.c.h.b16 %v646
    %v2430 = vunpack.c.l.b16 %v647
    %v2431 = vunpack.c.h.b16 %v647
    %v2432 = vunpack.c.l.b16 %v648
    %v2433 = vunpack.c.h.b16 %v648
    %v2434 = vunpack.c.l.b16 %v649
    %v2435 = vunpack.c.h.b16 %v649
    %v2436 = vunpack.c.l.b16 %v650
    %v2437 = vunpack.c.h.b16 %v650
    %v2438 = vunpack.c.l.b16 %v651
    %v2439 = vunpack.c.h.b16 %v651
    %v2440 = vunpack.c.l.b16 %v652
    %v2441 = vunpack.c.h.b16 %v652
    %v2442 = vunpack.c.l.b16 %v653
    %v2443 = vunpack.c.h.b16 %v653
    %v2444 = vunpack.c.l.b16 %v654
    %v2445 = vunpack.c.h.b16 %v654
    %v2446 = vunpack.c.l.b16 %v655
    %v2447 = vunpack.c.h.b16 %v655
    %v2448 = vunpack.c.l.b16 %v656
    %v2449 = vunpack.c.h.b16 %v656
    %v2450 = vunpack.c.l.b16 %v657
    %v2451 = vunpack.c.h.b16 %v657
    %v2452 = vunpack.c.l.b16 %v658
    %v2453 = vunpack.c.h.b16 %v658
    %v2454 = vunpack.c.l.b16 %v659
    %v2455 = vunpack.c.h.b16 %v659
    %v2456 = vunpack.c.l.b16 %v660
    %v2457 = vunpack.c.h.b16 %v660
    %v2458 = vunpack.c.l.b16 %v661
    %v2459 = vunpack.c.h.b16 %v661
    %v2460 = vunpack.c.l.b16 %v662
    %v2461 = vunpack.c.h.b16 %v662
    %v2462 = vunpack.c.l.b16 %v663
    %v2463 = vunpack.c.h.b16 %v663
    %v2464 = vunpack.c.l.b16 %v664
    %v2465 = vunpack.c.h.b16 %v664
    %v2466 = vunpack.c.l.b16 %v665
    %v2467 = vunpack.c.h.b16 %v665
    %v2468 = vunpack.c.l.b16 %v666
    %v2469 = vunpack.c.h.b16 %v666
    %v2470 = vunpack.c.l.b16 %v667
    %v2471 = vunpack.c.h.b16 %v667
    %v2472 = vunpack.c.l.b16 %v668
    %v2473 = vunpack.c.h.b16 %v668
    %v2474 = vunpack.c.l.b16 %v669
    %v2475 = vunpack.c.h.b16 %v669
    %v2476 = vunpack.c.l.b16 %v670
    %v2477 = vunpack.c.h.b16 %v670
    %v2478 = vunpack.c.l.b16 %v671
    %v2479 = vunpack.c.h.b16 %v671
    %v2480 = vunpack.c.l.b16 %v672
    %v2481 = vunpack.c.h.b16 %v672
    %v2482 = vunpack.c.l.b16 %v673
    %v2483 = vunpack.c.h.b16 %v673
    %v2484 = vunpack.c.l.b16 %v674
    %v2485 = vunpack.c.h.b16 %v674
    %v2486 = vunpack.c.l.b16 %v675
    %v2487 = vunpack.c.h.b16 %v675
    %v2488 = vunpack.c.l.b16 %v676
    %v2489 = vunpack.c.h.b16 %v676
    %v2490 = vunpack.c.l.b16 %v677
    %v2491 = vunpack.c.h.b16 %v677
    %v2492 = vunpack.c.l.b16 %v678
    %v2493 = vunpack.c.h.b16 %v678
    %v2494 = vunpack.c.l.b16 %v679
    %v2495 = vunpack.c.h.b16 %v679
    %v2496 = vunpack.c.l.b16 %v680
    %v2497 = vunpack.c.h.b16 %v680
    %v2498 = vunpack.c.l.b16 %v681
    %v2499 = vunpack.c.h.b16 %v681
    %v2500 = vunpack.c.l.b16 %v682
    %v2501 = vunpack.c.h.b16 %v682
    %v2502 = vunpack.c.l.b16 %v683
    %v2503 = vunpack.c.h.b16 %v683
    %v2504 = vunpack.c.l.b16 %v684
    %v2505 = vunpack.c.h.b16 %v684
    %v2506 = vunpack.c.l.b16 %v685
    %v2507 = vunpack.c.h.b16 %v685
    %v2508 = vunpack.c.l.b16 %v686
    %v2509 = vunpack.c.h.b16 %v686
    %v2510 = vunpack.c.l.b16 %v687
    %v2511 = vunpack.c.h.b16 %v687
    %v2512 = vunpack.c.l.b16 %v688
    %v2513 = vunpack.c.h.b16 %v688
    %v2514 = vunpack.c.l.b16 %v689
    %v2515 = vunpack.c.h.b16 %v689
    %v2516 = vunpack.c.l.b16 %v690
    %v2517 = vunpack.c.h.b16 %v690
    %v2518 = vunpack.c.l.b16 %v691
    %v2519 = vunpack.c.h.b16 %v691
    %v2520 = vunpack.c.l.b16 %v692
    %v2521 = vunpack.c.h.b16 %v692
    %v2522 = vunpack.c.l.b16 %v693
    %v2523 = vunpack.c.h.b16 %v693
    %v2524 = vunpack.c.l.b16 %v694
    %v2525 = vunpack.c.h.b16 %v694
    %v2526 = vunpack.c.l.b16 %v695
    %v2527 = vunpack.c.h.b16 %v695
    %v2528 = vunpack.c.l.b16 %v696
    %v2529 = vunpack.c.h.b16 %v696
    %v2530 = vunpack.c.l.b16 %v697
    %v2531 = vunpack.c.h.b16 %v697
    %v2532 = vunpack.c.l.b16 %v698
    %v2533 = vunpack.c.h.b16 %v698
    %v2534 = vunpack.c.l.b16 %v699
    %v2535 = vunpack.c.h.b16 %v699
    %v2536 = vunpack.c.l.b16 %v700
    %v2537 = vunpack.c.h.b16 %v700
    %v2538 = vunpack.c.l.b16 %v701
    %v2539 = vunpack.c.h.b16 %v701
    %v2540 = vunpack.c.l.b16 %v702
    %v2541 = vunpack.c.h.b16 %v702
    %v2542 = vunpack.c.l.b16 %v703
    %v2543 = vunpack.c.h.b16 %v703
    %v2544 = vunpack.c.l.b16 %v704
    %v2545 = vunpack.c.h.b16 %v704
    %v2546 = vunpack.c.l.b16 %v705
    %v2547 = vunpack.c.h.b16 %v705
    %v2548 = vunpack.c.l.b16 %v706
    %v2549 = vunpack.c.h.b16 %v706
    %v2550 = vunpack.c.l.b16 %v707
    %v2551 = vunpack.c.h.b16 %v707
    %v2552 = vunpack.c.l.b16 %v708
    %v2553 = vunpack.c.h.b16 %v708
    %v2554 = vunpack.c.l.b16 %v709
    %v2555 = vunpack.c.h.b16 %v709
    %v2556 = vunpack.c.l.b16 %v710
    %v2557 = vunpack.c.h.b16 %v710
    %v2558 = vunpack.c.l.b16 %v711
    %v2559 = vunpack.c.h.b16 %v711
    %v2560 = vunpack.c.l.b16 %v712
    %v2561 = vunpack.c.h.b16 %v712
    %v2562 = vunpack.c.l.b16 %v713
    %v2563 = vunpack.c.h.b16 %v713
    %v2564 = vunpack.c.l.b16 %v714
    %v2565 = vunpack.c.h.b16 %v714
    %v2566 = vunpack.c.l.b16 %v715
    %v2567 = vunpack.c.h.b16 %v715
    %v2568 = vunpack.c.l.b16 %v716
    %v2569 = vunpack.c.h.b16 %v716
    %v2570 = vunpack.c.l.b16 %v717
    %v2571 = vunpack.c.h.b16 %v717
    %v2572 = vunpack.c.l.b16 %v718
    %v2573 = vunpack.c.h.b16 %v718
    %v2574 = vunpack.c.l.b16 %v719
    %v2575 = vunpack.c.h.b16 %v719
    %v2576 = vunpack.c.l.b16 %v720
    %v2577 = vunpack.c.h.b16 %v720
    %v2578 = vunpack.c.l.b16 %v721
    %v2579 = vunpack.c.h.b16 %v721
    %v2580 = vunpack.c.l.b16 %v722
    %v2581 = vunpack.c.h.b16 %v722
    %v2582 = vunpack.c.l.b16 %v723
    %v2583 = vunpack.c.h.b16 %v723
    %v2584 = vunpack.c.l.b16 %v724
    %v2585 = vunpack.c.h.b16 %v724
    %v2586 = vunpack.c.l.b16 %v725
    %v2587 = vunpack.c.h.b16 %v725
    %v2588 = vunpack.c.l.b16 %v726
    %v2589 = vunpack.c.h.b16 %v726
    %v2590 = vunpack.c.l.b16 %v727
    %v2591 = vunpack.c.h.b16 %v727
    %v2592 = vunpack.c.l.b16 %v728
    %v2593 = vunpack.c.h.b16 %v728
    %v2594 = vunpack.c.l.b16 %v729
    %v2595 = vunpack.c.h.b16 %v729
    %v2596 = vunpack.c.l.b16 %v730
    %v2597 = vunpack.c.h.b16 %v730
    %v2598 = vunpack.c.l.b16 %v731
    %v2599 = vunpack.c.h.b16 %v731
    %v2600 = vunpack.c.l.b16 %v732
    %v2601 = vunpack.c.h.b16 %v732
    %v2602 = vunpack.c.l.b16 %v733
    %v2603 = vunpack.c.h.b16 %v733
    %v2604 = vunpack.c.l.b16 %v734
    %v2605 = vunpack.c.h.b16 %v734
    %v2606 = vunpack.c.l.b16 %v735
    %v2607 = vunpack.c.h.b16 %v735
    %v2608 = vunpack.c.l.b16 %v736
    %v2609 = vunpack.c.h.b16 %v736
    %v2610 = vunpack.c.l.b16 %v737
    %v2611 = vunpack.c.h.b16 %v737
    %v2612 = vunpack.c.l.b16 %v738
    %v2613 = vunpack.c.h.b16 %v738
    %v2614 = vunpack.c.l.b16 %v739
    %v2615 = vunpack.c.h.b16 %v739
    %v2616 = vunpack.c.l.b16 %v740
    %v2617 = vunpack.c.h.b16 %v740
    %v2618 = vunpack.c.l.b16 %v741
    %v2619 = vunpack.c.h.b16 %v741
    %v2620 = vunpack.c.l.b16 %v742
    %v2621 = vunpack.c.h.b16 %v742
    %v2622 = vunpack.c.l.b16 %v743
    %v2623 = vunpack.c.h.b16 %v743
    %v2624 = vunpack.c.l.b16 %v744
    %v2625 = vunpack.c.h.b16 %v744
    %v2626 = vunpack.c.l.b16 %v745
    %v2627 = vunpack.c.h.b16 %v745
    %v2628 = vunpack.c.l.b16 %v746
    %v2629 = vunpack.c.h.b16 %v746
    %v2630 = vunpack.c.l.b16 %v747
    %v2631 = vunpack.c.h.b16 %v747
    %v2632 = vunpack.c.l.b16 %v748
    %v2633 = vunpack.c.h.b16 %v748
    %v2634 = vunpack.c.l.b16 %v749
    %v2635 = vunpack.c.h.b16 %v749
    %v2636 = vunpack.c.l.b16 %v750
    %v2637 = vunpack.c.h.b16 %v750
    %v2638 = vunpack.c.l.b16 %v751
    %v2639 = vunpack.c.h.b16 %v751
    %v2640 = vunpack.c.l.b16 %v752
    %v2641 = vunpack.c.h.b16 %v752
    %v2642 = vunpack.c.l.b16 %v753
    %v2643 = vunpack.c.h.b16 %v753
    %v2644 = vunpack.c.l.b16 %v754
    %v2645 = vunpack.c.h.b16 %v754
    %v2646 = vunpack.c.l.b16 %v755
    %v2647 = vunpack.c.h.b16 %v755
    %v2648 = vunpack.c.l.b16 %v756
    %v2649 = vunpack.c.h.b16 %v756
    %v2650 = vunpack.c.l.b16 %v757
    %v2651 = vunpack.c.h.b16 %v757
    %v2652 = vunpack.c.l.b16 %v758
    %v2653 = vunpack.c.h.b16 %v758
    %v2654 = vunpack.c.l.b16 %v759
    %v2655 = vunpack.c.h.b16 %v759
    %v2656 = vunpack.c.l.b16 %v760
    %v2657 = vunpack.c.h.b16 %v760
    %v2658 = vunpack.c.l.b16 %v761
    %v2659 = vunpack.c.h.b16 %v761
    %v2660 = vunpack.c.l.b16 %v762
    %v2661 = vunpack.c.h.b16 %v762
    %v2662 = vunpack.c.l.b16 %v763
    %v2663 = vunpack.c.h.b16 %v763
    %v2664 = vunpack.c.l.b16 %v764
    %v2665 = vunpack.c.h.b16 %v764
    %v2666 = vunpack.c.l.b16 %v765
    %v2667 = vunpack.c.h.b16 %v765
    %v2668 = vunpack.c.l.b16 %v766
    %v2669 = vunpack.c.h.b16 %v766
    %v2670 = vunpack.c.l.b16 %v767
    %v2671 = vunpack.c.h.b16 %v767
    %v2672 = vunpack.c.l.b16 %v768
    %v2673 = vunpack.c.h.b16 %v768
    %v2674 = vunpack.c.l.b16 %v769
    %v2675 = vunpack.c.h.b16 %v769
    %v2676 = vunpack.c.l.b16 %v770
    %v2677 = vunpack.c.h.b16 %v770
    %v2678 = vunpack.c.l.b16 %v771
    %v2679 = vunpack.c.h.b16 %v771
    %v2680 = vunpack.c.l.b16 %v772
    %v2681 = vunpack.c.h.b16 %v772
    %v2682 = vunpack.c.l.b16 %v773
    %v2683 = vunpack.c.h.b16 %v773
    %v2684 = vunpack.c.l.b16 %v774
    %v2685 = vunpack.c.h.b16 %v774
    %v2686 = vunpack.c.l.b16 %v775
    %v2687 = vunpack.c.h.b16 %v775
    %v2688 = vunpack.c.l.b16 %v776
    %v2689 = vunpack.c.h.b16 %v776
    %v2690 = vunpack.c.l.b16 %v777
    %v2691 = vunpack.c.h.b16 %v777
    %v2692 = vunpack.c.l.b16 %v778
    %v2693 = vunpack.c.h.b16 %v778
    %v2694 = vunpack.c.l.b16 %v779
    %v2695 = vunpack.c.h.b16 %v779
    %v2696 = vunpack.c.l.b16 %v780
    %v2697 = vunpack.c.h.b16 %v780
    %v2698 = vunpack.c.l.b16 %v781
    %v2699 = vunpack.c.h.b16 %v781
    %v2700 = vunpack.c.l.b16 %v782
    %v2701 = vunpack.c.h.b16 %v782
    %v2702 = vunpack.c.l.b16 %v783
    %v2703 = vunpack.c.h.b16 %v783
    %v2704 = vunpack.c.l.b16 %v784
    %v2705 = vunpack.c.h.b16 %v784
    %v2706 = vunpack.c.l.b16 %v785
    %v2707 = vunpack.c.h.b16 %v785
    %v2708 = vunpack.c.l.b16 %v786
    %v2709 = vunpack.c.h.b16 %v786
    %v2710 = vunpack.c.l.b16 %v787
    %v2711 = vunpack.c.h.b16 %v787
    %v2712 = vunpack.c.l.b16 %v788
    %v2713 = vunpack.c.h.b16 %v788
    %v2714 = vunpack.c.l.b16 %v789
    %v2715 = vunpack.c.h.b16 %v789
    %v2716 = vunpack.c.l.b16 %v790
    %v2717 = vunpack.c.h.b16 %v790
    %v2718 = vunpack.c.l.b16 %v791
    %v2719 = vunpack.c.h.b16 %v791
    %v2720 = vunpack.c.l.b16 %v792
    %v2721 = vunpack.c.h.b16 %v792
    %v2722 = vunpack.c.l.b16 %v793
    %v2723 = vunpack.c.h.b16 %v793
    %v2724 = vunpack.c.l.b16 %v794
    %v2725 = vunpack.c.h.b16 %v794
    %v2726 = vunpack.c.l.b16 %v795
    %v2727 = vunpack.c.h.b16 %v795
    %v2728 = vunpack.c.l.b16 %v796
    %v2729 = vunpack.c.h.b16 %v796
    %v2730 = vunpack.c.l.b16 %v797
    %v2731 = vunpack.c.h.b16 %v797
    %v2732 = vunpack.c.l.b16 %v798
    %v2733 = vunpack.c.h.b16 %v798
    %v2734 = vunpack.c.l.b16 %v799
    %v2735 = vunpack.c.h.b16 %v799
    %v2736 = vunpack.c.l.b16 %v800
    %v2737 = vunpack.c.h.b16 %v800
    %v2738 = vunpack.c.l.b16 %v801
    %v2739 = vunpack.c.h.b16 %v801
    %v2740 = vunpack.c.l.b16 %v802
    %v2741 = vunpack.c.h.b16 %v802
    %v2742 = vunpack.c.l.b16 %v803
    %v2743 = vunpack.c.h.b16 %v803
    %v2744 = vunpack.c.l.b16 %v804
    %v2745 = vunpack.c.h.b16 %v804
    %v2746 = vunpack.c.l.b16 %v805
    %v2747 = vunpack.c.h.b16 %v805
    %v2748 = vunpack.c.l.b16 %v806
    %v2749 = vunpack.c.h.b16 %v806
    %v2750 = vunpack.c.l.b16 %v807
    %v2751 = vunpack.c.h.b16 %v807
    %v2752 = vunpack.c.l.b16 %v808
    %v2753 = vunpack.c.h.b16 %v808
    %v2754 = vunpack.c.l.b16 %v809
    %v2755 = vunpack.c.h.b16 %v809
    %v2756 = vunpack.c.l.b16 %v810
    %v2757 = vunpack.c.h.b16 %v810
    %v2758 = vunpack.c.l.b16 %v811
    %v2759 = vunpack.c.h.b16 %v811
    %v2760 = vunpack.c.l.b16 %v812
    %v2761 = vunpack.c.h.b16 %v812
    %v2762 = vunpack.c.l.b16 %v813
    %v2763 = vunpack.c.h.b16 %v813
    %v2764 = vunpack.c.l.b16 %v814
    %v2765 = vunpack.c.h.b16 %v814
    %v2766 = vunpack.c.l.b16 %v815
    %v2767 = vunpack.c.h.b16 %v815
    %v2768 = vunpack.c.l.b16 %v816
    %v2769 = vunpack.c.h.b16 %v816
    %v2770 = vunpack.c.l.b16 %v817
    %v2771 = vunpack.c.h.b16 %v817
    %v2772 = vunpack.c.l.b16 %v818
    %v2773 = vunpack.c.h.b16 %v818
    %v2774 = vunpack.c.l.b16 %v819
    %v2775 = vunpack.c.h.b16 %v819
    %v2776 = vunpack.c.l.b16 %v820
    %v2777 = vunpack.c.h.b16 %v820
    %v2778 = vunpack.c.l.b16 %v821
    %v2779 = vunpack.c.h.b16 %v821
    %v2780 = vunpack.c.l.b16 %v822
    %v2781 = vunpack.c.h.b16 %v822
    %v2782 = vunpack.c.l.b16 %v823
    %v2783 = vunpack.c.h.b16 %v823
    %v2784 = vunpack.c.l.b16 %v824
    %v2785 = vunpack.c.h.b16 %v824
    %v2786 = vunpack.c.l.b16 %v825
    %v2787 = vunpack.c.h.b16 %v825
    %v2788 = vunpack.c.l.b16 %v826
    %v2789 = vunpack.c.h.b16 %v826
    %v2790 = vunpack.c.l.b16 %v827
    %v2791 = vunpack.c.h.b16 %v827
    %v2792 = vunpack.c.l.b16 %v828
    %v2793 = vunpack.c.h.b16 %v828
    %v2794 = vunpack.c.l.b16 %v829
    %v2795 = vunpack.c.h.b16 %v829
    %v2796 = vunpack.c.l.b16 %v830
    %v2797 = vunpack.c.h.b16 %v830
    %v2798 = vunpack.c.l.b16 %v831
    %v2799 = vunpack.c.h.b16 %v831
    %v2800 = vunpack.c.l.b16 %v832
    %v2801 = vunpack.c.h.b16 %v832
    %v2802 = vunpack.c.l.b16 %v833
    %v2803 = vunpack.c.h.b16 %v833
    %v2804 = vunpack.c.l.b16 %v834
    %v2805 = vunpack.c.h.b16 %v834
    %v2806 = vunpack.c.l.b16 %v835
    %v2807 = vunpack.c.h.b16 %v835
    %v2808 = vunpack.c.l.b16 %v836
    %v2809 = vunpack.c.h.b16 %v836
    %v2810 = vunpack.c.l.b16 %v837
    %v2811 = vunpack.c.h.b16 %v837
    %v2812 = vunpack.c.l.b16 %v838
    %v2813 = vunpack.c.h.b16 %v838
    %v2814 = vunpack.c.l.b16 %v839
    %v2815 = vunpack.c.h.b16 %v839
    %v2816 = vunpack.c.l.b16 %v840
    %v2817 = vunpack.c.h.b16 %v840
    %v2818 = vunpack.c.l.b16 %v841
    %v2819 = vunpack.c.h.b16 %v841
    %v2820 = vunpack.c.l.b16 %v842
    %v2821 = vunpack.c.h.b16 %v842
    %v2822 = vunpack.c.l.b16 %v843
    %v2823 = vunpack.c.h.b16 %v843
    %v2824 = vunpack.c.l.b16 %v844
    %v2825 = vunpack.c.h.b16 %v844
    %v2826 = vunpack.c.l.b16 %v845
    %v2827 = vunpack.c.h.b16 %v845
    %v2828 = vunpack.c.l.b16 %v846
    %v2829 = vunpack.c.h.b16 %v846
    %v2830 = vunpack.c.l.b16 %v847
    %v2831 = vunpack.c.h.b16 %v847
    %v2832 = vunpack.c.l.b16 %v848
    %v2833 = vunpack.c.h.b16 %v848
    %v2834 = vunpack.c.l.b16 %v849
    %v2835 = vunpack.c.h.b16 %v849
    %v2836 = vunpack.c.l.b16 %v850
    %v2837 = vunpack.c.h.b16 %v850
    %v2838 = vunpack.c.l.b16 %v851
    %v2839 = vunpack.c.h.b16 %v851
    %v2840 = vunpack.c.l.b16 %v852
    %v2841 = vunpack.c.h.b16 %v852
    %v2842 = vunpack.c.l.b16 %v853
    %v2843 = vunpack.c.h.b16 %v853
    %v2844 = vunpack.c.l.b16 %v854
    %v2845 = vunpack.c.h.b16 %v854
    %v2846 = vunpack.c.l.b16 %v855
    %v2847 = vunpack.c.h.b16 %v855
    %v2848 = vunpack.c.l.b16 %v856
    %v2849 = vunpack.c.h.b16 %v856
    %v2850 = vunpack.c.l.b16 %v857
    %v2851 = vunpack.c.h.b16 %v857
    %v2852 = vunpack.c.l.b16 %v858
    %v2853 = vunpack.c.h.b16 %v858
    %v2854 = vunpack.c.l.b16 %v859
    %v2855 = vunpack.c.h.b16 %v859
    %v2856 = vunpack.c.l.b16 %v860
    %v2857 = vunpack.c.h.b16 %v860
    %v2858 = vunpack.c.l.b16 %v861
    %v2859 = vunpack.c.h.b16 %v861
    %v2860 = vunpack.c.l.b16 %v862
    %v2861 = vunpack.c.h.b16 %v862
    %v2862 = vunpack.c.l.b16 %v863
    %v2863 = vunpack.c.h.b16 %v863
    %v2864 = vpack.c.b16 %v1718, %v1712
    %v2865 = vpack.c.b16 %v1719, %v1713
    %v2866 = vpack.c.b16 %v1720, %v1714
    %v2867 = vpack.c.b16 %v1721, %v1715
    %v2868 = vpack.c.b16 %v1722, %v1716
    %v2869 = vpack.c.b16 %v1723, %v1717
    %v2870 = vpack.c.b16 %v1730, %v1724
    %v2871 = vpack.c.b16 %v1731, %v1725
    %v2872 = vpack.c.b16 %v1732, %v1726
    %v2873 = vpack.c.b16 %v1733, %v1727
    %v2874 = vpack.c.b16 %v1734, %v1728
    %v2875 = vpack.c.b16 %v1735, %v1729
    %v2876 = vpack.c.b16 %v1742, %v1736
    %v2877 = vpack.c.b16 %v1743, %v1737
    %v2878 = vpack.c.b16 %v1744, %v1738
    %v2879 = vpack.c.b16 %v1745, %v1739
    %v2880 = vpack.c.b16 %v1746, %v1740
    %v2881 = vpack.c.b16 %v1747, %v1741
    %v2882 = vpack.c.b16 %v1754, %v1748
    %v2883 = vpack.c.b16 %v1755, %v1749
    %v2884 = vpack.c.b16 %v1756, %v1750
    %v2885 = vpack.c.b16 %v1757, %v1751
    %v2886 = vpack.c.b16 %v1758, %v1752
    %v2887 = vpack.c.b16 %v1759, %v1753
    %v2888 = vpack.c.b16 %v1766, %v1760
    %v2889 = vpack.c.b16 %v1767, %v1761
    %v2890 = vpack.c.b16 %v1768, %v1762
    %v2891 = vpack.c.b16 %v1769, %v1763
    %v2892 = vpack.c.b16 %v1770, %v1764
    %v2893 = vpack.c.b16 %v1771, %v1765
    %v2894 = vpack.c.b16 %v1778, %v1772
    %v2895 = vpack.c.b16 %v1779, %v1773
    %v2896 = vpack.c.b16 %v1780, %v1774
    %v2897 = vpack.c.b16 %v1781, %v1775
    %v2898 = vpack.c.b16 %v1782, %v1776
    %v2899 = vpack.c.b16 %v1783, %v1777
    %v2900 = vpack.c.b16 %v1790, %v1784
    %v2901 = vpack.c.b16 %v1791, %v1785
    %v2902 = vpack.c.b16 %v1792, %v1786
    %v2903 = vpack.c.b16 %v1793, %v1787
    %v2904 = vpack.c.b16 %v1794, %v1788
    %v2905 = vpack.c.b16 %v1795, %v1789
    %v2906 = vpack.c.b16 %v1802, %v1796
    %v2907 = vpack.c.b16 %v1803, %v1797
    %v2908 = vpack.c.b16 %v1804, %v1798
    %v2909 = vpack.c.b16 %v1805, %v1799
    %v2910 = vpack.c.b16 %v1806, %v1800
    %v2911 = vpack.c.b16 %v1807, %v1801
    %v2912 = vpack.c.b16 %v1814, %v1808
    %v2913 = vpack.c.b16 %v1815, %v1809
    %v2914 = vpack.c.b16 %v1816, %v1810
    %v2915 = vpack.c.b16 %v1817, %v1811
    %v2916 = vpack.c.b16 %v1818, %v1812
    %v2917 = vpack.c.b16 %v1819, %v1813
    %v2918 = vpack.c.b16 %v1826, %v1820
    %v2919 = vpack.c.b16 %v1827, %v1821
    %v2920 = vpack.c.b16 %v1828, %v1822
    %v2921 = vpack.c.b16 %v1829, %v1823
    %v2922 = vpack.c.b16 %v1830, %v1824
    %v2923 = vpack.c.b16 %v1831, %v1825
    %v2924 = vpack.c.b16 %v1838, %v1832
    %v2925 = vpack.c.b16 %v1839, %v1833
    %v2926 = vpack.c.b16 %v1840, %v1834
    %v2927 = vpack.c.b16 %v1841, %v1835
    %v2928 = vpack.c.b16 %v1842, %v1836
    %v2929 = vpack.c.b16 %v1843, %v1837
    %v2930 = vpack.c.b16 %v1850, %v1844
    %v2931 = vpack.c.b16 %v1851, %v1845
    %v2932 = vpack.c.b16 %v1852, %v1846
    %v2933 = vpack.c.b16 %v1853, %v1847
    %v2934 = vpack.c.b16 %v1854, %v1848
    %v2935 = vpack.c.b16 %v1855, %v1849
    %v2936 = vpack.c.b16 %v1862, %v1856
    %v2937 = vpack.c.b16 %v1863, %v1857
    %v2938 = vpack.c.b16 %v1864, %v1858
    %v2939 = vpack.c.b16 %v1865, %v1859
    %v2940 = vpack.c.b16 %v1866, %v1860
    %v2941 = vpack.c.b16 %v1867, %v1861
    %v2942 = vpack.c.b16 %v1874, %v1868
    %v2943 = vpack.c.b16 %v1875, %v1869
    %v2944 = vpack.c.b16 %v1876, %v1870
    %v2945 = vpack.c.b16 %v1877, %v1871
    %v2946 = vpack.c.b16 %v1878, %v1872
    %v2947 = vpack.c.b16 %v1879, %v1873
    %v2948 = vpack.c.b16 %v1886, %v1880
    %v2949 = vpack.c.b16 %v1887, %v1881
    %v2950 = vpack.c.b16 %v1888, %v1882
    %v2951 = vpack.c.b16 %v1889, %v1883
    %v2952 = vpack.c.b16 %v1890, %v1884
    %v2953 = vpack.c.b16 %v1891, %v1885
    %v2954 = vpack.c.b16 %v1898, %v1892
    %v2955 = vpack.c.b16 %v1899, %v1893
    %v2956 = vpack.c.b16 %v1900, %v1894
    %v2957 = vpack.c.b16 %v1901, %v1895
    %v2958 = vpack.c.b16 %v1902, %v1896
    %v2959 = vpack.c.b16 %v1903, %v1897
    %v2960 = vpack.c.b16 %v1910, %v1904
    %v2961 = vpack.c.b16 %v1911, %v1905
    %v2962 = vpack.c.b16 %v1912, %v1906
    %v2963 = vpack.c.b16 %v1913, %v1907
    %v2964 = vpack.c.b16 %v1914, %v1908
    %v2965 = vpack.c.b16 %v1915, %v1909
    %v2966 = vpack.c.b16 %v1922, %v1916
    %v2967 = vpack.c.b16 %v1923, %v1917
    %v2968 = vpack.c.b16 %v1924, %v1918
    %v2969 = vpack.c.b16 %v1925, %v1919
    %v2970 = vpack.c.b16 %v1926, %v1920
    %v2971 = vpack.c.b16 %v1927, %v1921
    %v2972 = vpack.c.b16 %v1934, %v1928
    %v2973 = vpack.c.b16 %v1935, %v1929
    %v2974 = vpack.c.b16 %v1936, %v1930
    %v2975 = vpack.c.b16 %v1937, %v1931
    %v2976 = vpack.c.b16 %v1938, %v1932
    %v2977 = vpack.c.b16 %v1939, %v1933
    %v2978 = vpack.c.b16 %v1946, %v1940
    %v2979 = vpack.c.b16 %v1947, %v1941
    %v2980 = vpack.c.b16 %v1948, %v1942
    %v2981 = vpack.c.b16 %v1949, %v1943
    %v2982 = vpack.c.b16 %v1950, %v1944
    %v2983 = vpack.c.b16 %v1951, %v1945
    %v2984 = vpack.c.b16 %v1958, %v1952
    %v2985 = vpack.c.b16 %v1959, %v1953
    %v2986 = vpack.c.b16 %v1960, %v1954
    %v2987 = vpack.c.b16 %v1961, %v1955
    %v2988 = vpack.c.b16 %v1962, %v1956
    %v2989 = vpack.c.b16 %v1963, %v1957
    %v2990 = vpack.c.b16 %v1970, %v1964
    %v2991 = vpack.c.b16 %v1971, %v1965
    %v2992 = vpack.c.b16 %v1972, %v1966
    %v2993 = vpack.c.b16 %v1973, %v1967
    %v2994 = vpack.c.b16 %v1974, %v1968
    %v2995 = vpack.c.b16 %v1975, %v1969
    %v2996 = vpack.c.b16 %v1982, %v1976
    %v2997 = vpack.c.b16 %v1983, %v1977
    %v2998 = vpack.c.b16 %v1984, %v1978
    %v2999 = vpack.c.b16 %v1985, %v1979
    %v3000 = vpack.c.b16 %v1986, %v1980
    %v3001 = vpack.c.b16 %v1987, %v1981
    %v3002 = vpack.c.b16 %v1994, %v1988
    %v3003 = vpack.c.b16 %v1995, %v1989
    %v3004 = vpack.c.b16 %v1996, %v1990
    %v3005 = vpack.c.b16 %v1997, %v1991
    %v3006 = vpack.c.b16 %v1998, %v1992
    %v3007 = vpack.c.b16 %v1999, %v1993
    %v3008 = vpack.c.b16 %v2006, %v2000
    %v3009 = vpack.c.b16 %v2007, %v2001
    %v3010 = vpack.c.b16 %v2008, %v2002
    %v3011 = vpack.c.b16 %v2009, %v2003
    %v3012 = vpack.c.b16 %v2010, %v2004
    %v3013 = vpack.c.b16 %v2011, %v2005
    %v3014 = vpack.c.b16 %v2018, %v2012
    %v3015 = vpack.c.b16 %v2019, %v2013
    %v3016 = vpack.c.b16 %v2020, %v2014
    %v3017 = vpack.c.b16 %v2021, %v2015
    %v3018 = vpack.c.b16 %v2022, %v2016
    %v3019 = vpack.c.b16 %v2023, %v2017
    %v3020 = vpack.c.b16 %v2030, %v2024
    %v3021 = vpack.c.b16 %v2031, %v2025
    %v3022 = vpack.c.b16 %v2032, %v2026
    %v3023 = vpack.c.b16 %v2033, %v2027
    %v3024 = vpack.c.b16 %v2034, %v2028
    %v3025 = vpack.c.b16 %v2035, %v2029
    %v3026 = vpack.c.b16 %v2042, %v2036
    %v3027 = vpack.c.b16 %v2043, %v2037
    %v3028 = vpack.c.b16 %v2044, %v2038
    %v3029 = vpack.c.b16 %v2045, %v2039
    %v3030 = vpack.c.b16 %v2046, %v2040
    %v3031 = vpack.c.b16 %v2047, %v2041
    %v3032 = vpack.c.b16 %v2054, %v2048
    %v3033 = vpack.c.b16 %v2055, %v2049
    %v3034 = vpack.c.b16 %v2056, %v2050
    %v3035 = vpack.c.b16 %v2057, %v2051
    %v3036 = vpack.c.b16 %v2058, %v2052
    %v3037 = vpack.c.b16 %v2059, %v2053
    %v3038 = vpack.c.b16 %v2066, %v2060
    %v3039 = vpack.c.b16 %v2067, %v2061
    %v3040 = vpack.c.b16 %v2068, %v2062
    %v3041 = vpack.c.b16 %v2069, %v2063
    %v3042 = vpack.c.b16 %v2070, %v2064
    %v3043 = vpack.c.b16 %v2071, %v2065
    %v3044 = vpack.c.b16 %v2078, %v2072
    %v3045 = vpack.c.b16 %v2079, %v2073
    %v3046 = vpack.c.b16 %v2080, %v2074
    %v3047 = vpack.c.b16 %v2081, %v2075
    %v3048 = vpack.c.b16 %v2082, %v2076
    %v3049 = vpack.c.b16 %v2083, %v2077
    %v3050 = vpack.c.b16 %v2090, %v2084
    %v3051 = vpack.c.b16 %v2091, %v2085
    %v3052 = vpack.c.b16 %v2092, %v2086
    %v3053 = vpack.c.b16 %v2093, %v2087
    %v3054 = vpack.c.b16 %v2094, %v2088
    %v3055 = vpack.c.b16 %v2095, %v2089
    %v3056 = vpack.c.b16 %v2102, %v2096
    %v3057 = vpack.c.b16 %v2103, %v2097
    %v3058 = vpack.c.b16 %v2104, %v2098
    %v3059 = vpack.c.b16 %v2105, %v2099
    %v3060 = vpack.c.b16 %v2106, %v2100
    %v3061 = vpack.c.b16 %v2107, %v2101
    %v3062 = vpack.c.b16 %v2114, %v2108
    %v3063 = vpack.c.b16 %v2115, %v2109
    %v3064 = vpack.c.b16 %v2116, %v2110
    %v3065 = vpack.c.b16 %v2117, %v2111
    %v3066 = vpack.c.b16 %v2118, %v2112
    %v3067 = vpack.c.b16 %v2119, %v2113
    %v3068 = vpack.c.b16 %v2126, %v2120
    %v3069 = vpack.c.b16 %v2127, %v2121
    %v3070 = vpack.c.b16 %v2128, %v2122
    %v3071 = vpack.c.b16 %v2129, %v2123
    %v3072 = vpack.c.b16 %v2130, %v2124
    %v3073 = vpack.c.b16 %v2131, %v2125
    %v3074 = vpack.c.b16 %v2138, %v2132
    %v3075 = vpack.c.b16 %v2139, %v2133
    %v3076 = vpack.c.b16 %v2140, %v2134
    %v3077 = vpack.c.b16 %v2141, %v2135
    %v3078 = vpack.c.b16 %v2142, %v2136
    %v3079 = vpack.c.b16 %v2143, %v2137
    %v3080 = vpack.c.b16 %v2150, %v2144
    %v3081 = vpack.c.b16 %v2151, %v2145
    %v3082 = vpack.c.b16 %v2152, %v2146
    %v3083 = vpack.c.b16 %v2153, %v2147
    %v3084 = vpack.c.b16 %v2154, %v2148
    %v3085 = vpack.c.b16 %v2155, %v2149
    %v3086 = vpack.c.b16 %v2162, %v2156
    %v3087 = vpack.c.b16 %v2163, %v2157
    %v3088 = vpack.c.b16 %v2164, %v2158
    %v3089 = vpack.c.b16 %v2165, %v2159
    %v3090 = vpack.c.b16 %v2166, %v2160
    %v3091 = vpack.c.b16 %v2167, %v2161
    %v3092 = vpack.c.b16 %v2174, %v2168
    %v3093 = vpack.c.b16 %v2175, %v2169
    %v3094 = vpack.c.b16 %v2176, %v2170
    %v3095 = vpack.c.b16 %v2177, %v2171
    %v3096 = vpack.c.b16 %v2178, %v2172
    %v3097 = vpack.c.b16 %v2179, %v2173
    %v3098 = vpack.c.b16 %v2186, %v2180
    %v3099 = vpack.c.b16 %v2187, %v2181
    %v3100 = vpack.c.b16 %v2188, %v2182
    %v3101 = vpack.c.b16 %v2189, %v2183
    %v3102 = vpack.c.b16 %v2190, %v2184
    %v3103 = vpack.c.b16 %v2191, %v2185
    %v3104 = vpack.c.b16 %v2198, %v2192
    %v3105 = vpack.c.b16 %v2199, %v2193
    %v3106 = vpack.c.b16 %v2200, %v2194
    %v3107 = vpack.c.b16 %v2201, %v2195
    %v3108 = vpack.c.b16 %v2202, %v2196
    %v3109 = vpack.c.b16 %v2203, %v2197
    %v3110 = vpack.c.b16 %v2210, %v2204
    %v3111 = vpack.c.b16 %v2211, %v2205
    %v3112 = vpack.c.b16 %v2212, %v2206
    %v3113 = vpack.c.b16 %v2213, %v2207
    %v3114 = vpack.c.b16 %v2214, %v2208
    %v3115 = vpack.c.b16 %v2215, %v2209
    %v3116 = vpack.c.b16 %v2222, %v2216
    %v3117 = vpack.c.b16 %v2223, %v2217
    %v3118 = vpack.c.b16 %v2224, %v2218
    %v3119 = vpack.c.b16 %v2225, %v2219
    %v3120 = vpack.c.b16 %v2226, %v2220
    %v3121 = vpack.c.b16 %v2227, %v2221
    %v3122 = vpack.c.b16 %v2234, %v2228
    %v3123 = vpack.c.b16 %v2235, %v2229
    %v3124 = vpack.c.b16 %v2236, %v2230
    %v3125 = vpack.c.b16 %v2237, %v2231
    %v3126 = vpack.c.b16 %v2238, %v2232
    %v3127 = vpack.c.b16 %v2239, %v2233
    %v3128 = vpack.c.b16 %v2246, %v2240
    %v3129 = vpack.c.b16 %v2247, %v2241
    %v3130 = vpack.c.b16 %v2248, %v2242
    %v3131 = vpack.c.b16 %v2249, %v2243
    %v3132 = vpack.c.b16 %v2250, %v2244
    %v3133 = vpack.c.b16 %v2251, %v2245
    %v3134 = vpack.c.b16 %v2258, %v2252
    %v3135 = vpack.c.b16 %v2259, %v2253
    %v3136 = vpack.c.b16 %v2260, %v2254
    %v3137 = vpack.c.b16 %v2261, %v2255
    %v3138 = vpack.c.b16 %v2262, %v2256
    %v3139 = vpack.c.b16 %v2263, %v2257
    %v3140 = vpack.c.b16 %v2270, %v2264
    %v3141 = vpack.c.b16 %v2271, %v2265
    %v3142 = vpack.c.b16 %v2272, %v2266
    %v3143 = vpack.c.b16 %v2273, %v2267
    %v3144 = vpack.c.b16 %v2274, %v2268
    %v3145 = vpack.c.b16 %v2275, %v2269
    %v3146 = vpack.c.b16 %v2282, %v2276
    %v3147 = vpack.c.b16 %v2283, %v2277
    %v3148 = vpack.c.b16 %v2284, %v2278
    %v3149 = vpack.c.b16 %v2285, %v2279
    %v3150 = vpack.c.b16 %v2286, %v2280
    %v3151 = vpack.c.b16 %v2287, %v2281
    %v3152 = vpack.c.b16 %v2294, %v2288
    %v3153 = vpack.c.b16 %v2295, %v2289
    %v3154 = vpack.c.b16 %v2296, %v2290
    %v3155 = vpack.c.b16 %v2297, %v2291
    %v3156 = vpack.c.b16 %v2298, %v2292
    %v3157 = vpack.c.b16 %v2299, %v2293
    %v3158 = vpack.c.b16 %v2306, %v2300
    %v3159 = vpack.c.b16 %v2307, %v2301
    %v3160 = vpack.c.b16 %v2308, %v2302
    %v3161 = vpack.c.b16 %v2309, %v2303
    %v3162 = vpack.c.b16 %v2310, %v2304
    %v3163 = vpack.c.b16 %v2311, %v2305
    %v3164 = vpack.c.b16 %v2318, %v2312
    %v3165 = vpack.c.b16 %v2319, %v2313
    %v3166 = vpack.c.b16 %v2320, %v2314
    %v3167 = vpack.c.b16 %v2321, %v2315
    %v3168 = vpack.c.b16 %v2322, %v2316
    %v3169 = vpack.c.b16 %v2323, %v2317
    %v3170 = vpack.c.b16 %v2330, %v2324
    %v3171 = vpack.c.b16 %v2331, %v2325
    %v3172 = vpack.c.b16 %v2332, %v2326
    %v3173 = vpack.c.b16 %v2333, %v2327
    %v3174 = vpack.c.b16 %v2334, %v2328
    %v3175 = vpack.c.b16 %v2335, %v2329
    %v3176 = vpack.c.b16 %v2342, %v2336
    %v3177 = vpack.c.b16 %v2343, %v2337
    %v3178 = vpack.c.b16 %v2344, %v2338
    %v3179 = vpack.c.b16 %v2345, %v2339
    %v3180 = vpack.c.b16 %v2346, %v2340
    %v3181 = vpack.c.b16 %v2347, %v2341
    %v3182 = vpack.c.b16 %v2354, %v2348
    %v3183 = vpack.c.b16 %v2355, %v2349
    %v3184 = vpack.c.b16 %v2356, %v2350
    %v3185 = vpack.c.b16 %v2357, %v2351
    %v3186 = vpack.c.b16 %v2358, %v2352
    %v3187 = vpack.c.b16 %v2359, %v2353
    %v3188 = vpack.c.b16 %v2366, %v2360
    %v3189 = vpack.c.b16 %v2367, %v2361
    %v3190 = vpack.c.b16 %v2368, %v2362
    %v3191 = vpack.c.b16 %v2369, %v2363
    %v3192 = vpack.c.b16 %v2370, %v2364
    %v3193 = vpack.c.b16 %v2371, %v2365
    %v3194 = vpack.c.b16 %v2378, %v2372
    %v3195 = vpack.c.b16 %v2379, %v2373
    %v3196 = vpack.c.b16 %v2380, %v2374
    %v3197 = vpack.c.b16 %v2381, %v2375
    %v3198 = vpack.c.b16 %v2382, %v2376
    %v3199 = vpack.c.b16 %v2383, %v2377
    %v3200 = vpack.c.b16 %v2390, %v2384
    %v3201 = vpack.c.b16 %v2391, %v2385
    %v3202 = vpack.c.b16 %v2392, %v2386
    %v3203 = vpack.c.b16 %v2393, %v2387
    %v3204 = vpack.c.b16 %v2394, %v2388
    %v3205 = vpack.c.b16 %v2395, %v2389
    %v3206 = vpack.c.b16 %v2402, %v2396
    %v3207 = vpack.c.b16 %v2403, %v2397
    %v3208 = vpack.c.b16 %v2404, %v2398
    %v3209 = vpack.c.b16 %v2405, %v2399
    %v3210 = vpack.c.b16 %v2406, %v2400
    %v3211 = vpack.c.b16 %v2407, %v2401
    %v3212 = vpack.c.b16 %v2414, %v2408
    %v3213 = vpack.c.b16 %v2415, %v2409
    %v3214 = vpack.c.b16 %v2416, %v2410
    %v3215 = vpack.c.b16 %v2417, %v2411
    %v3216 = vpack.c.b16 %v2418, %v2412
    %v3217 = vpack.c.b16 %v2419, %v2413
    %v3218 = vpack.c.b16 %v2426, %v2420
    %v3219 = vpack.c.b16 %v2427, %v2421
    %v3220 = vpack.c.b16 %v2428, %v2422
    %v3221 = vpack.c.b16 %v2429, %v2423
    %v3222 = vpack.c.b16 %v2430, %v2424
    %v3223 = vpack.c.b16 %v2431, %v2425
    %v3224 = vpack.c.b16 %v2438, %v2432
    %v3225 = vpack.c.b16 %v2439, %v2433
    %v3226 = vpack.c.b16 %v2440, %v2434
    %v3227 = vpack.c.b16 %v2441, %v2435
    %v3228 = vpack.c.b16 %v2442, %v2436
    %v3229 = vpack.c.b16 %v2443, %v2437
    %v3230 = vpack.c.b16 %v2450, %v2444
    %v3231 = vpack.c.b16 %v2451, %v2445
    %v3232 = vpack.c.b16 %v2452, %v2446
    %v3233 = vpack.c.b16 %v2453, %v2447
    %v3234 = vpack.c.b16 %v2454, %v2448
    %v3235 = vpack.c.b16 %v2455, %v2449
    %v3236 = vpack.c.b16 %v2462, %v2456
    %v3237 = vpack.c.b16 %v2463, %v2457
    %v3238 = vpack.c.b16 %v2464, %v2458
    %v3239 = vpack.c.b16 %v2465, %v2459
    %v3240 = vpack.c.b16 %v2466, %v2460
    %v3241 = vpack.c.b16 %v2467, %v2461
    %v3242 = vpack.c.b16 %v2474, %v2468
    %v3243 = vpack.c.b16 %v2475, %v2469
    %v3244 = vpack.c.b16 %v2476, %v2470
    %v3245 = vpack.c.b16 %v2477, %v2471
    %v3246 = vpack.c.b16 %v2478, %v2472
    %v3247 = vpack.c.b16 %v2479, %v2473
    %v3248 = vpack.c.b16 %v2486, %v2480
    %v3249 = vpack.c.b16 %v2487, %v2481
    %v3250 = vpack.c.b16 %v2488, %v2482
    %v3251 = vpack.c.b16 %v2489, %v2483
    %v3252 = vpack.c.b16 %v2490, %v2484
    %v3253 = vpack.c.b16 %v2491, %v2485
    %v3254 = vpack.c.b16 %v2498, %v2492
    %v3255 = vpack.c.b16 %v2499, %v2493
    %v3256 = vpack.c.b16 %v2500, %v2494
    %v3257 = vpack.c.b16 %v2501, %v2495
    %v3258 = vpack.c.b16 %v2502, %v2496
    %v3259 = vpack.c.b16 %v2503, %v2497
    %v3260 = vpack.c.b16 %v2510, %v2504
    %v3261 = vpack.c.b16 %v2511, %v2505
    %v3262 = vpack.c.b16 %v2512, %v2506
    %v3263 = vpack.c.b16 %v2513, %v2507
    %v3264 = vpack.c.b16 %v2514, %v2508
    %v3265 = vpack.c.b16 %v2515, %v2509
    %v3266 = vpack.c.b16 %v2522, %v2516
    %v3267 = vpack.c.b16 %v2523, %v2517
    %v3268 = vpack.c.b16 %v2524, %v2518
    %v3269 = vpack.c.b16 %v2525, %v2519
    %v3270 = vpack.c.b16 %v2526, %v2520
    %v3271 = vpack.c.b16 %v2527, %v2521
    %v3272 = vpack.c.b16 %v2534, %v2528
    %v3273 = vpack.c.b16 %v2535, %v2529
    %v3274 = vpack.c.b16 %v2536, %v2530
    %v3275 = vpack.c.b16 %v2537, %v2531
    %v3276 = vpack.c.b16 %v2538, %v2532
    %v3277 = vpack.c.b16 %v2539, %v2533
    %v3278 = vpack.c.b16 %v2546, %v2540
    %v3279 = vpack.c.b16 %v2547, %v2541
    %v3280 = vpack.c.b16 %v2548, %v2542
    %v3281 = vpack.c.b16 %v2549, %v2543
    %v3282 = vpack.c.b16 %v2550, %v2544
    %v3283 = vpack.c.b16 %v2551, %v2545
    %v3284 = vpack.c.b16 %v2558, %v2552
    %v3285 = vpack.c.b16 %v2559, %v2553
    %v3286 = vpack.c.b16 %v2560, %v2554
    %v3287 = vpack.c.b16 %v2561, %v2555
    %v3288 = vpack.c.b16 %v2562, %v2556
    %v3289 = vpack.c.b16 %v2563, %v2557
    %v3290 = vpack.c.b16 %v2570, %v2564
    %v3291 = vpack.c.b16 %v2571, %v2565
    %v3292 = vpack.c.b16 %v2572, %v2566
    %v3293 = vpack.c.b16 %v2573, %v2567
    %v3294 = vpack.c.b16 %v2574, %v2568
    %v3295 = vpack.c.b16 %v2575, %v2569
    %v3296 = vpack.c.b16 %v2582, %v2576
    %v3297 = vpack.c.b16 %v2583, %v2577
    %v3298 = vpack.c.b16 %v2584, %v2578
    %v3299 = vpack.c.b16 %v2585, %v2579
    %v3300 = vpack.c.b16 %v2586, %v2580
    %v3301 = vpack.c.b16 %v2587, %v2581
    %v3302 = vpack.c.b16 %v2594, %v2588
    %v3303 = vpack.c.b16 %v2595, %v2589
    %v3304 = vpack.c.b16 %v2596, %v2590
    %v3305 = vpack.c.b16 %v2597, %v2591
    %v3306 = vpack.c.b16 %v2598, %v2592
    %v3307 = vpack.c.b16 %v2599, %v2593
    %v3308 = vpack.c.b16 %v2606, %v2600
    %v3309 = vpack.c.b16 %v2607, %v2601
    %v3310 = vpack.c.b16 %v2608, %v2602
    %v3311 = vpack.c.b16 %v2609, %v2603
    %v3312 = vpack.c.b16 %v2610, %v2604
    %v3313 = vpack.c.b16 %v2611, %v2605
    %v3314 = vpack.c.b16 %v2618, %v2612
    %v3315 = vpack.c.b16 %v2619, %v2613
    %v3316 = vpack.c.b16 %v2620, %v2614
    %v3317 = vpack.c.b16 %v2621, %v2615
    %v3318 = vpack.c.b16 %v2622, %v2616
    %v3319 = vpack.c.b16 %v2623, %v2617
    %v3320 = vpack.c.b16 %v2630, %v2624
    %v3321 = vpack.c.b16 %v2631, %v2625
    %v3322 = vpack.c.b16 %v2632, %v2626
    %v3323 = vpack.c.b16 %v2633, %v2627
    %v3324 = vpack.c.b16 %v2634, %v2628
    %v3325 = vpack.c.b16 %v2635, %v2629
    %v3326 = vpack.c.b16 %v2642, %v2636
    %v3327 = vpack.c.b16 %v2643, %v2637
    %v3328 = vpack.c.b16 %v2644, %v2638
    %v3329 = vpack.c.b16 %v2645, %v2639
    %v3330 = vpack.c.b16 %v2646, %v2640
    %v3331 = vpack.c.b16 %v2647, %v2641
    %v3332 = vpack.c.b16 %v2654, %v2648
    %v3333 = vpack.c.b16 %v2655, %v2649
    %v3334 = vpack.c.b16 %v2656, %v2650
    %v3335 = vpack.c.b16 %v2657, %v2651
    %v3336 = vpack.c.b16 %v2658, %v2652
    %v3337 = vpack.c.b16 %v2659, %v2653
    %v3338 = vpack.c.b16 %v2666, %v2660
    %v3339 = vpack.c.b16 %v2667, %v2661
    %v3340 = vpack.c.b16 %v2668, %v2662
    %v3341 = vpack.c.b16 %v2669, %v2663
    %v3342 = vpack.c.b16 %v2670, %v2664
    %v3343 = vpack.c.b16 %v2671, %v2665
    %v3344 = vpack.c.b16 %v2678, %v2672
    %v3345 = vpack.c.b16 %v2679, %v2673
    %v3346 = vpack.c.b16 %v2680, %v2674
    %v3347 = vpack.c.b16 %v2681, %v2675
    %v3348 = vpack.c.b16 %v2682, %v2676
    %v3349 = vpack.c.b16 %v2683, %v2677
    %v3350 = vpack.c.b16 %v2690, %v2684
    %v3351 = vpack.c.b16 %v2691, %v2685
    %v3352 = vpack.c.b16 %v2692, %v2686
    %v3353 = vpack.c.b16 %v2693, %v2687
    %v3354 = vpack.c.b16 %v2694, %v2688
    %v3355 = vpack.c.b16 %v2695, %v2689
    %v3356 = vpack.c.b16 %v2702, %v2696
    %v3357 = vpack.c.b16 %v2703, %v2697
    %v3358 = vpack.c.b16 %v2704, %v2698
    %v3359 = vpack.c.b16 %v2705, %v2699
    %v3360 = vpack.c.b16 %v2706, %v2700
    %v3361 = vpack.c.b16 %v2707, %v2701
    %v3362 = vpack.c.b16 %v2714, %v2708
    %v3363 = vpack.c.b16 %v2715, %v2709
    %v3364 = vpack.c.b16 %v2716, %v2710
    %v3365 = vpack.c.b16 %v2717, %v2711
    %v3366 = vpack.c.b16 %v2718, %v2712
    %v3367 = vpack.c.b16 %v2719, %v2713
    %v3368 = vpack.c.b16 %v2726, %v2720
    %v3369 = vpack.c.b16 %v2727, %v2721
    %v3370 = vpack.c.b16 %v2728, %v2722
    %v3371 = vpack.c.b16 %v2729, %v2723
    %v3372 = vpack.c.b16 %v2730, %v2724
    %v3373 = vpack.c.b16 %v2731, %v2725
    %v3374 = vpack.c.b16 %v2738, %v2732
    %v3375 = vpack.c.b16 %v2739, %v2733
    %v3376 = vpack.c.b16 %v2740, %v2734
    %v3377 = vpack.c.b16 %v2741, %v2735
    %v3378 = vpack.c.b16 %v2742, %v2736
    %v3379 = vpack.c.b16 %v2743, %v2737
    %v3380 = vpack.c.b16 %v2750, %v2744
    %v3381 = vpack.c.b16 %v2751, %v2745
    %v3382 = vpack.c.b16 %v2752, %v2746
    %v3383 = vpack.c.b16 %v2753, %v2747
    %v3384 = vpack.c.b16 %v2754, %v2748
    %v3385 = vpack.c.b16 %v2755, %v2749
    %v3386 = vpack.c.b16 %v2762, %v2756
    %v3387 = vpack.c.b16 %v2763, %v2757
    %v3388 = vpack.c.b16 %v2764, %v2758
    %v3389 = vpack.c.b16 %v2765, %v2759
    %v3390 = vpack.c.b16 %v2766, %v2760
    %v3391 = vpack.c.b16 %v2767, %v2761
    %v3392 = vpack.c.b16 %v2774, %v2768
    %v3393 = vpack.c.b16 %v2775, %v2769
    %v3394 = vpack.c.b16 %v2776, %v2770
    %v3395 = vpack.c.b16 %v2777, %v2771
    %v3396 = vpack.c.b16 %v2778, %v2772
    %v3397 = vpack.c.b16 %v2779, %v2773
    %v3398 = vpack.c.b16 %v2786, %v2780
    %v3399 = vpack.c.b16 %v2787, %v2781
    %v3400 = vpack.c.b16 %v2788, %v2782
    %v3401 = vpack.c.b16 %v2789, %v2783
    %v3402 = vpack.c.b16 %v2790, %v2784
    %v3403 = vpack.c.b16 %v2791, %v2785
    %v3404 = vpack.c.b16 %v2798, %v2792
    %v3405 = vpack.c.b16 %v2799, %v2793
    %v3406 = vpack.c.b16 %v2800, %v2794
    %v3407 = vpack.c.b16 %v2801, %v2795
    %v3408 = vpack.c.b16 %v2802, %v2796
    %v3409 = vpack.c.b16 %v2803, %v2797
    %v3410 = vpack.c.b16 %v2810, %v2804
    %v3411 = vpack.c.b16 %v2811, %v2805
    %v3412 = vpack.c.b16 %v2812, %v2806
    %v3413 = vpack.c.b16 %v2813, %v2807
    %v3414 = vpack.c.b16 %v2814, %v2808
    %v3415 = vpack.c.b16 %v2815, %v2809
    %v3416 = vpack.c.b16 %v2822, %v2816
    %v3417 = vpack.c.b16 %v2823, %v2817
    %v3418 = vpack.c.b16 %v2824, %v2818
    %v3419 = vpack.c.b16 %v2825, %v2819
    %v3420 = vpack.c.b16 %v2826, %v2820
    %v3421 = vpack.c.b16 %v2827, %v2821
    %v3422 = vpack.c.b16 %v2834, %v2828
    %v3423 = vpack.c.b16 %v2835, %v2829
    %v3424 = vpack.c.b16 %v2836, %v2830
    %v3425 = vpack.c.b16 %v2837, %v2831
    %v3426 = vpack.c.b16 %v2838, %v2832
    %v3427 = vpack.c.b16 %v2839, %v2833
    %v3428 = vpack.c.b16 %v2846, %v2840
    %v3429 = vpack.c.b16 %v2847, %v2841
    %v3430 = vpack.c.b16 %v2848, %v2842
    %v3431 = vpack.c.b16 %v2849, %v2843
    %v3432 = vpack.c.b16 %v2850, %v2844
    %v3433 = vpack.c.b16 %v2851, %v2845
    %v3434 = vpack.c.b16 %v2858, %v2852
    %v3435 = vpack.c.b16 %v2859, %v2853
    %v3436 = vpack.c.b16 %v2860, %v2854
    %v3437 = vpack.c.b16 %v2861, %v2855
    %v3438 = vpack.c.b16 %v2862, %v2856
    %v3439 = vpack.c.b16 %v2863, %v2857
    %4016 = vmatprep.subr.bf16.mxu0 %v2865
    %4017 = vmatpush1.bf16.msra.mxu0 %v2864
    %4018 = vmatprep.subr.bf16.mxu0 %v2871
    %4019 = vmatpush1.bf16.msra.mxu0 %v2870
    %4020 = vmatprep.subr.bf16.mxu0 %v2877
    %4021 = vmatpush1.bf16.msra.mxu0 %v2876
    %4022 = vmatprep.subr.bf16.mxu0 %v2883
    %4023 = vmatpush1.bf16.msra.mxu0 %v2882
    %4024 = vmatprep.subr.bf16.mxu0 %v2889
    %4025 = vmatpush1.bf16.msra.mxu0 %v2888
    %4026 = vmatprep.subr.bf16.mxu0 %v2895
    %4027 = vmatpush1.bf16.msra.mxu0 %v2894
    %4028 = vmatprep.subr.bf16.mxu0 %v2901
    %4029 = vmatpush1.bf16.msra.mxu0 %v2900
    %4030 = vmatprep.subr.bf16.mxu0 %v2907
    %4031 = vmatpush1.bf16.msra.mxu0 %v2906
    %4032 = vmatprep.subr.bf16.mxu0 %v2913
    %4033 = vmatpush1.bf16.msra.mxu0 %v2912
    %4034 = vmatprep.subr.bf16.mxu0 %v2919
    %4035 = vmatpush1.bf16.msra.mxu0 %v2918
    %4036 = vmatprep.subr.bf16.mxu0 %v2925
    %4037 = vmatpush1.bf16.msra.mxu0 %v2924
    %4038 = vmatprep.subr.bf16.mxu0 %v2931
    %4039 = vmatpush1.bf16.msra.mxu0 %v2930
    %4040 = vmatprep.subr.bf16.mxu0 %v2937
    %4041 = vmatpush1.bf16.msra.mxu0 %v2936
    %4042 = vmatprep.subr.bf16.mxu0 %v2943
    %4043 = vmatpush1.bf16.msra.mxu0 %v2942
    %4044 = vmatprep.subr.bf16.mxu0 %v2949
    %4045 = vmatpush1.bf16.msra.mxu0 %v2948
    %4046 = vmatprep.subr.bf16.mxu0 %v2955
    %4047 = vmatpush1.bf16.msra.mxu0 %v2954
    %4048 = vmatprep.mubr.bf16.mxu0 %v1041
    %4049 = vmatmul.mubr.bf16.gmra.mrb[0].mxu0 %v1040
    %v4050 = vpop.f32.mrb[0].mxu0
    %v4051 = vadd.f32 %v869, %v4050
    %v4052 = vpop.f32.mrb[0].mxu0
    %v4053 = vadd.f32 %v873, %v4052
    %v4054 = vpop.f32.mrb[0].mxu0
    %v4055 = vadd.f32 %v869, %v4054
    %v4056 = vpop.f32.mrb[0].mxu0
    %v4057 = vadd.f32 %v873, %v4056
    %4058 = vmatprep.mubr.bf16.mxu0 %v1053
    %4059 = vmatmul.mubr.bf16.gmra.mrb[0].mxu0 %v1052
    %v4060 = vpop.f32.mrb[0].mxu0
    %v4061 = vadd.f32 %v869, %v4060
    %v4062 = vpop.f32.mrb[0].mxu0
    %v4063 = vadd.f32 %v873, %v4062
    %v4064 = vpop.f32.mrb[0].mxu0
    %v4065 = vadd.f32 %v869, %v4064
    %v4066 = vpop.f32.mrb[0].mxu0
    %v4067 = vadd.f32 %v873, %v4066
    %4068 = vmatprep.mubr.bf16.mxu0 %v1065
    %4069 = vmatmul.mubr.bf16.gmra.mrb[0].mxu0 %v1064
    %v4070 = vpop.f32.mrb[0].mxu0
    %v4071 = vadd.f32 %v869, %v4070
    %v4072 = vpop.f32.mrb[0].mxu0
    %v4073 = vadd.f32 %v873, %v4072
    %v4074 = vpop.f32.mrb[0].mxu0
    %v4075 = vadd.f32 %v869, %v4074
    %v4076 = vpop.f32.mrb[0].mxu0
    %v4077 = vadd.f32 %v873, %v4076
    %4078 = vmatprep.mubr.bf16.mxu0 %v1077
    %4079 = vmatmul.mubr.bf16.gmra.mrb[0].mxu0 %v1076
    %v4080 = vpop.f32.mrb[0].mxu0
    %v4081 = vadd.f32 %v869, %v4080
    %v4082 = vpop.f32.mrb[0].mxu0
    %v4083 = vadd.f32 %v873, %v4082
    %v4084 = vpop.f32.mrb[0].mxu0
    %v4085 = vadd.f32 %v869, %v4084
    %v4086 = vpop.f32.mrb[0].mxu0
    %v4087 = vadd.f32 %v873, %v4086
    %4088 = vdwg.mxu0
    %4089 = vmatprep.subr.bf16.mxu0 %v2961
    %4090 = vmatpush1.bf16.msra.mxu0 %v2960
    %4091 = vmatprep.subr.bf16.mxu0 %v2967
    %4092 = vmatpush1.bf16.msra.mxu0 %v2966
    %4093 = vmatprep.subr.bf16.mxu0 %v2973
    %4094 = vmatpush1.bf16.msra.mxu0 %v2972
    %4095 = vmatprep.subr.bf16.mxu0 %v2979
    %4096 = vmatpush1.bf16.msra.mxu0 %v2978
    %4097 = vmatprep.subr.bf16.mxu0 %v2985
    %4098 = vmatpush1.bf16.msra.mxu0 %v2984
    %4099 = vmatprep.subr.bf16.mxu0 %v2991
    %4100 = vmatpush1.bf16.msra.mxu0 %v2990
    %4101 = vmatprep.subr.bf16.mxu0 %v2997
    %4102 = vmatpush1.bf16.msra.mxu0 %v2996
    %4103 = vmatprep.subr.bf16.mxu0 %v3003
    %4104 = vmatpush1.bf16.msra.mxu0 %v3002
    %4105 = vmatprep.subr.bf16.mxu0 %v3009
    %4106 = vmatpush1.bf16.msra.mxu0 %v3008
    %4107 = vmatprep.subr.bf16.mxu0 %v3015
    %4108 = vmatpush1.bf16.msra.mxu0 %v3014
    %4109 = vmatprep.subr.bf16.mxu0 %v3021
    %4110 = vmatpush1.bf16.msra.mxu0 %v3020
    %4111 = vmatprep.subr.bf16.mxu0 %v3027
    %4112 = vmatpush1.bf16.msra.mxu0 %v3026
    %4113 = vmatprep.subr.bf16.mxu0 %v3033
    %4114 = vmatpush1.bf16.msra.mxu0 %v3032
    %4115 = vmatprep.subr.bf16.mxu0 %v3039
    %4116 = vmatpush1.bf16.msra.mxu0 %v3038
    %4117 = vmatprep.subr.bf16.mxu0 %v3045
    %4118 = vmatpush1.bf16.msra.mxu0 %v3044
    %4119 = vmatprep.subr.bf16.mxu0 %v3051
    %4120 = vmatpush1.bf16.msra.mxu0 %v3050
    %4121 = vmatprep.mubr.bf16.mxu0 %v1043
    %4122 = vmatmul.mubr.bf16.gmra.mrb[0].mxu0 %v1042
    %v4123 = vpop.f32.mrb[0].mxu0
    %v4124 = vadd.f32 %v4051, %v4123
    %v4125 = vpop.f32.mrb[0].mxu0
    %v4126 = vadd.f32 %v4053, %v4125
    %v4127 = vpop.f32.mrb[0].mxu0
    %v4128 = vadd.f32 %v4055, %v4127
    %v4129 = vpop.f32.mrb[0].mxu0
    %v4130 = vadd.f32 %v4057, %v4129
    %4131 = vmatprep.mubr.bf16.mxu0 %v1055
    %4132 = vmatmul.mubr.bf16.gmra.mrb[0].mxu0 %v1054
    %v4133 = vpop.f32.mrb[0].mxu0
    %v4134 = vadd.f32 %v4061, %v4133
    %v4135 = vpop.f32.mrb[0].mxu0
    %v4136 = vadd.f32 %v4063, %v4135
    %v4137 = vpop.f32.mrb[0].mxu0
    %v4138 = vadd.f32 %v4065, %v4137
    %v4139 = vpop.f32.mrb[0].mxu0
    %v4140 = vadd.f32 %v4067, %v4139
    %4141 = vmatprep.mubr.bf16.mxu0 %v1067
    %4142 = vmatmul.mubr.bf16.gmra.mrb[0].mxu0 %v1066
    %v4143 = vpop.f32.mrb[0].mxu0
    %v4144 = vadd.f32 %v4071, %v4143
    %v4145 = vpop.f32.mrb[0].mxu0
    %v4146 = vadd.f32 %v4073, %v4145
    %v4147 = vpop.f32.mrb[0].mxu0
    %v4148 = vadd.f32 %v4075, %v4147
    %v4149 = vpop.f32.mrb[0].mxu0
    %v4150 = vadd.f32 %v4077, %v4149
    %4151 = vmatprep.mubr.bf16.mxu0 %v1079
    %4152 = vmatmul.mubr.bf16.gmra.mrb[0].mxu0 %v1078
    %v4153 = vpop.f32.mrb[0].mxu0
    %v4154 = vadd.f32 %v4081, %v4153
    %v4155 = vpop.f32.mrb[0].mxu0
    %v4156 = vadd.f32 %v4083, %v4155
    %v4157 = vpop.f32.mrb[0].mxu0
    %v4158 = vadd.f32 %v4085, %v4157
    %v4159 = vpop.f32.mrb[0].mxu0
    %v4160 = vadd.f32 %v4087, %v4159
    %4161 = vdwg.mxu0
    %4162 = vmatprep.subr.bf16.mxu0 %v3057
    %4163 = vmatpush1.bf16.msra.mxu0 %v3056
    %4164 = vmatprep.subr.bf16.mxu0 %v3063
    %4165 = vmatpush1.bf16.msra.mxu0 %v3062
    %4166 = vmatprep.subr.bf16.mxu0 %v3069
    %4167 = vmatpush1.bf16.msra.mxu0 %v3068
    %4168 = vmatprep.subr.bf16.mxu0 %v3075
    %4169 = vmatpush1.bf16.msra.mxu0 %v3074
    %4170 = vmatprep.subr.bf16.mxu0 %v3081
    %4171 = vmatpush1.bf16.msra.mxu0 %v3080
    %4172 = vmatprep.subr.bf16.mxu0 %v3087
    %4173 = vmatpush1.bf16.msra.mxu0 %v3086
    %4174 = vmatprep.subr.bf16.mxu0 %v3093
    %4175 = vmatpush1.bf16.msra.mxu0 %v3092
    %4176 = vmatprep.subr.bf16.mxu0 %v3099
    %4177 = vmatpush1.bf16.msra.mxu0 %v3098
    %4178 = vmatprep.subr.bf16.mxu0 %v3105
    %4179 = vmatpush1.bf16.msra.mxu0 %v3104
    %4180 = vmatprep.subr.bf16.mxu0 %v3111
    %4181 = vmatpush1.bf16.msra.mxu0 %v3110
    %4182 = vmatprep.subr.bf16.mxu0 %v3117
    %4183 = vmatpush1.bf16.msra.mxu0 %v3116
    %4184 = vmatprep.subr.bf16.mxu0 %v3123
    %4185 = vmatpush1.bf16.msra.mxu0 %v3122
    %4186 = vmatprep.subr.bf16.mxu0 %v3129
    %4187 = vmatpush1.bf16.msra.mxu0 %v3128
    %4188 = vmatprep.subr.bf16.mxu0 %v3135
    %4189 = vmatpush1.bf16.msra.mxu0 %v3134
    %4190 = vmatprep.subr.bf16.mxu0 %v3141
    %4191 = vmatpush1.bf16.msra.mxu0 %v3140
    %4192 = vmatprep.subr.bf16.mxu0 %v3147
    %4193 = vmatpush1.bf16.msra.mxu0 %v3146
    %4194 = vmatprep.mubr.bf16.mxu0 %v1045
    %4195 = vmatmul.mubr.bf16.gmra.mrb[0].mxu0 %v1044
    %v4196 = vpop.f32.mrb[0].mxu0
    %v4197 = vadd.f32 %v4124, %v4196
    %v4198 = vpop.f32.mrb[0].mxu0
    %v4199 = vadd.f32 %v4126, %v4198
    %v4200 = vpop.f32.mrb[0].mxu0
    %v4201 = vadd.f32 %v4128, %v4200
    %v4202 = vpop.f32.mrb[0].mxu0
    %v4203 = vadd.f32 %v4130, %v4202
    %4204 = vmatprep.mubr.bf16.mxu0 %v1057
    %4205 = vmatmul.mubr.bf16.gmra.mrb[0].mxu0 %v1056
    %v4206 = vpop.f32.mrb[0].mxu0
    %v4207 = vadd.f32 %v4134, %v4206
    %v4208 = vpop.f32.mrb[0].mxu0
    %v4209 = vadd.f32 %v4136, %v4208
    %v4210 = vpop.f32.mrb[0].mxu0
    %v4211 = vadd.f32 %v4138, %v4210
    %v4212 = vpop.f32.mrb[0].mxu0
    %v4213 = vadd.f32 %v4140, %v4212
    %4214 = vmatprep.mubr.bf16.mxu0 %v1069
    %4215 = vmatmul.mubr.bf16.gmra.mrb[0].mxu0 %v1068
    %v4216 = vpop.f32.mrb[0].mxu0
    %v4217 = vadd.f32 %v4144, %v4216
    %v4218 = vpop.f32.mrb[0].mxu0
    %v4219 = vadd.f32 %v4146, %v4218
    %v4220 = vpop.f32.mrb[0].mxu0
    %v4221 = vadd.f32 %v4148, %v4220
    %v4222 = vpop.f32.mrb[0].mxu0
    %v4223 = vadd.f32 %v4150, %v4222
    %4224 = vmatprep.mubr.bf16.mxu0 %v1081
    %4225 = vmatmul.mubr.bf16.gmra.mrb[0].mxu0 %v1080
    %v4226 = vpop.f32.mrb[0].mxu0
    %v4227 = vadd.f32 %v4154, %v4226
    %v4228 = vpop.f32.mrb[0].mxu0
    %v4229 = vadd.f32 %v4156, %v4228
    %v4230 = vpop.f32.mrb[0].mxu0
    %v4231 = vadd.f32 %v4158, %v4230
    %v4232 = vpop.f32.mrb[0].mxu0
    %v4233 = vadd.f32 %v4160, %v4232
    %4234 = vdwg.mxu0
    %4235 = vmatprep.subr.bf16.mxu0 %v3153
    %4236 = vmatpush1.bf16.msra.mxu0 %v3152
    %4237 = vmatprep.subr.bf16.mxu0 %v3159
    %4238 = vmatpush1.bf16.msra.mxu0 %v3158
    %4239 = vmatprep.subr.bf16.mxu0 %v3165
    %4240 = vmatpush1.bf16.msra.mxu0 %v3164
    %4241 = vmatprep.subr.bf16.mxu0 %v3171
    %4242 = vmatpush1.bf16.msra.mxu0 %v3170
    %4243 = vmatprep.subr.bf16.mxu0 %v3177
    %4244 = vmatpush1.bf16.msra.mxu0 %v3176
    %4245 = vmatprep.subr.bf16.mxu0 %v3183
    %4246 = vmatpush1.bf16.msra.mxu0 %v3182
    %4247 = vmatprep.subr.bf16.mxu0 %v3189
    %4248 = vmatpush1.bf16.msra.mxu0 %v3188
    %4249 = vmatprep.subr.bf16.mxu0 %v3195
    %4250 = vmatpush1.bf16.msra.mxu0 %v3194
    %4251 = vmatprep.subr.bf16.mxu0 %v3201
    %4252 = vmatpush1.bf16.msra.mxu0 %v3200
    %4253 = vmatprep.subr.bf16.mxu0 %v3207
    %4254 = vmatpush1.bf16.msra.mxu0 %v3206
    %4255 = vmatprep.subr.bf16.mxu0 %v3213
    %4256 = vmatpush1.bf16.msra.mxu0 %v3212
    %4257 = vmatprep.subr.bf16.mxu0 %v3219
    %4258 = vmatpush1.bf16.msra.mxu0 %v3218
    %4259 = vmatprep.subr.bf16.mxu0 %v3225
    %4260 = vmatpush1.bf16.msra.mxu0 %v3224
    %4261 = vmatprep.subr.bf16.mxu0 %v3231
    %4262 = vmatpush1.bf16.msra.mxu0 %v3230
    %4263 = vmatprep.subr.bf16.mxu0 %v3237
    %4264 = vmatpush1.bf16.msra.mxu0 %v3236
    %4265 = vmatprep.subr.bf16.mxu0 %v3243
    %4266 = vmatpush1.bf16.msra.mxu0 %v3242
    %4267 = vmatprep.mubr.bf16.mxu0 %v1047
    %4268 = vmatmul.mubr.bf16.gmra.mrb[0].mxu0 %v1046
    %v4269 = vpop.f32.mrb[0].mxu0
    %v4270 = vadd.f32 %v4197, %v4269
    %v4271 = vpop.f32.mrb[0].mxu0
    %v4272 = vadd.f32 %v4199, %v4271
    %v4273 = vpop.f32.mrb[0].mxu0
    %v4274 = vadd.f32 %v4201, %v4273
    %v4275 = vpop.f32.mrb[0].mxu0
    %v4276 = vadd.f32 %v4203, %v4275
    %4277 = vmatprep.mubr.bf16.mxu0 %v1059
    %4278 = vmatmul.mubr.bf16.gmra.mrb[0].mxu0 %v1058
    %v4279 = vpop.f32.mrb[0].mxu0
    %v4280 = vadd.f32 %v4207, %v4279
    %v4281 = vpop.f32.mrb[0].mxu0
    %v4282 = vadd.f32 %v4209, %v4281
    %v4283 = vpop.f32.mrb[0].mxu0
    %v4284 = vadd.f32 %v4211, %v4283
    %v4285 = vpop.f32.mrb[0].mxu0
    %v4286 = vadd.f32 %v4213, %v4285
    %4287 = vmatprep.mubr.bf16.mxu0 %v1071
    %4288 = vmatmul.mubr.bf16.gmra.mrb[0].mxu0 %v1070
    %v4289 = vpop.f32.mrb[0].mxu0
    %v4290 = vadd.f32 %v4217, %v4289
    %v4291 = vpop.f32.mrb[0].mxu0
    %v4292 = vadd.f32 %v4219, %v4291
    %v4293 = vpop.f32.mrb[0].mxu0
    %v4294 = vadd.f32 %v4221, %v4293
    %v4295 = vpop.f32.mrb[0].mxu0
    %v4296 = vadd.f32 %v4223, %v4295
    %4297 = vmatprep.mubr.bf16.mxu0 %v1083
    %4298 = vmatmul.mubr.bf16.gmra.mrb[0].mxu0 %v1082
    %v4299 = vpop.f32.mrb[0].mxu0
    %v4300 = vadd.f32 %v4227, %v4299
    %v4301 = vpop.f32.mrb[0].mxu0
    %v4302 = vadd.f32 %v4229, %v4301
    %v4303 = vpop.f32.mrb[0].mxu0
    %v4304 = vadd.f32 %v4231, %v4303
    %v4305 = vpop.f32.mrb[0].mxu0
    %v4306 = vadd.f32 %v4233, %v4305
    %4307 = vdwg.mxu0
    %4308 = vmatprep.subr.bf16.mxu0 %v3249
    %4309 = vmatpush1.bf16.msra.mxu0 %v3248
    %4310 = vmatprep.subr.bf16.mxu0 %v3255
    %4311 = vmatpush1.bf16.msra.mxu0 %v3254
    %4312 = vmatprep.subr.bf16.mxu0 %v3261
    %4313 = vmatpush1.bf16.msra.mxu0 %v3260
    %4314 = vmatprep.subr.bf16.mxu0 %v3267
    %4315 = vmatpush1.bf16.msra.mxu0 %v3266
    %4316 = vmatprep.subr.bf16.mxu0 %v3273
    %4317 = vmatpush1.bf16.msra.mxu0 %v3272
    %4318 = vmatprep.subr.bf16.mxu0 %v3279
    %4319 = vmatpush1.bf16.msra.mxu0 %v3278
    %4320 = vmatprep.subr.bf16.mxu0 %v3285
    %4321 = vmatpush1.bf16.msra.mxu0 %v3284
    %4322 = vmatprep.subr.bf16.mxu0 %v3291
    %4323 = vmatpush1.bf16.msra.mxu0 %v3290
    %4324 = vmatprep.subr.bf16.mxu0 %v3297
    %4325 = vmatpush1.bf16.msra.mxu0 %v3296
    %4326 = vmatprep.subr.bf16.mxu0 %v3303
    %4327 = vmatpush1.bf16.msra.mxu0 %v3302
    %4328 = vmatprep.subr.bf16.mxu0 %v3309
    %4329 = vmatpush1.bf16.msra.mxu0 %v3308
    %4330 = vmatprep.subr.bf16.mxu0 %v3315
    %4331 = vmatpush1.bf16.msra.mxu0 %v3314
    %4332 = vmatprep.subr.bf16.mxu0 %v3321
    %4333 = vmatpush1.bf16.msra.mxu0 %v3320
    %4334 = vmatprep.subr.bf16.mxu0 %v3327
    %4335 = vmatpush1.bf16.msra.mxu0 %v3326
    %4336 = vmatprep.subr.bf16.mxu0 %v3333
    %4337 = vmatpush1.bf16.msra.mxu0 %v3332
    %4338 = vmatprep.subr.bf16.mxu0 %v3339
    %4339 = vmatpush1.bf16.msra.mxu0 %v3338
    %4340 = vmatprep.mubr.bf16.mxu0 %v1049
    %4341 = vmatmul.mubr.bf16.gmra.mrb[0].mxu0 %v1048
    %v4342 = vpop.f32.mrb[0].mxu0
    %v4343 = vadd.f32 %v4270, %v4342
    %v4344 = vpop.f32.mrb[0].mxu0
    %v4345 = vadd.f32 %v4272, %v4344
    %v4346 = vpop.f32.mrb[0].mxu0
    %v4347 = vadd.f32 %v4274, %v4346
    %v4348 = vpop.f32.mrb[0].mxu0
    %v4349 = vadd.f32 %v4276, %v4348
    %4350 = vmatprep.mubr.bf16.mxu0 %v1061
    %4351 = vmatmul.mubr.bf16.gmra.mrb[0].mxu0 %v1060
    %v4352 = vpop.f32.mrb[0].mxu0
    %v4353 = vadd.f32 %v4280, %v4352
    %v4354 = vpop.f32.mrb[0].mxu0
    %v4355 = vadd.f32 %v4282, %v4354
    %v4356 = vpop.f32.mrb[0].mxu0
    %v4357 = vadd.f32 %v4284, %v4356
    %v4358 = vpop.f32.mrb[0].mxu0
    %v4359 = vadd.f32 %v4286, %v4358
    %4360 = vmatprep.mubr.bf16.mxu0 %v1073
    %4361 = vmatmul.mubr.bf16.gmra.mrb[0].mxu0 %v1072
    %v4362 = vpop.f32.mrb[0].mxu0
    %v4363 = vadd.f32 %v4290, %v4362
    %v4364 = vpop.f32.mrb[0].mxu0
    %v4365 = vadd.f32 %v4292, %v4364
    %v4366 = vpop.f32.mrb[0].mxu0
    %v4367 = vadd.f32 %v4294, %v4366
    %v4368 = vpop.f32.mrb[0].mxu0
    %v4369 = vadd.f32 %v4296, %v4368
    %4370 = vmatprep.mubr.bf16.mxu0 %v1085
    %4371 = vmatmul.mubr.bf16.gmra.mrb[0].mxu0 %v1084
    %v4372 = vpop.f32.mrb[0].mxu0
    %v4373 = vadd.f32 %v4300, %v4372
    %v4374 = vpop.f32.mrb[0].mxu0
    %v4375 = vadd.f32 %v4302, %v4374
    %v4376 = vpop.f32.mrb[0].mxu0
    %v4377 = vadd.f32 %v4304, %v4376
    %v4378 = vpop.f32.mrb[0].mxu0
    %v4379 = vadd.f32 %v4306, %v4378
    %4380 = vdwg.mxu0
    %4381 = vmatprep.subr.bf16.mxu0 %v3345
    %4382 = vmatpush1.bf16.msra.mxu0 %v3344
    %4383 = vmatprep.subr.bf16.mxu0 %v3351
    %4384 = vmatpush1.bf16.msra.mxu0 %v3350
    %4385 = vmatprep.subr.bf16.mxu0 %v3357
    %4386 = vmatpush1.bf16.msra.mxu0 %v3356
    %4387 = vmatprep.subr.bf16.mxu0 %v3363
    %4388 = vmatpush1.bf16.msra.mxu0 %v3362
    %4389 = vmatprep.subr.bf16.mxu0 %v3369
    %4390 = vmatpush1.bf16.msra.mxu0 %v3368
    %4391 = vmatprep.subr.bf16.mxu0 %v3375
    %4392 = vmatpush1.bf16.msra.mxu0 %v3374
    %4393 = vmatprep.subr.bf16.mxu0 %v3381
    %4394 = vmatpush1.bf16.msra.mxu0 %v3380
    %4395 = vmatprep.subr.bf16.mxu0 %v3387
    %4396 = vmatpush1.bf16.msra.mxu0 %v3386
    %4397 = vmatprep.subr.bf16.mxu0 %v3393
    %4398 = vmatpush1.bf16.msra.mxu0 %v3392
    %4399 = vmatprep.subr.bf16.mxu0 %v3399
    %4400 = vmatpush1.bf16.msra.mxu0 %v3398
    %4401 = vmatprep.subr.bf16.mxu0 %v3405
    %4402 = vmatpush1.bf16.msra.mxu0 %v3404
    %4403 = vmatprep.subr.bf16.mxu0 %v3411
    %4404 = vmatpush1.bf16.msra.mxu0 %v3410
    %4405 = vmatprep.subr.bf16.mxu0 %v3417
    %4406 = vmatpush1.bf16.msra.mxu0 %v3416
    %4407 = vmatprep.subr.bf16.mxu0 %v3423
    %4408 = vmatpush1.bf16.msra.mxu0 %v3422
    %4409 = vmatprep.subr.bf16.mxu0 %v3429
    %4410 = vmatpush1.bf16.msra.mxu0 %v3428
    %4411 = vmatprep.subr.bf16.mxu0 %v3435
    %4412 = vmatpush1.bf16.msra.mxu0 %v3434
    %4413 = vmatprep.mubr.bf16.mxu0 %v1051
    %4414 = vmatmul.mubr.bf16.gmra.mrb[0].mxu0 %v1050
    %v4415 = vpop.f32.mrb[0].mxu0
    %v4416 = vadd.f32 %v4343, %v4415
    %v4417 = vpop.f32.mrb[0].mxu0
    %v4418 = vadd.f32 %v4345, %v4417
    %v4419 = vpop.f32.mrb[0].mxu0
    %v4420 = vadd.f32 %v4347, %v4419
    %v4421 = vpop.f32.mrb[0].mxu0
    %v4422 = vadd.f32 %v4349, %v4421
    %4423 = vmatprep.mubr.bf16.mxu0 %v1063
    %4424 = vmatmul.mubr.bf16.gmra.mrb[0].mxu0 %v1062
    %v4425 = vpop.f32.mrb[0].mxu0
    %v4426 = vadd.f32 %v4353, %v4425
    %v4427 = vpop.f32.mrb[0].mxu0
    %v4428 = vadd.f32 %v4355, %v4427
    %v4429 = vpop.f32.mrb[0].mxu0
    %v4430 = vadd.f32 %v4357, %v4429
    %v4431 = vpop.f32.mrb[0].mxu0
    %v4432 = vadd.f32 %v4359, %v4431
    %4433 = vmatprep.mubr.bf16.mxu0 %v1075
    %4434 = vmatmul.mubr.bf16.gmra.mrb[0].mxu0 %v1074
    %v4435 = vpop.f32.mrb[0].mxu0
    %v4436 = vadd.f32 %v4363, %v4435
    %v4437 = vpop.f32.mrb[0].mxu0
    %v4438 = vadd.f32 %v4365, %v4437
    %v4439 = vpop.f32.mrb[0].mxu0
    %v4440 = vadd.f32 %v4367, %v4439
    %v4441 = vpop.f32.mrb[0].mxu0
    %v4442 = vadd.f32 %v4369, %v4441
    %4443 = vmatprep.mubr.bf16.mxu0 %v1087
    %4444 = vmatmul.mubr.bf16.gmra.mrb[0].mxu0 %v1086
    %v4445 = vpop.f32.mrb[0].mxu0
    %v4446 = vadd.f32 %v4373, %v4445
    %v4447 = vpop.f32.mrb[0].mxu0
    %v4448 = vadd.f32 %v4375, %v4447
    %v4449 = vpop.f32.mrb[0].mxu0
    %v4450 = vadd.f32 %v4377, %v4449
    %v4451 = vpop.f32.mrb[0].mxu0
    %v4452 = vadd.f32 %v4379, %v4451
    %4453 = vdwg.mxu0
    %4454 = vmatprep.subr.bf16.mxu0 %v2867
    %4455 = vmatpush1.bf16.msra.mxu0 %v2866
    %4456 = vmatprep.subr.bf16.mxu0 %v2873
    %4457 = vmatpush1.bf16.msra.mxu0 %v2872
    %4458 = vmatprep.subr.bf16.mxu0 %v2879
    %4459 = vmatpush1.bf16.msra.mxu0 %v2878
    %4460 = vmatprep.subr.bf16.mxu0 %v2885
    %4461 = vmatpush1.bf16.msra.mxu0 %v2884
    %4462 = vmatprep.subr.bf16.mxu0 %v2891
    %4463 = vmatpush1.bf16.msra.mxu0 %v2890
    %4464 = vmatprep.subr.bf16.mxu0 %v2897
    %4465 = vmatpush1.bf16.msra.mxu0 %v2896
    %4466 = vmatprep.subr.bf16.mxu0 %v2903
    %4467 = vmatpush1.bf16.msra.mxu0 %v2902
    %4468 = vmatprep.subr.bf16.mxu0 %v2909
    %4469 = vmatpush1.bf16.msra.mxu0 %v2908
    %4470 = vmatprep.subr.bf16.mxu0 %v2915
    %4471 = vmatpush1.bf16.msra.mxu0 %v2914
    %4472 = vmatprep.subr.bf16.mxu0 %v2921
    %4473 = vmatpush1.bf16.msra.mxu0 %v2920
    %4474 = vmatprep.subr.bf16.mxu0 %v2927
    %4475 = vmatpush1.bf16.msra.mxu0 %v2926
    %4476 = vmatprep.subr.bf16.mxu0 %v2933
    %4477 = vmatpush1.bf16.msra.mxu0 %v2932
    %4478 = vmatprep.subr.bf16.mxu0 %v2939
    %4479 = vmatpush1.bf16.msra.mxu0 %v2938
    %4480 = vmatprep.subr.bf16.mxu0 %v2945
    %4481 = vmatpush1.bf16.msra.mxu0 %v2944
    %4482 = vmatprep.subr.bf16.mxu0 %v2951
    %4483 = vmatpush1.bf16.msra.mxu0 %v2950
    %4484 = vmatprep.subr.bf16.mxu0 %v2957
    %4485 = vmatpush1.bf16.msra.mxu0 %v2956
    %4486 = vmatprep.mubr.bf16.mxu0 %v1041
    %4487 = vmatmul.mubr.bf16.gmra.mrb[0].mxu0 %v1040
    %v4488 = vpop.f32.mrb[0].mxu0
    %v4489 = vadd.f32 %v877, %v4488
    %v4490 = vpop.f32.mrb[0].mxu0
    %v4491 = vadd.f32 %v881, %v4490
    %v4492 = vpop.f32.mrb[0].mxu0
    %v4493 = vadd.f32 %v877, %v4492
    %v4494 = vpop.f32.mrb[0].mxu0
    %v4495 = vadd.f32 %v881, %v4494
    %4496 = vmatprep.mubr.bf16.mxu0 %v1053
    %4497 = vmatmul.mubr.bf16.gmra.mrb[0].mxu0 %v1052
    %v4498 = vpop.f32.mrb[0].mxu0
    %v4499 = vadd.f32 %v877, %v4498
    %v4500 = vpop.f32.mrb[0].mxu0
    %v4501 = vadd.f32 %v881, %v4500
    %v4502 = vpop.f32.mrb[0].mxu0
    %v4503 = vadd.f32 %v877, %v4502
    %v4504 = vpop.f32.mrb[0].mxu0
    %v4505 = vadd.f32 %v881, %v4504
    %4506 = vmatprep.mubr.bf16.mxu0 %v1065
    %4507 = vmatmul.mubr.bf16.gmra.mrb[0].mxu0 %v1064
    %v4508 = vpop.f32.mrb[0].mxu0
    %v4509 = vadd.f32 %v877, %v4508
    %v4510 = vpop.f32.mrb[0].mxu0
    %v4511 = vadd.f32 %v881, %v4510
    %v4512 = vpop.f32.mrb[0].mxu0
    %v4513 = vadd.f32 %v877, %v4512
    %v4514 = vpop.f32.mrb[0].mxu0
    %v4515 = vadd.f32 %v881, %v4514
    %4516 = vmatprep.mubr.bf16.mxu0 %v1077
    %4517 = vmatmul.mubr.bf16.gmra.mrb[0].mxu0 %v1076
    %v4518 = vpop.f32.mrb[0].mxu0
    %v4519 = vadd.f32 %v877, %v4518
    %v4520 = vpop.f32.mrb[0].mxu0
    %v4521 = vadd.f32 %v881, %v4520
    %v4522 = vpop.f32.mrb[0].mxu0
    %v4523 = vadd.f32 %v877, %v4522
    %v4524 = vpop.f32.mrb[0].mxu0
    %v4525 = vadd.f32 %v881, %v4524
    %4526 = vdwg.mxu0
    %4527 = vmatprep.subr.bf16.mxu0 %v2963
    %4528 = vmatpush1.bf16.msra.mxu0 %v2962
    %4529 = vmatprep.subr.bf16.mxu0 %v2969
    %4530 = vmatpush1.bf16.msra.mxu0 %v2968
    %4531 = vmatprep.subr.bf16.mxu0 %v2975
    %4532 = vmatpush1.bf16.msra.mxu0 %v2974
    %4533 = vmatprep.subr.bf16.mxu0 %v2981
    %4534 = vmatpush1.bf16.msra.mxu0 %v2980
    %4535 = vmatprep.subr.bf16.mxu0 %v2987
    %4536 = vmatpush1.bf16.msra.mxu0 %v2986
    %4537 = vmatprep.subr.bf16.mxu0 %v2993
    %4538 = vmatpush1.bf16.msra.mxu0 %v2992
    %4539 = vmatprep.subr.bf16.mxu0 %v2999
    %4540 = vmatpush1.bf16.msra.mxu0 %v2998
    %4541 = vmatprep.subr.bf16.mxu0 %v3005
    %4542 = vmatpush1.bf16.msra.mxu0 %v3004
    %4543 = vmatprep.subr.bf16.mxu0 %v3011
    %4544 = vmatpush1.bf16.msra.mxu0 %v3010
    %4545 = vmatprep.subr.bf16.mxu0 %v3017
    %4546 = vmatpush1.bf16.msra.mxu0 %v3016
    %4547 = vmatprep.subr.bf16.mxu0 %v3023
    %4548 = vmatpush1.bf16.msra.mxu0 %v3022
    %4549 = vmatprep.subr.bf16.mxu0 %v3029
    %4550 = vmatpush1.bf16.msra.mxu0 %v3028
    %4551 = vmatprep.subr.bf16.mxu0 %v3035
    %4552 = vmatpush1.bf16.msra.mxu0 %v3034
    %4553 = vmatprep.subr.bf16.mxu0 %v3041
    %4554 = vmatpush1.bf16.msra.mxu0 %v3040
    %4555 = vmatprep.subr.bf16.mxu0 %v3047
    %4556 = vmatpush1.bf16.msra.mxu0 %v3046
    %4557 = vmatprep.subr.bf16.mxu0 %v3053
    %4558 = vmatpush1.bf16.msra.mxu0 %v3052
    %4559 = vmatprep.mubr.bf16.mxu0 %v1043
    %4560 = vmatmul.mubr.bf16.gmra.mrb[0].mxu0 %v1042
    %v4561 = vpop.f32.mrb[0].mxu0
    %v4562 = vadd.f32 %v4489, %v4561
    %v4563 = vpop.f32.mrb[0].mxu0
    %v4564 = vadd.f32 %v4491, %v4563
    %v4565 = vpop.f32.mrb[0].mxu0
    %v4566 = vadd.f32 %v4493, %v4565
    %v4567 = vpop.f32.mrb[0].mxu0
    %v4568 = vadd.f32 %v4495, %v4567
    %4569 = vmatprep.mubr.bf16.mxu0 %v1055
    %4570 = vmatmul.mubr.bf16.gmra.mrb[0].mxu0 %v1054
    %v4571 = vpop.f32.mrb[0].mxu0
    %v4572 = vadd.f32 %v4499, %v4571
    %v4573 = vpop.f32.mrb[0].mxu0
    %v4574 = vadd.f32 %v4501, %v4573
    %v4575 = vpop.f32.mrb[0].mxu0
    %v4576 = vadd.f32 %v4503, %v4575
    %v4577 = vpop.f32.mrb[0].mxu0
    %v4578 = vadd.f32 %v4505, %v4577
    %4579 = vmatprep.mubr.bf16.mxu0 %v1067
    %4580 = vmatmul.mubr.bf16.gmra.mrb[0].mxu0 %v1066
    %v4581 = vpop.f32.mrb[0].mxu0
    %v4582 = vadd.f32 %v4509, %v4581
    %v4583 = vpop.f32.mrb[0].mxu0
    %v4584 = vadd.f32 %v4511, %v4583
    %v4585 = vpop.f32.mrb[0].mxu0
    %v4586 = vadd.f32 %v4513, %v4585
    %v4587 = vpop.f32.mrb[0].mxu0
    %v4588 = vadd.f32 %v4515, %v4587
    %4589 = vmatprep.mubr.bf16.mxu0 %v1079
    %4590 = vmatmul.mubr.bf16.gmra.mrb[0].mxu0 %v1078
    %v4591 = vpop.f32.mrb[0].mxu0
    %v4592 = vadd.f32 %v4519, %v4591
    %v4593 = vpop.f32.mrb[0].mxu0
    %v4594 = vadd.f32 %v4521, %v4593
    %v4595 = vpop.f32.mrb[0].mxu0
    %v4596 = vadd.f32 %v4523, %v4595
    %v4597 = vpop.f32.mrb[0].mxu0
    %v4598 = vadd.f32 %v4525, %v4597
    %4599 = vdwg.mxu0
    %4600 = vmatprep.subr.bf16.mxu0 %v3059
    %4601 = vmatpush1.bf16.msra.mxu0 %v3058
    %4602 = vmatprep.subr.bf16.mxu0 %v3065
    %4603 = vmatpush1.bf16.msra.mxu0 %v3064
    %4604 = vmatprep.subr.bf16.mxu0 %v3071
    %4605 = vmatpush1.bf16.msra.mxu0 %v3070
    %4606 = vmatprep.subr.bf16.mxu0 %v3077
    %4607 = vmatpush1.bf16.msra.mxu0 %v3076
    %4608 = vmatprep.subr.bf16.mxu0 %v3083
    %4609 = vmatpush1.bf16.msra.mxu0 %v3082
    %4610 = vmatprep.subr.bf16.mxu0 %v3089
    %4611 = vmatpush1.bf16.msra.mxu0 %v3088
    %4612 = vmatprep.subr.bf16.mxu0 %v3095
    %4613 = vmatpush1.bf16.msra.mxu0 %v3094
    %4614 = vmatprep.subr.bf16.mxu0 %v3101
    %4615 = vmatpush1.bf16.msra.mxu0 %v3100
    %4616 = vmatprep.subr.bf16.mxu0 %v3107
    %4617 = vmatpush1.bf16.msra.mxu0 %v3106
    %4618 = vmatprep.subr.bf16.mxu0 %v3113
    %4619 = vmatpush1.bf16.msra.mxu0 %v3112
    %4620 = vmatprep.subr.bf16.mxu0 %v3119
    %4621 = vmatpush1.bf16.msra.mxu0 %v3118
    %4622 = vmatprep.subr.bf16.mxu0 %v3125
    %4623 = vmatpush1.bf16.msra.mxu0 %v3124
    %4624 = vmatprep.subr.bf16.mxu0 %v3131
    %4625 = vmatpush1.bf16.msra.mxu0 %v3130
    %4626 = vmatprep.subr.bf16.mxu0 %v3137
    %4627 = vmatpush1.bf16.msra.mxu0 %v3136
    %4628 = vmatprep.subr.bf16.mxu0 %v3143
    %4629 = vmatpush1.bf16.msra.mxu0 %v3142
    %4630 = vmatprep.subr.bf16.mxu0 %v3149
    %4631 = vmatpush1.bf16.msra.mxu0 %v3148
    %4632 = vmatprep.mubr.bf16.mxu0 %v1045
    %4633 = vmatmul.mubr.bf16.gmra.mrb[0].mxu0 %v1044
    %v4634 = vpop.f32.mrb[0].mxu0
    %v4635 = vadd.f32 %v4562, %v4634
    %v4636 = vpop.f32.mrb[0].mxu0
    %v4637 = vadd.f32 %v4564, %v4636
    %v4638 = vpop.f32.mrb[0].mxu0
    %v4639 = vadd.f32 %v4566, %v4638
    %v4640 = vpop.f32.mrb[0].mxu0
    %v4641 = vadd.f32 %v4568, %v4640
    %4642 = vmatprep.mubr.bf16.mxu0 %v1057
    %4643 = vmatmul.mubr.bf16.gmra.mrb[0].mxu0 %v1056
    %v4644 = vpop.f32.mrb[0].mxu0
    %v4645 = vadd.f32 %v4572, %v4644
    %v4646 = vpop.f32.mrb[0].mxu0
    %v4647 = vadd.f32 %v4574, %v4646
    %v4648 = vpop.f32.mrb[0].mxu0
    %v4649 = vadd.f32 %v4576, %v4648
    %v4650 = vpop.f32.mrb[0].mxu0
    %v4651 = vadd.f32 %v4578, %v4650
    %4652 = vmatprep.mubr.bf16.mxu0 %v1069
    %4653 = vmatmul.mubr.bf16.gmra.mrb[0].mxu0 %v1068
    %v4654 = vpop.f32.mrb[0].mxu0
    %v4655 = vadd.f32 %v4582, %v4654
    %v4656 = vpop.f32.mrb[0].mxu0
    %v4657 = vadd.f32 %v4584, %v4656
    %v4658 = vpop.f32.mrb[0].mxu0
    %v4659 = vadd.f32 %v4586, %v4658
    %v4660 = vpop.f32.mrb[0].mxu0
    %v4661 = vadd.f32 %v4588, %v4660
    %4662 = vmatprep.mubr.bf16.mxu0 %v1081
    %4663 = vmatmul.mubr.bf16.gmra.mrb[0].mxu0 %v1080
    %v4664 = vpop.f32.mrb[0].mxu0
    %v4665 = vadd.f32 %v4592, %v4664
    %v4666 = vpop.f32.mrb[0].mxu0
    %v4667 = vadd.f32 %v4594, %v4666
    %v4668 = vpop.f32.mrb[0].mxu0
    %v4669 = vadd.f32 %v4596, %v4668
    %v4670 = vpop.f32.mrb[0].mxu0
    %v4671 = vadd.f32 %v4598, %v4670
    %4672 = vdwg.mxu0
    %4673 = vmatprep.subr.bf16.mxu0 %v3155
    %4674 = vmatpush1.bf16.msra.mxu0 %v3154
    %4675 = vmatprep.subr.bf16.mxu0 %v3161
    %4676 = vmatpush1.bf16.msra.mxu0 %v3160
    %4677 = vmatprep.subr.bf16.mxu0 %v3167
    %4678 = vmatpush1.bf16.msra.mxu0 %v3166
    %4679 = vmatprep.subr.bf16.mxu0 %v3173
    %4680 = vmatpush1.bf16.msra.mxu0 %v3172
    %4681 = vmatprep.subr.bf16.mxu0 %v3179
    %4682 = vmatpush1.bf16.msra.mxu0 %v3178
    %4683 = vmatprep.subr.bf16.mxu0 %v3185
    %4684 = vmatpush1.bf16.msra.mxu0 %v3184
    %4685 = vmatprep.subr.bf16.mxu0 %v3191
    %4686 = vmatpush1.bf16.msra.mxu0 %v3190
    %4687 = vmatprep.subr.bf16.mxu0 %v3197
    %4688 = vmatpush1.bf16.msra.mxu0 %v3196
    %4689 = vmatprep.subr.bf16.mxu0 %v3203
    %4690 = vmatpush1.bf16.msra.mxu0 %v3202
    %4691 = vmatprep.subr.bf16.mxu0 %v3209
    %4692 = vmatpush1.bf16.msra.mxu0 %v3208
    %4693 = vmatprep.subr.bf16.mxu0 %v3215
    %4694 = vmatpush1.bf16.msra.mxu0 %v3214
    %4695 = vmatprep.subr.bf16.mxu0 %v3221
    %4696 = vmatpush1.bf16.msra.mxu0 %v3220
    %4697 = vmatprep.subr.bf16.mxu0 %v3227
    %4698 = vmatpush1.bf16.msra.mxu0 %v3226
    %4699 = vmatprep.subr.bf16.mxu0 %v3233
    %4700 = vmatpush1.bf16.msra.mxu0 %v3232
    %4701 = vmatprep.subr.bf16.mxu0 %v3239
    %4702 = vmatpush1.bf16.msra.mxu0 %v3238
    %4703 = vmatprep.subr.bf16.mxu0 %v3245
    %4704 = vmatpush1.bf16.msra.mxu0 %v3244
    %4705 = vmatprep.mubr.bf16.mxu0 %v1047
    %4706 = vmatmul.mubr.bf16.gmra.mrb[0].mxu0 %v1046
    %v4707 = vpop.f32.mrb[0].mxu0
    %v4708 = vadd.f32 %v4635, %v4707
    %v4709 = vpop.f32.mrb[0].mxu0
    %v4710 = vadd.f32 %v4637, %v4709
    %v4711 = vpop.f32.mrb[0].mxu0
    %v4712 = vadd.f32 %v4639, %v4711
    %v4713 = vpop.f32.mrb[0].mxu0
    %v4714 = vadd.f32 %v4641, %v4713
    %4715 = vmatprep.mubr.bf16.mxu0 %v1059
    %4716 = vmatmul.mubr.bf16.gmra.mrb[0].mxu0 %v1058
    %v4717 = vpop.f32.mrb[0].mxu0
    %v4718 = vadd.f32 %v4645, %v4717
    %v4719 = vpop.f32.mrb[0].mxu0
    %v4720 = vadd.f32 %v4647, %v4719
    %v4721 = vpop.f32.mrb[0].mxu0
    %v4722 = vadd.f32 %v4649, %v4721
    %v4723 = vpop.f32.mrb[0].mxu0
    %v4724 = vadd.f32 %v4651, %v4723
    %4725 = vmatprep.mubr.bf16.mxu0 %v1071
    %4726 = vmatmul.mubr.bf16.gmra.mrb[0].mxu0 %v1070
    %v4727 = vpop.f32.mrb[0].mxu0
    %v4728 = vadd.f32 %v4655, %v4727
    %v4729 = vpop.f32.mrb[0].mxu0
    %v4730 = vadd.f32 %v4657, %v4729
    %v4731 = vpop.f32.mrb[0].mxu0
    %v4732 = vadd.f32 %v4659, %v4731
    %v4733 = vpop.f32.mrb[0].mxu0
    %v4734 = vadd.f32 %v4661, %v4733
    %4735 = vmatprep.mubr.bf16.mxu0 %v1083
    %4736 = vmatmul.mubr.bf16.gmra.mrb[0].mxu0 %v1082
    %v4737 = vpop.f32.mrb[0].mxu0
    %v4738 = vadd.f32 %v4665, %v4737
    %v4739 = vpop.f32.mrb[0].mxu0
    %v4740 = vadd.f32 %v4667, %v4739
    %v4741 = vpop.f32.mrb[0].mxu0
    %v4742 = vadd.f32 %v4669, %v4741
    %v4743 = vpop.f32.mrb[0].mxu0
    %v4744 = vadd.f32 %v4671, %v4743
    %4745 = vdwg.mxu0
    %4746 = vmatprep.subr.bf16.mxu0 %v3251
    %4747 = vmatpush1.bf16.msra.mxu0 %v3250
    %4748 = vmatprep.subr.bf16.mxu0 %v3257
    %4749 = vmatpush1.bf16.msra.mxu0 %v3256
    %4750 = vmatprep.subr.bf16.mxu0 %v3263
    %4751 = vmatpush1.bf16.msra.mxu0 %v3262
    %4752 = vmatprep.subr.bf16.mxu0 %v3269
    %4753 = vmatpush1.bf16.msra.mxu0 %v3268
    %4754 = vmatprep.subr.bf16.mxu0 %v3275
    %4755 = vmatpush1.bf16.msra.mxu0 %v3274
    %4756 = vmatprep.subr.bf16.mxu0 %v3281
    %4757 = vmatpush1.bf16.msra.mxu0 %v3280
    %4758 = vmatprep.subr.bf16.mxu0 %v3287
    %4759 = vmatpush1.bf16.msra.mxu0 %v3286
    %4760 = vmatprep.subr.bf16.mxu0 %v3293
    %4761 = vmatpush1.bf16.msra.mxu0 %v3292
    %4762 = vmatprep.subr.bf16.mxu0 %v3299
    %4763 = vmatpush1.bf16.msra.mxu0 %v3298
    %4764 = vmatprep.subr.bf16.mxu0 %v3305
    %4765 = vmatpush1.bf16.msra.mxu0 %v3304
    %4766 = vmatprep.subr.bf16.mxu0 %v3311
    %4767 = vmatpush1.bf16.msra.mxu0 %v3310
    %4768 = vmatprep.subr.bf16.mxu0 %v3317
    %4769 = vmatpush1.bf16.msra.mxu0 %v3316
    %4770 = vmatprep.subr.bf16.mxu0 %v3323
    %4771 = vmatpush1.bf16.msra.mxu0 %v3322
    %4772 = vmatprep.subr.bf16.mxu0 %v3329
    %4773 = vmatpush1.bf16.msra.mxu0 %v3328
    %4774 = vmatprep.subr.bf16.mxu0 %v3335
    %4775 = vmatpush1.bf16.msra.mxu0 %v3334
    %4776 = vmatprep.subr.bf16.mxu0 %v3341
    %4777 = vmatpush1.bf16.msra.mxu0 %v3340
    %4778 = vmatprep.mubr.bf16.mxu0 %v1049
    %4779 = vmatmul.mubr.bf16.gmra.mrb[0].mxu0 %v1048
    %v4780 = vpop.f32.mrb[0].mxu0
    %v4781 = vadd.f32 %v4708, %v4780
    %v4782 = vpop.f32.mrb[0].mxu0
    %v4783 = vadd.f32 %v4710, %v4782
    %v4784 = vpop.f32.mrb[0].mxu0
    %v4785 = vadd.f32 %v4712, %v4784
    %v4786 = vpop.f32.mrb[0].mxu0
    %v4787 = vadd.f32 %v4714, %v4786
    %4788 = vmatprep.mubr.bf16.mxu0 %v1061
    %4789 = vmatmul.mubr.bf16.gmra.mrb[0].mxu0 %v1060
    %v4790 = vpop.f32.mrb[0].mxu0
    %v4791 = vadd.f32 %v4718, %v4790
    %v4792 = vpop.f32.mrb[0].mxu0
    %v4793 = vadd.f32 %v4720, %v4792
    %v4794 = vpop.f32.mrb[0].mxu0
    %v4795 = vadd.f32 %v4722, %v4794
    %v4796 = vpop.f32.mrb[0].mxu0
    %v4797 = vadd.f32 %v4724, %v4796
    %4798 = vmatprep.mubr.bf16.mxu0 %v1073
    %4799 = vmatmul.mubr.bf16.gmra.mrb[0].mxu0 %v1072
    %v4800 = vpop.f32.mrb[0].mxu0
    %v4801 = vadd.f32 %v4728, %v4800
    %v4802 = vpop.f32.mrb[0].mxu0
    %v4803 = vadd.f32 %v4730, %v4802
    %v4804 = vpop.f32.mrb[0].mxu0
    %v4805 = vadd.f32 %v4732, %v4804
    %v4806 = vpop.f32.mrb[0].mxu0
    %v4807 = vadd.f32 %v4734, %v4806
    %4808 = vmatprep.mubr.bf16.mxu0 %v1085
    %4809 = vmatmul.mubr.bf16.gmra.mrb[0].mxu0 %v1084
    %v4810 = vpop.f32.mrb[0].mxu0
    %v4811 = vadd.f32 %v4738, %v4810
    %v4812 = vpop.f32.mrb[0].mxu0
    %v4813 = vadd.f32 %v4740, %v4812
    %v4814 = vpop.f32.mrb[0].mxu0
    %v4815 = vadd.f32 %v4742, %v4814
    %v4816 = vpop.f32.mrb[0].mxu0
    %v4817 = vadd.f32 %v4744, %v4816
    %4818 = vdwg.mxu0
    %4819 = vmatprep.subr.bf16.mxu0 %v3347
    %4820 = vmatpush1.bf16.msra.mxu0 %v3346
    %4821 = vmatprep.subr.bf16.mxu0 %v3353
    %4822 = vmatpush1.bf16.msra.mxu0 %v3352
    %4823 = vmatprep.subr.bf16.mxu0 %v3359
    %4824 = vmatpush1.bf16.msra.mxu0 %v3358
    %4825 = vmatprep.subr.bf16.mxu0 %v3365
    %4826 = vmatpush1.bf16.msra.mxu0 %v3364
    %4827 = vmatprep.subr.bf16.mxu0 %v3371
    %4828 = vmatpush1.bf16.msra.mxu0 %v3370
    %4829 = vmatprep.subr.bf16.mxu0 %v3377
    %4830 = vmatpush1.bf16.msra.mxu0 %v3376
    %4831 = vmatprep.subr.bf16.mxu0 %v3383
    %4832 = vmatpush1.bf16.msra.mxu0 %v3382
    %4833 = vmatprep.subr.bf16.mxu0 %v3389
    %4834 = vmatpush1.bf16.msra.mxu0 %v3388
    %4835 = vmatprep.subr.bf16.mxu0 %v3395
    %4836 = vmatpush1.bf16.msra.mxu0 %v3394
    %4837 = vmatprep.subr.bf16.mxu0 %v3401
    %4838 = vmatpush1.bf16.msra.mxu0 %v3400
    %4839 = vmatprep.subr.bf16.mxu0 %v3407
    %4840 = vmatpush1.bf16.msra.mxu0 %v3406
    %4841 = vmatprep.subr.bf16.mxu0 %v3413
    %4842 = vmatpush1.bf16.msra.mxu0 %v3412
    %4843 = vmatprep.subr.bf16.mxu0 %v3419
    %4844 = vmatpush1.bf16.msra.mxu0 %v3418
    %4845 = vmatprep.subr.bf16.mxu0 %v3425
    %4846 = vmatpush1.bf16.msra.mxu0 %v3424
    %4847 = vmatprep.subr.bf16.mxu0 %v3431
    %4848 = vmatpush1.bf16.msra.mxu0 %v3430
    %4849 = vmatprep.subr.bf16.mxu0 %v3437
    %4850 = vmatpush1.bf16.msra.mxu0 %v3436
    %4851 = vmatprep.mubr.bf16.mxu0 %v1051
    %4852 = vmatmul.mubr.bf16.gmra.mrb[0].mxu0 %v1050
    %v4853 = vpop.f32.mrb[0].mxu0
    %v4854 = vadd.f32 %v4781, %v4853
    %v4855 = vpop.f32.mrb[0].mxu0
    %v4856 = vadd.f32 %v4783, %v4855
    %v4857 = vpop.f32.mrb[0].mxu0
    %v4858 = vadd.f32 %v4785, %v4857
    %v4859 = vpop.f32.mrb[0].mxu0
    %v4860 = vadd.f32 %v4787, %v4859
    %4861 = vmatprep.mubr.bf16.mxu0 %v1063
    %4862 = vmatmul.mubr.bf16.gmra.mrb[0].mxu0 %v1062
    %v4863 = vpop.f32.mrb[0].mxu0
    %v4864 = vadd.f32 %v4791, %v4863
    %v4865 = vpop.f32.mrb[0].mxu0
    %v4866 = vadd.f32 %v4793, %v4865
    %v4867 = vpop.f32.mrb[0].mxu0
    %v4868 = vadd.f32 %v4795, %v4867
    %v4869 = vpop.f32.mrb[0].mxu0
    %v4870 = vadd.f32 %v4797, %v4869
    %4871 = vmatprep.mubr.bf16.mxu0 %v1075
    %4872 = vmatmul.mubr.bf16.gmra.mrb[0].mxu0 %v1074
    %v4873 = vpop.f32.mrb[0].mxu0
    %v4874 = vadd.f32 %v4801, %v4873
    %v4875 = vpop.f32.mrb[0].mxu0
    %v4876 = vadd.f32 %v4803, %v4875
    %v4877 = vpop.f32.mrb[0].mxu0
    %v4878 = vadd.f32 %v4805, %v4877
    %v4879 = vpop.f32.mrb[0].mxu0
    %v4880 = vadd.f32 %v4807, %v4879
    %4881 = vmatprep.mubr.bf16.mxu0 %v1087
    %4882 = vmatmul.mubr.bf16.gmra.mrb[0].mxu0 %v1086
    %v4883 = vpop.f32.mrb[0].mxu0
    %v4884 = vadd.f32 %v4811, %v4883
    %v4885 = vpop.f32.mrb[0].mxu0
    %v4886 = vadd.f32 %v4813, %v4885
    %v4887 = vpop.f32.mrb[0].mxu0
    %v4888 = vadd.f32 %v4815, %v4887
    %v4889 = vpop.f32.mrb[0].mxu0
    %v4890 = vadd.f32 %v4817, %v4889
    %4891 = vdwg.mxu0
    %4892 = vmatprep.subr.bf16.mxu0 %v2869
    %4893 = vmatpush1.bf16.msra.mxu0 %v2868
    %4894 = vmatprep.subr.bf16.mxu0 %v2875
    %4895 = vmatpush1.bf16.msra.mxu0 %v2874
    %4896 = vmatprep.subr.bf16.mxu0 %v2881
    %4897 = vmatpush1.bf16.msra.mxu0 %v2880
    %4898 = vmatprep.subr.bf16.mxu0 %v2887
    %4899 = vmatpush1.bf16.msra.mxu0 %v2886
    %4900 = vmatprep.subr.bf16.mxu0 %v2893
    %4901 = vmatpush1.bf16.msra.mxu0 %v2892
    %4902 = vmatprep.subr.bf16.mxu0 %v2899
    %4903 = vmatpush1.bf16.msra.mxu0 %v2898
    %4904 = vmatprep.subr.bf16.mxu0 %v2905
    %4905 = vmatpush1.bf16.msra.mxu0 %v2904
    %4906 = vmatprep.subr.bf16.mxu0 %v2911
    %4907 = vmatpush1.bf16.msra.mxu0 %v2910
    %4908 = vmatprep.subr.bf16.mxu0 %v2917
    %4909 = vmatpush1.bf16.msra.mxu0 %v2916
    %4910 = vmatprep.subr.bf16.mxu0 %v2923
    %4911 = vmatpush1.bf16.msra.mxu0 %v2922
    %4912 = vmatprep.subr.bf16.mxu0 %v2929
    %4913 = vmatpush1.bf16.msra.mxu0 %v2928
    %4914 = vmatprep.subr.bf16.mxu0 %v2935
    %4915 = vmatpush1.bf16.msra.mxu0 %v2934
    %4916 = vmatprep.subr.bf16.mxu0 %v2941
    %4917 = vmatpush1.bf16.msra.mxu0 %v2940
    %4918 = vmatprep.subr.bf16.mxu0 %v2947
    %4919 = vmatpush1.bf16.msra.mxu0 %v2946
    %4920 = vmatprep.subr.bf16.mxu0 %v2953
    %4921 = vmatpush1.bf16.msra.mxu0 %v2952
    %4922 = vmatprep.subr.bf16.mxu0 %v2959
    %4923 = vmatpush1.bf16.msra.mxu0 %v2958
    %4924 = vmatprep.mubr.bf16.mxu0 %v1041
    %4925 = vmatmul.mubr.bf16.gmra.mrb[0].mxu0 %v1040
    %v4926 = vpop.f32.mrb[0].mxu0
    %v4927 = vadd.f32 %v885, %v4926
    %v4928 = vpop.f32.mrb[0].mxu0
    %v4929 = vadd.f32 %v889, %v4928
    %v4930 = vpop.f32.mrb[0].mxu0
    %v4931 = vadd.f32 %v885, %v4930
    %v4932 = vpop.f32.mrb[0].mxu0
    %v4933 = vadd.f32 %v889, %v4932
    %4934 = vmatprep.mubr.bf16.mxu0 %v1053
    %4935 = vmatmul.mubr.bf16.gmra.mrb[0].mxu0 %v1052
    %v4936 = vpop.f32.mrb[0].mxu0
    %v4937 = vadd.f32 %v885, %v4936
    %v4938 = vpop.f32.mrb[0].mxu0
    %v4939 = vadd.f32 %v889, %v4938
    %v4940 = vpop.f32.mrb[0].mxu0
    %v4941 = vadd.f32 %v885, %v4940
    %v4942 = vpop.f32.mrb[0].mxu0
    %v4943 = vadd.f32 %v889, %v4942
    %4944 = vmatprep.mubr.bf16.mxu0 %v1065
    %4945 = vmatmul.mubr.bf16.gmra.mrb[0].mxu0 %v1064
    %v4946 = vpop.f32.mrb[0].mxu0
    %v4947 = vadd.f32 %v885, %v4946
    %v4948 = vpop.f32.mrb[0].mxu0
    %v4949 = vadd.f32 %v889, %v4948
    %v4950 = vpop.f32.mrb[0].mxu0
    %v4951 = vadd.f32 %v885, %v4950
    %v4952 = vpop.f32.mrb[0].mxu0
    %v4953 = vadd.f32 %v889, %v4952
    %4954 = vmatprep.mubr.bf16.mxu0 %v1077
    %4955 = vmatmul.mubr.bf16.gmra.mrb[0].mxu0 %v1076
    %v4956 = vpop.f32.mrb[0].mxu0
    %v4957 = vadd.f32 %v885, %v4956
    %v4958 = vpop.f32.mrb[0].mxu0
    %v4959 = vadd.f32 %v889, %v4958
    %v4960 = vpop.f32.mrb[0].mxu0
    %v4961 = vadd.f32 %v885, %v4960
    %v4962 = vpop.f32.mrb[0].mxu0
    %v4963 = vadd.f32 %v889, %v4962
    %4964 = vdwg.mxu0
    %4965 = vmatprep.subr.bf16.mxu0 %v2965
    %4966 = vmatpush1.bf16.msra.mxu0 %v2964
    %4967 = vmatprep.subr.bf16.mxu0 %v2971
    %4968 = vmatpush1.bf16.msra.mxu0 %v2970
    %4969 = vmatprep.subr.bf16.mxu0 %v2977
    %4970 = vmatpush1.bf16.msra.mxu0 %v2976
    %4971 = vmatprep.subr.bf16.mxu0 %v2983
    %4972 = vmatpush1.bf16.msra.mxu0 %v2982
    %4973 = vmatprep.subr.bf16.mxu0 %v2989
    %4974 = vmatpush1.bf16.msra.mxu0 %v2988
    %4975 = vmatprep.subr.bf16.mxu0 %v2995
    %4976 = vmatpush1.bf16.msra.mxu0 %v2994
    %4977 = vmatprep.subr.bf16.mxu0 %v3001
    %4978 = vmatpush1.bf16.msra.mxu0 %v3000
    %4979 = vmatprep.subr.bf16.mxu0 %v3007
    %4980 = vmatpush1.bf16.msra.mxu0 %v3006
    %4981 = vmatprep.subr.bf16.mxu0 %v3013
    %4982 = vmatpush1.bf16.msra.mxu0 %v3012
    %4983 = vmatprep.subr.bf16.mxu0 %v3019
    %4984 = vmatpush1.bf16.msra.mxu0 %v3018
    %4985 = vmatprep.subr.bf16.mxu0 %v3025
    %4986 = vmatpush1.bf16.msra.mxu0 %v3024
    %4987 = vmatprep.subr.bf16.mxu0 %v3031
    %4988 = vmatpush1.bf16.msra.mxu0 %v3030
    %4989 = vmatprep.subr.bf16.mxu0 %v3037
    %4990 = vmatpush1.bf16.msra.mxu0 %v3036
    %4991 = vmatprep.subr.bf16.mxu0 %v3043
    %4992 = vmatpush1.bf16.msra.mxu0 %v3042
    %4993 = vmatprep.subr.bf16.mxu0 %v3049
    %4994 = vmatpush1.bf16.msra.mxu0 %v3048
    %4995 = vmatprep.subr.bf16.mxu0 %v3055
    %4996 = vmatpush1.bf16.msra.mxu0 %v3054
    %4997 = vmatprep.mubr.bf16.mxu0 %v1043
    %4998 = vmatmul.mubr.bf16.gmra.mrb[0].mxu0 %v1042
    %v4999 = vpop.f32.mrb[0].mxu0
    %v5000 = vadd.f32 %v4927, %v4999
    %v5001 = vpop.f32.mrb[0].mxu0
    %v5002 = vadd.f32 %v4929, %v5001
    %v5003 = vpop.f32.mrb[0].mxu0
    %v5004 = vadd.f32 %v4931, %v5003
    %v5005 = vpop.f32.mrb[0].mxu0
    %v5006 = vadd.f32 %v4933, %v5005
    %5007 = vmatprep.mubr.bf16.mxu0 %v1055
    %5008 = vmatmul.mubr.bf16.gmra.mrb[0].mxu0 %v1054
    %v5009 = vpop.f32.mrb[0].mxu0
    %v5010 = vadd.f32 %v4937, %v5009
    %v5011 = vpop.f32.mrb[0].mxu0
    %v5012 = vadd.f32 %v4939, %v5011
    %v5013 = vpop.f32.mrb[0].mxu0
    %v5014 = vadd.f32 %v4941, %v5013
    %v5015 = vpop.f32.mrb[0].mxu0
    %v5016 = vadd.f32 %v4943, %v5015
    %5017 = vmatprep.mubr.bf16.mxu0 %v1067
    %5018 = vmatmul.mubr.bf16.gmra.mrb[0].mxu0 %v1066
    %v5019 = vpop.f32.mrb[0].mxu0
    %v5020 = vadd.f32 %v4947, %v5019
    %v5021 = vpop.f32.mrb[0].mxu0
    %v5022 = vadd.f32 %v4949, %v5021
    %v5023 = vpop.f32.mrb[0].mxu0
    %v5024 = vadd.f32 %v4951, %v5023
    %v5025 = vpop.f32.mrb[0].mxu0
    %v5026 = vadd.f32 %v4953, %v5025
    %5027 = vmatprep.mubr.bf16.mxu0 %v1079
    %5028 = vmatmul.mubr.bf16.gmra.mrb[0].mxu0 %v1078
    %v5029 = vpop.f32.mrb[0].mxu0
    %v5030 = vadd.f32 %v4957, %v5029
    %v5031 = vpop.f32.mrb[0].mxu0
    %v5032 = vadd.f32 %v4959, %v5031
    %v5033 = vpop.f32.mrb[0].mxu0
    %v5034 = vadd.f32 %v4961, %v5033
    %v5035 = vpop.f32.mrb[0].mxu0
    %v5036 = vadd.f32 %v4963, %v5035
    %5037 = vdwg.mxu0
    %5038 = vmatprep.subr.bf16.mxu0 %v3061
    %5039 = vmatpush1.bf16.msra.mxu0 %v3060
    %5040 = vmatprep.subr.bf16.mxu0 %v3067
    %5041 = vmatpush1.bf16.msra.mxu0 %v3066
    %5042 = vmatprep.subr.bf16.mxu0 %v3073
    %5043 = vmatpush1.bf16.msra.mxu0 %v3072
    %5044 = vmatprep.subr.bf16.mxu0 %v3079
    %5045 = vmatpush1.bf16.msra.mxu0 %v3078
    %5046 = vmatprep.subr.bf16.mxu0 %v3085
    %5047 = vmatpush1.bf16.msra.mxu0 %v3084
    %5048 = vmatprep.subr.bf16.mxu0 %v3091
    %5049 = vmatpush1.bf16.msra.mxu0 %v3090
    %5050 = vmatprep.subr.bf16.mxu0 %v3097
    %5051 = vmatpush1.bf16.msra.mxu0 %v3096
    %5052 = vmatprep.subr.bf16.mxu0 %v3103
    %5053 = vmatpush1.bf16.msra.mxu0 %v3102
    %5054 = vmatprep.subr.bf16.mxu0 %v3109
    %5055 = vmatpush1.bf16.msra.mxu0 %v3108
    %5056 = vmatprep.subr.bf16.mxu0 %v3115
    %5057 = vmatpush1.bf16.msra.mxu0 %v3114
    %5058 = vmatprep.subr.bf16.mxu0 %v3121
    %5059 = vmatpush1.bf16.msra.mxu0 %v3120
    %5060 = vmatprep.subr.bf16.mxu0 %v3127
    %5061 = vmatpush1.bf16.msra.mxu0 %v3126
    %5062 = vmatprep.subr.bf16.mxu0 %v3133
    %5063 = vmatpush1.bf16.msra.mxu0 %v3132
    %5064 = vmatprep.subr.bf16.mxu0 %v3139
    %5065 = vmatpush1.bf16.msra.mxu0 %v3138
    %5066 = vmatprep.subr.bf16.mxu0 %v3145
    %5067 = vmatpush1.bf16.msra.mxu0 %v3144
    %5068 = vmatprep.subr.bf16.mxu0 %v3151
    %5069 = vmatpush1.bf16.msra.mxu0 %v3150
    %5070 = vmatprep.mubr.bf16.mxu0 %v1045
    %5071 = vmatmul.mubr.bf16.gmra.mrb[0].mxu0 %v1044
    %v5072 = vpop.f32.mrb[0].mxu0
    %v5073 = vadd.f32 %v5000, %v5072
    %v5074 = vpop.f32.mrb[0].mxu0
    %v5075 = vadd.f32 %v5002, %v5074
    %v5076 = vpop.f32.mrb[0].mxu0
    %v5077 = vadd.f32 %v5004, %v5076
    %v5078 = vpop.f32.mrb[0].mxu0
    %v5079 = vadd.f32 %v5006, %v5078
    %5080 = vmatprep.mubr.bf16.mxu0 %v1057
    %5081 = vmatmul.mubr.bf16.gmra.mrb[0].mxu0 %v1056
    %v5082 = vpop.f32.mrb[0].mxu0
    %v5083 = vadd.f32 %v5010, %v5082
    %v5084 = vpop.f32.mrb[0].mxu0
    %v5085 = vadd.f32 %v5012, %v5084
    %v5086 = vpop.f32.mrb[0].mxu0
    %v5087 = vadd.f32 %v5014, %v5086
    %v5088 = vpop.f32.mrb[0].mxu0
    %v5089 = vadd.f32 %v5016, %v5088
    %5090 = vmatprep.mubr.bf16.mxu0 %v1069
    %5091 = vmatmul.mubr.bf16.gmra.mrb[0].mxu0 %v1068
    %v5092 = vpop.f32.mrb[0].mxu0
    %v5093 = vadd.f32 %v5020, %v5092
    %v5094 = vpop.f32.mrb[0].mxu0
    %v5095 = vadd.f32 %v5022, %v5094
    %v5096 = vpop.f32.mrb[0].mxu0
    %v5097 = vadd.f32 %v5024, %v5096
    %v5098 = vpop.f32.mrb[0].mxu0
    %v5099 = vadd.f32 %v5026, %v5098
    %5100 = vmatprep.mubr.bf16.mxu0 %v1081
    %5101 = vmatmul.mubr.bf16.gmra.mrb[0].mxu0 %v1080
    %v5102 = vpop.f32.mrb[0].mxu0
    %v5103 = vadd.f32 %v5030, %v5102
    %v5104 = vpop.f32.mrb[0].mxu0
    %v5105 = vadd.f32 %v5032, %v5104
    %v5106 = vpop.f32.mrb[0].mxu0
    %v5107 = vadd.f32 %v5034, %v5106
    %v5108 = vpop.f32.mrb[0].mxu0
    %v5109 = vadd.f32 %v5036, %v5108
    %5110 = vdwg.mxu0
    %5111 = vmatprep.subr.bf16.mxu0 %v3157
    %5112 = vmatpush1.bf16.msra.mxu0 %v3156
    %5113 = vmatprep.subr.bf16.mxu0 %v3163
    %5114 = vmatpush1.bf16.msra.mxu0 %v3162
    %5115 = vmatprep.subr.bf16.mxu0 %v3169
    %5116 = vmatpush1.bf16.msra.mxu0 %v3168
    %5117 = vmatprep.subr.bf16.mxu0 %v3175
    %5118 = vmatpush1.bf16.msra.mxu0 %v3174
    %5119 = vmatprep.subr.bf16.mxu0 %v3181
    %5120 = vmatpush1.bf16.msra.mxu0 %v3180
    %5121 = vmatprep.subr.bf16.mxu0 %v3187
    %5122 = vmatpush1.bf16.msra.mxu0 %v3186
    %5123 = vmatprep.subr.bf16.mxu0 %v3193
    %5124 = vmatpush1.bf16.msra.mxu0 %v3192
    %5125 = vmatprep.subr.bf16.mxu0 %v3199
    %5126 = vmatpush1.bf16.msra.mxu0 %v3198
    %5127 = vmatprep.subr.bf16.mxu0 %v3205
    %5128 = vmatpush1.bf16.msra.mxu0 %v3204
    %5129 = vmatprep.subr.bf16.mxu0 %v3211
    %5130 = vmatpush1.bf16.msra.mxu0 %v3210
    %5131 = vmatprep.subr.bf16.mxu0 %v3217
    %5132 = vmatpush1.bf16.msra.mxu0 %v3216
    %5133 = vmatprep.subr.bf16.mxu0 %v3223
    %5134 = vmatpush1.bf16.msra.mxu0 %v3222
    %5135 = vmatprep.subr.bf16.mxu0 %v3229
    %5136 = vmatpush1.bf16.msra.mxu0 %v3228
    %5137 = vmatprep.subr.bf16.mxu0 %v3235
    %5138 = vmatpush1.bf16.msra.mxu0 %v3234
    %5139 = vmatprep.subr.bf16.mxu0 %v3241
    %5140 = vmatpush1.bf16.msra.mxu0 %v3240
    %5141 = vmatprep.subr.bf16.mxu0 %v3247
    %5142 = vmatpush1.bf16.msra.mxu0 %v3246
    %5143 = vmatprep.mubr.bf16.mxu0 %v1047
    %5144 = vmatmul.mubr.bf16.gmra.mrb[0].mxu0 %v1046
    %v5145 = vpop.f32.mrb[0].mxu0
    %v5146 = vadd.f32 %v5073, %v5145
    %v5147 = vpop.f32.mrb[0].mxu0
    %v5148 = vadd.f32 %v5075, %v5147
    %v5149 = vpop.f32.mrb[0].mxu0
    %v5150 = vadd.f32 %v5077, %v5149
    %v5151 = vpop.f32.mrb[0].mxu0
    %v5152 = vadd.f32 %v5079, %v5151
    %5153 = vmatprep.mubr.bf16.mxu0 %v1059
    %5154 = vmatmul.mubr.bf16.gmra.mrb[0].mxu0 %v1058
    %v5155 = vpop.f32.mrb[0].mxu0
    %v5156 = vadd.f32 %v5083, %v5155
    %v5157 = vpop.f32.mrb[0].mxu0
    %v5158 = vadd.f32 %v5085, %v5157
    %v5159 = vpop.f32.mrb[0].mxu0
    %v5160 = vadd.f32 %v5087, %v5159
    %v5161 = vpop.f32.mrb[0].mxu0
    %v5162 = vadd.f32 %v5089, %v5161
    %5163 = vmatprep.mubr.bf16.mxu0 %v1071
    %5164 = vmatmul.mubr.bf16.gmra.mrb[0].mxu0 %v1070
    %v5165 = vpop.f32.mrb[0].mxu0
    %v5166 = vadd.f32 %v5093, %v5165
    %v5167 = vpop.f32.mrb[0].mxu0
    %v5168 = vadd.f32 %v5095, %v5167
    %v5169 = vpop.f32.mrb[0].mxu0
    %v5170 = vadd.f32 %v5097, %v5169
    %v5171 = vpop.f32.mrb[0].mxu0
    %v5172 = vadd.f32 %v5099, %v5171
    %5173 = vmatprep.mubr.bf16.mxu0 %v1083
    %5174 = vmatmul.mubr.bf16.gmra.mrb[0].mxu0 %v1082
    %v5175 = vpop.f32.mrb[0].mxu0
    %v5176 = vadd.f32 %v5103, %v5175
    %v5177 = vpop.f32.mrb[0].mxu0
    %v5178 = vadd.f32 %v5105, %v5177
    %v5179 = vpop.f32.mrb[0].mxu0
    %v5180 = vadd.f32 %v5107, %v5179
    %v5181 = vpop.f32.mrb[0].mxu0
    %v5182 = vadd.f32 %v5109, %v5181
    %5183 = vdwg.mxu0
    %5184 = vmatprep.subr.bf16.mxu0 %v3253
    %5185 = vmatpush1.bf16.msra.mxu0 %v3252
    %5186 = vmatprep.subr.bf16.mxu0 %v3259
    %5187 = vmatpush1.bf16.msra.mxu0 %v3258
    %5188 = vmatprep.subr.bf16.mxu0 %v3265
    %5189 = vmatpush1.bf16.msra.mxu0 %v3264
    %5190 = vmatprep.subr.bf16.mxu0 %v3271
    %5191 = vmatpush1.bf16.msra.mxu0 %v3270
    %5192 = vmatprep.subr.bf16.mxu0 %v3277
    %5193 = vmatpush1.bf16.msra.mxu0 %v3276
    %5194 = vmatprep.subr.bf16.mxu0 %v3283
    %5195 = vmatpush1.bf16.msra.mxu0 %v3282
    %5196 = vmatprep.subr.bf16.mxu0 %v3289
    %5197 = vmatpush1.bf16.msra.mxu0 %v3288
    %5198 = vmatprep.subr.bf16.mxu0 %v3295
    %5199 = vmatpush1.bf16.msra.mxu0 %v3294
    %5200 = vmatprep.subr.bf16.mxu0 %v3301
    %5201 = vmatpush1.bf16.msra.mxu0 %v3300
    %5202 = vmatprep.subr.bf16.mxu0 %v3307
    %5203 = vmatpush1.bf16.msra.mxu0 %v3306
    %5204 = vmatprep.subr.bf16.mxu0 %v3313
    %5205 = vmatpush1.bf16.msra.mxu0 %v3312
    %5206 = vmatprep.subr.bf16.mxu0 %v3319
    %5207 = vmatpush1.bf16.msra.mxu0 %v3318
    %5208 = vmatprep.subr.bf16.mxu0 %v3325
    %5209 = vmatpush1.bf16.msra.mxu0 %v3324
    %5210 = vmatprep.subr.bf16.mxu0 %v3331
    %5211 = vmatpush1.bf16.msra.mxu0 %v3330
    %5212 = vmatprep.subr.bf16.mxu0 %v3337
    %5213 = vmatpush1.bf16.msra.mxu0 %v3336
    %5214 = vmatprep.subr.bf16.mxu0 %v3343
    %5215 = vmatpush1.bf16.msra.mxu0 %v3342
    %5216 = vmatprep.mubr.bf16.mxu0 %v1049
    %5217 = vmatmul.mubr.bf16.gmra.mrb[0].mxu0 %v1048
    %v5218 = vpop.f32.mrb[0].mxu0
    %v5219 = vadd.f32 %v5146, %v5218
    %v5220 = vpop.f32.mrb[0].mxu0
    %v5221 = vadd.f32 %v5148, %v5220
    %v5222 = vpop.f32.mrb[0].mxu0
    %v5223 = vadd.f32 %v5150, %v5222
    %v5224 = vpop.f32.mrb[0].mxu0
    %v5225 = vadd.f32 %v5152, %v5224
    %5226 = vmatprep.mubr.bf16.mxu0 %v1061
    %5227 = vmatmul.mubr.bf16.gmra.mrb[0].mxu0 %v1060
    %v5228 = vpop.f32.mrb[0].mxu0
    %v5229 = vadd.f32 %v5156, %v5228
    %v5230 = vpop.f32.mrb[0].mxu0
    %v5231 = vadd.f32 %v5158, %v5230
    %v5232 = vpop.f32.mrb[0].mxu0
    %v5233 = vadd.f32 %v5160, %v5232
    %v5234 = vpop.f32.mrb[0].mxu0
    %v5235 = vadd.f32 %v5162, %v5234
    %5236 = vmatprep.mubr.bf16.mxu0 %v1073
    %5237 = vmatmul.mubr.bf16.gmra.mrb[0].mxu0 %v1072
    %v5238 = vpop.f32.mrb[0].mxu0
    %v5239 = vadd.f32 %v5166, %v5238
    %v5240 = vpop.f32.mrb[0].mxu0
    %v5241 = vadd.f32 %v5168, %v5240
    %v5242 = vpop.f32.mrb[0].mxu0
    %v5243 = vadd.f32 %v5170, %v5242
    %v5244 = vpop.f32.mrb[0].mxu0
    %v5245 = vadd.f32 %v5172, %v5244
    %5246 = vmatprep.mubr.bf16.mxu0 %v1085
    %5247 = vmatmul.mubr.bf16.gmra.mrb[0].mxu0 %v1084
    %v5248 = vpop.f32.mrb[0].mxu0
    %v5249 = vadd.f32 %v5176, %v5248
    %v5250 = vpop.f32.mrb[0].mxu0
    %v5251 = vadd.f32 %v5178, %v5250
    %v5252 = vpop.f32.mrb[0].mxu0
    %v5253 = vadd.f32 %v5180, %v5252
    %v5254 = vpop.f32.mrb[0].mxu0
    %v5255 = vadd.f32 %v5182, %v5254
    %5256 = vdwg.mxu0
    %5257 = vmatprep.subr.bf16.mxu0 %v3349
    %5258 = vmatpush1.bf16.msra.mxu0 %v3348
    %5259 = vmatprep.subr.bf16.mxu0 %v3355
    %5260 = vmatpush1.bf16.msra.mxu0 %v3354
    %5261 = vmatprep.subr.bf16.mxu0 %v3361
    %5262 = vmatpush1.bf16.msra.mxu0 %v3360
    %5263 = vmatprep.subr.bf16.mxu0 %v3367
    %5264 = vmatpush1.bf16.msra.mxu0 %v3366
    %5265 = vmatprep.subr.bf16.mxu0 %v3373
    %5266 = vmatpush1.bf16.msra.mxu0 %v3372
    %5267 = vmatprep.subr.bf16.mxu0 %v3379
    %5268 = vmatpush1.bf16.msra.mxu0 %v3378
    %5269 = vmatprep.subr.bf16.mxu0 %v3385
    %5270 = vmatpush1.bf16.msra.mxu0 %v3384
    %5271 = vmatprep.subr.bf16.mxu0 %v3391
    %5272 = vmatpush1.bf16.msra.mxu0 %v3390
    %5273 = vmatprep.subr.bf16.mxu0 %v3397
    %5274 = vmatpush1.bf16.msra.mxu0 %v3396
    %5275 = vmatprep.subr.bf16.mxu0 %v3403
    %5276 = vmatpush1.bf16.msra.mxu0 %v3402
    %5277 = vmatprep.subr.bf16.mxu0 %v3409
    %5278 = vmatpush1.bf16.msra.mxu0 %v3408
    %5279 = vmatprep.subr.bf16.mxu0 %v3415
    %5280 = vmatpush1.bf16.msra.mxu0 %v3414
    %5281 = vmatprep.subr.bf16.mxu0 %v3421
    %5282 = vmatpush1.bf16.msra.mxu0 %v3420
    %5283 = vmatprep.subr.bf16.mxu0 %v3427
    %5284 = vmatpush1.bf16.msra.mxu0 %v3426
    %5285 = vmatprep.subr.bf16.mxu0 %v3433
    %5286 = vmatpush1.bf16.msra.mxu0 %v3432
    %5287 = vmatprep.subr.bf16.mxu0 %v3439
    %5288 = vmatpush1.bf16.msra.mxu0 %v3438
    %5289 = vmatprep.mubr.bf16.mxu0 %v1051
    %5290 = vmatmul.mubr.bf16.gmra.mrb[0].mxu0 %v1050
    %v5291 = vpop.f32.mrb[0].mxu0
    %v5292 = vadd.f32 %v5219, %v5291
    %v5293 = vpop.f32.mrb[0].mxu0
    %v5294 = vadd.f32 %v5221, %v5293
    %v5295 = vpop.f32.mrb[0].mxu0
    %v5296 = vadd.f32 %v5223, %v5295
    %v5297 = vpop.f32.mrb[0].mxu0
    %v5298 = vadd.f32 %v5225, %v5297
    %5299 = vmatprep.mubr.bf16.mxu0 %v1063
    %5300 = vmatmul.mubr.bf16.gmra.mrb[0].mxu0 %v1062
    %v5301 = vpop.f32.mrb[0].mxu0
    %v5302 = vadd.f32 %v5229, %v5301
    %v5303 = vpop.f32.mrb[0].mxu0
    %v5304 = vadd.f32 %v5231, %v5303
    %v5305 = vpop.f32.mrb[0].mxu0
    %v5306 = vadd.f32 %v5233, %v5305
    %v5307 = vpop.f32.mrb[0].mxu0
    %v5308 = vadd.f32 %v5235, %v5307
    %5309 = vmatprep.mubr.bf16.mxu0 %v1075
    %5310 = vmatmul.mubr.bf16.gmra.mrb[0].mxu0 %v1074
    %v5311 = vpop.f32.mrb[0].mxu0
    %v5312 = vadd.f32 %v5239, %v5311
    %v5313 = vpop.f32.mrb[0].mxu0
    %v5314 = vadd.f32 %v5241, %v5313
    %v5315 = vpop.f32.mrb[0].mxu0
    %v5316 = vadd.f32 %v5243, %v5315
    %v5317 = vpop.f32.mrb[0].mxu0
    %v5318 = vadd.f32 %v5245, %v5317
    %5319 = vmatprep.mubr.bf16.mxu0 %v1087
    %5320 = vmatmul.mubr.bf16.gmra.mrb[0].mxu0 %v1086
    %v5321 = vpop.f32.mrb[0].mxu0
    %v5322 = vadd.f32 %v5249, %v5321
    %v5323 = vpop.f32.mrb[0].mxu0
    %v5324 = vadd.f32 %v5251, %v5323
    %v5325 = vpop.f32.mrb[0].mxu0
    %v5326 = vadd.f32 %v5253, %v5325
    %v5327 = vpop.f32.mrb[0].mxu0
    %v5328 = vadd.f32 %v5255, %v5327
    %5329 = vdwg.mxu0
    %v5330 = vadd.f32 %v4416, %v4418
    %v5331 = vadd.f32 %v5330, %v4854
    %v5332 = vadd.f32 %v5331, %v4856
    %v5333 = vadd.f32 %v5332, %v5292
    %v5334 = vadd.f32 %v5333, %v5294
    %5335 = vadd.xlane.f32.xlu0 %v5334
    %v5336 = vpop.xlane.xlu0 %5335
    %v5337 = vadd.f32 %v4420, %v4422
    %v5338 = vadd.f32 %v5337, %v4858
    %v5339 = vadd.f32 %v5338, %v4860
    %v5340 = vadd.f32 %v5339, %v5296
    %v5341 = vadd.f32 %v5340, %v5298
    %5342 = vadd.xlane.f32.xlu0 %v5341
    %v5343 = vpop.xlane.xlu0 %5342
    %v5344 = vadd.f32 %v4426, %v4428
    %v5345 = vadd.f32 %v5344, %v4864
    %v5346 = vadd.f32 %v5345, %v4866
    %v5347 = vadd.f32 %v5346, %v5302
    %v5348 = vadd.f32 %v5347, %v5304
    %5349 = vadd.xlane.f32.xlu0 %v5348
    %v5350 = vpop.xlane.xlu0 %5349
    %v5351 = vadd.f32 %v4430, %v4432
    %v5352 = vadd.f32 %v5351, %v4868
    %v5353 = vadd.f32 %v5352, %v4870
    %v5354 = vadd.f32 %v5353, %v5306
    %v5355 = vadd.f32 %v5354, %v5308
    %5356 = vadd.xlane.f32.xlu0 %v5355
    %v5357 = vpop.xlane.xlu0 %5356
    %v5358 = vadd.f32 %v4436, %v4438
    %v5359 = vadd.f32 %v5358, %v4874
    %v5360 = vadd.f32 %v5359, %v4876
    %v5361 = vadd.f32 %v5360, %v5312
    %v5362 = vadd.f32 %v5361, %v5314
    %5363 = vadd.xlane.f32.xlu0 %v5362
    %v5364 = vpop.xlane.xlu0 %5363
    %v5365 = vadd.f32 %v4440, %v4442
    %v5366 = vadd.f32 %v5365, %v4878
    %v5367 = vadd.f32 %v5366, %v4880
    %v5368 = vadd.f32 %v5367, %v5316
    %v5369 = vadd.f32 %v5368, %v5318
    %5370 = vadd.xlane.f32.xlu0 %v5369
    %v5371 = vpop.xlane.xlu0 %5370
    %v5372 = vadd.f32 %v4446, %v4448
    %v5373 = vadd.f32 %v5372, %v4884
    %v5374 = vadd.f32 %v5373, %v4886
    %v5375 = vadd.f32 %v5374, %v5322
    %v5376 = vadd.f32 %v5375, %v5324
    %5377 = vadd.xlane.f32.xlu0 %v5376
    %v5378 = vpop.xlane.xlu0 %5377
    %v5379 = vadd.f32 %v4450, %v4452
    %v5380 = vadd.f32 %v5379, %v4888
    %v5381 = vadd.f32 %v5380, %v4890
    %v5382 = vadd.f32 %v5381, %v5326
    %v5383 = vadd.f32 %v5382, %v5328
    %5384 = vadd.xlane.f32.xlu0 %v5383
    %v5385 = vpop.xlane.xlu0 %5384
    %v5386 = vrcp.pop 768.0
    %v5387 = vmul.f32 %v5336, %v5386
    %v5388 = vmul.f32 %v5343, %v5386
    %v5389 = vmul.f32 %v5350, %v5386
    %v5390 = vmul.f32 %v5357, %v5386
    %v5391 = vmul.f32 %v5364, %v5386
    %v5392 = vmul.f32 %v5371, %v5386
    %v5393 = vmul.f32 %v5378, %v5386
    %v5394 = vmul.f32 %v5385, %v5386
    %v5395 = vsub.f32 %v4416, %v5387
    %v5396 = vsub.f32 %v4418, %v5387
    %v5397 = vsub.f32 %v4854, %v5387
    %v5398 = vsub.f32 %v4856, %v5387
    %v5399 = vsub.f32 %v5292, %v5387
    %v5400 = vsub.f32 %v5294, %v5387
    %v5401 = vsub.f32 %v4420, %v5388
    %v5402 = vsub.f32 %v4422, %v5388
    %v5403 = vsub.f32 %v4858, %v5388
    %v5404 = vsub.f32 %v4860, %v5388
    %v5405 = vsub.f32 %v5296, %v5388
    %v5406 = vsub.f32 %v5298, %v5388
    %v5407 = vsub.f32 %v4426, %v5389
    %v5408 = vsub.f32 %v4428, %v5389
    %v5409 = vsub.f32 %v4864, %v5389
    %v5410 = vsub.f32 %v4866, %v5389
    %v5411 = vsub.f32 %v5302, %v5389
    %v5412 = vsub.f32 %v5304, %v5389
    %v5413 = vsub.f32 %v4430, %v5390
    %v5414 = vsub.f32 %v4432, %v5390
    %v5415 = vsub.f32 %v4868, %v5390
    %v5416 = vsub.f32 %v4870, %v5390
    %v5417 = vsub.f32 %v5306, %v5390
    %v5418 = vsub.f32 %v5308, %v5390
    %v5419 = vsub.f32 %v4436, %v5391
    %v5420 = vsub.f32 %v4438, %v5391
    %v5421 = vsub.f32 %v4874, %v5391
    %v5422 = vsub.f32 %v4876, %v5391
    %v5423 = vsub.f32 %v5312, %v5391
    %v5424 = vsub.f32 %v5314, %v5391
    %v5425 = vsub.f32 %v4440, %v5392
    %v5426 = vsub.f32 %v4442, %v5392
    %v5427 = vsub.f32 %v4878, %v5392
    %v5428 = vsub.f32 %v4880, %v5392
    %v5429 = vsub.f32 %v5316, %v5392
    %v5430 = vsub.f32 %v5318, %v5392
    %v5431 = vsub.f32 %v4446, %v5393
    %v5432 = vsub.f32 %v4448, %v5393
    %v5433 = vsub.f32 %v4884, %v5393
    %v5434 = vsub.f32 %v4886, %v5393
    %v5435 = vsub.f32 %v5322, %v5393
    %v5436 = vsub.f32 %v5324, %v5393
    %v5437 = vsub.f32 %v4450, %v5394
    %v5438 = vsub.f32 %v4452, %v5394
    %v5439 = vsub.f32 %v4888, %v5394
    %v5440 = vsub.f32 %v4890, %v5394
    %v5441 = vsub.f32 %v5326, %v5394
    %v5442 = vsub.f32 %v5328, %v5394
    %v5443 = vmul.f32 %v5395, %v5395
    %v5444 = vmul.f32 %v5396, %v5396
    %v5445 = vmul.f32 %v5397, %v5397
    %v5446 = vmul.f32 %v5398, %v5398
    %v5447 = vmul.f32 %v5399, %v5399
    %v5448 = vmul.f32 %v5400, %v5400
    %v5449 = vmul.f32 %v5401, %v5401
    %v5450 = vmul.f32 %v5402, %v5402
    %v5451 = vmul.f32 %v5403, %v5403
    %v5452 = vmul.f32 %v5404, %v5404
    %v5453 = vmul.f32 %v5405, %v5405
    %v5454 = vmul.f32 %v5406, %v5406
    %v5455 = vmul.f32 %v5407, %v5407
    %v5456 = vmul.f32 %v5408, %v5408
    %v5457 = vmul.f32 %v5409, %v5409
    %v5458 = vmul.f32 %v5410, %v5410
    %v5459 = vmul.f32 %v5411, %v5411
    %v5460 = vmul.f32 %v5412, %v5412
    %v5461 = vmul.f32 %v5413, %v5413
    %v5462 = vmul.f32 %v5414, %v5414
    %v5463 = vmul.f32 %v5415, %v5415
    %v5464 = vmul.f32 %v5416, %v5416
    %v5465 = vmul.f32 %v5417, %v5417
    %v5466 = vmul.f32 %v5418, %v5418
    %v5467 = vmul.f32 %v5419, %v5419
    %v5468 = vmul.f32 %v5420, %v5420
    %v5469 = vmul.f32 %v5421, %v5421
    %v5470 = vmul.f32 %v5422, %v5422
    %v5471 = vmul.f32 %v5423, %v5423
    %v5472 = vmul.f32 %v5424, %v5424
    %v5473 = vmul.f32 %v5425, %v5425
    %v5474 = vmul.f32 %v5426, %v5426
    %v5475 = vmul.f32 %v5427, %v5427
    %v5476 = vmul.f32 %v5428, %v5428
    %v5477 = vmul.f32 %v5429, %v5429
    %v5478 = vmul.f32 %v5430, %v5430
    %v5479 = vmul.f32 %v5431, %v5431
    %v5480 = vmul.f32 %v5432, %v5432
    %v5481 = vmul.f32 %v5433, %v5433
    %v5482 = vmul.f32 %v5434, %v5434
    %v5483 = vmul.f32 %v5435, %v5435
    %v5484 = vmul.f32 %v5436, %v5436
    %v5485 = vmul.f32 %v5437, %v5437
    %v5486 = vmul.f32 %v5438, %v5438
    %v5487 = vmul.f32 %v5439, %v5439
    %v5488 = vmul.f32 %v5440, %v5440
    %v5489 = vmul.f32 %v5441, %v5441
    %v5490 = vmul.f32 %v5442, %v5442
    %v5491 = vadd.f32 %v5443, %v5444
    %v5492 = vadd.f32 %v5491, %v5445
    %v5493 = vadd.f32 %v5492, %v5446
    %v5494 = vadd.f32 %v5493, %v5447
    %v5495 = vadd.f32 %v5494, %v5448
    %5496 = vadd.xlane.f32.xlu0 %v5495
    %v5497 = vpop.xlane.xlu0 %5496
    %v5498 = vadd.f32 %v5449, %v5450
    %v5499 = vadd.f32 %v5498, %v5451
    %v5500 = vadd.f32 %v5499, %v5452
    %v5501 = vadd.f32 %v5500, %v5453
    %v5502 = vadd.f32 %v5501, %v5454
    %5503 = vadd.xlane.f32.xlu0 %v5502
    %v5504 = vpop.xlane.xlu0 %5503
    %v5505 = vadd.f32 %v5455, %v5456
    %v5506 = vadd.f32 %v5505, %v5457
    %v5507 = vadd.f32 %v5506, %v5458
    %v5508 = vadd.f32 %v5507, %v5459
    %v5509 = vadd.f32 %v5508, %v5460
    %5510 = vadd.xlane.f32.xlu0 %v5509
    %v5511 = vpop.xlane.xlu0 %5510
    %v5512 = vadd.f32 %v5461, %v5462
    %v5513 = vadd.f32 %v5512, %v5463
    %v5514 = vadd.f32 %v5513, %v5464
    %v5515 = vadd.f32 %v5514, %v5465
    %v5516 = vadd.f32 %v5515, %v5466
    %5517 = vadd.xlane.f32.xlu0 %v5516
    %v5518 = vpop.xlane.xlu0 %5517
    %v5519 = vadd.f32 %v5467, %v5468
    %v5520 = vadd.f32 %v5519, %v5469
    %v5521 = vadd.f32 %v5520, %v5470
    %v5522 = vadd.f32 %v5521, %v5471
    %v5523 = vadd.f32 %v5522, %v5472
    %5524 = vadd.xlane.f32.xlu0 %v5523
    %v5525 = vpop.xlane.xlu0 %5524
    %v5526 = vadd.f32 %v5473, %v5474
    %v5527 = vadd.f32 %v5526, %v5475
    %v5528 = vadd.f32 %v5527, %v5476
    %v5529 = vadd.f32 %v5528, %v5477
    %v5530 = vadd.f32 %v5529, %v5478
    %5531 = vadd.xlane.f32.xlu0 %v5530
    %v5532 = vpop.xlane.xlu0 %5531
    %v5533 = vadd.f32 %v5479, %v5480
    %v5534 = vadd.f32 %v5533, %v5481
    %v5535 = vadd.f32 %v5534, %v5482
    %v5536 = vadd.f32 %v5535, %v5483
    %v5537 = vadd.f32 %v5536, %v5484
    %5538 = vadd.xlane.f32.xlu0 %v5537
    %v5539 = vpop.xlane.xlu0 %5538
    %v5540 = vadd.f32 %v5485, %v5486
    %v5541 = vadd.f32 %v5540, %v5487
    %v5542 = vadd.f32 %v5541, %v5488
    %v5543 = vadd.f32 %v5542, %v5489
    %v5544 = vadd.f32 %v5543, %v5490
    %5545 = vadd.xlane.f32.xlu0 %v5544
    %v5546 = vpop.xlane.xlu0 %5545
    %v5547 = vmul.f32 %v5497, %v5386
    %v5548 = vmul.f32 %v5504, %v5386
    %v5549 = vmul.f32 %v5511, %v5386
    %v5550 = vmul.f32 %v5518, %v5386
    %v5551 = vmul.f32 %v5525, %v5386
    %v5552 = vmul.f32 %v5532, %v5386
    %v5553 = vmul.f32 %v5539, %v5386
    %v5554 = vmul.f32 %v5546, %v5386
    %v5555 = vadd.f32 %v5547, 1e-05
    %v5556 = vadd.f32 %v5548, 1e-05
    %v5557 = vadd.f32 %v5549, 1e-05
    %v5558 = vadd.f32 %v5550, 1e-05
    %v5559 = vadd.f32 %v5551, 1e-05
    %v5560 = vadd.f32 %v5552, 1e-05
    %v5561 = vadd.f32 %v5553, 1e-05
    %v5562 = vadd.f32 %v5554, 1e-05
    %v5563 = vrsqrt.pop %v5555
    %v5564 = vrsqrt.pop %v5556
    %v5565 = vrsqrt.pop %v5557
    %v5566 = vrsqrt.pop %v5558
    %v5567 = vrsqrt.pop %v5559
    %v5568 = vrsqrt.pop %v5560
    %v5569 = vrsqrt.pop %v5561
    %v5570 = vrsqrt.pop %v5562
    %v5571 = vmul.f32 %v5395, %v5563
    %v5572 = vmul.f32 %v5396, %v5563
    %v5573 = vmul.f32 %v5397, %v5563
    %v5574 = vmul.f32 %v5398, %v5563
    %v5575 = vmul.f32 %v5399, %v5563
    %v5576 = vmul.f32 %v5400, %v5563
    %v5577 = vmul.f32 %v5401, %v5564
    %v5578 = vmul.f32 %v5402, %v5564
    %v5579 = vmul.f32 %v5403, %v5564
    %v5580 = vmul.f32 %v5404, %v5564
    %v5581 = vmul.f32 %v5405, %v5564
    %v5582 = vmul.f32 %v5406, %v5564
    %v5583 = vmul.f32 %v5407, %v5565
    %v5584 = vmul.f32 %v5408, %v5565
    %v5585 = vmul.f32 %v5409, %v5565
    %v5586 = vmul.f32 %v5410, %v5565
    %v5587 = vmul.f32 %v5411, %v5565
    %v5588 = vmul.f32 %v5412, %v5565
    %v5589 = vmul.f32 %v5413, %v5566
    %v5590 = vmul.f32 %v5414, %v5566
    %v5591 = vmul.f32 %v5415, %v5566
    %v5592 = vmul.f32 %v5416, %v5566
    %v5593 = vmul.f32 %v5417, %v5566
    %v5594 = vmul.f32 %v5418, %v5566
    %v5595 = vmul.f32 %v5419, %v5567
    %v5596 = vmul.f32 %v5420, %v5567
    %v5597 = vmul.f32 %v5421, %v5567
    %v5598 = vmul.f32 %v5422, %v5567
    %v5599 = vmul.f32 %v5423, %v5567
    %v5600 = vmul.f32 %v5424, %v5567
    %v5601 = vmul.f32 %v5425, %v5568
    %v5602 = vmul.f32 %v5426, %v5568
    %v5603 = vmul.f32 %v5427, %v5568
    %v5604 = vmul.f32 %v5428, %v5568
    %v5605 = vmul.f32 %v5429, %v5568
    %v5606 = vmul.f32 %v5430, %v5568
    %v5607 = vmul.f32 %v5431, %v5569
    %v5608 = vmul.f32 %v5432, %v5569
    %v5609 = vmul.f32 %v5433, %v5569
    %v5610 = vmul.f32 %v5434, %v5569
    %v5611 = vmul.f32 %v5435, %v5569
    %v5612 = vmul.f32 %v5436, %v5569
    %v5613 = vmul.f32 %v5437, %v5570
    %v5614 = vmul.f32 %v5438, %v5570
    %v5615 = vmul.f32 %v5439, %v5570
    %v5616 = vmul.f32 %v5440, %v5570
    %v5617 = vmul.f32 %v5441, %v5570
    %v5618 = vmul.f32 %v5442, %v5570
    %v5619 = vld [vmem:[#allocation7] sm:$0x3f]
    %v5621 = vlaneseq
    %v5622 = vshrl.u32 %v5621, 7
    %v5623 = vsub.s32 0, %v5622
    %v5624 = vrot.slane %v5619, %v5623
    %v5625 = vlaneseq
    %v5626 = vshrl.u32 %v5625, 7
    %v5627 = vsub.s32 1, %v5626
    %v5628 = vrot.slane %v5619, %v5627
    %v5629 = vlaneseq
    %v5630 = vshrl.u32 %v5629, 7
    %v5631 = vsub.s32 2, %v5630
    %v5632 = vrot.slane %v5619, %v5631
    %v5633 = vlaneseq
    %v5634 = vshrl.u32 %v5633, 7
    %v5635 = vsub.s32 3, %v5634
    %v5636 = vrot.slane %v5619, %v5635
    %v5637 = vlaneseq
    %v5638 = vshrl.u32 %v5637, 7
    %v5639 = vsub.s32 4, %v5638
    %v5640 = vrot.slane %v5619, %v5639
    %v5641 = vlaneseq
    %v5642 = vshrl.u32 %v5641, 7
    %v5643 = vsub.s32 5, %v5642
    %v5644 = vrot.slane %v5619, %v5643
    %v5651 = vmul.f32 %v5571, %v5624
    %v5652 = vmul.f32 %v5572, %v5628
    %v5653 = vmul.f32 %v5573, %v5632
    %v5654 = vmul.f32 %v5574, %v5636
    %v5655 = vmul.f32 %v5575, %v5640
    %v5656 = vmul.f32 %v5576, %v5644
    %v5657 = vmul.f32 %v5577, %v5624
    %v5658 = vmul.f32 %v5578, %v5628
    %v5659 = vmul.f32 %v5579, %v5632
    %v5660 = vmul.f32 %v5580, %v5636
    %v5661 = vmul.f32 %v5581, %v5640
    %v5662 = vmul.f32 %v5582, %v5644
    %v5663 = vmul.f32 %v5583, %v5624
    %v5664 = vmul.f32 %v5584, %v5628
    %v5665 = vmul.f32 %v5585, %v5632
    %v5666 = vmul.f32 %v5586, %v5636
    %v5667 = vmul.f32 %v5587, %v5640
    %v5668 = vmul.f32 %v5588, %v5644
    %v5669 = vmul.f32 %v5589, %v5624
    %v5670 = vmul.f32 %v5590, %v5628
    %v5671 = vmul.f32 %v5591, %v5632
    %v5672 = vmul.f32 %v5592, %v5636
    %v5673 = vmul.f32 %v5593, %v5640
    %v5674 = vmul.f32 %v5594, %v5644
    %v5675 = vmul.f32 %v5595, %v5624
    %v5676 = vmul.f32 %v5596, %v5628
    %v5677 = vmul.f32 %v5597, %v5632
    %v5678 = vmul.f32 %v5598, %v5636
    %v5679 = vmul.f32 %v5599, %v5640
    %v5680 = vmul.f32 %v5600, %v5644
    %v5681 = vmul.f32 %v5601, %v5624
    %v5682 = vmul.f32 %v5602, %v5628
    %v5683 = vmul.f32 %v5603, %v5632
    %v5684 = vmul.f32 %v5604, %v5636
    %v5685 = vmul.f32 %v5605, %v5640
    %v5686 = vmul.f32 %v5606, %v5644
    %v5687 = vmul.f32 %v5607, %v5624
    %v5688 = vmul.f32 %v5608, %v5628
    %v5689 = vmul.f32 %v5609, %v5632
    %v5690 = vmul.f32 %v5610, %v5636
    %v5691 = vmul.f32 %v5611, %v5640
    %v5692 = vmul.f32 %v5612, %v5644
    %v5693 = vmul.f32 %v5613, %v5624
    %v5694 = vmul.f32 %v5614, %v5628
    %v5695 = vmul.f32 %v5615, %v5632
    %v5696 = vmul.f32 %v5616, %v5636
    %v5697 = vmul.f32 %v5617, %v5640
    %v5698 = vmul.f32 %v5618, %v5644
    %v5699 = vld [vmem:[#allocation8] sm:$0x3f]
    %v5701 = vlaneseq
    %v5702 = vshrl.u32 %v5701, 7
    %v5703 = vsub.s32 0, %v5702
    %v5704 = vrot.slane %v5699, %v5703
    %v5705 = vlaneseq
    %v5706 = vshrl.u32 %v5705, 7
    %v5707 = vsub.s32 1, %v5706
    %v5708 = vrot.slane %v5699, %v5707
    %v5709 = vlaneseq
    %v5710 = vshrl.u32 %v5709, 7
    %v5711 = vsub.s32 2, %v5710
    %v5712 = vrot.slane %v5699, %v5711
    %v5713 = vlaneseq
    %v5714 = vshrl.u32 %v5713, 7
    %v5715 = vsub.s32 3, %v5714
    %v5716 = vrot.slane %v5699, %v5715
    %v5717 = vlaneseq
    %v5718 = vshrl.u32 %v5717, 7
    %v5719 = vsub.s32 4, %v5718
    %v5720 = vrot.slane %v5699, %v5719
    %v5721 = vlaneseq
    %v5722 = vshrl.u32 %v5721, 7
    %v5723 = vsub.s32 5, %v5722
    %v5724 = vrot.slane %v5699, %v5723
    %v5731 = vadd.f32 %v5651, %v5704
    %v5732 = vadd.f32 %v5652, %v5708
    %v5733 = vadd.f32 %v5653, %v5712
    %v5734 = vadd.f32 %v5654, %v5716
    %v5735 = vadd.f32 %v5655, %v5720
    %v5736 = vadd.f32 %v5656, %v5724
    %v5737 = vadd.f32 %v5657, %v5704
    %v5738 = vadd.f32 %v5658, %v5708
    %v5739 = vadd.f32 %v5659, %v5712
    %v5740 = vadd.f32 %v5660, %v5716
    %v5741 = vadd.f32 %v5661, %v5720
    %v5742 = vadd.f32 %v5662, %v5724
    %v5743 = vadd.f32 %v5663, %v5704
    %v5744 = vadd.f32 %v5664, %v5708
    %v5745 = vadd.f32 %v5665, %v5712
    %v5746 = vadd.f32 %v5666, %v5716
    %v5747 = vadd.f32 %v5667, %v5720
    %v5748 = vadd.f32 %v5668, %v5724
    %v5749 = vadd.f32 %v5669, %v5704
    %v5750 = vadd.f32 %v5670, %v5708
    %v5751 = vadd.f32 %v5671, %v5712
    %v5752 = vadd.f32 %v5672, %v5716
    %v5753 = vadd.f32 %v5673, %v5720
    %v5754 = vadd.f32 %v5674, %v5724
    %v5755 = vadd.f32 %v5675, %v5704
    %v5756 = vadd.f32 %v5676, %v5708
    %v5757 = vadd.f32 %v5677, %v5712
    %v5758 = vadd.f32 %v5678, %v5716
    %v5759 = vadd.f32 %v5679, %v5720
    %v5760 = vadd.f32 %v5680, %v5724
    %v5761 = vadd.f32 %v5681, %v5704
    %v5762 = vadd.f32 %v5682, %v5708
    %v5763 = vadd.f32 %v5683, %v5712
    %v5764 = vadd.f32 %v5684, %v5716
    %v5765 = vadd.f32 %v5685, %v5720
    %v5766 = vadd.f32 %v5686, %v5724
    %v5767 = vadd.f32 %v5687, %v5704
    %v5768 = vadd.f32 %v5688, %v5708
    %v5769 = vadd.f32 %v5689, %v5712
    %v5770 = vadd.f32 %v5690, %v5716
    %v5771 = vadd.f32 %v5691, %v5720
    %v5772 = vadd.f32 %v5692, %v5724
    %v5773 = vadd.f32 %v5693, %v5704
    %v5774 = vadd.f32 %v5694, %v5708
    %v5775 = vadd.f32 %v5695, %v5712
    %v5776 = vadd.f32 %v5696, %v5716
    %v5777 = vadd.f32 %v5697, %v5720
    %v5778 = vadd.f32 %v5698, %v5724
    %v5779 = vld [vmem:[#allocation10] sm:$0xff]
    %v5780 = vld [vmem:[#allocation10 + $0x8] sm:$0xf]
    %v5781 = vld [vmem:[#allocation10 + $0xc] sm:$0xff]
    %v5782 = vld [vmem:[#allocation10 + $0x14] sm:$0xf]
    %v5783 = vld [vmem:[#allocation10 + $0x18] sm:$0xff]
    %v5784 = vld [vmem:[#allocation10 + $0x20] sm:$0xf]
    %v5785 = vld [vmem:[#allocation10 + $0x24] sm:$0xff]
    %v5786 = vld [vmem:[#allocation10 + $0x2c] sm:$0xf]
    %v5787 = vld [vmem:[#allocation10 + $0x30] sm:$0xff]
    %v5788 = vld [vmem:[#allocation10 + $0x38] sm:$0xf]
    %v5789 = vld [vmem:[#allocation10 + $0x3c] sm:$0xff]
    %v5790 = vld [vmem:[#allocation10 + $0x44] sm:$0xf]
    %v5791 = vld [vmem:[#allocation10 + $0x48] sm:$0xff]
    %v5792 = vld [vmem:[#allocation10 + $0x50] sm:$0xf]
    %v5793 = vld [vmem:[#allocation10 + $0x54] sm:$0xff]
    %v5794 = vld [vmem:[#allocation10 + $0x5c] sm:$0xf]
    %v5795 = vld [vmem:[#allocation10 + $0x60] sm:$0xff]
    %v5796 = vld [vmem:[#allocation10 + $0x68] sm:$0xf]
    %v5797 = vld [vmem:[#allocation10 + $0x6c] sm:$0xff]
    %v5798 = vld [vmem:[#allocation10 + $0x74] sm:$0xf]
    %v5799 = vld [vmem:[#allocation10 + $0x78] sm:$0xff]
    %v5800 = vld [vmem:[#allocation10 + $0x80] sm:$0xf]
    %v5801 = vld [vmem:[#allocation10 + $0x84] sm:$0xff]
    %v5802 = vld [vmem:[#allocation10 + $0x8c] sm:$0xf]
    %v5803 = vld [vmem:[#allocation10 + $0x90] sm:$0xff]
    %v5804 = vld [vmem:[#allocation10 + $0x98] sm:$0xf]
    %v5805 = vld [vmem:[#allocation10 + $0x9c] sm:$0xff]
    %v5806 = vld [vmem:[#allocation10 + $0xa4] sm:$0xf]
    %v5807 = vld [vmem:[#allocation10 + $0xa8] sm:$0xff]
    %v5808 = vld [vmem:[#allocation10 + $0xb0] sm:$0xf]
    %v5809 = vld [vmem:[#allocation10 + $0xb4] sm:$0xff]
    %v5810 = vld [vmem:[#allocation10 + $0xbc] sm:$0xf]
    %v5811 = vpack.c.bf16 %v5737, %v5731
    %v5812 = vpack.c.bf16 %v5738, %v5732
    %v5813 = vpack.c.bf16 %v5739, %v5733
    %v5814 = vpack.c.bf16 %v5740, %v5734
    %v5815 = vpack.c.bf16 %v5741, %v5735
    %v5816 = vpack.c.bf16 %v5742, %v5736
    %v5817 = vpack.c.bf16 %v5749, %v5743
    %v5818 = vpack.c.bf16 %v5750, %v5744
    %v5819 = vpack.c.bf16 %v5751, %v5745
    %v5820 = vpack.c.bf16 %v5752, %v5746
    %v5821 = vpack.c.bf16 %v5753, %v5747
    %v5822 = vpack.c.bf16 %v5754, %v5748
    %v5823 = vpack.c.bf16 %v5761, %v5755
    %v5824 = vpack.c.bf16 %v5762, %v5756
    %v5825 = vpack.c.bf16 %v5763, %v5757
    %v5826 = vpack.c.bf16 %v5764, %v5758
    %v5827 = vpack.c.bf16 %v5765, %v5759
    %v5828 = vpack.c.bf16 %v5766, %v5760
    %v5829 = vpack.c.bf16 %v5773, %v5767
    %v5830 = vpack.c.bf16 %v5774, %v5768
    %v5831 = vpack.c.bf16 %v5775, %v5769
    %v5832 = vpack.c.bf16 %v5776, %v5770
    %v5833 = vpack.c.bf16 %v5777, %v5771
    %v5834 = vpack.c.bf16 %v5778, %v5772
    %v5835 = vld [vmem:[%s5] sm:$0xff]
    %v5836 = vld [vmem:[%s5 + $0x8] sm:$0xf]
    %v5837 = vld [vmem:[%s5 + $0xc] sm:$0xff]
    %v5838 = vld [vmem:[%s5 + $0x14] sm:$0xf]
    %v5839 = vld [vmem:[%s5 + $0x18] sm:$0xff]
    %v5840 = vld [vmem:[%s5 + $0x20] sm:$0xf]
    %v5841 = vld [vmem:[%s5 + $0x24] sm:$0xff]
    %v5842 = vld [vmem:[%s5 + $0x2c] sm:$0xf]
    %v5843 = vld [vmem:[%s5 + $0x30] sm:$0xff]
    %v5844 = vld [vmem:[%s5 + $0x38] sm:$0xf]
    %v5845 = vld [vmem:[%s5 + $0x3c] sm:$0xff]
    %v5846 = vld [vmem:[%s5 + $0x44] sm:$0xf]
    %v5847 = vld [vmem:[%s5 + $0x48] sm:$0xff]
    %v5848 = vld [vmem:[%s5 + $0x50] sm:$0xf]
    %v5849 = vld [vmem:[%s5 + $0x54] sm:$0xff]
    %v5850 = vld [vmem:[%s5 + $0x5c] sm:$0xf]
    %v5851 = vld [vmem:[%s5 + $0x60] sm:$0xff]
    %v5852 = vld [vmem:[%s5 + $0x68] sm:$0xf]
    %v5853 = vld [vmem:[%s5 + $0x6c] sm:$0xff]
    %v5854 = vld [vmem:[%s5 + $0x74] sm:$0xf]
    %v5855 = vld [vmem:[%s5 + $0x78] sm:$0xff]
    %v5856 = vld [vmem:[%s5 + $0x80] sm:$0xf]
    %v5857 = vld [vmem:[%s5 + $0x84] sm:$0xff]
    %v5858 = vld [vmem:[%s5 + $0x8c] sm:$0xf]
    %v5859 = vld [vmem:[%s5 + $0x90] sm:$0xff]
    %v5860 = vld [vmem:[%s5 + $0x98] sm:$0xf]
    %v5861 = vld [vmem:[%s5 + $0x9c] sm:$0xff]
    %v5862 = vld [vmem:[%s5 + $0xa4] sm:$0xf]
    %v5863 = vld [vmem:[%s5 + $0xa8] sm:$0xff]
    %v5864 = vld [vmem:[%s5 + $0xb0] sm:$0xf]
    %v5865 = vld [vmem:[%s5 + $0xb4] sm:$0xff]
    %v5866 = vld [vmem:[%s5 + $0xbc] sm:$0xf]
    %v5867 = vld [vmem:[%s5 + $0xc0] sm:$0xff]
    %v5868 = vld [vmem:[%s5 + $0xc8] sm:$0xf]
    %v5869 = vld [vmem:[%s5 + $0xcc] sm:$0xff]
    %v5870 = vld [vmem:[%s5 + $0xd4] sm:$0xf]
    %v5871 = vld [vmem:[%s5 + $0xd8] sm:$0xff]
    %v5872 = vld [vmem:[%s5 + $0xe0] sm:$0xf]
    %v5873 = vld [vmem:[%s5 + $0xe4] sm:$0xff]
    %v5874 = vld [vmem:[%s5 + $0xec] sm:$0xf]
    %v5875 = vld [vmem:[%s5 + $0xf0] sm:$0xff]
    %v5876 = vld [vmem:[%s5 + $0xf8] sm:$0xf]
    %v5877 = vld [vmem:[%s5 + $0xfc] sm:$0xff]
    %v5878 = vld [vmem:[%s5 + $0x104] sm:$0xf]
    %v5879 = vld [vmem:[%s5 + $0x108] sm:$0xff]
    %v5880 = vld [vmem:[%s5 + $0x110] sm:$0xf]
    %v5881 = vld [vmem:[%s5 + $0x114] sm:$0xff]
    %v5882 = vld [vmem:[%s5 + $0x11c] sm:$0xf]
    %v5883 = vld [vmem:[%s5 + $0x120] sm:$0xff]
    %v5884 = vld [vmem:[%s5 + $0x128] sm:$0xf]
    %v5885 = vld [vmem:[%s5 + $0x12c] sm:$0xff]
    %v5886 = vld [vmem:[%s5 + $0x134] sm:$0xf]
    %v5887 = vld [vmem:[%s5 + $0x138] sm:$0xff]
    %v5888 = vld [vmem:[%s5 + $0x140] sm:$0xf]
    %v5889 = vld [vmem:[%s5 + $0x144] sm:$0xff]
    %v5890 = vld [vmem:[%s5 + $0x14c] sm:$0xf]
    %v5891 = vld [vmem:[%s5 + $0x150] sm:$0xff]
    %v5892 = vld [vmem:[%s5 + $0x158] sm:$0xf]
    %v5893 = vld [vmem:[%s5 + $0x15c] sm:$0xff]
    %v5894 = vld [vmem:[%s5 + $0x164] sm:$0xf]
    %v5895 = vld [vmem:[%s5 + $0x168] sm:$0xff]
    %v5896 = vld [vmem:[%s5 + $0x170] sm:$0xf]
    %v5897 = vld [vmem:[%s5 + $0x174] sm:$0xff]
    %v5898 = vld [vmem:[%s5 + $0x17c] sm:$0xf]
    %v5899 = vld [vmem:[%s5 + $0x180] sm:$0xff]
    %v5900 = vld [vmem:[%s5 + $0x188] sm:$0xf]
    %v5901 = vld [vmem:[%s5 + $0x18c] sm:$0xff]
    %v5902 = vld [vmem:[%s5 + $0x194] sm:$0xf]
    %v5903 = vld [vmem:[%s5 + $0x198] sm:$0xff]
    %v5904 = vld [vmem:[%s5 + $0x1a0] sm:$0xf]
    %v5905 = vld [vmem:[%s5 + $0x1a4] sm:$0xff]
    %v5906 = vld [vmem:[%s5 + $0x1ac] sm:$0xf]
    %v5907 = vld [vmem:[%s5 + $0x1b0] sm:$0xff]
    %v5908 = vld [vmem:[%s5 + $0x1b8] sm:$0xf]
    %v5909 = vld [vmem:[%s5 + $0x1bc] sm:$0xff]
    %v5910 = vld [vmem:[%s5 + $0x1c4] sm:$0xf]
    %v5911 = vld [vmem:[%s5 + $0x1c8] sm:$0xff]
    %v5912 = vld [vmem:[%s5 + $0x1d0] sm:$0xf]
    %v5913 = vld [vmem:[%s5 + $0x1d4] sm:$0xff]
    %v5914 = vld [vmem:[%s5 + $0x1dc] sm:$0xf]
    %v5915 = vld [vmem:[%s5 + $0x1e0] sm:$0xff]
    %v5916 = vld [vmem:[%s5 + $0x1e8] sm:$0xf]
    %v5917 = vld [vmem:[%s5 + $0x1ec] sm:$0xff]
    %v5918 = vld [vmem:[%s5 + $0x1f4] sm:$0xf]
    %v5919 = vld [vmem:[%s5 + $0x1f8] sm:$0xff]
    %v5920 = vld [vmem:[%s5 + $0x200] sm:$0xf]
    %v5921 = vld [vmem:[%s5 + $0x204] sm:$0xff]
    %v5922 = vld [vmem:[%s5 + $0x20c] sm:$0xf]
    %v5923 = vld [vmem:[%s5 + $0x210] sm:$0xff]
    %v5924 = vld [vmem:[%s5 + $0x218] sm:$0xf]
    %v5925 = vld [vmem:[%s5 + $0x21c] sm:$0xff]
    %v5926 = vld [vmem:[%s5 + $0x224] sm:$0xf]
    %v5927 = vld [vmem:[%s5 + $0x228] sm:$0xff]
    %v5928 = vld [vmem:[%s5 + $0x230] sm:$0xf]
    %v5929 = vld [vmem:[%s5 + $0x234] sm:$0xff]
    %v5930 = vld [vmem:[%s5 + $0x23c] sm:$0xf]
    %v5931 = vld [vmem:[%s5 + $0x240] sm:$0xff]
    %v5932 = vld [vmem:[%s5 + $0x248] sm:$0xf]
    %v5933 = vld [vmem:[%s5 + $0x24c] sm:$0xff]
    %v5934 = vld [vmem:[%s5 + $0x254] sm:$0xf]
    %v5935 = vld [vmem:[%s5 + $0x258] sm:$0xff]
    %v5936 = vld [vmem:[%s5 + $0x260] sm:$0xf]
    %v5937 = vld [vmem:[%s5 + $0x264] sm:$0xff]
    %v5938 = vld [vmem:[%s5 + $0x26c] sm:$0xf]
    %v5939 = vld [vmem:[%s5 + $0x270] sm:$0xff]
    %v5940 = vld [vmem:[%s5 + $0x278] sm:$0xf]
    %v5941 = vld [vmem:[%s5 + $0x27c] sm:$0xff]
    %v5942 = vld [vmem:[%s5 + $0x284] sm:$0xf]
    %v5943 = vld [vmem:[%s5 + $0x288] sm:$0xff]
    %v5944 = vld [vmem:[%s5 + $0x290] sm:$0xf]
    %v5945 = vld [vmem:[%s5 + $0x294] sm:$0xff]
    %v5946 = vld [vmem:[%s5 + $0x29c] sm:$0xf]
    %v5947 = vld [vmem:[%s5 + $0x2a0] sm:$0xff]
    %v5948 = vld [vmem:[%s5 + $0x2a8] sm:$0xf]
    %v5949 = vld [vmem:[%s5 + $0x2ac] sm:$0xff]
    %v5950 = vld [vmem:[%s5 + $0x2b4] sm:$0xf]
    %v5951 = vld [vmem:[%s5 + $0x2b8] sm:$0xff]
    %v5952 = vld [vmem:[%s5 + $0x2c0] sm:$0xf]
    %v5953 = vld [vmem:[%s5 + $0x2c4] sm:$0xff]
    %v5954 = vld [vmem:[%s5 + $0x2cc] sm:$0xf]
    %v5955 = vld [vmem:[%s5 + $0x2d0] sm:$0xff]
    %v5956 = vld [vmem:[%s5 + $0x2d8] sm:$0xf]
    %v5957 = vld [vmem:[%s5 + $0x2dc] sm:$0xff]
    %v5958 = vld [vmem:[%s5 + $0x2e4] sm:$0xf]
    %v5959 = vld [vmem:[%s5 + $0x2e8] sm:$0xff]
    %v5960 = vld [vmem:[%s5 + $0x2f0] sm:$0xf]
    %v5961 = vld [vmem:[%s5 + $0x2f4] sm:$0xff]
    %v5962 = vld [vmem:[%s5 + $0x2fc] sm:$0xf]
    %v5963 = vld [vmem:[%s5 + $0x300] sm:$0xff]
    %v5964 = vld [vmem:[%s5 + $0x308] sm:$0xf]
    %v5965 = vld [vmem:[%s5 + $0x30c] sm:$0xff]
    %v5966 = vld [vmem:[%s5 + $0x314] sm:$0xf]
    %v5967 = vld [vmem:[%s5 + $0x318] sm:$0xff]
    %v5968 = vld [vmem:[%s5 + $0x320] sm:$0xf]
    %v5969 = vld [vmem:[%s5 + $0x324] sm:$0xff]
    %v5970 = vld [vmem:[%s5 + $0x32c] sm:$0xf]
    %v5971 = vld [vmem:[%s5 + $0x330] sm:$0xff]
    %v5972 = vld [vmem:[%s5 + $0x338] sm:$0xf]
    %v5973 = vld [vmem:[%s5 + $0x33c] sm:$0xff]
    %v5974 = vld [vmem:[%s5 + $0x344] sm:$0xf]
    %v5975 = vld [vmem:[%s5 + $0x348] sm:$0xff]
    %v5976 = vld [vmem:[%s5 + $0x350] sm:$0xf]
    %v5977 = vld [vmem:[%s5 + $0x354] sm:$0xff]
    %v5978 = vld [vmem:[%s5 + $0x35c] sm:$0xf]
    %v5979 = vld [vmem:[%s5 + $0x360] sm:$0xff]
    %v5980 = vld [vmem:[%s5 + $0x368] sm:$0xf]
    %v5981 = vld [vmem:[%s5 + $0x36c] sm:$0xff]
    %v5982 = vld [vmem:[%s5 + $0x374] sm:$0xf]
    %v5983 = vld [vmem:[%s5 + $0x378] sm:$0xff]
    %v5984 = vld [vmem:[%s5 + $0x380] sm:$0xf]
    %v5985 = vld [vmem:[%s5 + $0x384] sm:$0xff]
    %v5986 = vld [vmem:[%s5 + $0x38c] sm:$0xf]
    %v5987 = vld [vmem:[%s5 + $0x390] sm:$0xff]
    %v5988 = vld [vmem:[%s5 + $0x398] sm:$0xf]
    %v5989 = vld [vmem:[%s5 + $0x39c] sm:$0xff]
    %v5990 = vld [vmem:[%s5 + $0x3a4] sm:$0xf]
    %v5991 = vld [vmem:[%s5 + $0x3a8] sm:$0xff]
    %v5992 = vld [vmem:[%s5 + $0x3b0] sm:$0xf]
    %v5993 = vld [vmem:[%s5 + $0x3b4] sm:$0xff]
    %v5994 = vld [vmem:[%s5 + $0x3bc] sm:$0xf]
    %v5995 = vld [vmem:[%s5 + $0x3c0] sm:$0xff]
    %v5996 = vld [vmem:[%s5 + $0x3c8] sm:$0xf]
    %v5997 = vld [vmem:[%s5 + $0x3cc] sm:$0xff]
    %v5998 = vld [vmem:[%s5 + $0x3d4] sm:$0xf]
    %v5999 = vld [vmem:[%s5 + $0x3d8] sm:$0xff]
    %v6000 = vld [vmem:[%s5 + $0x3e0] sm:$0xf]
    %v6001 = vld [vmem:[%s5 + $0x3e4] sm:$0xff]
    %v6002 = vld [vmem:[%s5 + $0x3ec] sm:$0xf]
    %v6003 = vld [vmem:[%s5 + $0x3f0] sm:$0xff]
    %v6004 = vld [vmem:[%s5 + $0x3f8] sm:$0xf]
    %v6005 = vld [vmem:[%s5 + $0x3fc] sm:$0xff]
    %v6006 = vld [vmem:[%s5 + $0x404] sm:$0xf]
    %v6007 = vld [vmem:[%s5 + $0x408] sm:$0xff]
    %v6008 = vld [vmem:[%s5 + $0x410] sm:$0xf]
    %v6009 = vld [vmem:[%s5 + $0x414] sm:$0xff]
    %v6010 = vld [vmem:[%s5 + $0x41c] sm:$0xf]
    %v6011 = vld [vmem:[%s5 + $0x420] sm:$0xff]
    %v6012 = vld [vmem:[%s5 + $0x428] sm:$0xf]
    %v6013 = vld [vmem:[%s5 + $0x42c] sm:$0xff]
    %v6014 = vld [vmem:[%s5 + $0x434] sm:$0xf]
    %v6015 = vld [vmem:[%s5 + $0x438] sm:$0xff]
    %v6016 = vld [vmem:[%s5 + $0x440] sm:$0xf]
    %v6017 = vld [vmem:[%s5 + $0x444] sm:$0xff]
    %v6018 = vld [vmem:[%s5 + $0x44c] sm:$0xf]
    %v6019 = vld [vmem:[%s5 + $0x450] sm:$0xff]
    %v6020 = vld [vmem:[%s5 + $0x458] sm:$0xf]
    %v6021 = vld [vmem:[%s5 + $0x45c] sm:$0xff]
    %v6022 = vld [vmem:[%s5 + $0x464] sm:$0xf]
    %v6023 = vld [vmem:[%s5 + $0x468] sm:$0xff]
    %v6024 = vld [vmem:[%s5 + $0x470] sm:$0xf]
    %v6025 = vld [vmem:[%s5 + $0x474] sm:$0xff]
    %v6026 = vld [vmem:[%s5 + $0x47c] sm:$0xf]
    %v6027 = vld [vmem:[#allocation11] sm:$0x7]
    %v6029 = vlaneseq
    %v6030 = vshrl.u32 %v6029, 7
    %v6031 = vsub.s32 0, %v6030
    %v6032 = vrot.slane %v6027, %v6031
    %v6033 = vlaneseq
    %v6034 = vshrl.u32 %v6033, 7
    %v6035 = vsub.s32 1, %v6034
    %v6036 = vrot.slane %v6027, %v6035
    %v6037 = vlaneseq
    %v6038 = vshrl.u32 %v6037, 7
    %v6039 = vsub.s32 2, %v6038
    %v6040 = vrot.slane %v6027, %v6039
    %v6236 = vunpack.c.l.b16 %v5835
    %v6237 = vunpack.c.h.b16 %v5835
    %v6238 = vunpack.c.l.b16 %v5836
    %v6239 = vunpack.c.l.b16 %v5837
    %v6240 = vunpack.c.h.b16 %v5837
    %v6241 = vunpack.c.l.b16 %v5838
    %v6242 = vunpack.c.l.b16 %v5839
    %v6243 = vunpack.c.h.b16 %v5839
    %v6244 = vunpack.c.l.b16 %v5840
    %v6245 = vunpack.c.l.b16 %v5841
    %v6246 = vunpack.c.h.b16 %v5841
    %v6247 = vunpack.c.l.b16 %v5842
    %v6248 = vunpack.c.l.b16 %v5843
    %v6249 = vunpack.c.h.b16 %v5843
    %v6250 = vunpack.c.l.b16 %v5844
    %v6251 = vunpack.c.l.b16 %v5845
    %v6252 = vunpack.c.h.b16 %v5845
    %v6253 = vunpack.c.l.b16 %v5846
    %v6254 = vunpack.c.l.b16 %v5847
    %v6255 = vunpack.c.h.b16 %v5847
    %v6256 = vunpack.c.l.b16 %v5848
    %v6257 = vunpack.c.l.b16 %v5849
    %v6258 = vunpack.c.h.b16 %v5849
    %v6259 = vunpack.c.l.b16 %v5850
    %v6260 = vunpack.c.l.b16 %v5851
    %v6261 = vunpack.c.h.b16 %v5851
    %v6262 = vunpack.c.l.b16 %v5852
    %v6263 = vunpack.c.l.b16 %v5853
    %v6264 = vunpack.c.h.b16 %v5853
    %v6265 = vunpack.c.l.b16 %v5854
    %v6266 = vunpack.c.l.b16 %v5855
    %v6267 = vunpack.c.h.b16 %v5855
    %v6268 = vunpack.c.l.b16 %v5856
    %v6269 = vunpack.c.l.b16 %v5857
    %v6270 = vunpack.c.h.b16 %v5857
    %v6271 = vunpack.c.l.b16 %v5858
    %v6272 = vunpack.c.l.b16 %v5859
    %v6273 = vunpack.c.h.b16 %v5859
    %v6274 = vunpack.c.l.b16 %v5860
    %v6275 = vunpack.c.l.b16 %v5861
    %v6276 = vunpack.c.h.b16 %v5861
    %v6277 = vunpack.c.l.b16 %v5862
    %v6278 = vunpack.c.l.b16 %v5863
    %v6279 = vunpack.c.h.b16 %v5863
    %v6280 = vunpack.c.l.b16 %v5864
    %v6281 = vunpack.c.l.b16 %v5865
    %v6282 = vunpack.c.h.b16 %v5865
    %v6283 = vunpack.c.l.b16 %v5866
    %v6284 = vunpack.c.l.b16 %v5867
    %v6285 = vunpack.c.h.b16 %v5867
    %v6286 = vunpack.c.l.b16 %v5868
    %v6287 = vunpack.c.l.b16 %v5869
    %v6288 = vunpack.c.h.b16 %v5869
    %v6289 = vunpack.c.l.b16 %v5870
    %v6290 = vunpack.c.l.b16 %v5871
    %v6291 = vunpack.c.h.b16 %v5871
    %v6292 = vunpack.c.l.b16 %v5872
    %v6293 = vunpack.c.l.b16 %v5873
    %v6294 = vunpack.c.h.b16 %v5873
    %v6295 = vunpack.c.l.b16 %v5874
    %v6296 = vunpack.c.l.b16 %v5875
    %v6297 = vunpack.c.h.b16 %v5875
    %v6298 = vunpack.c.l.b16 %v5876
    %v6299 = vunpack.c.l.b16 %v5877
    %v6300 = vunpack.c.h.b16 %v5877
    %v6301 = vunpack.c.l.b16 %v5878
    %v6302 = vunpack.c.l.b16 %v5879
    %v6303 = vunpack.c.h.b16 %v5879
    %v6304 = vunpack.c.l.b16 %v5880
    %v6305 = vunpack.c.l.b16 %v5881
    %v6306 = vunpack.c.h.b16 %v5881
    %v6307 = vunpack.c.l.b16 %v5882
    %v6308 = vunpack.c.l.b16 %v5883
    %v6309 = vunpack.c.h.b16 %v5883
    %v6310 = vunpack.c.l.b16 %v5884
    %v6311 = vunpack.c.l.b16 %v5885
    %v6312 = vunpack.c.h.b16 %v5885
    %v6313 = vunpack.c.l.b16 %v5886
    %v6314 = vunpack.c.l.b16 %v5887
    %v6315 = vunpack.c.h.b16 %v5887
    %v6316 = vunpack.c.l.b16 %v5888
    %v6317 = vunpack.c.l.b16 %v5889
    %v6318 = vunpack.c.h.b16 %v5889
    %v6319 = vunpack.c.l.b16 %v5890
    %v6320 = vunpack.c.l.b16 %v5891
    %v6321 = vunpack.c.h.b16 %v5891
    %v6322 = vunpack.c.l.b16 %v5892
    %v6323 = vunpack.c.l.b16 %v5893
    %v6324 = vunpack.c.h.b16 %v5893
    %v6325 = vunpack.c.l.b16 %v5894
    %v6326 = vunpack.c.l.b16 %v5895
    %v6327 = vunpack.c.h.b16 %v5895
    %v6328 = vunpack.c.l.b16 %v5896
    %v6329 = vunpack.c.l.b16 %v5897
    %v6330 = vunpack.c.h.b16 %v5897
    %v6331 = vunpack.c.l.b16 %v5898
    %v6332 = vunpack.c.l.b16 %v5899
    %v6333 = vunpack.c.h.b16 %v5899
    %v6334 = vunpack.c.l.b16 %v5900
    %v6335 = vunpack.c.l.b16 %v5901
    %v6336 = vunpack.c.h.b16 %v5901
    %v6337 = vunpack.c.l.b16 %v5902
    %v6338 = vunpack.c.l.b16 %v5903
    %v6339 = vunpack.c.h.b16 %v5903
    %v6340 = vunpack.c.l.b16 %v5904
    %v6341 = vunpack.c.l.b16 %v5905
    %v6342 = vunpack.c.h.b16 %v5905
    %v6343 = vunpack.c.l.b16 %v5906
    %v6344 = vunpack.c.l.b16 %v5907
    %v6345 = vunpack.c.h.b16 %v5907
    %v6346 = vunpack.c.l.b16 %v5908
    %v6347 = vunpack.c.l.b16 %v5909
    %v6348 = vunpack.c.h.b16 %v5909
    %v6349 = vunpack.c.l.b16 %v5910
    %v6350 = vunpack.c.l.b16 %v5911
    %v6351 = vunpack.c.h.b16 %v5911
    %v6352 = vunpack.c.l.b16 %v5912
    %v6353 = vunpack.c.l.b16 %v5913
    %v6354 = vunpack.c.h.b16 %v5913
    %v6355 = vunpack.c.l.b16 %v5914
    %v6356 = vunpack.c.l.b16 %v5915
    %v6357 = vunpack.c.h.b16 %v5915
    %v6358 = vunpack.c.l.b16 %v5916
    %v6359 = vunpack.c.l.b16 %v5917
    %v6360 = vunpack.c.h.b16 %v5917
    %v6361 = vunpack.c.l.b16 %v5918
    %v6362 = vunpack.c.l.b16 %v5919
    %v6363 = vunpack.c.h.b16 %v5919
    %v6364 = vunpack.c.l.b16 %v5920
    %v6365 = vunpack.c.l.b16 %v5921
    %v6366 = vunpack.c.h.b16 %v5921
    %v6367 = vunpack.c.l.b16 %v5922
    %v6368 = vunpack.c.l.b16 %v5923
    %v6369 = vunpack.c.h.b16 %v5923
    %v6370 = vunpack.c.l.b16 %v5924
    %v6371 = vunpack.c.l.b16 %v5925
    %v6372 = vunpack.c.h.b16 %v5925
    %v6373 = vunpack.c.l.b16 %v5926
    %v6374 = vunpack.c.l.b16 %v5927
    %v6375 = vunpack.c.h.b16 %v5927
    %v6376 = vunpack.c.l.b16 %v5928
    %v6377 = vunpack.c.l.b16 %v5929
    %v6378 = vunpack.c.h.b16 %v5929
    %v6379 = vunpack.c.l.b16 %v5930
    %v6380 = vunpack.c.l.b16 %v5931
    %v6381 = vunpack.c.h.b16 %v5931
    %v6382 = vunpack.c.l.b16 %v5932
    %v6383 = vunpack.c.l.b16 %v5933
    %v6384 = vunpack.c.h.b16 %v5933
    %v6385 = vunpack.c.l.b16 %v5934
    %v6386 = vunpack.c.l.b16 %v5935
    %v6387 = vunpack.c.h.b16 %v5935
    %v6388 = vunpack.c.l.b16 %v5936
    %v6389 = vunpack.c.l.b16 %v5937
    %v6390 = vunpack.c.h.b16 %v5937
    %v6391 = vunpack.c.l.b16 %v5938
    %v6392 = vunpack.c.l.b16 %v5939
    %v6393 = vunpack.c.h.b16 %v5939
    %v6394 = vunpack.c.l.b16 %v5940
    %v6395 = vunpack.c.l.b16 %v5941
    %v6396 = vunpack.c.h.b16 %v5941
    %v6397 = vunpack.c.l.b16 %v5942
    %v6398 = vunpack.c.l.b16 %v5943
    %v6399 = vunpack.c.h.b16 %v5943
    %v6400 = vunpack.c.l.b16 %v5944
    %v6401 = vunpack.c.l.b16 %v5945
    %v6402 = vunpack.c.h.b16 %v5945
    %v6403 = vunpack.c.l.b16 %v5946
    %v6404 = vunpack.c.l.b16 %v5947
    %v6405 = vunpack.c.h.b16 %v5947
    %v6406 = vunpack.c.l.b16 %v5948
    %v6407 = vunpack.c.l.b16 %v5949
    %v6408 = vunpack.c.h.b16 %v5949
    %v6409 = vunpack.c.l.b16 %v5950
    %v6410 = vunpack.c.l.b16 %v5951
    %v6411 = vunpack.c.h.b16 %v5951
    %v6412 = vunpack.c.l.b16 %v5952
    %v6413 = vunpack.c.l.b16 %v5953
    %v6414 = vunpack.c.h.b16 %v5953
    %v6415 = vunpack.c.l.b16 %v5954
    %v6416 = vunpack.c.l.b16 %v5955
    %v6417 = vunpack.c.h.b16 %v5955
    %v6418 = vunpack.c.l.b16 %v5956
    %v6419 = vunpack.c.l.b16 %v5957
    %v6420 = vunpack.c.h.b16 %v5957
    %v6421 = vunpack.c.l.b16 %v5958
    %v6422 = vunpack.c.l.b16 %v5959
    %v6423 = vunpack.c.h.b16 %v5959
    %v6424 = vunpack.c.l.b16 %v5960
    %v6425 = vunpack.c.l.b16 %v5961
    %v6426 = vunpack.c.h.b16 %v5961
    %v6427 = vunpack.c.l.b16 %v5962
    %v6428 = vunpack.c.l.b16 %v5963
    %v6429 = vunpack.c.h.b16 %v5963
    %v6430 = vunpack.c.l.b16 %v5964
    %v6431 = vunpack.c.l.b16 %v5965
    %v6432 = vunpack.c.h.b16 %v5965
    %v6433 = vunpack.c.l.b16 %v5966
    %v6434 = vunpack.c.l.b16 %v5967
    %v6435 = vunpack.c.h.b16 %v5967
    %v6436 = vunpack.c.l.b16 %v5968
    %v6437 = vunpack.c.l.b16 %v5969
    %v6438 = vunpack.c.h.b16 %v5969
    %v6439 = vunpack.c.l.b16 %v5970
    %v6440 = vunpack.c.l.b16 %v5971
    %v6441 = vunpack.c.h.b16 %v5971
    %v6442 = vunpack.c.l.b16 %v5972
    %v6443 = vunpack.c.l.b16 %v5973
    %v6444 = vunpack.c.h.b16 %v5973
    %v6445 = vunpack.c.l.b16 %v5974
    %v6446 = vunpack.c.l.b16 %v5975
    %v6447 = vunpack.c.h.b16 %v5975
    %v6448 = vunpack.c.l.b16 %v5976
    %v6449 = vunpack.c.l.b16 %v5977
    %v6450 = vunpack.c.h.b16 %v5977
    %v6451 = vunpack.c.l.b16 %v5978
    %v6452 = vunpack.c.l.b16 %v5979
    %v6453 = vunpack.c.h.b16 %v5979
    %v6454 = vunpack.c.l.b16 %v5980
    %v6455 = vunpack.c.l.b16 %v5981
    %v6456 = vunpack.c.h.b16 %v5981
    %v6457 = vunpack.c.l.b16 %v5982
    %v6458 = vunpack.c.l.b16 %v5983
    %v6459 = vunpack.c.h.b16 %v5983
    %v6460 = vunpack.c.l.b16 %v5984
    %v6461 = vunpack.c.l.b16 %v5985
    %v6462 = vunpack.c.h.b16 %v5985
    %v6463 = vunpack.c.l.b16 %v5986
    %v6464 = vunpack.c.l.b16 %v5987
    %v6465 = vunpack.c.h.b16 %v5987
    %v6466 = vunpack.c.l.b16 %v5988
    %v6467 = vunpack.c.l.b16 %v5989
    %v6468 = vunpack.c.h.b16 %v5989
    %v6469 = vunpack.c.l.b16 %v5990
    %v6470 = vunpack.c.l.b16 %v5991
    %v6471 = vunpack.c.h.b16 %v5991
    %v6472 = vunpack.c.l.b16 %v5992
    %v6473 = vunpack.c.l.b16 %v5993
    %v6474 = vunpack.c.h.b16 %v5993
    %v6475 = vunpack.c.l.b16 %v5994
    %v6476 = vunpack.c.l.b16 %v5995
    %v6477 = vunpack.c.h.b16 %v5995
    %v6478 = vunpack.c.l.b16 %v5996
    %v6479 = vunpack.c.l.b16 %v5997
    %v6480 = vunpack.c.h.b16 %v5997
    %v6481 = vunpack.c.l.b16 %v5998
    %v6482 = vunpack.c.l.b16 %v5999
    %v6483 = vunpack.c.h.b16 %v5999
    %v6484 = vunpack.c.l.b16 %v6000
    %v6485 = vunpack.c.l.b16 %v6001
    %v6486 = vunpack.c.h.b16 %v6001
    %v6487 = vunpack.c.l.b16 %v6002
    %v6488 = vunpack.c.l.b16 %v6003
    %v6489 = vunpack.c.h.b16 %v6003
    %v6490 = vunpack.c.l.b16 %v6004
    %v6491 = vunpack.c.l.b16 %v6005
    %v6492 = vunpack.c.h.b16 %v6005
    %v6493 = vunpack.c.l.b16 %v6006
    %v6494 = vunpack.c.l.b16 %v6007
    %v6495 = vunpack.c.h.b16 %v6007
    %v6496 = vunpack.c.l.b16 %v6008
    %v6497 = vunpack.c.l.b16 %v6009
    %v6498 = vunpack.c.h.b16 %v6009
    %v6499 = vunpack.c.l.b16 %v6010
    %v6500 = vunpack.c.l.b16 %v6011
    %v6501 = vunpack.c.h.b16 %v6011
    %v6502 = vunpack.c.l.b16 %v6012
    %v6503 = vunpack.c.l.b16 %v6013
    %v6504 = vunpack.c.h.b16 %v6013
    %v6505 = vunpack.c.l.b16 %v6014
    %v6506 = vunpack.c.l.b16 %v6015
    %v6507 = vunpack.c.h.b16 %v6015
    %v6508 = vunpack.c.l.b16 %v6016
    %v6509 = vunpack.c.l.b16 %v6017
    %v6510 = vunpack.c.h.b16 %v6017
    %v6511 = vunpack.c.l.b16 %v6018
    %v6512 = vunpack.c.l.b16 %v6019
    %v6513 = vunpack.c.h.b16 %v6019
    %v6514 = vunpack.c.l.b16 %v6020
    %v6515 = vunpack.c.l.b16 %v6021
    %v6516 = vunpack.c.h.b16 %v6021
    %v6517 = vunpack.c.l.b16 %v6022
    %v6518 = vunpack.c.l.b16 %v6023
    %v6519 = vunpack.c.h.b16 %v6023
    %v6520 = vunpack.c.l.b16 %v6024
    %v6521 = vunpack.c.l.b16 %v6025
    %v6522 = vunpack.c.h.b16 %v6025
    %v6523 = vunpack.c.l.b16 %v6026
    %v6524 = vpack.c.b16 %v6239, %v6236
    %v6525 = vpack.c.b16 %v6240, %v6237
    %v6526 = vpack.c.b16 %v6241, %v6238
    %v6527 = vpack.c.b16 %v6245, %v6242
    %v6528 = vpack.c.b16 %v6246, %v6243
    %v6529 = vpack.c.b16 %v6247, %v6244
    %v6530 = vpack.c.b16 %v6251, %v6248
    %v6531 = vpack.c.b16 %v6252, %v6249
    %v6532 = vpack.c.b16 %v6253, %v6250
    %v6533 = vpack.c.b16 %v6257, %v6254
    %v6534 = vpack.c.b16 %v6258, %v6255
    %v6535 = vpack.c.b16 %v6259, %v6256
    %v6536 = vpack.c.b16 %v6263, %v6260
    %v6537 = vpack.c.b16 %v6264, %v6261
    %v6538 = vpack.c.b16 %v6265, %v6262
    %v6539 = vpack.c.b16 %v6269, %v6266
    %v6540 = vpack.c.b16 %v6270, %v6267
    %v6541 = vpack.c.b16 %v6271, %v6268
    %v6542 = vpack.c.b16 %v6275, %v6272
    %v6543 = vpack.c.b16 %v6276, %v6273
    %v6544 = vpack.c.b16 %v6277, %v6274
    %v6545 = vpack.c.b16 %v6281, %v6278
    %v6546 = vpack.c.b16 %v6282, %v6279
    %v6547 = vpack.c.b16 %v6283, %v6280
    %v6548 = vpack.c.b16 %v6287, %v6284
    %v6549 = vpack.c.b16 %v6288, %v6285
    %v6550 = vpack.c.b16 %v6289, %v6286
    %v6551 = vpack.c.b16 %v6293, %v6290
    %v6552 = vpack.c.b16 %v6294, %v6291
    %v6553 = vpack.c.b16 %v6295, %v6292
    %v6554 = vpack.c.b16 %v6299, %v6296
    %v6555 = vpack.c.b16 %v6300, %v6297
    %v6556 = vpack.c.b16 %v6301, %v6298
    %v6557 = vpack.c.b16 %v6305, %v6302
    %v6558 = vpack.c.b16 %v6306, %v6303
    %v6559 = vpack.c.b16 %v6307, %v6304
    %v6560 = vpack.c.b16 %v6311, %v6308
    %v6561 = vpack.c.b16 %v6312, %v6309
    %v6562 = vpack.c.b16 %v6313, %v6310
    %v6563 = vpack.c.b16 %v6317, %v6314
    %v6564 = vpack.c.b16 %v6318, %v6315
    %v6565 = vpack.c.b16 %v6319, %v6316
    %v6566 = vpack.c.b16 %v6323, %v6320
    %v6567 = vpack.c.b16 %v6324, %v6321
    %v6568 = vpack.c.b16 %v6325, %v6322
    %v6569 = vpack.c.b16 %v6329, %v6326
    %v6570 = vpack.c.b16 %v6330, %v6327
    %v6571 = vpack.c.b16 %v6331, %v6328
    %v6572 = vpack.c.b16 %v6335, %v6332
    %v6573 = vpack.c.b16 %v6336, %v6333
    %v6574 = vpack.c.b16 %v6337, %v6334
    %v6575 = vpack.c.b16 %v6341, %v6338
    %v6576 = vpack.c.b16 %v6342, %v6339
    %v6577 = vpack.c.b16 %v6343, %v6340
    %v6578 = vpack.c.b16 %v6347, %v6344
    %v6579 = vpack.c.b16 %v6348, %v6345
    %v6580 = vpack.c.b16 %v6349, %v6346
    %v6581 = vpack.c.b16 %v6353, %v6350
    %v6582 = vpack.c.b16 %v6354, %v6351
    %v6583 = vpack.c.b16 %v6355, %v6352
    %v6584 = vpack.c.b16 %v6359, %v6356
    %v6585 = vpack.c.b16 %v6360, %v6357
    %v6586 = vpack.c.b16 %v6361, %v6358
    %v6587 = vpack.c.b16 %v6365, %v6362
    %v6588 = vpack.c.b16 %v6366, %v6363
    %v6589 = vpack.c.b16 %v6367, %v6364
    %v6590 = vpack.c.b16 %v6371, %v6368
    %v6591 = vpack.c.b16 %v6372, %v6369
    %v6592 = vpack.c.b16 %v6373, %v6370
    %v6593 = vpack.c.b16 %v6377, %v6374
    %v6594 = vpack.c.b16 %v6378, %v6375
    %v6595 = vpack.c.b16 %v6379, %v6376
    %v6596 = vpack.c.b16 %v6383, %v6380
    %v6597 = vpack.c.b16 %v6384, %v6381
    %v6598 = vpack.c.b16 %v6385, %v6382
    %v6599 = vpack.c.b16 %v6389, %v6386
    %v6600 = vpack.c.b16 %v6390, %v6387
    %v6601 = vpack.c.b16 %v6391, %v6388
    %v6602 = vpack.c.b16 %v6395, %v6392
    %v6603 = vpack.c.b16 %v6396, %v6393
    %v6604 = vpack.c.b16 %v6397, %v6394
    %v6605 = vpack.c.b16 %v6401, %v6398
    %v6606 = vpack.c.b16 %v6402, %v6399
    %v6607 = vpack.c.b16 %v6403, %v6400
    %v6608 = vpack.c.b16 %v6407, %v6404
    %v6609 = vpack.c.b16 %v6408, %v6405
    %v6610 = vpack.c.b16 %v6409, %v6406
    %v6611 = vpack.c.b16 %v6413, %v6410
    %v6612 = vpack.c.b16 %v6414, %v6411
    %v6613 = vpack.c.b16 %v6415, %v6412
    %v6614 = vpack.c.b16 %v6419, %v6416
    %v6615 = vpack.c.b16 %v6420, %v6417
    %v6616 = vpack.c.b16 %v6421, %v6418
    %v6617 = vpack.c.b16 %v6425, %v6422
    %v6618 = vpack.c.b16 %v6426, %v6423
    %v6619 = vpack.c.b16 %v6427, %v6424
    %v6620 = vpack.c.b16 %v6431, %v6428
    %v6621 = vpack.c.b16 %v6432, %v6429
    %v6622 = vpack.c.b16 %v6433, %v6430
    %v6623 = vpack.c.b16 %v6437, %v6434
    %v6624 = vpack.c.b16 %v6438, %v6435
    %v6625 = vpack.c.b16 %v6439, %v6436
    %v6626 = vpack.c.b16 %v6443, %v6440
    %v6627 = vpack.c.b16 %v6444, %v6441
    %v6628 = vpack.c.b16 %v6445, %v6442
    %v6629 = vpack.c.b16 %v6449, %v6446
    %v6630 = vpack.c.b16 %v6450, %v6447
    %v6631 = vpack.c.b16 %v6451, %v6448
    %v6632 = vpack.c.b16 %v6455, %v6452
    %v6633 = vpack.c.b16 %v6456, %v6453
    %v6634 = vpack.c.b16 %v6457, %v6454
    %v6635 = vpack.c.b16 %v6461, %v6458
    %v6636 = vpack.c.b16 %v6462, %v6459
    %v6637 = vpack.c.b16 %v6463, %v6460
    %v6638 = vpack.c.b16 %v6467, %v6464
    %v6639 = vpack.c.b16 %v6468, %v6465
    %v6640 = vpack.c.b16 %v6469, %v6466
    %v6641 = vpack.c.b16 %v6473, %v6470
    %v6642 = vpack.c.b16 %v6474, %v6471
    %v6643 = vpack.c.b16 %v6475, %v6472
    %v6644 = vpack.c.b16 %v6479, %v6476
    %v6645 = vpack.c.b16 %v6480, %v6477
    %v6646 = vpack.c.b16 %v6481, %v6478
    %v6647 = vpack.c.b16 %v6485, %v6482
    %v6648 = vpack.c.b16 %v6486, %v6483
    %v6649 = vpack.c.b16 %v6487, %v6484
    %v6650 = vpack.c.b16 %v6491, %v6488
    %v6651 = vpack.c.b16 %v6492, %v6489
    %v6652 = vpack.c.b16 %v6493, %v6490
    %v6653 = vpack.c.b16 %v6497, %v6494
    %v6654 = vpack.c.b16 %v6498, %v6495
    %v6655 = vpack.c.b16 %v6499, %v6496
    %v6656 = vpack.c.b16 %v6503, %v6500
    %v6657 = vpack.c.b16 %v6504, %v6501
    %v6658 = vpack.c.b16 %v6505, %v6502
    %v6659 = vpack.c.b16 %v6509, %v6506
    %v6660 = vpack.c.b16 %v6510, %v6507
    %v6661 = vpack.c.b16 %v6511, %v6508
    %v6662 = vpack.c.b16 %v6515, %v6512
    %v6663 = vpack.c.b16 %v6516, %v6513
    %v6664 = vpack.c.b16 %v6517, %v6514
    %v6665 = vpack.c.b16 %v6521, %v6518
    %v6666 = vpack.c.b16 %v6522, %v6519
    %v6667 = vpack.c.b16 %v6523, %v6520
    %6812 = vmatprep.subr.bf16.mxu0 %v6525
    %6813 = vmatpush1.bf16.msra.mxu0 %v6524
    %6814 = vmatprep.subr.bf16.mxu0 %v6528
    %6815 = vmatpush1.bf16.msra.mxu0 %v6527
    %6816 = vmatprep.subr.bf16.mxu0 %v6531
    %6817 = vmatpush1.bf16.msra.mxu0 %v6530
    %6818 = vmatprep.subr.bf16.mxu0 %v6534
    %6819 = vmatpush1.bf16.msra.mxu0 %v6533
    %6820 = vmatprep.subr.bf16.mxu0 %v6537
    %6821 = vmatpush1.bf16.msra.mxu0 %v6536
    %6822 = vmatprep.subr.bf16.mxu0 %v6540
    %6823 = vmatpush1.bf16.msra.mxu0 %v6539
    %6824 = vmatprep.subr.bf16.mxu0 %v6543
    %6825 = vmatpush1.bf16.msra.mxu0 %v6542
    %6826 = vmatprep.subr.bf16.mxu0 %v6546
    %6827 = vmatpush1.bf16.msra.mxu0 %v6545
    %6828 = vmatprep.subr.bf16.mxu0 %v6549
    %6829 = vmatpush1.bf16.msra.mxu0 %v6548
    %6830 = vmatprep.subr.bf16.mxu0 %v6552
    %6831 = vmatpush1.bf16.msra.mxu0 %v6551
    %6832 = vmatprep.subr.bf16.mxu0 %v6555
    %6833 = vmatpush1.bf16.msra.mxu0 %v6554
    %6834 = vmatprep.subr.bf16.mxu0 %v6558
    %6835 = vmatpush1.bf16.msra.mxu0 %v6557
    %6836 = vmatprep.subr.bf16.mxu0 %v6561
    %6837 = vmatpush1.bf16.msra.mxu0 %v6560
    %6838 = vmatprep.subr.bf16.mxu0 %v6564
    %6839 = vmatpush1.bf16.msra.mxu0 %v6563
    %6840 = vmatprep.subr.bf16.mxu0 %v6567
    %6841 = vmatpush1.bf16.msra.mxu0 %v6566
    %6842 = vmatprep.subr.bf16.mxu0 %v6570
    %6843 = vmatpush1.bf16.msra.mxu0 %v6569
    %6844 = vmatprep.mubr.bf16.mxu0 %v5812
    %6845 = vmatmul.mubr.bf16.gmra.mrb[0].mxu0 %v5811
    %v6846 = vpop.f32.mrb[0].mxu0
    %v6847 = vadd.f32 %v6032, %v6846
    %v6848 = vpop.f32.mrb[0].mxu0
    %v6849 = vadd.f32 %v6036, %v6848
    %v6850 = vpop.f32.mrb[0].mxu0
    %v6851 = vadd.f32 %v6032, %v6850
    %v6852 = vpop.f32.mrb[0].mxu0
    %v6853 = vadd.f32 %v6036, %v6852
    %6854 = vmatprep.mubr.bf16.mxu0 %v5818
    %6855 = vmatmul.mubr.bf16.gmra.mrb[0].mxu0 %v5817
    %v6856 = vpop.f32.mrb[0].mxu0
    %v6857 = vadd.f32 %v6032, %v6856
    %v6858 = vpop.f32.mrb[0].mxu0
    %v6859 = vadd.f32 %v6036, %v6858
    %v6860 = vpop.f32.mrb[0].mxu0
    %v6861 = vadd.f32 %v6032, %v6860
    %v6862 = vpop.f32.mrb[0].mxu0
    %v6863 = vadd.f32 %v6036, %v6862
    %6864 = vmatprep.mubr.bf16.mxu0 %v5824
    %6865 = vmatmul.mubr.bf16.gmra.mrb[0].mxu0 %v5823
    %v6866 = vpop.f32.mrb[0].mxu0
    %v6867 = vadd.f32 %v6032, %v6866
    %v6868 = vpop.f32.mrb[0].mxu0
    %v6869 = vadd.f32 %v6036, %v6868
    %v6870 = vpop.f32.mrb[0].mxu0
    %v6871 = vadd.f32 %v6032, %v6870
    %v6872 = vpop.f32.mrb[0].mxu0
    %v6873 = vadd.f32 %v6036, %v6872
    %6874 = vmatprep.mubr.bf16.mxu0 %v5830
    %6875 = vmatmul.mubr.bf16.gmra.mrb[0].mxu0 %v5829
    %v6876 = vpop.f32.mrb[0].mxu0
    %v6877 = vadd.f32 %v6032, %v6876
    %v6878 = vpop.f32.mrb[0].mxu0
    %v6879 = vadd.f32 %v6036, %v6878
    %v6880 = vpop.f32.mrb[0].mxu0
    %v6881 = vadd.f32 %v6032, %v6880
    %v6882 = vpop.f32.mrb[0].mxu0
    %v6883 = vadd.f32 %v6036, %v6882
    %6884 = vdwg.mxu0
    %6885 = vmatprep.subr.bf16.mxu0 %v6573
    %6886 = vmatpush1.bf16.msra.mxu0 %v6572
    %6887 = vmatprep.subr.bf16.mxu0 %v6576
    %6888 = vmatpush1.bf16.msra.mxu0 %v6575
    %6889 = vmatprep.subr.bf16.mxu0 %v6579
    %6890 = vmatpush1.bf16.msra.mxu0 %v6578
    %6891 = vmatprep.subr.bf16.mxu0 %v6582
    %6892 = vmatpush1.bf16.msra.mxu0 %v6581
    %6893 = vmatprep.subr.bf16.mxu0 %v6585
    %6894 = vmatpush1.bf16.msra.mxu0 %v6584
    %6895 = vmatprep.subr.bf16.mxu0 %v6588
    %6896 = vmatpush1.bf16.msra.mxu0 %v6587
    %6897 = vmatprep.subr.bf16.mxu0 %v6591
    %6898 = vmatpush1.bf16.msra.mxu0 %v6590
    %6899 = vmatprep.subr.bf16.mxu0 %v6594
    %6900 = vmatpush1.bf16.msra.mxu0 %v6593
    %6901 = vmatprep.subr.bf16.mxu0 %v6597
    %6902 = vmatpush1.bf16.msra.mxu0 %v6596
    %6903 = vmatprep.subr.bf16.mxu0 %v6600
    %6904 = vmatpush1.bf16.msra.mxu0 %v6599
    %6905 = vmatprep.subr.bf16.mxu0 %v6603
    %6906 = vmatpush1.bf16.msra.mxu0 %v6602
    %6907 = vmatprep.subr.bf16.mxu0 %v6606
    %6908 = vmatpush1.bf16.msra.mxu0 %v6605
    %6909 = vmatprep.subr.bf16.mxu0 %v6609
    %6910 = vmatpush1.bf16.msra.mxu0 %v6608
    %6911 = vmatprep.subr.bf16.mxu0 %v6612
    %6912 = vmatpush1.bf16.msra.mxu0 %v6611
    %6913 = vmatprep.subr.bf16.mxu0 %v6615
    %6914 = vmatpush1.bf16.msra.mxu0 %v6614
    %6915 = vmatprep.subr.bf16.mxu0 %v6618
    %6916 = vmatpush1.bf16.msra.mxu0 %v6617
    %6917 = vmatprep.mubr.bf16.mxu0 %v5814
    %6918 = vmatmul.mubr.bf16.gmra.mrb[0].mxu0 %v5813
    %v6919 = vpop.f32.mrb[0].mxu0
    %v6920 = vadd.f32 %v6847, %v6919
    %v6921 = vpop.f32.mrb[0].mxu0
    %v6922 = vadd.f32 %v6849, %v6921
    %v6923 = vpop.f32.mrb[0].mxu0
    %v6924 = vadd.f32 %v6851, %v6923
    %v6925 = vpop.f32.mrb[0].mxu0
    %v6926 = vadd.f32 %v6853, %v6925
    %6927 = vmatprep.mubr.bf16.mxu0 %v5820
    %6928 = vmatmul.mubr.bf16.gmra.mrb[0].mxu0 %v5819
    %v6929 = vpop.f32.mrb[0].mxu0
    %v6930 = vadd.f32 %v6857, %v6929
    %v6931 = vpop.f32.mrb[0].mxu0
    %v6932 = vadd.f32 %v6859, %v6931
    %v6933 = vpop.f32.mrb[0].mxu0
    %v6934 = vadd.f32 %v6861, %v6933
    %v6935 = vpop.f32.mrb[0].mxu0
    %v6936 = vadd.f32 %v6863, %v6935
    %6937 = vmatprep.mubr.bf16.mxu0 %v5826
    %6938 = vmatmul.mubr.bf16.gmra.mrb[0].mxu0 %v5825
    %v6939 = vpop.f32.mrb[0].mxu0
    %v6940 = vadd.f32 %v6867, %v6939
    %v6941 = vpop.f32.mrb[0].mxu0
    %v6942 = vadd.f32 %v6869, %v6941
    %v6943 = vpop.f32.mrb[0].mxu0
    %v6944 = vadd.f32 %v6871, %v6943
    %v6945 = vpop.f32.mrb[0].mxu0
    %v6946 = vadd.f32 %v6873, %v6945
    %6947 = vmatprep.mubr.bf16.mxu0 %v5832
    %6948 = vmatmul.mubr.bf16.gmra.mrb[0].mxu0 %v5831
    %v6949 = vpop.f32.mrb[0].mxu0
    %v6950 = vadd.f32 %v6877, %v6949
    %v6951 = vpop.f32.mrb[0].mxu0
    %v6952 = vadd.f32 %v6879, %v6951
    %v6953 = vpop.f32.mrb[0].mxu0
    %v6954 = vadd.f32 %v6881, %v6953
    %v6955 = vpop.f32.mrb[0].mxu0
    %v6956 = vadd.f32 %v6883, %v6955
    %6957 = vdwg.mxu0
    %6958 = vmatprep.subr.bf16.mxu0 %v6621
    %6959 = vmatpush1.bf16.msra.mxu0 %v6620
    %6960 = vmatprep.subr.bf16.mxu0 %v6624
    %6961 = vmatpush1.bf16.msra.mxu0 %v6623
    %6962 = vmatprep.subr.bf16.mxu0 %v6627
    %6963 = vmatpush1.bf16.msra.mxu0 %v6626
    %6964 = vmatprep.subr.bf16.mxu0 %v6630
    %6965 = vmatpush1.bf16.msra.mxu0 %v6629
    %6966 = vmatprep.subr.bf16.mxu0 %v6633
    %6967 = vmatpush1.bf16.msra.mxu0 %v6632
    %6968 = vmatprep.subr.bf16.mxu0 %v6636
    %6969 = vmatpush1.bf16.msra.mxu0 %v6635
    %6970 = vmatprep.subr.bf16.mxu0 %v6639
    %6971 = vmatpush1.bf16.msra.mxu0 %v6638
    %6972 = vmatprep.subr.bf16.mxu0 %v6642
    %6973 = vmatpush1.bf16.msra.mxu0 %v6641
    %6974 = vmatprep.subr.bf16.mxu0 %v6645
    %6975 = vmatpush1.bf16.msra.mxu0 %v6644
    %6976 = vmatprep.subr.bf16.mxu0 %v6648
    %6977 = vmatpush1.bf16.msra.mxu0 %v6647
    %6978 = vmatprep.subr.bf16.mxu0 %v6651
    %6979 = vmatpush1.bf16.msra.mxu0 %v6650
    %6980 = vmatprep.subr.bf16.mxu0 %v6654
    %6981 = vmatpush1.bf16.msra.mxu0 %v6653
    %6982 = vmatprep.subr.bf16.mxu0 %v6657
    %6983 = vmatpush1.bf16.msra.mxu0 %v6656
    %6984 = vmatprep.subr.bf16.mxu0 %v6660
    %6985 = vmatpush1.bf16.msra.mxu0 %v6659
    %6986 = vmatprep.subr.bf16.mxu0 %v6663
    %6987 = vmatpush1.bf16.msra.mxu0 %v6662
    %6988 = vmatprep.subr.bf16.mxu0 %v6666
    %6989 = vmatpush1.bf16.msra.mxu0 %v6665
    %6990 = vmatprep.mubr.bf16.mxu0 %v5816
    %6991 = vmatmul.mubr.bf16.gmra.mrb[0].mxu0 %v5815
    %v6992 = vpop.f32.mrb[0].mxu0
    %v6993 = vadd.f32 %v6920, %v6992
    %v6994 = vpop.f32.mrb[0].mxu0
    %v6995 = vadd.f32 %v6922, %v6994
    %v6996 = vpop.f32.mrb[0].mxu0
    %v6997 = vadd.f32 %v6924, %v6996
    %v6998 = vpop.f32.mrb[0].mxu0
    %v6999 = vadd.f32 %v6926, %v6998
    %7000 = vmatprep.mubr.bf16.mxu0 %v5822
    %7001 = vmatmul.mubr.bf16.gmra.mrb[0].mxu0 %v5821
    %v7002 = vpop.f32.mrb[0].mxu0
    %v7003 = vadd.f32 %v6930, %v7002
    %v7004 = vpop.f32.mrb[0].mxu0
    %v7005 = vadd.f32 %v6932, %v7004
    %v7006 = vpop.f32.mrb[0].mxu0
    %v7007 = vadd.f32 %v6934, %v7006
    %v7008 = vpop.f32.mrb[0].mxu0
    %v7009 = vadd.f32 %v6936, %v7008
    %7010 = vmatprep.mubr.bf16.mxu0 %v5828
    %7011 = vmatmul.mubr.bf16.gmra.mrb[0].mxu0 %v5827
    %v7012 = vpop.f32.mrb[0].mxu0
    %v7013 = vadd.f32 %v6940, %v7012
    %v7014 = vpop.f32.mrb[0].mxu0
    %v7015 = vadd.f32 %v6942, %v7014
    %v7016 = vpop.f32.mrb[0].mxu0
    %v7017 = vadd.f32 %v6944, %v7016
    %v7018 = vpop.f32.mrb[0].mxu0
    %v7019 = vadd.f32 %v6946, %v7018
    %7020 = vmatprep.mubr.bf16.mxu0 %v5834
    %7021 = vmatmul.mubr.bf16.gmra.mrb[0].mxu0 %v5833
    %v7022 = vpop.f32.mrb[0].mxu0
    %v7023 = vadd.f32 %v6950, %v7022
    %v7024 = vpop.f32.mrb[0].mxu0
    %v7025 = vadd.f32 %v6952, %v7024
    %v7026 = vpop.f32.mrb[0].mxu0
    %v7027 = vadd.f32 %v6954, %v7026
    %v7028 = vpop.f32.mrb[0].mxu0
    %v7029 = vadd.f32 %v6956, %v7028
    %7030 = vdwg.mxu0
    %7031 = vmatprep.subr.bf16.mxu0 0
    %7032 = vmatpush1.bf16.msra.mxu0 %v6526
    %7033 = vmatprep.subr.bf16.mxu0 0
    %7034 = vmatpush1.bf16.msra.mxu0 %v6529
    %7035 = vmatprep.subr.bf16.mxu0 0
    %7036 = vmatpush1.bf16.msra.mxu0 %v6532
    %7037 = vmatprep.subr.bf16.mxu0 0
    %7038 = vmatpush1.bf16.msra.mxu0 %v6535
    %7039 = vmatprep.subr.bf16.mxu0 0
    %7040 = vmatpush1.bf16.msra.mxu0 %v6538
    %7041 = vmatprep.subr.bf16.mxu0 0
    %7042 = vmatpush1.bf16.msra.mxu0 %v6541
    %7043 = vmatprep.subr.bf16.mxu0 0
    %7044 = vmatpush1.bf16.msra.mxu0 %v6544
    %7045 = vmatprep.subr.bf16.mxu0 0
    %7046 = vmatpush1.bf16.msra.mxu0 %v6547
    %7047 = vmatprep.subr.bf16.mxu0 0
    %7048 = vmatpush1.bf16.msra.mxu0 %v6550
    %7049 = vmatprep.subr.bf16.mxu0 0
    %7050 = vmatpush1.bf16.msra.mxu0 %v6553
    %7051 = vmatprep.subr.bf16.mxu0 0
    %7052 = vmatpush1.bf16.msra.mxu0 %v6556
    %7053 = vmatprep.subr.bf16.mxu0 0
    %7054 = vmatpush1.bf16.msra.mxu0 %v6559
    %7055 = vmatprep.subr.bf16.mxu0 0
    %7056 = vmatpush1.bf16.msra.mxu0 %v6562
    %7057 = vmatprep.subr.bf16.mxu0 0
    %7058 = vmatpush1.bf16.msra.mxu0 %v6565
    %7059 = vmatprep.subr.bf16.mxu0 0
    %7060 = vmatpush1.bf16.msra.mxu0 %v6568
    %7061 = vmatprep.subr.bf16.mxu0 0
    %7062 = vmatpush1.bf16.msra.mxu0 %v6571
    %7063 = vmatprep.mubr.bf16.mxu0 %v5812
    %7064 = vmatmul.mubr.bf16.gmra.mrb[0].mxu0 %v5811
    %v7065 = vpop.f32.mrb[0].mxu0
    %v7066 = vadd.f32 %v6040, %v7065
    %v7067 = vpop.f32.mrb[0].mxu0
    %v7068 = vpop.f32.mrb[0].mxu0
    %v7069 = vadd.f32 %v6040, %v7068
    %v7070 = vpop.f32.mrb[0].mxu0
    %7071 = vmatprep.mubr.bf16.mxu0 %v5818
    %7072 = vmatmul.mubr.bf16.gmra.mrb[0].mxu0 %v5817
    %v7073 = vpop.f32.mrb[0].mxu0
    %v7074 = vadd.f32 %v6040, %v7073
    %v7075 = vpop.f32.mrb[0].mxu0
    %v7076 = vpop.f32.mrb[0].mxu0
    %v7077 = vadd.f32 %v6040, %v7076
    %v7078 = vpop.f32.mrb[0].mxu0
    %7079 = vmatprep.mubr.bf16.mxu0 %v5824
    %7080 = vmatmul.mubr.bf16.gmra.mrb[0].mxu0 %v5823
    %v7081 = vpop.f32.mrb[0].mxu0
    %v7082 = vadd.f32 %v6040, %v7081
    %v7083 = vpop.f32.mrb[0].mxu0
    %v7084 = vpop.f32.mrb[0].mxu0
    %v7085 = vadd.f32 %v6040, %v7084
    %v7086 = vpop.f32.mrb[0].mxu0
    %7087 = vmatprep.mubr.bf16.mxu0 %v5830
    %7088 = vmatmul.mubr.bf16.gmra.mrb[0].mxu0 %v5829
    %v7089 = vpop.f32.mrb[0].mxu0
    %v7090 = vadd.f32 %v6040, %v7089
    %v7091 = vpop.f32.mrb[0].mxu0
    %v7092 = vpop.f32.mrb[0].mxu0
    %v7093 = vadd.f32 %v6040, %v7092
    %v7094 = vpop.f32.mrb[0].mxu0
    %7095 = vdwg.mxu0
    %7096 = vmatprep.subr.bf16.mxu0 0
    %7097 = vmatpush1.bf16.msra.mxu0 %v6574
    %7098 = vmatprep.subr.bf16.mxu0 0
    %7099 = vmatpush1.bf16.msra.mxu0 %v6577
    %7100 = vmatprep.subr.bf16.mxu0 0
    %7101 = vmatpush1.bf16.msra.mxu0 %v6580
    %7102 = vmatprep.subr.bf16.mxu0 0
    %7103 = vmatpush1.bf16.msra.mxu0 %v6583
    %7104 = vmatprep.subr.bf16.mxu0 0
    %7105 = vmatpush1.bf16.msra.mxu0 %v6586
    %7106 = vmatprep.subr.bf16.mxu0 0
    %7107 = vmatpush1.bf16.msra.mxu0 %v6589
    %7108 = vmatprep.subr.bf16.mxu0 0
    %7109 = vmatpush1.bf16.msra.mxu0 %v6592
    %7110 = vmatprep.subr.bf16.mxu0 0
    %7111 = vmatpush1.bf16.msra.mxu0 %v6595
    %7112 = vmatprep.subr.bf16.mxu0 0
    %7113 = vmatpush1.bf16.msra.mxu0 %v6598
    %7114 = vmatprep.subr.bf16.mxu0 0
    %7115 = vmatpush1.bf16.msra.mxu0 %v6601
    %7116 = vmatprep.subr.bf16.mxu0 0
    %7117 = vmatpush1.bf16.msra.mxu0 %v6604
    %7118 = vmatprep.subr.bf16.mxu0 0
    %7119 = vmatpush1.bf16.msra.mxu0 %v6607
    %7120 = vmatprep.subr.bf16.mxu0 0
    %7121 = vmatpush1.bf16.msra.mxu0 %v6610
    %7122 = vmatprep.subr.bf16.mxu0 0
    %7123 = vmatpush1.bf16.msra.mxu0 %v6613
    %7124 = vmatprep.subr.bf16.mxu0 0
    %7125 = vmatpush1.bf16.msra.mxu0 %v6616
    %7126 = vmatprep.subr.bf16.mxu0 0
    %7127 = vmatpush1.bf16.msra.mxu0 %v6619
    %7128 = vmatprep.mubr.bf16.mxu0 %v5814
    %7129 = vmatmul.mubr.bf16.gmra.mrb[0].mxu0 %v5813
    %v7130 = vpop.f32.mrb[0].mxu0
    %v7131 = vadd.f32 %v7066, %v7130
    %v7132 = vpop.f32.mrb[0].mxu0
    %v7133 = vpop.f32.mrb[0].mxu0
    %v7134 = vadd.f32 %v7069, %v7133
    %v7135 = vpop.f32.mrb[0].mxu0
    %7136 = vmatprep.mubr.bf16.mxu0 %v5820
    %7137 = vmatmul.mubr.bf16.gmra.mrb[0].mxu0 %v5819
    %v7138 = vpop.f32.mrb[0].mxu0
    %v7139 = vadd.f32 %v7074, %v7138
    %v7140 = vpop.f32.mrb[0].mxu0
    %v7141 = vpop.f32.mrb[0].mxu0
    %v7142 = vadd.f32 %v7077, %v7141
    %v7143 = vpop.f32.mrb[0].mxu0
    %7144 = vmatprep.mubr.bf16.mxu0 %v5826
    %7145 = vmatmul.mubr.bf16.gmra.mrb[0].mxu0 %v5825
    %v7146 = vpop.f32.mrb[0].mxu0
    %v7147 = vadd.f32 %v7082, %v7146
    %v7148 = vpop.f32.mrb[0].mxu0
    %v7149 = vpop.f32.mrb[0].mxu0
    %v7150 = vadd.f32 %v7085, %v7149
    %v7151 = vpop.f32.mrb[0].mxu0
    %7152 = vmatprep.mubr.bf16.mxu0 %v5832
    %7153 = vmatmul.mubr.bf16.gmra.mrb[0].mxu0 %v5831
    %v7154 = vpop.f32.mrb[0].mxu0
    %v7155 = vadd.f32 %v7090, %v7154
    %v7156 = vpop.f32.mrb[0].mxu0
    %v7157 = vpop.f32.mrb[0].mxu0
    %v7158 = vadd.f32 %v7093, %v7157
    %v7159 = vpop.f32.mrb[0].mxu0
    %7160 = vdwg.mxu0
    %7161 = vmatprep.subr.bf16.mxu0 0
    %7162 = vmatpush1.bf16.msra.mxu0 %v6622
    %7163 = vmatprep.subr.bf16.mxu0 0
    %7164 = vmatpush1.bf16.msra.mxu0 %v6625
    %7165 = vmatprep.subr.bf16.mxu0 0
    %7166 = vmatpush1.bf16.msra.mxu0 %v6628
    %7167 = vmatprep.subr.bf16.mxu0 0
    %7168 = vmatpush1.bf16.msra.mxu0 %v6631
    %7169 = vmatprep.subr.bf16.mxu0 0
    %7170 = vmatpush1.bf16.msra.mxu0 %v6634
    %7171 = vmatprep.subr.bf16.mxu0 0
    %7172 = vmatpush1.bf16.msra.mxu0 %v6637
    %7173 = vmatprep.subr.bf16.mxu0 0
    %7174 = vmatpush1.bf16.msra.mxu0 %v6640
    %7175 = vmatprep.subr.bf16.mxu0 0
    %7176 = vmatpush1.bf16.msra.mxu0 %v6643
    %7177 = vmatprep.subr.bf16.mxu0 0
    %7178 = vmatpush1.bf16.msra.mxu0 %v6646
    %7179 = vmatprep.subr.bf16.mxu0 0
    %7180 = vmatpush1.bf16.msra.mxu0 %v6649
    %7181 = vmatprep.subr.bf16.mxu0 0
    %7182 = vmatpush1.bf16.msra.mxu0 %v6652
    %7183 = vmatprep.subr.bf16.mxu0 0
    %7184 = vmatpush1.bf16.msra.mxu0 %v6655
    %7185 = vmatprep.subr.bf16.mxu0 0
    %7186 = vmatpush1.bf16.msra.mxu0 %v6658
    %7187 = vmatprep.subr.bf16.mxu0 0
    %7188 = vmatpush1.bf16.msra.mxu0 %v6661
    %7189 = vmatprep.subr.bf16.mxu0 0
    %7190 = vmatpush1.bf16.msra.mxu0 %v6664
    %7191 = vmatprep.subr.bf16.mxu0 0
    %7192 = vmatpush1.bf16.msra.mxu0 %v6667
    %7193 = vmatprep.mubr.bf16.mxu0 %v5816
    %7194 = vmatmul.mubr.bf16.gmra.mrb[0].mxu0 %v5815
    %v7195 = vpop.f32.mrb[0].mxu0
    %v7196 = vadd.f32 %v7131, %v7195
    %v7197 = vpop.f32.mrb[0].mxu0
    %v7198 = vpop.f32.mrb[0].mxu0
    %v7199 = vadd.f32 %v7134, %v7198
    %v7200 = vpop.f32.mrb[0].mxu0
    %7201 = vmatprep.mubr.bf16.mxu0 %v5822
    %7202 = vmatmul.mubr.bf16.gmra.mrb[0].mxu0 %v5821
    %v7203 = vpop.f32.mrb[0].mxu0
    %v7204 = vadd.f32 %v7139, %v7203
    %v7205 = vpop.f32.mrb[0].mxu0
    %v7206 = vpop.f32.mrb[0].mxu0
    %v7207 = vadd.f32 %v7142, %v7206
    %v7208 = vpop.f32.mrb[0].mxu0
    %7209 = vmatprep.mubr.bf16.mxu0 %v5828
    %7210 = vmatmul.mubr.bf16.gmra.mrb[0].mxu0 %v5827
    %v7211 = vpop.f32.mrb[0].mxu0
    %v7212 = vadd.f32 %v7147, %v7211
    %v7213 = vpop.f32.mrb[0].mxu0
    %v7214 = vpop.f32.mrb[0].mxu0
    %v7215 = vadd.f32 %v7150, %v7214
    %v7216 = vpop.f32.mrb[0].mxu0
    %7217 = vmatprep.mubr.bf16.mxu0 %v5834
    %7218 = vmatmul.mubr.bf16.gmra.mrb[0].mxu0 %v5833
    %v7219 = vpop.f32.mrb[0].mxu0
    %v7220 = vadd.f32 %v7155, %v7219
    %v7221 = vpop.f32.mrb[0].mxu0
    %v7222 = vpop.f32.mrb[0].mxu0
    %v7223 = vadd.f32 %v7158, %v7222
    %v7224 = vpop.f32.mrb[0].mxu0
    %7225 = vdwg.mxu0
    %v7226 = vld [vmem:[#allocation13] sm:$0x7]
    %v7228 = vlaneseq
    %v7229 = vshrl.u32 %v7228, 7
    %v7230 = vsub.s32 0, %v7229
    %v7231 = vrot.slane %v7226, %v7230
    %v7232 = vlaneseq
    %v7233 = vshrl.u32 %v7232, 7
    %v7234 = vsub.s32 1, %v7233
    %v7235 = vrot.slane %v7226, %v7234
    %v7236 = vlaneseq
    %v7237 = vshrl.u32 %v7236, 7
    %v7238 = vsub.s32 2, %v7237
    %v7239 = vrot.slane %v7226, %v7238
    %v7275 = vunpack.c.l.b16 %v5779
    %v7276 = vunpack.c.h.b16 %v5779
    %v7277 = vunpack.c.l.b16 %v5780
    %v7278 = vunpack.c.l.b16 %v5781
    %v7279 = vunpack.c.h.b16 %v5781
    %v7280 = vunpack.c.l.b16 %v5782
    %v7281 = vunpack.c.l.b16 %v5783
    %v7282 = vunpack.c.h.b16 %v5783
    %v7283 = vunpack.c.l.b16 %v5784
    %v7284 = vunpack.c.l.b16 %v5785
    %v7285 = vunpack.c.h.b16 %v5785
    %v7286 = vunpack.c.l.b16 %v5786
    %v7287 = vunpack.c.l.b16 %v5787
    %v7288 = vunpack.c.h.b16 %v5787
    %v7289 = vunpack.c.l.b16 %v5788
    %v7290 = vunpack.c.l.b16 %v5789
    %v7291 = vunpack.c.h.b16 %v5789
    %v7292 = vunpack.c.l.b16 %v5790
    %v7293 = vunpack.c.l.b16 %v5791
    %v7294 = vunpack.c.h.b16 %v5791
    %v7295 = vunpack.c.l.b16 %v5792
    %v7296 = vunpack.c.l.b16 %v5793
    %v7297 = vunpack.c.h.b16 %v5793
    %v7298 = vunpack.c.l.b16 %v5794
    %v7299 = vunpack.c.l.b16 %v5795
    %v7300 = vunpack.c.h.b16 %v5795
    %v7301 = vunpack.c.l.b16 %v5796
    %v7302 = vunpack.c.l.b16 %v5797
    %v7303 = vunpack.c.h.b16 %v5797
    %v7304 = vunpack.c.l.b16 %v5798
    %v7305 = vunpack.c.l.b16 %v5799
    %v7306 = vunpack.c.h.b16 %v5799
    %v7307 = vunpack.c.l.b16 %v5800
    %v7308 = vunpack.c.l.b16 %v5801
    %v7309 = vunpack.c.h.b16 %v5801
    %v7310 = vunpack.c.l.b16 %v5802
    %v7311 = vunpack.c.l.b16 %v5803
    %v7312 = vunpack.c.h.b16 %v5803
    %v7313 = vunpack.c.l.b16 %v5804
    %v7314 = vunpack.c.l.b16 %v5805
    %v7315 = vunpack.c.h.b16 %v5805
    %v7316 = vunpack.c.l.b16 %v5806
    %v7317 = vunpack.c.l.b16 %v5807
    %v7318 = vunpack.c.h.b16 %v5807
    %v7319 = vunpack.c.l.b16 %v5808
    %v7320 = vunpack.c.l.b16 %v5809
    %v7321 = vunpack.c.h.b16 %v5809
    %v7322 = vunpack.c.l.b16 %v5810
    %v7323 = vpack.c.b16 %v7278, %v7275
    %v7324 = vpack.c.b16 %v7279, %v7276
    %v7325 = vpack.c.b16 %v7280, %v7277
    %v7326 = vpack.c.b16 %v7284, %v7281
    %v7327 = vpack.c.b16 %v7285, %v7282
    %v7328 = vpack.c.b16 %v7286, %v7283
    %v7329 = vpack.c.b16 %v7290, %v7287
    %v7330 = vpack.c.b16 %v7291, %v7288
    %v7331 = vpack.c.b16 %v7292, %v7289
    %v7332 = vpack.c.b16 %v7296, %v7293
    %v7333 = vpack.c.b16 %v7297, %v7294
    %v7334 = vpack.c.b16 %v7298, %v7295
    %v7335 = vpack.c.b16 %v7302, %v7299
    %v7336 = vpack.c.b16 %v7303, %v7300
    %v7337 = vpack.c.b16 %v7304, %v7301
    %v7338 = vpack.c.b16 %v7308, %v7305
    %v7339 = vpack.c.b16 %v7309, %v7306
    %v7340 = vpack.c.b16 %v7310, %v7307
    %v7341 = vpack.c.b16 %v7314, %v7311
    %v7342 = vpack.c.b16 %v7315, %v7312
    %v7343 = vpack.c.b16 %v7316, %v7313
    %v7344 = vpack.c.b16 %v7320, %v7317
    %v7345 = vpack.c.b16 %v7321, %v7318
    %v7346 = vpack.c.b16 %v7322, %v7319
    %7371 = vmatprep.subr.bf16.mxu0 %v7324
    %7372 = vmatpush1.bf16.msra.mxu0 %v7323
    %7373 = vmatprep.subr.bf16.mxu0 %v7327
    %7374 = vmatpush1.bf16.msra.mxu0 %v7326
    %7375 = vmatprep.subr.bf16.mxu0 %v7330
    %7376 = vmatpush1.bf16.msra.mxu0 %v7329
    %7377 = vmatprep.subr.bf16.mxu0 %v7333
    %7378 = vmatpush1.bf16.msra.mxu0 %v7332
    %7379 = vmatprep.subr.bf16.mxu0 %v7336
    %7380 = vmatpush1.bf16.msra.mxu0 %v7335
    %7381 = vmatprep.subr.bf16.mxu0 %v7339
    %7382 = vmatpush1.bf16.msra.mxu0 %v7338
    %7383 = vmatprep.subr.bf16.mxu0 %v7342
    %7384 = vmatpush1.bf16.msra.mxu0 %v7341
    %7385 = vmatprep.subr.bf16.mxu0 %v7345
    %7386 = vmatpush1.bf16.msra.mxu0 %v7344
    %7387 = vmatprep.subr.bf16.mxu0 0
    %7388 = vmatpush1.bf16.msra.mxu0 0
    %7389 = vmatprep.subr.bf16.mxu0 0
    %7390 = vmatpush1.bf16.msra.mxu0 0
    %7391 = vmatprep.subr.bf16.mxu0 0
    %7392 = vmatpush1.bf16.msra.mxu0 0
    %7393 = vmatprep.subr.bf16.mxu0 0
    %7394 = vmatpush1.bf16.msra.mxu0 0
    %7395 = vmatprep.subr.bf16.mxu0 0
    %7396 = vmatpush1.bf16.msra.mxu0 0
    %7397 = vmatprep.subr.bf16.mxu0 0
    %7398 = vmatpush1.bf16.msra.mxu0 0
    %7399 = vmatprep.subr.bf16.mxu0 0
    %7400 = vmatpush1.bf16.msra.mxu0 0
    %7401 = vmatprep.subr.bf16.mxu0 0
    %7402 = vmatpush1.bf16.msra.mxu0 0
    %7403 = vmatprep.mubr.bf16.mxu0 0
    %7404 = vmatmul.mubr.bf16.gmra.mrb[0].mxu0 0
    %v7405 = vpop.f32.mrb[0].mxu0
    %v7406 = vadd.f32 %v7231, %v7405
    %v7407 = vpop.f32.mrb[0].mxu0
    %v7408 = vadd.f32 %v7235, %v7407
    %v7409 = vpop.f32.mrb[0].mxu0
    %v7410 = vpop.f32.mrb[0].mxu0
    %7411 = vdwg.mxu0
    %7412 = vmatprep.subr.bf16.mxu0 0
    %7413 = vmatpush1.bf16.msra.mxu0 %v7325
    %7414 = vmatprep.subr.bf16.mxu0 0
    %7415 = vmatpush1.bf16.msra.mxu0 %v7328
    %7416 = vmatprep.subr.bf16.mxu0 0
    %7417 = vmatpush1.bf16.msra.mxu0 %v7331
    %7418 = vmatprep.subr.bf16.mxu0 0
    %7419 = vmatpush1.bf16.msra.mxu0 %v7334
    %7420 = vmatprep.subr.bf16.mxu0 0
    %7421 = vmatpush1.bf16.msra.mxu0 %v7337
    %7422 = vmatprep.subr.bf16.mxu0 0
    %7423 = vmatpush1.bf16.msra.mxu0 %v7340
    %7424 = vmatprep.subr.bf16.mxu0 0
    %7425 = vmatpush1.bf16.msra.mxu0 %v7343
    %7426 = vmatprep.subr.bf16.mxu0 0
    %7427 = vmatpush1.bf16.msra.mxu0 %v7346
    %7428 = vmatprep.subr.bf16.mxu0 0
    %7429 = vmatpush1.bf16.msra.mxu0 0
    %7430 = vmatprep.subr.bf16.mxu0 0
    %7431 = vmatpush1.bf16.msra.mxu0 0
    %7432 = vmatprep.subr.bf16.mxu0 0
    %7433 = vmatpush1.bf16.msra.mxu0 0
    %7434 = vmatprep.subr.bf16.mxu0 0
    %7435 = vmatpush1.bf16.msra.mxu0 0
    %7436 = vmatprep.subr.bf16.mxu0 0
    %7437 = vmatpush1.bf16.msra.mxu0 0
    %7438 = vmatprep.subr.bf16.mxu0 0
    %7439 = vmatpush1.bf16.msra.mxu0 0
    %7440 = vmatprep.subr.bf16.mxu0 0
    %7441 = vmatpush1.bf16.msra.mxu0 0
    %7442 = vmatprep.subr.bf16.mxu0 0
    %7443 = vmatpush1.bf16.msra.mxu0 0
    %7444 = vmatprep.mubr.bf16.mxu0 0
    %7445 = vmatmul.mubr.bf16.gmra.mrb[0].mxu0 0
    %v7446 = vpop.f32.mrb[0].mxu0
    %v7447 = vadd.f32 %v7239, %v7446
    %v7448 = vpop.f32.mrb[0].mxu0
    %v7449 = vpop.f32.mrb[0].mxu0
    %v7450 = vpop.f32.mrb[0].mxu0
    %7451 = vdwg.mxu0
    %v7452 = vadd.f32 %v6993, %v7406
    %v7453 = vxor.u32 %v7452, 2147483648
    %v7454 = vmul.f32 %v7453, 1.442695
    %v7455 = vpow.pop %v7454
    %v7456 = vadd.f32 %v7455, 1.0
    %v7457 = vrcp.pop %v7456
    %v7458 = vmul.f32 1.0, %v7457
    %v7459 = vadd.f32 %v6995, %v7408
    %v7460 = vxor.u32 %v7459, 2147483648
    %v7461 = vmul.f32 %v7460, 1.442695
    %v7462 = vpow.pop %v7461
    %v7463 = vadd.f32 %v7462, 1.0
    %v7464 = vrcp.pop %v7463
    %v7465 = vmul.f32 1.0, %v7464
    %v7466 = vmul.f32 %v7458, %v7447
    %v7467 = vadd.f32 %v7196, %v7466
    %v7468 = vtanh.pop %v7467
    %v7469 = vsub.f32 1.0, %v7465
    %v7470 = vmul.f32 %v7469, %v7468
    %v7471 = vmul.f32 %v7465, 0.0
    %v7472 = vadd.f32 %v7470, %v7471
    %7473 = vst [vmem:[#allocation2] sm:$0xff] %v7472
    %v7474 = vpack.c.bf16 %v7472, %v7472
    %7475 = vmatprep.subr.bf16.mxu0 %v7324
    %7476 = vmatpush1.bf16.msra.mxu0 %v7323
    %7477 = vmatprep.subr.bf16.mxu0 %v7327
    %7478 = vmatpush1.bf16.msra.mxu0 %v7326
    %7479 = vmatprep.subr.bf16.mxu0 %v7330
    %7480 = vmatpush1.bf16.msra.mxu0 %v7329
    %7481 = vmatprep.subr.bf16.mxu0 %v7333
    %7482 = vmatpush1.bf16.msra.mxu0 %v7332
    %7483 = vmatprep.subr.bf16.mxu0 %v7336
    %7484 = vmatpush1.bf16.msra.mxu0 %v7335
    %7485 = vmatprep.subr.bf16.mxu0 %v7339
    %7486 = vmatpush1.bf16.msra.mxu0 %v7338
    %7487 = vmatprep.subr.bf16.mxu0 %v7342
    %7488 = vmatpush1.bf16.msra.mxu0 %v7341
    %7489 = vmatprep.subr.bf16.mxu0 %v7345
    %7490 = vmatpush1.bf16.msra.mxu0 %v7344
    %7491 = vmatprep.subr.bf16.mxu0 0
    %7492 = vmatpush1.bf16.msra.mxu0 0
    %7493 = vmatprep.subr.bf16.mxu0 0
    %7494 = vmatpush1.bf16.msra.mxu0 0
    %7495 = vmatprep.subr.bf16.mxu0 0
    %7496 = vmatpush1.bf16.msra.mxu0 0
    %7497 = vmatprep.subr.bf16.mxu0 0
    %7498 = vmatpush1.bf16.msra.mxu0 0
    %7499 = vmatprep.subr.bf16.mxu0 0
    %7500 = vmatpush1.bf16.msra.mxu0 0
    %7501 = vmatprep.subr.bf16.mxu0 0
    %7502 = vmatpush1.bf16.msra.mxu0 0
    %7503 = vmatprep.subr.bf16.mxu0 0
    %7504 = vmatpush1.bf16.msra.mxu0 0
    %7505 = vmatprep.subr.bf16.mxu0 0
    %7506 = vmatpush1.bf16.msra.mxu0 0
    %7507 = vmatprep.mubr.bf16.mxu0 0
    %7508 = vmatmul.mubr.bf16.gmra.mrb[0].mxu0 %v7474
    %v7509 = vpop.f32.mrb[0].mxu0
    %v7510 = vadd.f32 %v7231, %v7509
    %v7511 = vpop.f32.mrb[0].mxu0
    %v7512 = vadd.f32 %v7235, %v7511
    %v7513 = vpop.f32.mrb[0].mxu0
    %v7514 = vpop.f32.mrb[0].mxu0
    %7515 = vdwg.mxu0
    %7516 = vmatprep.subr.bf16.mxu0 0
    %7517 = vmatpush1.bf16.msra.mxu0 %v7325
    %7518 = vmatprep.subr.bf16.mxu0 0
    %7519 = vmatpush1.bf16.msra.mxu0 %v7328
    %7520 = vmatprep.subr.bf16.mxu0 0
    %7521 = vmatpush1.bf16.msra.mxu0 %v7331
    %7522 = vmatprep.subr.bf16.mxu0 0
    %7523 = vmatpush1.bf16.msra.mxu0 %v7334
    %7524 = vmatprep.subr.bf16.mxu0 0
    %7525 = vmatpush1.bf16.msra.mxu0 %v7337
    %7526 = vmatprep.subr.bf16.mxu0 0
    %7527 = vmatpush1.bf16.msra.mxu0 %v7340
    %7528 = vmatprep.subr.bf16.mxu0 0
    %7529 = vmatpush1.bf16.msra.mxu0 %v7343
    %7530 = vmatprep.subr.bf16.mxu0 0
    %7531 = vmatpush1.bf16.msra.mxu0 %v7346
    %7532 = vmatprep.subr.bf16.mxu0 0
    %7533 = vmatpush1.bf16.msra.mxu0 0
    %7534 = vmatprep.subr.bf16.mxu0 0
    %7535 = vmatpush1.bf16.msra.mxu0 0
    %7536 = vmatprep.subr.bf16.mxu0 0
    %7537 = vmatpush1.bf16.msra.mxu0 0
    %7538 = vmatprep.subr.bf16.mxu0 0
    %7539 = vmatpush1.bf16.msra.mxu0 0
    %7540 = vmatprep.subr.bf16.mxu0 0
    %7541 = vmatpush1.bf16.msra.mxu0 0
    %7542 = vmatprep.subr.bf16.mxu0 0
    %7543 = vmatpush1.bf16.msra.mxu0 0
    %7544 = vmatprep.subr.bf16.mxu0 0
    %7545 = vmatpush1.bf16.msra.mxu0 0
    %7546 = vmatprep.subr.bf16.mxu0 0
    %7547 = vmatpush1.bf16.msra.mxu0 0
    %7548 = vmatprep.mubr.bf16.mxu0 0
    %7549 = vmatmul.mubr.bf16.gmra.mrb[0].mxu0 %v7474
    %v7550 = vpop.f32.mrb[0].mxu0
    %v7551 = vadd.f32 %v7239, %v7550
    %v7552 = vpop.f32.mrb[0].mxu0
    %v7553 = vpop.f32.mrb[0].mxu0
    %v7554 = vpop.f32.mrb[0].mxu0
    %7555 = vdwg.mxu0
    %v7556 = vadd.f32 %v6997, %v7510
    %v7557 = vxor.u32 %v7556, 2147483648
    %v7558 = vmul.f32 %v7557, 1.442695
    %v7559 = vpow.pop %v7558
    %v7560 = vadd.f32 %v7559, 1.0
    %v7561 = vrcp.pop %v7560
    %v7562 = vmul.f32 1.0, %v7561
    %v7563 = vadd.f32 %v6999, %v7512
    %v7564 = vxor.u32 %v7563, 2147483648
    %v7565 = vmul.f32 %v7564, 1.442695
    %v7566 = vpow.pop %v7565
    %v7567 = vadd.f32 %v7566, 1.0
    %v7568 = vrcp.pop %v7567
    %v7569 = vmul.f32 1.0, %v7568
    %v7570 = vmul.f32 %v7562, %v7551
    %v7571 = vadd.f32 %v7199, %v7570
    %v7572 = vtanh.pop %v7571
    %v7573 = vsub.f32 1.0, %v7569
    %v7574 = vmul.f32 %v7573, %v7572
    %v7575 = vmul.f32 %v7569, %v7472
    %v7576 = vadd.f32 %v7574, %v7575
    %7577 = vst [vmem:[#allocation2 + $0x8] sm:$0xff] %v7576
    %v7578 = vpack.c.bf16 %v7576, %v7576
    %7579 = vmatprep.subr.bf16.mxu0 %v7324
    %7580 = vmatpush1.bf16.msra.mxu0 %v7323
    %7581 = vmatprep.subr.bf16.mxu0 %v7327
    %7582 = vmatpush1.bf16.msra.mxu0 %v7326
    %7583 = vmatprep.subr.bf16.mxu0 %v7330
    %7584 = vmatpush1.bf16.msra.mxu0 %v7329
    %7585 = vmatprep.subr.bf16.mxu0 %v7333
    %7586 = vmatpush1.bf16.msra.mxu0 %v7332
    %7587 = vmatprep.subr.bf16.mxu0 %v7336
    %7588 = vmatpush1.bf16.msra.mxu0 %v7335
    %7589 = vmatprep.subr.bf16.mxu0 %v7339
    %7590 = vmatpush1.bf16.msra.mxu0 %v7338
    %7591 = vmatprep.subr.bf16.mxu0 %v7342
    %7592 = vmatpush1.bf16.msra.mxu0 %v7341
    %7593 = vmatprep.subr.bf16.mxu0 %v7345
    %7594 = vmatpush1.bf16.msra.mxu0 %v7344
    %7595 = vmatprep.subr.bf16.mxu0 0
    %7596 = vmatpush1.bf16.msra.mxu0 0
    %7597 = vmatprep.subr.bf16.mxu0 0
    %7598 = vmatpush1.bf16.msra.mxu0 0
    %7599 = vmatprep.subr.bf16.mxu0 0
    %7600 = vmatpush1.bf16.msra.mxu0 0
    %7601 = vmatprep.subr.bf16.mxu0 0
    %7602 = vmatpush1.bf16.msra.mxu0 0
    %7603 = vmatprep.subr.bf16.mxu0 0
    %7604 = vmatpush1.bf16.msra.mxu0 0
    %7605 = vmatprep.subr.bf16.mxu0 0
    %7606 = vmatpush1.bf16.msra.mxu0 0
    %7607 = vmatprep.subr.bf16.mxu0 0
    %7608 = vmatpush1.bf16.msra.mxu0 0
    %7609 = vmatprep.subr.bf16.mxu0 0
    %7610 = vmatpush1.bf16.msra.mxu0 0
    %7611 = vmatprep.mubr.bf16.mxu0 0
    %7612 = vmatmul.mubr.bf16.gmra.mrb[0].mxu0 %v7578
    %v7613 = vpop.f32.mrb[0].mxu0
    %v7614 = vadd.f32 %v7231, %v7613
    %v7615 = vpop.f32.mrb[0].mxu0
    %v7616 = vadd.f32 %v7235, %v7615
    %v7617 = vpop.f32.mrb[0].mxu0
    %v7618 = vpop.f32.mrb[0].mxu0
    %7619 = vdwg.mxu0
    %7620 = vmatprep.subr.bf16.mxu0 0
    %7621 = vmatpush1.bf16.msra.mxu0 %v7325
    %7622 = vmatprep.subr.bf16.mxu0 0
    %7623 = vmatpush1.bf16.msra.mxu0 %v7328
    %7624 = vmatprep.subr.bf16.mxu0 0
    %7625 = vmatpush1.bf16.msra.mxu0 %v7331
    %7626 = vmatprep.subr.bf16.mxu0 0
    %7627 = vmatpush1.bf16.msra.mxu0 %v7334
    %7628 = vmatprep.subr.bf16.mxu0 0
    %7629 = vmatpush1.bf16.msra.mxu0 %v7337
    %7630 = vmatprep.subr.bf16.mxu0 0
    %7631 = vmatpush1.bf16.msra.mxu0 %v7340
    %7632 = vmatprep.subr.bf16.mxu0 0
    %7633 = vmatpush1.bf16.msra.mxu0 %v7343
    %7634 = vmatprep.subr.bf16.mxu0 0
    %7635 = vmatpush1.bf16.msra.mxu0 %v7346
    %7636 = vmatprep.subr.bf16.mxu0 0
    %7637 = vmatpush1.bf16.msra.mxu0 0
    %7638 = vmatprep.subr.bf16.mxu0 0
    %7639 = vmatpush1.bf16.msra.mxu0 0
    %7640 = vmatprep.subr.bf16.mxu0 0
    %7641 = vmatpush1.bf16.msra.mxu0 0
    %7642 = vmatprep.subr.bf16.mxu0 0
    %7643 = vmatpush1.bf16.msra.mxu0 0
    %7644 = vmatprep.subr.bf16.mxu0 0
    %7645 = vmatpush1.bf16.msra.mxu0 0
    %7646 = vmatprep.subr.bf16.mxu0 0
    %7647 = vmatpush1.bf16.msra.mxu0 0
    %7648 = vmatprep.subr.bf16.mxu0 0
    %7649 = vmatpush1.bf16.msra.mxu0 0
    %7650 = vmatprep.subr.bf16.mxu0 0
    %7651 = vmatpush1.bf16.msra.mxu0 0
    %7652 = vmatprep.mubr.bf16.mxu0 0
    %7653 = vmatmul.mubr.bf16.gmra.mrb[0].mxu0 %v7578
    %v7654 = vpop.f32.mrb[0].mxu0
    %v7655 = vadd.f32 %v7239, %v7654
    %v7656 = vpop.f32.mrb[0].mxu0
    %v7657 = vpop.f32.mrb[0].mxu0
    %v7658 = vpop.f32.mrb[0].mxu0
    %7659 = vdwg.mxu0
    %v7660 = vadd.f32 %v7003, %v7614
    %v7661 = vxor.u32 %v7660, 2147483648
    %v7662 = vmul.f32 %v7661, 1.442695
    %v7663 = vpow.pop %v7662
    %v7664 = vadd.f32 %v7663, 1.0
    %v7665 = vrcp.pop %v7664
    %v7666 = vmul.f32 1.0, %v7665
    %v7667 = vadd.f32 %v7005, %v7616
    %v7668 = vxor.u32 %v7667, 2147483648
    %v7669 = vmul.f32 %v7668, 1.442695
    %v7670 = vpow.pop %v7669
    %v7671 = vadd.f32 %v7670, 1.0
    %v7672 = vrcp.pop %v7671
    %v7673 = vmul.f32 1.0, %v7672
    %v7674 = vmul.f32 %v7666, %v7655
    %v7675 = vadd.f32 %v7204, %v7674
    %v7676 = vtanh.pop %v7675
    %v7677 = vsub.f32 1.0, %v7673
    %v7678 = vmul.f32 %v7677, %v7676
    %v7679 = vmul.f32 %v7673, %v7576
    %v7680 = vadd.f32 %v7678, %v7679
    %7681 = vst [vmem:[#allocation2 + $0x10] sm:$0xff] %v7680
    %v7682 = vpack.c.bf16 %v7680, %v7680
    %7683 = vmatprep.subr.bf16.mxu0 %v7324
    %7684 = vmatpush1.bf16.msra.mxu0 %v7323
    %7685 = vmatprep.subr.bf16.mxu0 %v7327
    %7686 = vmatpush1.bf16.msra.mxu0 %v7326
    %7687 = vmatprep.subr.bf16.mxu0 %v7330
    %7688 = vmatpush1.bf16.msra.mxu0 %v7329
    %7689 = vmatprep.subr.bf16.mxu0 %v7333
    %7690 = vmatpush1.bf16.msra.mxu0 %v7332
    %7691 = vmatprep.subr.bf16.mxu0 %v7336
    %7692 = vmatpush1.bf16.msra.mxu0 %v7335
    %7693 = vmatprep.subr.bf16.mxu0 %v7339
    %7694 = vmatpush1.bf16.msra.mxu0 %v7338
    %7695 = vmatprep.subr.bf16.mxu0 %v7342
    %7696 = vmatpush1.bf16.msra.mxu0 %v7341
    %7697 = vmatprep.subr.bf16.mxu0 %v7345
    %7698 = vmatpush1.bf16.msra.mxu0 %v7344
    %7699 = vmatprep.subr.bf16.mxu0 0
    %7700 = vmatpush1.bf16.msra.mxu0 0
    %7701 = vmatprep.subr.bf16.mxu0 0
    %7702 = vmatpush1.bf16.msra.mxu0 0
    %7703 = vmatprep.subr.bf16.mxu0 0
    %7704 = vmatpush1.bf16.msra.mxu0 0
    %7705 = vmatprep.subr.bf16.mxu0 0
    %7706 = vmatpush1.bf16.msra.mxu0 0
    %7707 = vmatprep.subr.bf16.mxu0 0
    %7708 = vmatpush1.bf16.msra.mxu0 0
    %7709 = vmatprep.subr.bf16.mxu0 0
    %7710 = vmatpush1.bf16.msra.mxu0 0
    %7711 = vmatprep.subr.bf16.mxu0 0
    %7712 = vmatpush1.bf16.msra.mxu0 0
    %7713 = vmatprep.subr.bf16.mxu0 0
    %7714 = vmatpush1.bf16.msra.mxu0 0
    %7715 = vmatprep.mubr.bf16.mxu0 0
    %7716 = vmatmul.mubr.bf16.gmra.mrb[0].mxu0 %v7682
    %v7717 = vpop.f32.mrb[0].mxu0
    %v7718 = vadd.f32 %v7231, %v7717
    %v7719 = vpop.f32.mrb[0].mxu0
    %v7720 = vadd.f32 %v7235, %v7719
    %v7721 = vpop.f32.mrb[0].mxu0
    %v7722 = vpop.f32.mrb[0].mxu0
    %7723 = vdwg.mxu0
    %7724 = vmatprep.subr.bf16.mxu0 0
    %7725 = vmatpush1.bf16.msra.mxu0 %v7325
    %7726 = vmatprep.subr.bf16.mxu0 0
    %7727 = vmatpush1.bf16.msra.mxu0 %v7328
    %7728 = vmatprep.subr.bf16.mxu0 0
    %7729 = vmatpush1.bf16.msra.mxu0 %v7331
    %7730 = vmatprep.subr.bf16.mxu0 0
    %7731 = vmatpush1.bf16.msra.mxu0 %v7334
    %7732 = vmatprep.subr.bf16.mxu0 0
    %7733 = vmatpush1.bf16.msra.mxu0 %v7337
    %7734 = vmatprep.subr.bf16.mxu0 0
    %7735 = vmatpush1.bf16.msra.mxu0 %v7340
    %7736 = vmatprep.subr.bf16.mxu0 0
    %7737 = vmatpush1.bf16.msra.mxu0 %v7343
    %7738 = vmatprep.subr.bf16.mxu0 0
    %7739 = vmatpush1.bf16.msra.mxu0 %v7346
    %7740 = vmatprep.subr.bf16.mxu0 0
    %7741 = vmatpush1.bf16.msra.mxu0 0
    %7742 = vmatprep.subr.bf16.mxu0 0
    %7743 = vmatpush1.bf16.msra.mxu0 0
    %7744 = vmatprep.subr.bf16.mxu0 0
    %7745 = vmatpush1.bf16.msra.mxu0 0
    %7746 = vmatprep.subr.bf16.mxu0 0
    %7747 = vmatpush1.bf16.msra.mxu0 0
    %7748 = vmatprep.subr.bf16.mxu0 0
    %7749 = vmatpush1.bf16.msra.mxu0 0
    %7750 = vmatprep.subr.bf16.mxu0 0
    %7751 = vmatpush1.bf16.msra.mxu0 0
    %7752 = vmatprep.subr.bf16.mxu0 0
    %7753 = vmatpush1.bf16.msra.mxu0 0
    %7754 = vmatprep.subr.bf16.mxu0 0
    %7755 = vmatpush1.bf16.msra.mxu0 0
    %7756 = vmatprep.mubr.bf16.mxu0 0
    %7757 = vmatmul.mubr.bf16.gmra.mrb[0].mxu0 %v7682
    %v7758 = vpop.f32.mrb[0].mxu0
    %v7759 = vadd.f32 %v7239, %v7758
    %v7760 = vpop.f32.mrb[0].mxu0
    %v7761 = vpop.f32.mrb[0].mxu0
    %v7762 = vpop.f32.mrb[0].mxu0
    %7763 = vdwg.mxu0
    %v7764 = vadd.f32 %v7007, %v7718
    %v7765 = vxor.u32 %v7764, 2147483648
    %v7766 = vmul.f32 %v7765, 1.442695
    %v7767 = vpow.pop %v7766
    %v7768 = vadd.f32 %v7767, 1.0
    %v7769 = vrcp.pop %v7768
    %v7770 = vmul.f32 1.0, %v7769
    %v7771 = vadd.f32 %v7009, %v7720
    %v7772 = vxor.u32 %v7771, 2147483648
    %v7773 = vmul.f32 %v7772, 1.442695
    %v7774 = vpow.pop %v7773
    %v7775 = vadd.f32 %v7774, 1.0
    %v7776 = vrcp.pop %v7775
    %v7777 = vmul.f32 1.0, %v7776
    %v7778 = vmul.f32 %v7770, %v7759
    %v7779 = vadd.f32 %v7207, %v7778
    %v7780 = vtanh.pop %v7779
    %v7781 = vsub.f32 1.0, %v7777
    %v7782 = vmul.f32 %v7781, %v7780
    %v7783 = vmul.f32 %v7777, %v7680
    %v7784 = vadd.f32 %v7782, %v7783
    %7785 = vst [vmem:[#allocation2 + $0x18] sm:$0xff] %v7784
    %v7786 = vpack.c.bf16 %v7784, %v7784
    %7787 = vmatprep.subr.bf16.mxu0 %v7324
    %7788 = vmatpush1.bf16.msra.mxu0 %v7323
    %7789 = vmatprep.subr.bf16.mxu0 %v7327
    %7790 = vmatpush1.bf16.msra.mxu0 %v7326
    %7791 = vmatprep.subr.bf16.mxu0 %v7330
    %7792 = vmatpush1.bf16.msra.mxu0 %v7329
    %7793 = vmatprep.subr.bf16.mxu0 %v7333
    %7794 = vmatpush1.bf16.msra.mxu0 %v7332
    %7795 = vmatprep.subr.bf16.mxu0 %v7336
    %7796 = vmatpush1.bf16.msra.mxu0 %v7335
    %7797 = vmatprep.subr.bf16.mxu0 %v7339
    %7798 = vmatpush1.bf16.msra.mxu0 %v7338
    %7799 = vmatprep.subr.bf16.mxu0 %v7342
    %7800 = vmatpush1.bf16.msra.mxu0 %v7341
    %7801 = vmatprep.subr.bf16.mxu0 %v7345
    %7802 = vmatpush1.bf16.msra.mxu0 %v7344
    %7803 = vmatprep.subr.bf16.mxu0 0
    %7804 = vmatpush1.bf16.msra.mxu0 0
    %7805 = vmatprep.subr.bf16.mxu0 0
    %7806 = vmatpush1.bf16.msra.mxu0 0
    %7807 = vmatprep.subr.bf16.mxu0 0
    %7808 = vmatpush1.bf16.msra.mxu0 0
    %7809 = vmatprep.subr.bf16.mxu0 0
    %7810 = vmatpush1.bf16.msra.mxu0 0
    %7811 = vmatprep.subr.bf16.mxu0 0
    %7812 = vmatpush1.bf16.msra.mxu0 0
    %7813 = vmatprep.subr.bf16.mxu0 0
    %7814 = vmatpush1.bf16.msra.mxu0 0
    %7815 = vmatprep.subr.bf16.mxu0 0
    %7816 = vmatpush1.bf16.msra.mxu0 0
    %7817 = vmatprep.subr.bf16.mxu0 0
    %7818 = vmatpush1.bf16.msra.mxu0 0
    %7819 = vmatprep.mubr.bf16.mxu0 0
    %7820 = vmatmul.mubr.bf16.gmra.mrb[0].mxu0 %v7786
    %v7821 = vpop.f32.mrb[0].mxu0
    %v7822 = vadd.f32 %v7231, %v7821
    %v7823 = vpop.f32.mrb[0].mxu0
    %v7824 = vadd.f32 %v7235, %v7823
    %v7825 = vpop.f32.mrb[0].mxu0
    %v7826 = vpop.f32.mrb[0].mxu0
    %7827 = vdwg.mxu0
    %7828 = vmatprep.subr.bf16.mxu0 0
    %7829 = vmatpush1.bf16.msra.mxu0 %v7325
    %7830 = vmatprep.subr.bf16.mxu0 0
    %7831 = vmatpush1.bf16.msra.mxu0 %v7328
    %7832 = vmatprep.subr.bf16.mxu0 0
    %7833 = vmatpush1.bf16.msra.mxu0 %v7331
    %7834 = vmatprep.subr.bf16.mxu0 0
    %7835 = vmatpush1.bf16.msra.mxu0 %v7334
    %7836 = vmatprep.subr.bf16.mxu0 0
    %7837 = vmatpush1.bf16.msra.mxu0 %v7337
    %7838 = vmatprep.subr.bf16.mxu0 0
    %7839 = vmatpush1.bf16.msra.mxu0 %v7340
    %7840 = vmatprep.subr.bf16.mxu0 0
    %7841 = vmatpush1.bf16.msra.mxu0 %v7343
    %7842 = vmatprep.subr.bf16.mxu0 0
    %7843 = vmatpush1.bf16.msra.mxu0 %v7346
    %7844 = vmatprep.subr.bf16.mxu0 0
    %7845 = vmatpush1.bf16.msra.mxu0 0
    %7846 = vmatprep.subr.bf16.mxu0 0
    %7847 = vmatpush1.bf16.msra.mxu0 0
    %7848 = vmatprep.subr.bf16.mxu0 0
    %7849 = vmatpush1.bf16.msra.mxu0 0
    %7850 = vmatprep.subr.bf16.mxu0 0
    %7851 = vmatpush1.bf16.msra.mxu0 0
    %7852 = vmatprep.subr.bf16.mxu0 0
    %7853 = vmatpush1.bf16.msra.mxu0 0
    %7854 = vmatprep.subr.bf16.mxu0 0
    %7855 = vmatpush1.bf16.msra.mxu0 0
    %7856 = vmatprep.subr.bf16.mxu0 0
    %7857 = vmatpush1.bf16.msra.mxu0 0
    %7858 = vmatprep.subr.bf16.mxu0 0
    %7859 = vmatpush1.bf16.msra.mxu0 0
    %7860 = vmatprep.mubr.bf16.mxu0 0
    %7861 = vmatmul.mubr.bf16.gmra.mrb[0].mxu0 %v7786
    %v7862 = vpop.f32.mrb[0].mxu0
    %v7863 = vadd.f32 %v7239, %v7862
    %v7864 = vpop.f32.mrb[0].mxu0
    %v7865 = vpop.f32.mrb[0].mxu0
    %v7866 = vpop.f32.mrb[0].mxu0
    %7867 = vdwg.mxu0
    %v7868 = vadd.f32 %v7013, %v7822
    %v7869 = vxor.u32 %v7868, 2147483648
    %v7870 = vmul.f32 %v7869, 1.442695
    %v7871 = vpow.pop %v7870
    %v7872 = vadd.f32 %v7871, 1.0
    %v7873 = vrcp.pop %v7872
    %v7874 = vmul.f32 1.0, %v7873
    %v7875 = vadd.f32 %v7015, %v7824
    %v7876 = vxor.u32 %v7875, 2147483648
    %v7877 = vmul.f32 %v7876, 1.442695
    %v7878 = vpow.pop %v7877
    %v7879 = vadd.f32 %v7878, 1.0
    %v7880 = vrcp.pop %v7879
    %v7881 = vmul.f32 1.0, %v7880
    %v7882 = vmul.f32 %v7874, %v7863
    %v7883 = vadd.f32 %v7212, %v7882
    %v7884 = vtanh.pop %v7883
    %v7885 = vsub.f32 1.0, %v7881
    %v7886 = vmul.f32 %v7885, %v7884
    %v7887 = vmul.f32 %v7881, %v7784
    %v7888 = vadd.f32 %v7886, %v7887
    %7889 = vst [vmem:[#allocation2 + $0x20] sm:$0xff] %v7888
    %v7890 = vpack.c.bf16 %v7888, %v7888
    %7891 = vmatprep.subr.bf16.mxu0 %v7324
    %7892 = vmatpush1.bf16.msra.mxu0 %v7323
    %7893 = vmatprep.subr.bf16.mxu0 %v7327
    %7894 = vmatpush1.bf16.msra.mxu0 %v7326
    %7895 = vmatprep.subr.bf16.mxu0 %v7330
    %7896 = vmatpush1.bf16.msra.mxu0 %v7329
    %7897 = vmatprep.subr.bf16.mxu0 %v7333
    %7898 = vmatpush1.bf16.msra.mxu0 %v7332
    %7899 = vmatprep.subr.bf16.mxu0 %v7336
    %7900 = vmatpush1.bf16.msra.mxu0 %v7335
    %7901 = vmatprep.subr.bf16.mxu0 %v7339
    %7902 = vmatpush1.bf16.msra.mxu0 %v7338
    %7903 = vmatprep.subr.bf16.mxu0 %v7342
    %7904 = vmatpush1.bf16.msra.mxu0 %v7341
    %7905 = vmatprep.subr.bf16.mxu0 %v7345
    %7906 = vmatpush1.bf16.msra.mxu0 %v7344
    %7907 = vmatprep.subr.bf16.mxu0 0
    %7908 = vmatpush1.bf16.msra.mxu0 0
    %7909 = vmatprep.subr.bf16.mxu0 0
    %7910 = vmatpush1.bf16.msra.mxu0 0
    %7911 = vmatprep.subr.bf16.mxu0 0
    %7912 = vmatpush1.bf16.msra.mxu0 0
    %7913 = vmatprep.subr.bf16.mxu0 0
    %7914 = vmatpush1.bf16.msra.mxu0 0
    %7915 = vmatprep.subr.bf16.mxu0 0
    %7916 = vmatpush1.bf16.msra.mxu0 0
    %7917 = vmatprep.subr.bf16.mxu0 0
    %7918 = vmatpush1.bf16.msra.mxu0 0
    %7919 = vmatprep.subr.bf16.mxu0 0
    %7920 = vmatpush1.bf16.msra.mxu0 0
    %7921 = vmatprep.subr.bf16.mxu0 0
    %7922 = vmatpush1.bf16.msra.mxu0 0
    %7923 = vmatprep.mubr.bf16.mxu0 0
    %7924 = vmatmul.mubr.bf16.gmra.mrb[0].mxu0 %v7890
    %v7925 = vpop.f32.mrb[0].mxu0
    %v7926 = vadd.f32 %v7231, %v7925
    %v7927 = vpop.f32.mrb[0].mxu0
    %v7928 = vadd.f32 %v7235, %v7927
    %v7929 = vpop.f32.mrb[0].mxu0
    %v7930 = vpop.f32.mrb[0].mxu0
    %7931 = vdwg.mxu0
    %7932 = vmatprep.subr.bf16.mxu0 0
    %7933 = vmatpush1.bf16.msra.mxu0 %v7325
    %7934 = vmatprep.subr.bf16.mxu0 0
    %7935 = vmatpush1.bf16.msra.mxu0 %v7328
    %7936 = vmatprep.subr.bf16.mxu0 0
    %7937 = vmatpush1.bf16.msra.mxu0 %v7331
    %7938 = vmatprep.subr.bf16.mxu0 0
    %7939 = vmatpush1.bf16.msra.mxu0 %v7334
    %7940 = vmatprep.subr.bf16.mxu0 0
    %7941 = vmatpush1.bf16.msra.mxu0 %v7337
    %7942 = vmatprep.subr.bf16.mxu0 0
    %7943 = vmatpush1.bf16.msra.mxu0 %v7340
    %7944 = vmatprep.subr.bf16.mxu0 0
    %7945 = vmatpush1.bf16.msra.mxu0 %v7343
    %7946 = vmatprep.subr.bf16.mxu0 0
    %7947 = vmatpush1.bf16.msra.mxu0 %v7346
    %7948 = vmatprep.subr.bf16.mxu0 0
    %7949 = vmatpush1.bf16.msra.mxu0 0
    %7950 = vmatprep.subr.bf16.mxu0 0
    %7951 = vmatpush1.bf16.msra.mxu0 0
    %7952 = vmatprep.subr.bf16.mxu0 0
    %7953 = vmatpush1.bf16.msra.mxu0 0
    %7954 = vmatprep.subr.bf16.mxu0 0
    %7955 = vmatpush1.bf16.msra.mxu0 0
    %7956 = vmatprep.subr.bf16.mxu0 0
    %7957 = vmatpush1.bf16.msra.mxu0 0
    %7958 = vmatprep.subr.bf16.mxu0 0
    %7959 = vmatpush1.bf16.msra.mxu0 0
    %7960 = vmatprep.subr.bf16.mxu0 0
    %7961 = vmatpush1.bf16.msra.mxu0 0
    %7962 = vmatprep.subr.bf16.mxu0 0
    %7963 = vmatpush1.bf16.msra.mxu0 0
    %7964 = vmatprep.mubr.bf16.mxu0 0
    %7965 = vmatmul.mubr.bf16.gmra.mrb[0].mxu0 %v7890
    %v7966 = vpop.f32.mrb[0].mxu0
    %v7967 = vadd.f32 %v7239, %v7966
    %v7968 = vpop.f32.mrb[0].mxu0
    %v7969 = vpop.f32.mrb[0].mxu0
    %v7970 = vpop.f32.mrb[0].mxu0
    %7971 = vdwg.mxu0
    %v7972 = vadd.f32 %v7017, %v7926
    %v7973 = vxor.u32 %v7972, 2147483648
    %v7974 = vmul.f32 %v7973, 1.442695
    %v7975 = vpow.pop %v7974
    %v7976 = vadd.f32 %v7975, 1.0
    %v7977 = vrcp.pop %v7976
    %v7978 = vmul.f32 1.0, %v7977
    %v7979 = vadd.f32 %v7019, %v7928
    %v7980 = vxor.u32 %v7979, 2147483648
    %v7981 = vmul.f32 %v7980, 1.442695
    %v7982 = vpow.pop %v7981
    %v7983 = vadd.f32 %v7982, 1.0
    %v7984 = vrcp.pop %v7983
    %v7985 = vmul.f32 1.0, %v7984
    %v7986 = vmul.f32 %v7978, %v7967
    %v7987 = vadd.f32 %v7215, %v7986
    %v7988 = vtanh.pop %v7987
    %v7989 = vsub.f32 1.0, %v7985
    %v7990 = vmul.f32 %v7989, %v7988
    %v7991 = vmul.f32 %v7985, %v7888
    %v7992 = vadd.f32 %v7990, %v7991
    %7993 = vst [vmem:[#allocation2 + $0x28] sm:$0xff] %v7992
    %v7994 = vpack.c.bf16 %v7992, %v7992
    %7995 = vmatprep.subr.bf16.mxu0 %v7324
    %7996 = vmatpush1.bf16.msra.mxu0 %v7323
    %7997 = vmatprep.subr.bf16.mxu0 %v7327
    %7998 = vmatpush1.bf16.msra.mxu0 %v7326
    %7999 = vmatprep.subr.bf16.mxu0 %v7330
    %8000 = vmatpush1.bf16.msra.mxu0 %v7329
    %8001 = vmatprep.subr.bf16.mxu0 %v7333
    %8002 = vmatpush1.bf16.msra.mxu0 %v7332
    %8003 = vmatprep.subr.bf16.mxu0 %v7336
    %8004 = vmatpush1.bf16.msra.mxu0 %v7335
    %8005 = vmatprep.subr.bf16.mxu0 %v7339
    %8006 = vmatpush1.bf16.msra.mxu0 %v7338
    %8007 = vmatprep.subr.bf16.mxu0 %v7342
    %8008 = vmatpush1.bf16.msra.mxu0 %v7341
    %8009 = vmatprep.subr.bf16.mxu0 %v7345
    %8010 = vmatpush1.bf16.msra.mxu0 %v7344
    %8011 = vmatprep.subr.bf16.mxu0 0
    %8012 = vmatpush1.bf16.msra.mxu0 0
    %8013 = vmatprep.subr.bf16.mxu0 0
    %8014 = vmatpush1.bf16.msra.mxu0 0
    %8015 = vmatprep.subr.bf16.mxu0 0
    %8016 = vmatpush1.bf16.msra.mxu0 0
    %8017 = vmatprep.subr.bf16.mxu0 0
    %8018 = vmatpush1.bf16.msra.mxu0 0
    %8019 = vmatprep.subr.bf16.mxu0 0
    %8020 = vmatpush1.bf16.msra.mxu0 0
    %8021 = vmatprep.subr.bf16.mxu0 0
    %8022 = vmatpush1.bf16.msra.mxu0 0
    %8023 = vmatprep.subr.bf16.mxu0 0
    %8024 = vmatpush1.bf16.msra.mxu0 0
    %8025 = vmatprep.subr.bf16.mxu0 0
    %8026 = vmatpush1.bf16.msra.mxu0 0
    %8027 = vmatprep.mubr.bf16.mxu0 0
    %8028 = vmatmul.mubr.bf16.gmra.mrb[0].mxu0 %v7994
    %v8029 = vpop.f32.mrb[0].mxu0
    %v8030 = vadd.f32 %v7231, %v8029
    %v8031 = vpop.f32.mrb[0].mxu0
    %v8032 = vadd.f32 %v7235, %v8031
    %v8033 = vpop.f32.mrb[0].mxu0
    %v8034 = vpop.f32.mrb[0].mxu0
    %8035 = vdwg.mxu0
    %8036 = vmatprep.subr.bf16.mxu0 0
    %8037 = vmatpush1.bf16.msra.mxu0 %v7325
    %8038 = vmatprep.subr.bf16.mxu0 0
    %8039 = vmatpush1.bf16.msra.mxu0 %v7328
    %8040 = vmatprep.subr.bf16.mxu0 0
    %8041 = vmatpush1.bf16.msra.mxu0 %v7331
    %8042 = vmatprep.subr.bf16.mxu0 0
    %8043 = vmatpush1.bf16.msra.mxu0 %v7334
    %8044 = vmatprep.subr.bf16.mxu0 0
    %8045 = vmatpush1.bf16.msra.mxu0 %v7337
    %8046 = vmatprep.subr.bf16.mxu0 0
    %8047 = vmatpush1.bf16.msra.mxu0 %v7340
    %8048 = vmatprep.subr.bf16.mxu0 0
    %8049 = vmatpush1.bf16.msra.mxu0 %v7343
    %8050 = vmatprep.subr.bf16.mxu0 0
    %8051 = vmatpush1.bf16.msra.mxu0 %v7346
    %8052 = vmatprep.subr.bf16.mxu0 0
    %8053 = vmatpush1.bf16.msra.mxu0 0
    %8054 = vmatprep.subr.bf16.mxu0 0
    %8055 = vmatpush1.bf16.msra.mxu0 0
    %8056 = vmatprep.subr.bf16.mxu0 0
    %8057 = vmatpush1.bf16.msra.mxu0 0
    %8058 = vmatprep.subr.bf16.mxu0 0
    %8059 = vmatpush1.bf16.msra.mxu0 0
    %8060 = vmatprep.subr.bf16.mxu0 0
    %8061 = vmatpush1.bf16.msra.mxu0 0
    %8062 = vmatprep.subr.bf16.mxu0 0
    %8063 = vmatpush1.bf16.msra.mxu0 0
    %8064 = vmatprep.subr.bf16.mxu0 0
    %8065 = vmatpush1.bf16.msra.mxu0 0
    %8066 = vmatprep.subr.bf16.mxu0 0
    %8067 = vmatpush1.bf16.msra.mxu0 0
    %8068 = vmatprep.mubr.bf16.mxu0 0
    %8069 = vmatmul.mubr.bf16.gmra.mrb[0].mxu0 %v7994
    %v8070 = vpop.f32.mrb[0].mxu0
    %v8071 = vadd.f32 %v7239, %v8070
    %v8072 = vpop.f32.mrb[0].mxu0
    %v8073 = vpop.f32.mrb[0].mxu0
    %v8074 = vpop.f32.mrb[0].mxu0
    %8075 = vdwg.mxu0
    %v8076 = vadd.f32 %v7023, %v8030
    %v8077 = vxor.u32 %v8076, 2147483648
    %v8078 = vmul.f32 %v8077, 1.442695
    %v8079 = vpow.pop %v8078
    %v8080 = vadd.f32 %v8079, 1.0
    %v8081 = vrcp.pop %v8080
    %v8082 = vmul.f32 1.0, %v8081
    %v8083 = vadd.f32 %v7025, %v8032
    %v8084 = vxor.u32 %v8083, 2147483648
    %v8085 = vmul.f32 %v8084, 1.442695
    %v8086 = vpow.pop %v8085
    %v8087 = vadd.f32 %v8086, 1.0
    %v8088 = vrcp.pop %v8087
    %v8089 = vmul.f32 1.0, %v8088
    %v8090 = vmul.f32 %v8082, %v8071
    %v8091 = vadd.f32 %v7220, %v8090
    %v8092 = vtanh.pop %v8091
    %v8093 = vsub.f32 1.0, %v8089
    %v8094 = vmul.f32 %v8093, %v8092
    %v8095 = vmul.f32 %v8089, %v7992
    %v8096 = vadd.f32 %v8094, %v8095
    %8097 = vst [vmem:[#allocation2 + $0x30] sm:$0xff] %v8096
    %v8098 = vpack.c.bf16 %v8096, %v8096
    %8099 = vmatprep.subr.bf16.mxu0 %v7324
    %8100 = vmatpush1.bf16.msra.mxu0 %v7323
    %8101 = vmatprep.subr.bf16.mxu0 %v7327
    %8102 = vmatpush1.bf16.msra.mxu0 %v7326
    %8103 = vmatprep.subr.bf16.mxu0 %v7330
    %8104 = vmatpush1.bf16.msra.mxu0 %v7329
    %8105 = vmatprep.subr.bf16.mxu0 %v7333
    %8106 = vmatpush1.bf16.msra.mxu0 %v7332
    %8107 = vmatprep.subr.bf16.mxu0 %v7336
    %8108 = vmatpush1.bf16.msra.mxu0 %v7335
    %8109 = vmatprep.subr.bf16.mxu0 %v7339
    %8110 = vmatpush1.bf16.msra.mxu0 %v7338
    %8111 = vmatprep.subr.bf16.mxu0 %v7342
    %8112 = vmatpush1.bf16.msra.mxu0 %v7341
    %8113 = vmatprep.subr.bf16.mxu0 %v7345
    %8114 = vmatpush1.bf16.msra.mxu0 %v7344
    %8115 = vmatprep.subr.bf16.mxu0 0
    %8116 = vmatpush1.bf16.msra.mxu0 0
    %8117 = vmatprep.subr.bf16.mxu0 0
    %8118 = vmatpush1.bf16.msra.mxu0 0
    %8119 = vmatprep.subr.bf16.mxu0 0
    %8120 = vmatpush1.bf16.msra.mxu0 0
    %8121 = vmatprep.subr.bf16.mxu0 0
    %8122 = vmatpush1.bf16.msra.mxu0 0
    %8123 = vmatprep.subr.bf16.mxu0 0
    %8124 = vmatpush1.bf16.msra.mxu0 0
    %8125 = vmatprep.subr.bf16.mxu0 0
    %8126 = vmatpush1.bf16.msra.mxu0 0
    %8127 = vmatprep.subr.bf16.mxu0 0
    %8128 = vmatpush1.bf16.msra.mxu0 0
    %8129 = vmatprep.subr.bf16.mxu0 0
    %8130 = vmatpush1.bf16.msra.mxu0 0
    %8131 = vmatprep.mubr.bf16.mxu0 0
    %8132 = vmatmul.mubr.bf16.gmra.mrb[0].mxu0 %v8098
    %v8133 = vpop.f32.mrb[0].mxu0
    %v8134 = vadd.f32 %v7231, %v8133
    %v8135 = vpop.f32.mrb[0].mxu0
    %v8136 = vadd.f32 %v7235, %v8135
    %v8137 = vpop.f32.mrb[0].mxu0
    %v8138 = vpop.f32.mrb[0].mxu0
    %8139 = vdwg.mxu0
    %8140 = vmatprep.subr.bf16.mxu0 0
    %8141 = vmatpush1.bf16.msra.mxu0 %v7325
    %8142 = vmatprep.subr.bf16.mxu0 0
    %8143 = vmatpush1.bf16.msra.mxu0 %v7328
    %8144 = vmatprep.subr.bf16.mxu0 0
    %8145 = vmatpush1.bf16.msra.mxu0 %v7331
    %8146 = vmatprep.subr.bf16.mxu0 0
    %8147 = vmatpush1.bf16.msra.mxu0 %v7334
    %8148 = vmatprep.subr.bf16.mxu0 0
    %8149 = vmatpush1.bf16.msra.mxu0 %v7337
    %8150 = vmatprep.subr.bf16.mxu0 0
    %8151 = vmatpush1.bf16.msra.mxu0 %v7340
    %8152 = vmatprep.subr.bf16.mxu0 0
    %8153 = vmatpush1.bf16.msra.mxu0 %v7343
    %8154 = vmatprep.subr.bf16.mxu0 0
    %8155 = vmatpush1.bf16.msra.mxu0 %v7346
    %8156 = vmatprep.subr.bf16.mxu0 0
    %8157 = vmatpush1.bf16.msra.mxu0 0
    %8158 = vmatprep.subr.bf16.mxu0 0
    %8159 = vmatpush1.bf16.msra.mxu0 0
    %8160 = vmatprep.subr.bf16.mxu0 0
    %8161 = vmatpush1.bf16.msra.mxu0 0
    %8162 = vmatprep.subr.bf16.mxu0 0
    %8163 = vmatpush1.bf16.msra.mxu0 0
    %8164 = vmatprep.subr.bf16.mxu0 0
    %8165 = vmatpush1.bf16.msra.mxu0 0
    %8166 = vmatprep.subr.bf16.mxu0 0
    %8167 = vmatpush1.bf16.msra.mxu0 0
    %8168 = vmatprep.subr.bf16.mxu0 0
    %8169 = vmatpush1.bf16.msra.mxu0 0
    %8170 = vmatprep.subr.bf16.mxu0 0
    %8171 = vmatpush1.bf16.msra.mxu0 0
    %8172 = vmatprep.mubr.bf16.mxu0 0
    %8173 = vmatmul.mubr.bf16.gmra.mrb[0].mxu0 %v8098
    %v8174 = vpop.f32.mrb[0].mxu0
    %v8175 = vadd.f32 %v7239, %v8174
    %v8176 = vpop.f32.mrb[0].mxu0
    %v8177 = vpop.f32.mrb[0].mxu0
    %v8178 = vpop.f32.mrb[0].mxu0
    %8179 = vdwg.mxu0
    %v8180 = vadd.f32 %v7027, %v8134
    %v8181 = vxor.u32 %v8180, 2147483648
    %v8182 = vmul.f32 %v8181, 1.442695
    %v8183 = vpow.pop %v8182
    %v8184 = vadd.f32 %v8183, 1.0
    %v8185 = vrcp.pop %v8184
    %v8186 = vmul.f32 1.0, %v8185
    %v8187 = vadd.f32 %v7029, %v8136
    %v8188 = vxor.u32 %v8187, 2147483648
    %v8189 = vmul.f32 %v8188, 1.442695
    %v8190 = vpow.pop %v8189
    %v8191 = vadd.f32 %v8190, 1.0
    %v8192 = vrcp.pop %v8191
    %v8193 = vmul.f32 1.0, %v8192
    %v8194 = vmul.f32 %v8186, %v8175
    %v8195 = vadd.f32 %v7223, %v8194
    %v8196 = vtanh.pop %v8195
    %v8197 = vsub.f32 1.0, %v8193
    %v8198 = vmul.f32 %v8197, %v8196
    %v8199 = vmul.f32 %v8193, %v8096
    %v8200 = vadd.f32 %v8198, %v8199
    %8201 = vst [vmem:[#allocation2 + $0x38] sm:$0xff] %v8200
    %v8202 = vld [vmem:[#allocation2] sm:$0xff]
    %v8203 = vld [vmem:[#allocation2 + $0x8] sm:$0xff]
    %v8204 = vld [vmem:[#allocation2 + $0x10] sm:$0xff]
    %v8205 = vld [vmem:[#allocation2 + $0x18] sm:$0xff]
    %v8206 = vld [vmem:[#allocation2 + $0x20] sm:$0xff]
    %v8207 = vld [vmem:[#allocation2 + $0x28] sm:$0xff]
    %v8208 = vld [vmem:[#allocation2 + $0x30] sm:$0xff]
    %v8209 = vld [vmem:[#allocation2 + $0x38] sm:$0xff]
    %v8210 = vld [vmem:[#allocation16] sm:$0xff]
    %v8211 = vld [vmem:[#allocation16 + $0x8] sm:$0xf]
    %v8212 = vld [vmem:[#allocation16 + $0xc] sm:$0xff]
    %v8213 = vld [vmem:[#allocation16 + $0x14] sm:$0xf]
    %v8214 = vld [vmem:[#allocation16 + $0x18] sm:$0xff]
    %v8215 = vld [vmem:[#allocation16 + $0x20] sm:$0xf]
    %v8216 = vld [vmem:[#allocation16 + $0x24] sm:$0xff]
    %v8217 = vld [vmem:[#allocation16 + $0x2c] sm:$0xf]
    %v8218 = vld [vmem:[#allocation16 + $0x30] sm:$0xff]
    %v8219 = vld [vmem:[#allocation16 + $0x38] sm:$0xf]
    %v8220 = vld [vmem:[#allocation16 + $0x3c] sm:$0xff]
    %v8221 = vld [vmem:[#allocation16 + $0x44] sm:$0xf]
    %v8222 = vld [vmem:[#allocation16 + $0x48] sm:$0xff]
    %v8223 = vld [vmem:[#allocation16 + $0x50] sm:$0xf]
    %v8224 = vld [vmem:[#allocation16 + $0x54] sm:$0xff]
    %v8225 = vld [vmem:[#allocation16 + $0x5c] sm:$0xf]
    %v8226 = vld [vmem:[#allocation16 + $0x60] sm:$0xff]
    %v8227 = vld [vmem:[#allocation16 + $0x68] sm:$0xf]
    %v8228 = vld [vmem:[#allocation16 + $0x6c] sm:$0xff]
    %v8229 = vld [vmem:[#allocation16 + $0x74] sm:$0xf]
    %v8230 = vld [vmem:[#allocation16 + $0x78] sm:$0xff]
    %v8231 = vld [vmem:[#allocation16 + $0x80] sm:$0xf]
    %v8232 = vld [vmem:[#allocation16 + $0x84] sm:$0xff]
    %v8233 = vld [vmem:[#allocation16 + $0x8c] sm:$0xf]
    %v8234 = vld [vmem:[#allocation16 + $0x90] sm:$0xff]
    %v8235 = vld [vmem:[#allocation16 + $0x98] sm:$0xf]
    %v8236 = vld [vmem:[#allocation16 + $0x9c] sm:$0xff]
    %v8237 = vld [vmem:[#allocation16 + $0xa4] sm:$0xf]
    %v8238 = vld [vmem:[#allocation16 + $0xa8] sm:$0xff]
    %v8239 = vld [vmem:[#allocation16 + $0xb0] sm:$0xf]
    %v8240 = vld [vmem:[#allocation16 + $0xb4] sm:$0xff]
    %v8241 = vld [vmem:[#allocation16 + $0xbc] sm:$0xf]
    %v8242 = vpack.c.bf16 %v8203, %v8202
    %v8243 = vpack.c.bf16 %v8205, %v8204
    %v8244 = vpack.c.bf16 %v8207, %v8206
    %v8245 = vpack.c.bf16 %v8209, %v8208
    %v8246 = vld [vmem:[#allocation14] sm:$0xff]
    %v8247 = vld [vmem:[#allocation14 + $0x8] sm:$0xf]
    %v8248 = vld [vmem:[#allocation14 + $0xc] sm:$0xff]
    %v8249 = vld [vmem:[#allocation14 + $0x14] sm:$0xf]
    %v8250 = vld [vmem:[#allocation14 + $0x18] sm:$0xff]
    %v8251 = vld [vmem:[#allocation14 + $0x20] sm:$0xf]
    %v8252 = vld [vmem:[#allocation14 + $0x24] sm:$0xff]
    %v8253 = vld [vmem:[#allocation14 + $0x2c] sm:$0xf]
    %v8254 = vld [vmem:[#allocation14 + $0x30] sm:$0xff]
    %v8255 = vld [vmem:[#allocation14 + $0x38] sm:$0xf]
    %v8256 = vld [vmem:[#allocation14 + $0x3c] sm:$0xff]
    %v8257 = vld [vmem:[#allocation14 + $0x44] sm:$0xf]
    %v8258 = vld [vmem:[#allocation14 + $0x48] sm:$0xff]
    %v8259 = vld [vmem:[#allocation14 + $0x50] sm:$0xf]
    %v8260 = vld [vmem:[#allocation14 + $0x54] sm:$0xff]
    %v8261 = vld [vmem:[#allocation14 + $0x5c] sm:$0xf]
    %v8262 = vld [vmem:[#allocation14 + $0x60] sm:$0xff]
    %v8263 = vld [vmem:[#allocation14 + $0x68] sm:$0xf]
    %v8264 = vld [vmem:[#allocation14 + $0x6c] sm:$0xff]
    %v8265 = vld [vmem:[#allocation14 + $0x74] sm:$0xf]
    %v8266 = vld [vmem:[#allocation14 + $0x78] sm:$0xff]
    %v8267 = vld [vmem:[#allocation14 + $0x80] sm:$0xf]
    %v8268 = vld [vmem:[#allocation14 + $0x84] sm:$0xff]
    %v8269 = vld [vmem:[#allocation14 + $0x8c] sm:$0xf]
    %v8270 = vld [vmem:[#allocation14 + $0x90] sm:$0xff]
    %v8271 = vld [vmem:[#allocation14 + $0x98] sm:$0xf]
    %v8272 = vld [vmem:[#allocation14 + $0x9c] sm:$0xff]
    %v8273 = vld [vmem:[#allocation14 + $0xa4] sm:$0xf]
    %v8274 = vld [vmem:[#allocation14 + $0xa8] sm:$0xff]
    %v8275 = vld [vmem:[#allocation14 + $0xb0] sm:$0xf]
    %v8276 = vld [vmem:[#allocation14 + $0xb4] sm:$0xff]
    %v8277 = vld [vmem:[#allocation14 + $0xbc] sm:$0xf]
    %v8278 = vld [vmem:[#allocation17] sm:$0x7]
    %v8280 = vlaneseq
    %v8281 = vshrl.u32 %v8280, 7
    %v8282 = vsub.s32 0, %v8281
    %v8283 = vrot.slane %v8278, %v8282
    %v8284 = vlaneseq
    %v8285 = vshrl.u32 %v8284, 7
    %v8286 = vsub.s32 1, %v8285
    %v8287 = vrot.slane %v8278, %v8286
    %v8288 = vlaneseq
    %v8289 = vshrl.u32 %v8288, 7
    %v8290 = vsub.s32 2, %v8289
    %v8291 = vrot.slane %v8278, %v8290
    %v8327 = vunpack.c.l.b16 %v8246
    %v8328 = vunpack.c.h.b16 %v8246
    %v8329 = vunpack.c.l.b16 %v8247
    %v8330 = vunpack.c.l.b16 %v8248
    %v8331 = vunpack.c.h.b16 %v8248
    %v8332 = vunpack.c.l.b16 %v8249
    %v8333 = vunpack.c.l.b16 %v8250
    %v8334 = vunpack.c.h.b16 %v8250
    %v8335 = vunpack.c.l.b16 %v8251
    %v8336 = vunpack.c.l.b16 %v8252
    %v8337 = vunpack.c.h.b16 %v8252
    %v8338 = vunpack.c.l.b16 %v8253
    %v8339 = vunpack.c.l.b16 %v8254
    %v8340 = vunpack.c.h.b16 %v8254
    %v8341 = vunpack.c.l.b16 %v8255
    %v8342 = vunpack.c.l.b16 %v8256
    %v8343 = vunpack.c.h.b16 %v8256
    %v8344 = vunpack.c.l.b16 %v8257
    %v8345 = vunpack.c.l.b16 %v8258
    %v8346 = vunpack.c.h.b16 %v8258
    %v8347 = vunpack.c.l.b16 %v8259
    %v8348 = vunpack.c.l.b16 %v8260
    %v8349 = vunpack.c.h.b16 %v8260
    %v8350 = vunpack.c.l.b16 %v8261
    %v8351 = vunpack.c.l.b16 %v8262
    %v8352 = vunpack.c.h.b16 %v8262
    %v8353 = vunpack.c.l.b16 %v8263
    %v8354 = vunpack.c.l.b16 %v8264
    %v8355 = vunpack.c.h.b16 %v8264
    %v8356 = vunpack.c.l.b16 %v8265
    %v8357 = vunpack.c.l.b16 %v8266
    %v8358 = vunpack.c.h.b16 %v8266
    %v8359 = vunpack.c.l.b16 %v8267
    %v8360 = vunpack.c.l.b16 %v8268
    %v8361 = vunpack.c.h.b16 %v8268
    %v8362 = vunpack.c.l.b16 %v8269
    %v8363 = vunpack.c.l.b16 %v8270
    %v8364 = vunpack.c.h.b16 %v8270
    %v8365 = vunpack.c.l.b16 %v8271
    %v8366 = vunpack.c.l.b16 %v8272
    %v8367 = vunpack.c.h.b16 %v8272
    %v8368 = vunpack.c.l.b16 %v8273
    %v8369 = vunpack.c.l.b16 %v8274
    %v8370 = vunpack.c.h.b16 %v8274
    %v8371 = vunpack.c.l.b16 %v8275
    %v8372 = vunpack.c.l.b16 %v8276
    %v8373 = vunpack.c.h.b16 %v8276
    %v8374 = vunpack.c.l.b16 %v8277
    %v8375 = vpack.c.b16 %v8330, %v8327
    %v8376 = vpack.c.b16 %v8331, %v8328
    %v8377 = vpack.c.b16 %v8332, %v8329
    %v8378 = vpack.c.b16 %v8336, %v8333
    %v8379 = vpack.c.b16 %v8337, %v8334
    %v8380 = vpack.c.b16 %v8338, %v8335
    %v8381 = vpack.c.b16 %v8342, %v8339
    %v8382 = vpack.c.b16 %v8343, %v8340
    %v8383 = vpack.c.b16 %v8344, %v8341
    %v8384 = vpack.c.b16 %v8348, %v8345
    %v8385 = vpack.c.b16 %v8349, %v8346
    %v8386 = vpack.c.b16 %v8350, %v8347
    %v8387 = vpack.c.b16 %v8354, %v8351
    %v8388 = vpack.c.b16 %v8355, %v8352
    %v8389 = vpack.c.b16 %v8356, %v8353
    %v8390 = vpack.c.b16 %v8360, %v8357
    %v8391 = vpack.c.b16 %v8361, %v8358
    %v8392 = vpack.c.b16 %v8362, %v8359
    %v8393 = vpack.c.b16 %v8366, %v8363
    %v8394 = vpack.c.b16 %v8367, %v8364
    %v8395 = vpack.c.b16 %v8368, %v8365
    %v8396 = vpack.c.b16 %v8372, %v8369
    %v8397 = vpack.c.b16 %v8373, %v8370
    %v8398 = vpack.c.b16 %v8374, %v8371
    %8423 = vmatprep.subr.bf16.mxu0 %v8376
    %8424 = vmatpush1.bf16.msra.mxu0 %v8375
    %8425 = vmatprep.subr.bf16.mxu0 %v8379
    %8426 = vmatpush1.bf16.msra.mxu0 %v8378
    %8427 = vmatprep.subr.bf16.mxu0 %v8382
    %8428 = vmatpush1.bf16.msra.mxu0 %v8381
    %8429 = vmatprep.subr.bf16.mxu0 %v8385
    %8430 = vmatpush1.bf16.msra.mxu0 %v8384
    %8431 = vmatprep.subr.bf16.mxu0 %v8388
    %8432 = vmatpush1.bf16.msra.mxu0 %v8387
    %8433 = vmatprep.subr.bf16.mxu0 %v8391
    %8434 = vmatpush1.bf16.msra.mxu0 %v8390
    %8435 = vmatprep.subr.bf16.mxu0 %v8394
    %8436 = vmatpush1.bf16.msra.mxu0 %v8393
    %8437 = vmatprep.subr.bf16.mxu0 %v8397
    %8438 = vmatpush1.bf16.msra.mxu0 %v8396
    %8439 = vmatprep.subr.bf16.mxu0 0
    %8440 = vmatpush1.bf16.msra.mxu0 0
    %8441 = vmatprep.subr.bf16.mxu0 0
    %8442 = vmatpush1.bf16.msra.mxu0 0
    %8443 = vmatprep.subr.bf16.mxu0 0
    %8444 = vmatpush1.bf16.msra.mxu0 0
    %8445 = vmatprep.subr.bf16.mxu0 0
    %8446 = vmatpush1.bf16.msra.mxu0 0
    %8447 = vmatprep.subr.bf16.mxu0 0
    %8448 = vmatpush1.bf16.msra.mxu0 0
    %8449 = vmatprep.subr.bf16.mxu0 0
    %8450 = vmatpush1.bf16.msra.mxu0 0
    %8451 = vmatprep.subr.bf16.mxu0 0
    %8452 = vmatpush1.bf16.msra.mxu0 0
    %8453 = vmatprep.subr.bf16.mxu0 0
    %8454 = vmatpush1.bf16.msra.mxu0 0
    %8455 = vmatprep.mubr.bf16.mxu0 0
    %8456 = vmatmul.mubr.bf16.gmra.mrb[0].mxu0 %v8242
    %v8457 = vpop.f32.mrb[0].mxu0
    %v8458 = vadd.f32 %v8283, %v8457
    %v8459 = vpop.f32.mrb[0].mxu0
    %v8460 = vadd.f32 %v8287, %v8459
    %v8461 = vpop.f32.mrb[0].mxu0
    %v8462 = vadd.f32 %v8283, %v8461
    %v8463 = vpop.f32.mrb[0].mxu0
    %v8464 = vadd.f32 %v8287, %v8463
    %8465 = vmatprep.mubr.bf16.mxu0 0
    %8466 = vmatmul.mubr.bf16.gmra.mrb[0].mxu0 %v8243
    %v8467 = vpop.f32.mrb[0].mxu0
    %v8468 = vadd.f32 %v8283, %v8467
    %v8469 = vpop.f32.mrb[0].mxu0
    %v8470 = vadd.f32 %v8287, %v8469
    %v8471 = vpop.f32.mrb[0].mxu0
    %v8472 = vadd.f32 %v8283, %v8471
    %v8473 = vpop.f32.mrb[0].mxu0
    %v8474 = vadd.f32 %v8287, %v8473
    %8475 = vmatprep.mubr.bf16.mxu0 0
    %8476 = vmatmul.mubr.bf16.gmra.mrb[0].mxu0 %v8244
    %v8477 = vpop.f32.mrb[0].mxu0
    %v8478 = vadd.f32 %v8283, %v8477
    %v8479 = vpop.f32.mrb[0].mxu0
    %v8480 = vadd.f32 %v8287, %v8479
    %v8481 = vpop.f32.mrb[0].mxu0
    %v8482 = vadd.f32 %v8283, %v8481
    %v8483 = vpop.f32.mrb[0].mxu0
    %v8484 = vadd.f32 %v8287, %v8483
    %8485 = vmatprep.mubr.bf16.mxu0 0
    %8486 = vmatmul.mubr.bf16.gmra.mrb[0].mxu0 %v8245
    %v8487 = vpop.f32.mrb[0].mxu0
    %v8488 = vadd.f32 %v8283, %v8487
    %v8489 = vpop.f32.mrb[0].mxu0
    %v8490 = vadd.f32 %v8287, %v8489
    %v8491 = vpop.f32.mrb[0].mxu0
    %v8492 = vadd.f32 %v8283, %v8491
    %v8493 = vpop.f32.mrb[0].mxu0
    %v8494 = vadd.f32 %v8287, %v8493
    %8495 = vdwg.mxu0
    %8496 = vmatprep.subr.bf16.mxu0 0
    %8497 = vmatpush1.bf16.msra.mxu0 %v8377
    %8498 = vmatprep.subr.bf16.mxu0 0
    %8499 = vmatpush1.bf16.msra.mxu0 %v8380
    %8500 = vmatprep.subr.bf16.mxu0 0
    %8501 = vmatpush1.bf16.msra.mxu0 %v8383
    %8502 = vmatprep.subr.bf16.mxu0 0
    %8503 = vmatpush1.bf16.msra.mxu0 %v8386
    %8504 = vmatprep.subr.bf16.mxu0 0
    %8505 = vmatpush1.bf16.msra.mxu0 %v8389
    %8506 = vmatprep.subr.bf16.mxu0 0
    %8507 = vmatpush1.bf16.msra.mxu0 %v8392
    %8508 = vmatprep.subr.bf16.mxu0 0
    %8509 = vmatpush1.bf16.msra.mxu0 %v8395
    %8510 = vmatprep.subr.bf16.mxu0 0
    %8511 = vmatpush1.bf16.msra.mxu0 %v8398
    %8512 = vmatprep.subr.bf16.mxu0 0
    %8513 = vmatpush1.bf16.msra.mxu0 0
    %8514 = vmatprep.subr.bf16.mxu0 0
    %8515 = vmatpush1.bf16.msra.mxu0 0
    %8516 = vmatprep.subr.bf16.mxu0 0
    %8517 = vmatpush1.bf16.msra.mxu0 0
    %8518 = vmatprep.subr.bf16.mxu0 0
    %8519 = vmatpush1.bf16.msra.mxu0 0
    %8520 = vmatprep.subr.bf16.mxu0 0
    %8521 = vmatpush1.bf16.msra.mxu0 0
    %8522 = vmatprep.subr.bf16.mxu0 0
    %8523 = vmatpush1.bf16.msra.mxu0 0
    %8524 = vmatprep.subr.bf16.mxu0 0
    %8525 = vmatpush1.bf16.msra.mxu0 0
    %8526 = vmatprep.subr.bf16.mxu0 0
    %8527 = vmatpush1.bf16.msra.mxu0 0
    %8528 = vmatprep.mubr.bf16.mxu0 0
    %8529 = vmatmul.mubr.bf16.gmra.mrb[0].mxu0 %v8242
    %v8530 = vpop.f32.mrb[0].mxu0
    %v8531 = vadd.f32 %v8291, %v8530
    %v8532 = vpop.f32.mrb[0].mxu0
    %v8533 = vpop.f32.mrb[0].mxu0
    %v8534 = vadd.f32 %v8291, %v8533
    %v8535 = vpop.f32.mrb[0].mxu0
    %8536 = vmatprep.mubr.bf16.mxu0 0
    %8537 = vmatmul.mubr.bf16.gmra.mrb[0].mxu0 %v8243
    %v8538 = vpop.f32.mrb[0].mxu0
    %v8539 = vadd.f32 %v8291, %v8538
    %v8540 = vpop.f32.mrb[0].mxu0
    %v8541 = vpop.f32.mrb[0].mxu0
    %v8542 = vadd.f32 %v8291, %v8541
    %v8543 = vpop.f32.mrb[0].mxu0
    %8544 = vmatprep.mubr.bf16.mxu0 0
    %8545 = vmatmul.mubr.bf16.gmra.mrb[0].mxu0 %v8244
    %v8546 = vpop.f32.mrb[0].mxu0
    %v8547 = vadd.f32 %v8291, %v8546
    %v8548 = vpop.f32.mrb[0].mxu0
    %v8549 = vpop.f32.mrb[0].mxu0
    %v8550 = vadd.f32 %v8291, %v8549
    %v8551 = vpop.f32.mrb[0].mxu0
    %8552 = vmatprep.mubr.bf16.mxu0 0
    %8553 = vmatmul.mubr.bf16.gmra.mrb[0].mxu0 %v8245
    %v8554 = vpop.f32.mrb[0].mxu0
    %v8555 = vadd.f32 %v8291, %v8554
    %v8556 = vpop.f32.mrb[0].mxu0
    %v8557 = vpop.f32.mrb[0].mxu0
    %v8558 = vadd.f32 %v8291, %v8557
    %v8559 = vpop.f32.mrb[0].mxu0
    %8560 = vdwg.mxu0
    %v8561 = vld [vmem:[#allocation19] sm:$0x7]
    %v8563 = vlaneseq
    %v8564 = vshrl.u32 %v8563, 7
    %v8565 = vsub.s32 0, %v8564
    %v8566 = vrot.slane %v8561, %v8565
    %v8567 = vlaneseq
    %v8568 = vshrl.u32 %v8567, 7
    %v8569 = vsub.s32 1, %v8568
    %v8570 = vrot.slane %v8561, %v8569
    %v8571 = vlaneseq
    %v8572 = vshrl.u32 %v8571, 7
    %v8573 = vsub.s32 2, %v8572
    %v8574 = vrot.slane %v8561, %v8573
    %v8610 = vunpack.c.l.b16 %v8210
    %v8611 = vunpack.c.h.b16 %v8210
    %v8612 = vunpack.c.l.b16 %v8211
    %v8613 = vunpack.c.l.b16 %v8212
    %v8614 = vunpack.c.h.b16 %v8212
    %v8615 = vunpack.c.l.b16 %v8213
    %v8616 = vunpack.c.l.b16 %v8214
    %v8617 = vunpack.c.h.b16 %v8214
    %v8618 = vunpack.c.l.b16 %v8215
    %v8619 = vunpack.c.l.b16 %v8216
    %v8620 = vunpack.c.h.b16 %v8216
    %v8621 = vunpack.c.l.b16 %v8217
    %v8622 = vunpack.c.l.b16 %v8218
    %v8623 = vunpack.c.h.b16 %v8218
    %v8624 = vunpack.c.l.b16 %v8219
    %v8625 = vunpack.c.l.b16 %v8220
    %v8626 = vunpack.c.h.b16 %v8220
    %v8627 = vunpack.c.l.b16 %v8221
    %v8628 = vunpack.c.l.b16 %v8222
    %v8629 = vunpack.c.h.b16 %v8222
    %v8630 = vunpack.c.l.b16 %v8223
    %v8631 = vunpack.c.l.b16 %v8224
    %v8632 = vunpack.c.h.b16 %v8224
    %v8633 = vunpack.c.l.b16 %v8225
    %v8634 = vunpack.c.l.b16 %v8226
    %v8635 = vunpack.c.h.b16 %v8226
    %v8636 = vunpack.c.l.b16 %v8227
    %v8637 = vunpack.c.l.b16 %v8228
    %v8638 = vunpack.c.h.b16 %v8228
    %v8639 = vunpack.c.l.b16 %v8229
    %v8640 = vunpack.c.l.b16 %v8230
    %v8641 = vunpack.c.h.b16 %v8230
    %v8642 = vunpack.c.l.b16 %v8231
    %v8643 = vunpack.c.l.b16 %v8232
    %v8644 = vunpack.c.h.b16 %v8232
    %v8645 = vunpack.c.l.b16 %v8233
    %v8646 = vunpack.c.l.b16 %v8234
    %v8647 = vunpack.c.h.b16 %v8234
    %v8648 = vunpack.c.l.b16 %v8235
    %v8649 = vunpack.c.l.b16 %v8236
    %v8650 = vunpack.c.h.b16 %v8236
    %v8651 = vunpack.c.l.b16 %v8237
    %v8652 = vunpack.c.l.b16 %v8238
    %v8653 = vunpack.c.h.b16 %v8238
    %v8654 = vunpack.c.l.b16 %v8239
    %v8655 = vunpack.c.l.b16 %v8240
    %v8656 = vunpack.c.h.b16 %v8240
    %v8657 = vunpack.c.l.b16 %v8241
    %v8658 = vpack.c.b16 %v8613, %v8610
    %v8659 = vpack.c.b16 %v8614, %v8611
    %v8660 = vpack.c.b16 %v8615, %v8612
    %v8661 = vpack.c.b16 %v8619, %v8616
    %v8662 = vpack.c.b16 %v8620, %v8617
    %v8663 = vpack.c.b16 %v8621, %v8618
    %v8664 = vpack.c.b16 %v8625, %v8622
    %v8665 = vpack.c.b16 %v8626, %v8623
    %v8666 = vpack.c.b16 %v8627, %v8624
    %v8667 = vpack.c.b16 %v8631, %v8628
    %v8668 = vpack.c.b16 %v8632, %v8629
    %v8669 = vpack.c.b16 %v8633, %v8630
    %v8670 = vpack.c.b16 %v8637, %v8634
    %v8671 = vpack.c.b16 %v8638, %v8635
    %v8672 = vpack.c.b16 %v8639, %v8636
    %v8673 = vpack.c.b16 %v8643, %v8640
    %v8674 = vpack.c.b16 %v8644, %v8641
    %v8675 = vpack.c.b16 %v8645, %v8642
    %v8676 = vpack.c.b16 %v8649, %v8646
    %v8677 = vpack.c.b16 %v8650, %v8647
    %v8678 = vpack.c.b16 %v8651, %v8648
    %v8679 = vpack.c.b16 %v8655, %v8652
    %v8680 = vpack.c.b16 %v8656, %v8653
    %v8681 = vpack.c.b16 %v8657, %v8654
    %8706 = vmatprep.subr.bf16.mxu0 %v8659
    %8707 = vmatpush1.bf16.msra.mxu0 %v8658
    %8708 = vmatprep.subr.bf16.mxu0 %v8662
    %8709 = vmatpush1.bf16.msra.mxu0 %v8661
    %8710 = vmatprep.subr.bf16.mxu0 %v8665
    %8711 = vmatpush1.bf16.msra.mxu0 %v8664
    %8712 = vmatprep.subr.bf16.mxu0 %v8668
    %8713 = vmatpush1.bf16.msra.mxu0 %v8667
    %8714 = vmatprep.subr.bf16.mxu0 %v8671
    %8715 = vmatpush1.bf16.msra.mxu0 %v8670
    %8716 = vmatprep.subr.bf16.mxu0 %v8674
    %8717 = vmatpush1.bf16.msra.mxu0 %v8673
    %8718 = vmatprep.subr.bf16.mxu0 %v8677
    %8719 = vmatpush1.bf16.msra.mxu0 %v8676
    %8720 = vmatprep.subr.bf16.mxu0 %v8680
    %8721 = vmatpush1.bf16.msra.mxu0 %v8679
    %8722 = vmatprep.subr.bf16.mxu0 0
    %8723 = vmatpush1.bf16.msra.mxu0 0
    %8724 = vmatprep.subr.bf16.mxu0 0
    %8725 = vmatpush1.bf16.msra.mxu0 0
    %8726 = vmatprep.subr.bf16.mxu0 0
    %8727 = vmatpush1.bf16.msra.mxu0 0
    %8728 = vmatprep.subr.bf16.mxu0 0
    %8729 = vmatpush1.bf16.msra.mxu0 0
    %8730 = vmatprep.subr.bf16.mxu0 0
    %8731 = vmatpush1.bf16.msra.mxu0 0
    %8732 = vmatprep.subr.bf16.mxu0 0
    %8733 = vmatpush1.bf16.msra.mxu0 0
    %8734 = vmatprep.subr.bf16.mxu0 0
    %8735 = vmatpush1.bf16.msra.mxu0 0
    %8736 = vmatprep.subr.bf16.mxu0 0
    %8737 = vmatpush1.bf16.msra.mxu0 0
    %8738 = vmatprep.mubr.bf16.mxu0 0
    %8739 = vmatmul.mubr.bf16.gmra.mrb[0].mxu0 0
    %v8740 = vpop.f32.mrb[0].mxu0
    %v8741 = vadd.f32 %v8566, %v8740
    %v8742 = vpop.f32.mrb[0].mxu0
    %v8743 = vadd.f32 %v8570, %v8742
    %v8744 = vpop.f32.mrb[0].mxu0
    %v8745 = vpop.f32.mrb[0].mxu0
    %8746 = vdwg.mxu0
    %8747 = vmatprep.subr.bf16.mxu0 0
    %8748 = vmatpush1.bf16.msra.mxu0 %v8660
    %8749 = vmatprep.subr.bf16.mxu0 0
    %8750 = vmatpush1.bf16.msra.mxu0 %v8663
    %8751 = vmatprep.subr.bf16.mxu0 0
    %8752 = vmatpush1.bf16.msra.mxu0 %v8666
    %8753 = vmatprep.subr.bf16.mxu0 0
    %8754 = vmatpush1.bf16.msra.mxu0 %v8669
    %8755 = vmatprep.subr.bf16.mxu0 0
    %8756 = vmatpush1.bf16.msra.mxu0 %v8672
    %8757 = vmatprep.subr.bf16.mxu0 0
    %8758 = vmatpush1.bf16.msra.mxu0 %v8675
    %8759 = vmatprep.subr.bf16.mxu0 0
    %8760 = vmatpush1.bf16.msra.mxu0 %v8678
    %8761 = vmatprep.subr.bf16.mxu0 0
    %8762 = vmatpush1.bf16.msra.mxu0 %v8681
    %8763 = vmatprep.subr.bf16.mxu0 0
    %8764 = vmatpush1.bf16.msra.mxu0 0
    %8765 = vmatprep.subr.bf16.mxu0 0
    %8766 = vmatpush1.bf16.msra.mxu0 0
    %8767 = vmatprep.subr.bf16.mxu0 0
    %8768 = vmatpush1.bf16.msra.mxu0 0
    %8769 = vmatprep.subr.bf16.mxu0 0
    %8770 = vmatpush1.bf16.msra.mxu0 0
    %8771 = vmatprep.subr.bf16.mxu0 0
    %8772 = vmatpush1.bf16.msra.mxu0 0
    %8773 = vmatprep.subr.bf16.mxu0 0
    %8774 = vmatpush1.bf16.msra.mxu0 0
    %8775 = vmatprep.subr.bf16.mxu0 0
    %8776 = vmatpush1.bf16.msra.mxu0 0
    %8777 = vmatprep.subr.bf16.mxu0 0
    %8778 = vmatpush1.bf16.msra.mxu0 0
    %8779 = vmatprep.mubr.bf16.mxu0 0
    %8780 = vmatmul.mubr.bf16.gmra.mrb[0].mxu0 0
    %v8781 = vpop.f32.mrb[0].mxu0
    %v8782 = vadd.f32 %v8574, %v8781
    %v8783 = vpop.f32.mrb[0].mxu0
    %v8784 = vpop.f32.mrb[0].mxu0
    %v8785 = vpop.f32.mrb[0].mxu0
    %8786 = vdwg.mxu0
    %v8787 = vadd.f32 %v8458, %v8741
    %v8788 = vxor.u32 %v8787, 2147483648
    %v8789 = vmul.f32 %v8788, 1.442695
    %v8790 = vpow.pop %v8789
    %v8791 = vadd.f32 %v8790, 1.0
    %v8792 = vrcp.pop %v8791
    %v8793 = vmul.f32 1.0, %v8792
    %v8794 = vadd.f32 %v8460, %v8743
    %v8795 = vxor.u32 %v8794, 2147483648
    %v8796 = vmul.f32 %v8795, 1.442695
    %v8797 = vpow.pop %v8796
    %v8798 = vadd.f32 %v8797, 1.0
    %v8799 = vrcp.pop %v8798
    %v8800 = vmul.f32 1.0, %v8799
    %v8801 = vmul.f32 %v8793, %v8782
    %v8802 = vadd.f32 %v8531, %v8801
    %v8803 = vtanh.pop %v8802
    %v8804 = vsub.f32 1.0, %v8800
    %v8805 = vmul.f32 %v8804, %v8803
    %v8806 = vmul.f32 %v8800, 0.0
    %v8807 = vadd.f32 %v8805, %v8806
    %v8808 = vpack.c.bf16 %v8807, %v8807
    %8809 = vmatprep.subr.bf16.mxu0 %v8659
    %8810 = vmatpush1.bf16.msra.mxu0 %v8658
    %8811 = vmatprep.subr.bf16.mxu0 %v8662
    %8812 = vmatpush1.bf16.msra.mxu0 %v8661
    %8813 = vmatprep.subr.bf16.mxu0 %v8665
    %8814 = vmatpush1.bf16.msra.mxu0 %v8664
    %8815 = vmatprep.subr.bf16.mxu0 %v8668
    %8816 = vmatpush1.bf16.msra.mxu0 %v8667
    %8817 = vmatprep.subr.bf16.mxu0 %v8671
    %8818 = vmatpush1.bf16.msra.mxu0 %v8670
    %8819 = vmatprep.subr.bf16.mxu0 %v8674
    %8820 = vmatpush1.bf16.msra.mxu0 %v8673
    %8821 = vmatprep.subr.bf16.mxu0 %v8677
    %8822 = vmatpush1.bf16.msra.mxu0 %v8676
    %8823 = vmatprep.subr.bf16.mxu0 %v8680
    %8824 = vmatpush1.bf16.msra.mxu0 %v8679
    %8825 = vmatprep.subr.bf16.mxu0 0
    %8826 = vmatpush1.bf16.msra.mxu0 0
    %8827 = vmatprep.subr.bf16.mxu0 0
    %8828 = vmatpush1.bf16.msra.mxu0 0
    %8829 = vmatprep.subr.bf16.mxu0 0
    %8830 = vmatpush1.bf16.msra.mxu0 0
    %8831 = vmatprep.subr.bf16.mxu0 0
    %8832 = vmatpush1.bf16.msra.mxu0 0
    %8833 = vmatprep.subr.bf16.mxu0 0
    %8834 = vmatpush1.bf16.msra.mxu0 0
    %8835 = vmatprep.subr.bf16.mxu0 0
    %8836 = vmatpush1.bf16.msra.mxu0 0
    %8837 = vmatprep.subr.bf16.mxu0 0
    %8838 = vmatpush1.bf16.msra.mxu0 0
    %8839 = vmatprep.subr.bf16.mxu0 0
    %8840 = vmatpush1.bf16.msra.mxu0 0
    %8841 = vmatprep.mubr.bf16.mxu0 0
    %8842 = vmatmul.mubr.bf16.gmra.mrb[0].mxu0 %v8808
    %v8843 = vpop.f32.mrb[0].mxu0
    %v8844 = vadd.f32 %v8566, %v8843
    %v8845 = vpop.f32.mrb[0].mxu0
    %v8846 = vadd.f32 %v8570, %v8845
    %v8847 = vpop.f32.mrb[0].mxu0
    %v8848 = vpop.f32.mrb[0].mxu0
    %8849 = vdwg.mxu0
    %8850 = vmatprep.subr.bf16.mxu0 0
    %8851 = vmatpush1.bf16.msra.mxu0 %v8660
    %8852 = vmatprep.subr.bf16.mxu0 0
    %8853 = vmatpush1.bf16.msra.mxu0 %v8663
    %8854 = vmatprep.subr.bf16.mxu0 0
    %8855 = vmatpush1.bf16.msra.mxu0 %v8666
    %8856 = vmatprep.subr.bf16.mxu0 0
    %8857 = vmatpush1.bf16.msra.mxu0 %v8669
    %8858 = vmatprep.subr.bf16.mxu0 0
    %8859 = vmatpush1.bf16.msra.mxu0 %v8672
    %8860 = vmatprep.subr.bf16.mxu0 0
    %8861 = vmatpush1.bf16.msra.mxu0 %v8675
    %8862 = vmatprep.subr.bf16.mxu0 0
    %8863 = vmatpush1.bf16.msra.mxu0 %v8678
    %8864 = vmatprep.subr.bf16.mxu0 0
    %8865 = vmatpush1.bf16.msra.mxu0 %v8681
    %8866 = vmatprep.subr.bf16.mxu0 0
    %8867 = vmatpush1.bf16.msra.mxu0 0
    %8868 = vmatprep.subr.bf16.mxu0 0
    %8869 = vmatpush1.bf16.msra.mxu0 0
    %8870 = vmatprep.subr.bf16.mxu0 0
    %8871 = vmatpush1.bf16.msra.mxu0 0
    %8872 = vmatprep.subr.bf16.mxu0 0
    %8873 = vmatpush1.bf16.msra.mxu0 0
    %8874 = vmatprep.subr.bf16.mxu0 0
    %8875 = vmatpush1.bf16.msra.mxu0 0
    %8876 = vmatprep.subr.bf16.mxu0 0
    %8877 = vmatpush1.bf16.msra.mxu0 0
    %8878 = vmatprep.subr.bf16.mxu0 0
    %8879 = vmatpush1.bf16.msra.mxu0 0
    %8880 = vmatprep.subr.bf16.mxu0 0
    %8881 = vmatpush1.bf16.msra.mxu0 0
    %8882 = vmatprep.mubr.bf16.mxu0 0
    %8883 = vmatmul.mubr.bf16.gmra.mrb[0].mxu0 %v8808
    %v8884 = vpop.f32.mrb[0].mxu0
    %v8885 = vadd.f32 %v8574, %v8884
    %v8886 = vpop.f32.mrb[0].mxu0
    %v8887 = vpop.f32.mrb[0].mxu0
    %v8888 = vpop.f32.mrb[0].mxu0
    %8889 = vdwg.mxu0
    %v8890 = vadd.f32 %v8462, %v8844
    %v8891 = vxor.u32 %v8890, 2147483648
    %v8892 = vmul.f32 %v8891, 1.442695
    %v8893 = vpow.pop %v8892
    %v8894 = vadd.f32 %v8893, 1.0
    %v8895 = vrcp.pop %v8894
    %v8896 = vmul.f32 1.0, %v8895
    %v8897 = vadd.f32 %v8464, %v8846
    %v8898 = vxor.u32 %v8897, 2147483648
    %v8899 = vmul.f32 %v8898, 1.442695
    %v8900 = vpow.pop %v8899
    %v8901 = vadd.f32 %v8900, 1.0
    %v8902 = vrcp.pop %v8901
    %v8903 = vmul.f32 1.0, %v8902
    %v8904 = vmul.f32 %v8896, %v8885
    %v8905 = vadd.f32 %v8534, %v8904
    %v8906 = vtanh.pop %v8905
    %v8907 = vsub.f32 1.0, %v8903
    %v8908 = vmul.f32 %v8907, %v8906
    %v8909 = vmul.f32 %v8903, %v8807
    %v8910 = vadd.f32 %v8908, %v8909
    %v8911 = vpack.c.bf16 %v8910, %v8910
    %8912 = vmatprep.subr.bf16.mxu0 %v8659
    %8913 = vmatpush1.bf16.msra.mxu0 %v8658
    %8914 = vmatprep.subr.bf16.mxu0 %v8662
    %8915 = vmatpush1.bf16.msra.mxu0 %v8661
    %8916 = vmatprep.subr.bf16.mxu0 %v8665
    %8917 = vmatpush1.bf16.msra.mxu0 %v8664
    %8918 = vmatprep.subr.bf16.mxu0 %v8668
    %8919 = vmatpush1.bf16.msra.mxu0 %v8667
    %8920 = vmatprep.subr.bf16.mxu0 %v8671
    %8921 = vmatpush1.bf16.msra.mxu0 %v8670
    %8922 = vmatprep.subr.bf16.mxu0 %v8674
    %8923 = vmatpush1.bf16.msra.mxu0 %v8673
    %8924 = vmatprep.subr.bf16.mxu0 %v8677
    %8925 = vmatpush1.bf16.msra.mxu0 %v8676
    %8926 = vmatprep.subr.bf16.mxu0 %v8680
    %8927 = vmatpush1.bf16.msra.mxu0 %v8679
    %8928 = vmatprep.subr.bf16.mxu0 0
    %8929 = vmatpush1.bf16.msra.mxu0 0
    %8930 = vmatprep.subr.bf16.mxu0 0
    %8931 = vmatpush1.bf16.msra.mxu0 0
    %8932 = vmatprep.subr.bf16.mxu0 0
    %8933 = vmatpush1.bf16.msra.mxu0 0
    %8934 = vmatprep.subr.bf16.mxu0 0
    %8935 = vmatpush1.bf16.msra.mxu0 0
    %8936 = vmatprep.subr.bf16.mxu0 0
    %8937 = vmatpush1.bf16.msra.mxu0 0
    %8938 = vmatprep.subr.bf16.mxu0 0
    %8939 = vmatpush1.bf16.msra.mxu0 0
    %8940 = vmatprep.subr.bf16.mxu0 0
    %8941 = vmatpush1.bf16.msra.mxu0 0
    %8942 = vmatprep.subr.bf16.mxu0 0
    %8943 = vmatpush1.bf16.msra.mxu0 0
    %8944 = vmatprep.mubr.bf16.mxu0 0
    %8945 = vmatmul.mubr.bf16.gmra.mrb[0].mxu0 %v8911
    %v8946 = vpop.f32.mrb[0].mxu0
    %v8947 = vadd.f32 %v8566, %v8946
    %v8948 = vpop.f32.mrb[0].mxu0
    %v8949 = vadd.f32 %v8570, %v8948
    %v8950 = vpop.f32.mrb[0].mxu0
    %v8951 = vpop.f32.mrb[0].mxu0
    %8952 = vdwg.mxu0
    %8953 = vmatprep.subr.bf16.mxu0 0
    %8954 = vmatpush1.bf16.msra.mxu0 %v8660
    %8955 = vmatprep.subr.bf16.mxu0 0
    %8956 = vmatpush1.bf16.msra.mxu0 %v8663
    %8957 = vmatprep.subr.bf16.mxu0 0
    %8958 = vmatpush1.bf16.msra.mxu0 %v8666
    %8959 = vmatprep.subr.bf16.mxu0 0
    %8960 = vmatpush1.bf16.msra.mxu0 %v8669
    %8961 = vmatprep.subr.bf16.mxu0 0
    %8962 = vmatpush1.bf16.msra.mxu0 %v8672
    %8963 = vmatprep.subr.bf16.mxu0 0
    %8964 = vmatpush1.bf16.msra.mxu0 %v8675
    %8965 = vmatprep.subr.bf16.mxu0 0
    %8966 = vmatpush1.bf16.msra.mxu0 %v8678
    %8967 = vmatprep.subr.bf16.mxu0 0
    %8968 = vmatpush1.bf16.msra.mxu0 %v8681
    %8969 = vmatprep.subr.bf16.mxu0 0
    %8970 = vmatpush1.bf16.msra.mxu0 0
    %8971 = vmatprep.subr.bf16.mxu0 0
    %8972 = vmatpush1.bf16.msra.mxu0 0
    %8973 = vmatprep.subr.bf16.mxu0 0
    %8974 = vmatpush1.bf16.msra.mxu0 0
    %8975 = vmatprep.subr.bf16.mxu0 0
    %8976 = vmatpush1.bf16.msra.mxu0 0
    %8977 = vmatprep.subr.bf16.mxu0 0
    %8978 = vmatpush1.bf16.msra.mxu0 0
    %8979 = vmatprep.subr.bf16.mxu0 0
    %8980 = vmatpush1.bf16.msra.mxu0 0
    %8981 = vmatprep.subr.bf16.mxu0 0
    %8982 = vmatpush1.bf16.msra.mxu0 0
    %8983 = vmatprep.subr.bf16.mxu0 0
    %8984 = vmatpush1.bf16.msra.mxu0 0
    %8985 = vmatprep.mubr.bf16.mxu0 0
    %8986 = vmatmul.mubr.bf16.gmra.mrb[0].mxu0 %v8911
    %v8987 = vpop.f32.mrb[0].mxu0
    %v8988 = vadd.f32 %v8574, %v8987
    %v8989 = vpop.f32.mrb[0].mxu0
    %v8990 = vpop.f32.mrb[0].mxu0
    %v8991 = vpop.f32.mrb[0].mxu0
    %8992 = vdwg.mxu0
    %v8993 = vadd.f32 %v8468, %v8947
    %v8994 = vxor.u32 %v8993, 2147483648
    %v8995 = vmul.f32 %v8994, 1.442695
    %v8996 = vpow.pop %v8995
    %v8997 = vadd.f32 %v8996, 1.0
    %v8998 = vrcp.pop %v8997
    %v8999 = vmul.f32 1.0, %v8998
    %v9000 = vadd.f32 %v8470, %v8949
    %v9001 = vxor.u32 %v9000, 2147483648
    %v9002 = vmul.f32 %v9001, 1.442695
    %v9003 = vpow.pop %v9002
    %v9004 = vadd.f32 %v9003, 1.0
    %v9005 = vrcp.pop %v9004
    %v9006 = vmul.f32 1.0, %v9005
    %v9007 = vmul.f32 %v8999, %v8988
    %v9008 = vadd.f32 %v8539, %v9007
    %v9009 = vtanh.pop %v9008
    %v9010 = vsub.f32 1.0, %v9006
    %v9011 = vmul.f32 %v9010, %v9009
    %v9012 = vmul.f32 %v9006, %v8910
    %v9013 = vadd.f32 %v9011, %v9012
    %v9014 = vpack.c.bf16 %v9013, %v9013
    %9015 = vmatprep.subr.bf16.mxu0 %v8659
    %9016 = vmatpush1.bf16.msra.mxu0 %v8658
    %9017 = vmatprep.subr.bf16.mxu0 %v8662
    %9018 = vmatpush1.bf16.msra.mxu0 %v8661
    %9019 = vmatprep.subr.bf16.mxu0 %v8665
    %9020 = vmatpush1.bf16.msra.mxu0 %v8664
    %9021 = vmatprep.subr.bf16.mxu0 %v8668
    %9022 = vmatpush1.bf16.msra.mxu0 %v8667
    %9023 = vmatprep.subr.bf16.mxu0 %v8671
    %9024 = vmatpush1.bf16.msra.mxu0 %v8670
    %9025 = vmatprep.subr.bf16.mxu0 %v8674
    %9026 = vmatpush1.bf16.msra.mxu0 %v8673
    %9027 = vmatprep.subr.bf16.mxu0 %v8677
    %9028 = vmatpush1.bf16.msra.mxu0 %v8676
    %9029 = vmatprep.subr.bf16.mxu0 %v8680
    %9030 = vmatpush1.bf16.msra.mxu0 %v8679
    %9031 = vmatprep.subr.bf16.mxu0 0
    %9032 = vmatpush1.bf16.msra.mxu0 0
    %9033 = vmatprep.subr.bf16.mxu0 0
    %9034 = vmatpush1.bf16.msra.mxu0 0
    %9035 = vmatprep.subr.bf16.mxu0 0
    %9036 = vmatpush1.bf16.msra.mxu0 0
    %9037 = vmatprep.subr.bf16.mxu0 0
    %9038 = vmatpush1.bf16.msra.mxu0 0
    %9039 = vmatprep.subr.bf16.mxu0 0
    %9040 = vmatpush1.bf16.msra.mxu0 0
    %9041 = vmatprep.subr.bf16.mxu0 0
    %9042 = vmatpush1.bf16.msra.mxu0 0
    %9043 = vmatprep.subr.bf16.mxu0 0
    %9044 = vmatpush1.bf16.msra.mxu0 0
    %9045 = vmatprep.subr.bf16.mxu0 0
    %9046 = vmatpush1.bf16.msra.mxu0 0
    %9047 = vmatprep.mubr.bf16.mxu0 0
    %9048 = vmatmul.mubr.bf16.gmra.mrb[0].mxu0 %v9014
    %v9049 = vpop.f32.mrb[0].mxu0
    %v9050 = vadd.f32 %v8566, %v9049
    %v9051 = vpop.f32.mrb[0].mxu0
    %v9052 = vadd.f32 %v8570, %v9051
    %v9053 = vpop.f32.mrb[0].mxu0
    %v9054 = vpop.f32.mrb[0].mxu0
    %9055 = vdwg.mxu0
    %9056 = vmatprep.subr.bf16.mxu0 0
    %9057 = vmatpush1.bf16.msra.mxu0 %v8660
    %9058 = vmatprep.subr.bf16.mxu0 0
    %9059 = vmatpush1.bf16.msra.mxu0 %v8663
    %9060 = vmatprep.subr.bf16.mxu0 0
    %9061 = vmatpush1.bf16.msra.mxu0 %v8666
    %9062 = vmatprep.subr.bf16.mxu0 0
    %9063 = vmatpush1.bf16.msra.mxu0 %v8669
    %9064 = vmatprep.subr.bf16.mxu0 0
    %9065 = vmatpush1.bf16.msra.mxu0 %v8672
    %9066 = vmatprep.subr.bf16.mxu0 0
    %9067 = vmatpush1.bf16.msra.mxu0 %v8675
    %9068 = vmatprep.subr.bf16.mxu0 0
    %9069 = vmatpush1.bf16.msra.mxu0 %v8678
    %9070 = vmatprep.subr.bf16.mxu0 0
    %9071 = vmatpush1.bf16.msra.mxu0 %v8681
    %9072 = vmatprep.subr.bf16.mxu0 0
    %9073 = vmatpush1.bf16.msra.mxu0 0
    %9074 = vmatprep.subr.bf16.mxu0 0
    %9075 = vmatpush1.bf16.msra.mxu0 0
    %9076 = vmatprep.subr.bf16.mxu0 0
    %9077 = vmatpush1.bf16.msra.mxu0 0
    %9078 = vmatprep.subr.bf16.mxu0 0
    %9079 = vmatpush1.bf16.msra.mxu0 0
    %9080 = vmatprep.subr.bf16.mxu0 0
    %9081 = vmatpush1.bf16.msra.mxu0 0
    %9082 = vmatprep.subr.bf16.mxu0 0
    %9083 = vmatpush1.bf16.msra.mxu0 0
    %9084 = vmatprep.subr.bf16.mxu0 0
    %9085 = vmatpush1.bf16.msra.mxu0 0
    %9086 = vmatprep.subr.bf16.mxu0 0
    %9087 = vmatpush1.bf16.msra.mxu0 0
    %9088 = vmatprep.mubr.bf16.mxu0 0
    %9089 = vmatmul.mubr.bf16.gmra.mrb[0].mxu0 %v9014
    %v9090 = vpop.f32.mrb[0].mxu0
    %v9091 = vadd.f32 %v8574, %v9090
    %v9092 = vpop.f32.mrb[0].mxu0
    %v9093 = vpop.f32.mrb[0].mxu0
    %v9094 = vpop.f32.mrb[0].mxu0
    %9095 = vdwg.mxu0
    %v9096 = vadd.f32 %v8472, %v9050
    %v9097 = vxor.u32 %v9096, 2147483648
    %v9098 = vmul.f32 %v9097, 1.442695
    %v9099 = vpow.pop %v9098
    %v9100 = vadd.f32 %v9099, 1.0
    %v9101 = vrcp.pop %v9100
    %v9102 = vmul.f32 1.0, %v9101
    %v9103 = vadd.f32 %v8474, %v9052
    %v9104 = vxor.u32 %v9103, 2147483648
    %v9105 = vmul.f32 %v9104, 1.442695
    %v9106 = vpow.pop %v9105
    %v9107 = vadd.f32 %v9106, 1.0
    %v9108 = vrcp.pop %v9107
    %v9109 = vmul.f32 1.0, %v9108
    %v9110 = vmul.f32 %v9102, %v9091
    %v9111 = vadd.f32 %v8542, %v9110
    %v9112 = vtanh.pop %v9111
    %v9113 = vsub.f32 1.0, %v9109
    %v9114 = vmul.f32 %v9113, %v9112
    %v9115 = vmul.f32 %v9109, %v9013
    %v9116 = vadd.f32 %v9114, %v9115
    %v9117 = vpack.c.bf16 %v9116, %v9116
    %9118 = vmatprep.subr.bf16.mxu0 %v8659
    %9119 = vmatpush1.bf16.msra.mxu0 %v8658
    %9120 = vmatprep.subr.bf16.mxu0 %v8662
    %9121 = vmatpush1.bf16.msra.mxu0 %v8661
    %9122 = vmatprep.subr.bf16.mxu0 %v8665
    %9123 = vmatpush1.bf16.msra.mxu0 %v8664
    %9124 = vmatprep.subr.bf16.mxu0 %v8668
    %9125 = vmatpush1.bf16.msra.mxu0 %v8667
    %9126 = vmatprep.subr.bf16.mxu0 %v8671
    %9127 = vmatpush1.bf16.msra.mxu0 %v8670
    %9128 = vmatprep.subr.bf16.mxu0 %v8674
    %9129 = vmatpush1.bf16.msra.mxu0 %v8673
    %9130 = vmatprep.subr.bf16.mxu0 %v8677
    %9131 = vmatpush1.bf16.msra.mxu0 %v8676
    %9132 = vmatprep.subr.bf16.mxu0 %v8680
    %9133 = vmatpush1.bf16.msra.mxu0 %v8679
    %9134 = vmatprep.subr.bf16.mxu0 0
    %9135 = vmatpush1.bf16.msra.mxu0 0
    %9136 = vmatprep.subr.bf16.mxu0 0
    %9137 = vmatpush1.bf16.msra.mxu0 0
    %9138 = vmatprep.subr.bf16.mxu0 0
    %9139 = vmatpush1.bf16.msra.mxu0 0
    %9140 = vmatprep.subr.bf16.mxu0 0
    %9141 = vmatpush1.bf16.msra.mxu0 0
    %9142 = vmatprep.subr.bf16.mxu0 0
    %9143 = vmatpush1.bf16.msra.mxu0 0
    %9144 = vmatprep.subr.bf16.mxu0 0
    %9145 = vmatpush1.bf16.msra.mxu0 0
    %9146 = vmatprep.subr.bf16.mxu0 0
    %9147 = vmatpush1.bf16.msra.mxu0 0
    %9148 = vmatprep.subr.bf16.mxu0 0
    %9149 = vmatpush1.bf16.msra.mxu0 0
    %9150 = vmatprep.mubr.bf16.mxu0 0
    %9151 = vmatmul.mubr.bf16.gmra.mrb[0].mxu0 %v9117
    %v9152 = vpop.f32.mrb[0].mxu0
    %v9153 = vadd.f32 %v8566, %v9152
    %v9154 = vpop.f32.mrb[0].mxu0
    %v9155 = vadd.f32 %v8570, %v9154
    %v9156 = vpop.f32.mrb[0].mxu0
    %v9157 = vpop.f32.mrb[0].mxu0
    %9158 = vdwg.mxu0
    %9159 = vmatprep.subr.bf16.mxu0 0
    %9160 = vmatpush1.bf16.msra.mxu0 %v8660
    %9161 = vmatprep.subr.bf16.mxu0 0
    %9162 = vmatpush1.bf16.msra.mxu0 %v8663
    %9163 = vmatprep.subr.bf16.mxu0 0
    %9164 = vmatpush1.bf16.msra.mxu0 %v8666
    %9165 = vmatprep.subr.bf16.mxu0 0
    %9166 = vmatpush1.bf16.msra.mxu0 %v8669
    %9167 = vmatprep.subr.bf16.mxu0 0
    %9168 = vmatpush1.bf16.msra.mxu0 %v8672
    %9169 = vmatprep.subr.bf16.mxu0 0
    %9170 = vmatpush1.bf16.msra.mxu0 %v8675
    %9171 = vmatprep.subr.bf16.mxu0 0
    %9172 = vmatpush1.bf16.msra.mxu0 %v8678
    %9173 = vmatprep.subr.bf16.mxu0 0
    %9174 = vmatpush1.bf16.msra.mxu0 %v8681
    %9175 = vmatprep.subr.bf16.mxu0 0
    %9176 = vmatpush1.bf16.msra.mxu0 0
    %9177 = vmatprep.subr.bf16.mxu0 0
    %9178 = vmatpush1.bf16.msra.mxu0 0
    %9179 = vmatprep.subr.bf16.mxu0 0
    %9180 = vmatpush1.bf16.msra.mxu0 0
    %9181 = vmatprep.subr.bf16.mxu0 0
    %9182 = vmatpush1.bf16.msra.mxu0 0
    %9183 = vmatprep.subr.bf16.mxu0 0
    %9184 = vmatpush1.bf16.msra.mxu0 0
    %9185 = vmatprep.subr.bf16.mxu0 0
    %9186 = vmatpush1.bf16.msra.mxu0 0
    %9187 = vmatprep.subr.bf16.mxu0 0
    %9188 = vmatpush1.bf16.msra.mxu0 0
    %9189 = vmatprep.subr.bf16.mxu0 0
    %9190 = vmatpush1.bf16.msra.mxu0 0
    %9191 = vmatprep.mubr.bf16.mxu0 0
    %9192 = vmatmul.mubr.bf16.gmra.mrb[0].mxu0 %v9117
    %v9193 = vpop.f32.mrb[0].mxu0
    %v9194 = vadd.f32 %v8574, %v9193
    %v9195 = vpop.f32.mrb[0].mxu0
    %v9196 = vpop.f32.mrb[0].mxu0
    %v9197 = vpop.f32.mrb[0].mxu0
    %9198 = vdwg.mxu0
    %v9199 = vadd.f32 %v8478, %v9153
    %v9200 = vxor.u32 %v9199, 2147483648
    %v9201 = vmul.f32 %v9200, 1.442695
    %v9202 = vpow.pop %v9201
    %v9203 = vadd.f32 %v9202, 1.0
    %v9204 = vrcp.pop %v9203
    %v9205 = vmul.f32 1.0, %v9204
    %v9206 = vadd.f32 %v8480, %v9155
    %v9207 = vxor.u32 %v9206, 2147483648
    %v9208 = vmul.f32 %v9207, 1.442695
    %v9209 = vpow.pop %v9208
    %v9210 = vadd.f32 %v9209, 1.0
    %v9211 = vrcp.pop %v9210
    %v9212 = vmul.f32 1.0, %v9211
    %v9213 = vmul.f32 %v9205, %v9194
    %v9214 = vadd.f32 %v8547, %v9213
    %v9215 = vtanh.pop %v9214
    %v9216 = vsub.f32 1.0, %v9212
    %v9217 = vmul.f32 %v9216, %v9215
    %v9218 = vmul.f32 %v9212, %v9116
    %v9219 = vadd.f32 %v9217, %v9218
    %v9220 = vpack.c.bf16 %v9219, %v9219
    %9221 = vmatprep.subr.bf16.mxu0 %v8659
    %9222 = vmatpush1.bf16.msra.mxu0 %v8658
    %9223 = vmatprep.subr.bf16.mxu0 %v8662
    %9224 = vmatpush1.bf16.msra.mxu0 %v8661
    %9225 = vmatprep.subr.bf16.mxu0 %v8665
    %9226 = vmatpush1.bf16.msra.mxu0 %v8664
    %9227 = vmatprep.subr.bf16.mxu0 %v8668
    %9228 = vmatpush1.bf16.msra.mxu0 %v8667
    %9229 = vmatprep.subr.bf16.mxu0 %v8671
    %9230 = vmatpush1.bf16.msra.mxu0 %v8670
    %9231 = vmatprep.subr.bf16.mxu0 %v8674
    %9232 = vmatpush1.bf16.msra.mxu0 %v8673
    %9233 = vmatprep.subr.bf16.mxu0 %v8677
    %9234 = vmatpush1.bf16.msra.mxu0 %v8676
    %9235 = vmatprep.subr.bf16.mxu0 %v8680
    %9236 = vmatpush1.bf16.msra.mxu0 %v8679
    %9237 = vmatprep.subr.bf16.mxu0 0
    %9238 = vmatpush1.bf16.msra.mxu0 0
    %9239 = vmatprep.subr.bf16.mxu0 0
    %9240 = vmatpush1.bf16.msra.mxu0 0
    %9241 = vmatprep.subr.bf16.mxu0 0
    %9242 = vmatpush1.bf16.msra.mxu0 0
    %9243 = vmatprep.subr.bf16.mxu0 0
    %9244 = vmatpush1.bf16.msra.mxu0 0
    %9245 = vmatprep.subr.bf16.mxu0 0
    %9246 = vmatpush1.bf16.msra.mxu0 0
    %9247 = vmatprep.subr.bf16.mxu0 0
    %9248 = vmatpush1.bf16.msra.mxu0 0
    %9249 = vmatprep.subr.bf16.mxu0 0
    %9250 = vmatpush1.bf16.msra.mxu0 0
    %9251 = vmatprep.subr.bf16.mxu0 0
    %9252 = vmatpush1.bf16.msra.mxu0 0
    %9253 = vmatprep.mubr.bf16.mxu0 0
    %9254 = vmatmul.mubr.bf16.gmra.mrb[0].mxu0 %v9220
    %v9255 = vpop.f32.mrb[0].mxu0
    %v9256 = vadd.f32 %v8566, %v9255
    %v9257 = vpop.f32.mrb[0].mxu0
    %v9258 = vadd.f32 %v8570, %v9257
    %v9259 = vpop.f32.mrb[0].mxu0
    %v9260 = vpop.f32.mrb[0].mxu0
    %9261 = vdwg.mxu0
    %9262 = vmatprep.subr.bf16.mxu0 0
    %9263 = vmatpush1.bf16.msra.mxu0 %v8660
    %9264 = vmatprep.subr.bf16.mxu0 0
    %9265 = vmatpush1.bf16.msra.mxu0 %v8663
    %9266 = vmatprep.subr.bf16.mxu0 0
    %9267 = vmatpush1.bf16.msra.mxu0 %v8666
    %9268 = vmatprep.subr.bf16.mxu0 0
    %9269 = vmatpush1.bf16.msra.mxu0 %v8669
    %9270 = vmatprep.subr.bf16.mxu0 0
    %9271 = vmatpush1.bf16.msra.mxu0 %v8672
    %9272 = vmatprep.subr.bf16.mxu0 0
    %9273 = vmatpush1.bf16.msra.mxu0 %v8675
    %9274 = vmatprep.subr.bf16.mxu0 0
    %9275 = vmatpush1.bf16.msra.mxu0 %v8678
    %9276 = vmatprep.subr.bf16.mxu0 0
    %9277 = vmatpush1.bf16.msra.mxu0 %v8681
    %9278 = vmatprep.subr.bf16.mxu0 0
    %9279 = vmatpush1.bf16.msra.mxu0 0
    %9280 = vmatprep.subr.bf16.mxu0 0
    %9281 = vmatpush1.bf16.msra.mxu0 0
    %9282 = vmatprep.subr.bf16.mxu0 0
    %9283 = vmatpush1.bf16.msra.mxu0 0
    %9284 = vmatprep.subr.bf16.mxu0 0
    %9285 = vmatpush1.bf16.msra.mxu0 0
    %9286 = vmatprep.subr.bf16.mxu0 0
    %9287 = vmatpush1.bf16.msra.mxu0 0
    %9288 = vmatprep.subr.bf16.mxu0 0
    %9289 = vmatpush1.bf16.msra.mxu0 0
    %9290 = vmatprep.subr.bf16.mxu0 0
    %9291 = vmatpush1.bf16.msra.mxu0 0
    %9292 = vmatprep.subr.bf16.mxu0 0
    %9293 = vmatpush1.bf16.msra.mxu0 0
    %9294 = vmatprep.mubr.bf16.mxu0 0
    %9295 = vmatmul.mubr.bf16.gmra.mrb[0].mxu0 %v9220
    %v9296 = vpop.f32.mrb[0].mxu0
    %v9297 = vadd.f32 %v8574, %v9296
    %v9298 = vpop.f32.mrb[0].mxu0
    %v9299 = vpop.f32.mrb[0].mxu0
    %v9300 = vpop.f32.mrb[0].mxu0
    %9301 = vdwg.mxu0
    %v9302 = vadd.f32 %v8482, %v9256
    %v9303 = vxor.u32 %v9302, 2147483648
    %v9304 = vmul.f32 %v9303, 1.442695
    %v9305 = vpow.pop %v9304
    %v9306 = vadd.f32 %v9305, 1.0
    %v9307 = vrcp.pop %v9306
    %v9308 = vmul.f32 1.0, %v9307
    %v9309 = vadd.f32 %v8484, %v9258
    %v9310 = vxor.u32 %v9309, 2147483648
    %v9311 = vmul.f32 %v9310, 1.442695
    %v9312 = vpow.pop %v9311
    %v9313 = vadd.f32 %v9312, 1.0
    %v9314 = vrcp.pop %v9313
    %v9315 = vmul.f32 1.0, %v9314
    %v9316 = vmul.f32 %v9308, %v9297
    %v9317 = vadd.f32 %v8550, %v9316
    %v9318 = vtanh.pop %v9317
    %v9319 = vsub.f32 1.0, %v9315
    %v9320 = vmul.f32 %v9319, %v9318
    %v9321 = vmul.f32 %v9315, %v9219
    %v9322 = vadd.f32 %v9320, %v9321
    %v9323 = vpack.c.bf16 %v9322, %v9322
    %9324 = vmatprep.subr.bf16.mxu0 %v8659
    %9325 = vmatpush1.bf16.msra.mxu0 %v8658
    %9326 = vmatprep.subr.bf16.mxu0 %v8662
    %9327 = vmatpush1.bf16.msra.mxu0 %v8661
    %9328 = vmatprep.subr.bf16.mxu0 %v8665
    %9329 = vmatpush1.bf16.msra.mxu0 %v8664
    %9330 = vmatprep.subr.bf16.mxu0 %v8668
    %9331 = vmatpush1.bf16.msra.mxu0 %v8667
    %9332 = vmatprep.subr.bf16.mxu0 %v8671
    %9333 = vmatpush1.bf16.msra.mxu0 %v8670
    %9334 = vmatprep.subr.bf16.mxu0 %v8674
    %9335 = vmatpush1.bf16.msra.mxu0 %v8673
    %9336 = vmatprep.subr.bf16.mxu0 %v8677
    %9337 = vmatpush1.bf16.msra.mxu0 %v8676
    %9338 = vmatprep.subr.bf16.mxu0 %v8680
    %9339 = vmatpush1.bf16.msra.mxu0 %v8679
    %9340 = vmatprep.subr.bf16.mxu0 0
    %9341 = vmatpush1.bf16.msra.mxu0 0
    %9342 = vmatprep.subr.bf16.mxu0 0
    %9343 = vmatpush1.bf16.msra.mxu0 0
    %9344 = vmatprep.subr.bf16.mxu0 0
    %9345 = vmatpush1.bf16.msra.mxu0 0
    %9346 = vmatprep.subr.bf16.mxu0 0
    %9347 = vmatpush1.bf16.msra.mxu0 0
    %9348 = vmatprep.subr.bf16.mxu0 0
    %9349 = vmatpush1.bf16.msra.mxu0 0
    %9350 = vmatprep.subr.bf16.mxu0 0
    %9351 = vmatpush1.bf16.msra.mxu0 0
    %9352 = vmatprep.subr.bf16.mxu0 0
    %9353 = vmatpush1.bf16.msra.mxu0 0
    %9354 = vmatprep.subr.bf16.mxu0 0
    %9355 = vmatpush1.bf16.msra.mxu0 0
    %9356 = vmatprep.mubr.bf16.mxu0 0
    %9357 = vmatmul.mubr.bf16.gmra.mrb[0].mxu0 %v9323
    %v9358 = vpop.f32.mrb[0].mxu0
    %v9359 = vadd.f32 %v8566, %v9358
    %v9360 = vpop.f32.mrb[0].mxu0
    %v9361 = vadd.f32 %v8570, %v9360
    %v9362 = vpop.f32.mrb[0].mxu0
    %v9363 = vpop.f32.mrb[0].mxu0
    %9364 = vdwg.mxu0
    %9365 = vmatprep.subr.bf16.mxu0 0
    %9366 = vmatpush1.bf16.msra.mxu0 %v8660
    %9367 = vmatprep.subr.bf16.mxu0 0
    %9368 = vmatpush1.bf16.msra.mxu0 %v8663
    %9369 = vmatprep.subr.bf16.mxu0 0
    %9370 = vmatpush1.bf16.msra.mxu0 %v8666
    %9371 = vmatprep.subr.bf16.mxu0 0
    %9372 = vmatpush1.bf16.msra.mxu0 %v8669
    %9373 = vmatprep.subr.bf16.mxu0 0
    %9374 = vmatpush1.bf16.msra.mxu0 %v8672
    %9375 = vmatprep.subr.bf16.mxu0 0
    %9376 = vmatpush1.bf16.msra.mxu0 %v8675
    %9377 = vmatprep.subr.bf16.mxu0 0
    %9378 = vmatpush1.bf16.msra.mxu0 %v8678
    %9379 = vmatprep.subr.bf16.mxu0 0
    %9380 = vmatpush1.bf16.msra.mxu0 %v8681
    %9381 = vmatprep.subr.bf16.mxu0 0
    %9382 = vmatpush1.bf16.msra.mxu0 0
    %9383 = vmatprep.subr.bf16.mxu0 0
    %9384 = vmatpush1.bf16.msra.mxu0 0
    %9385 = vmatprep.subr.bf16.mxu0 0
    %9386 = vmatpush1.bf16.msra.mxu0 0
    %9387 = vmatprep.subr.bf16.mxu0 0
    %9388 = vmatpush1.bf16.msra.mxu0 0
    %9389 = vmatprep.subr.bf16.mxu0 0
    %9390 = vmatpush1.bf16.msra.mxu0 0
    %9391 = vmatprep.subr.bf16.mxu0 0
    %9392 = vmatpush1.bf16.msra.mxu0 0
    %9393 = vmatprep.subr.bf16.mxu0 0
    %9394 = vmatpush1.bf16.msra.mxu0 0
    %9395 = vmatprep.subr.bf16.mxu0 0
    %9396 = vmatpush1.bf16.msra.mxu0 0
    %9397 = vmatprep.mubr.bf16.mxu0 0
    %9398 = vmatmul.mubr.bf16.gmra.mrb[0].mxu0 %v9323
    %v9399 = vpop.f32.mrb[0].mxu0
    %v9400 = vadd.f32 %v8574, %v9399
    %v9401 = vpop.f32.mrb[0].mxu0
    %v9402 = vpop.f32.mrb[0].mxu0
    %v9403 = vpop.f32.mrb[0].mxu0
    %9404 = vdwg.mxu0
    %v9405 = vadd.f32 %v8488, %v9359
    %v9406 = vxor.u32 %v9405, 2147483648
    %v9407 = vmul.f32 %v9406, 1.442695
    %v9408 = vpow.pop %v9407
    %v9409 = vadd.f32 %v9408, 1.0
    %v9410 = vrcp.pop %v9409
    %v9411 = vmul.f32 1.0, %v9410
    %v9412 = vadd.f32 %v8490, %v9361
    %v9413 = vxor.u32 %v9412, 2147483648
    %v9414 = vmul.f32 %v9413, 1.442695
    %v9415 = vpow.pop %v9414
    %v9416 = vadd.f32 %v9415, 1.0
    %v9417 = vrcp.pop %v9416
    %v9418 = vmul.f32 1.0, %v9417
    %v9419 = vmul.f32 %v9411, %v9400
    %v9420 = vadd.f32 %v8555, %v9419
    %v9421 = vtanh.pop %v9420
    %v9422 = vsub.f32 1.0, %v9418
    %v9423 = vmul.f32 %v9422, %v9421
    %v9424 = vmul.f32 %v9418, %v9322
    %v9425 = vadd.f32 %v9423, %v9424
    %v9426 = vpack.c.bf16 %v9425, %v9425
    %9427 = vmatprep.subr.bf16.mxu0 %v8659
    %9428 = vmatpush1.bf16.msra.mxu0 %v8658
    %9429 = vmatprep.subr.bf16.mxu0 %v8662
    %9430 = vmatpush1.bf16.msra.mxu0 %v8661
    %9431 = vmatprep.subr.bf16.mxu0 %v8665
    %9432 = vmatpush1.bf16.msra.mxu0 %v8664
    %9433 = vmatprep.subr.bf16.mxu0 %v8668
    %9434 = vmatpush1.bf16.msra.mxu0 %v8667
    %9435 = vmatprep.subr.bf16.mxu0 %v8671
    %9436 = vmatpush1.bf16.msra.mxu0 %v8670
    %9437 = vmatprep.subr.bf16.mxu0 %v8674
    %9438 = vmatpush1.bf16.msra.mxu0 %v8673
    %9439 = vmatprep.subr.bf16.mxu0 %v8677
    %9440 = vmatpush1.bf16.msra.mxu0 %v8676
    %9441 = vmatprep.subr.bf16.mxu0 %v8680
    %9442 = vmatpush1.bf16.msra.mxu0 %v8679
    %9443 = vmatprep.subr.bf16.mxu0 0
    %9444 = vmatpush1.bf16.msra.mxu0 0
    %9445 = vmatprep.subr.bf16.mxu0 0
    %9446 = vmatpush1.bf16.msra.mxu0 0
    %9447 = vmatprep.subr.bf16.mxu0 0
    %9448 = vmatpush1.bf16.msra.mxu0 0
    %9449 = vmatprep.subr.bf16.mxu0 0
    %9450 = vmatpush1.bf16.msra.mxu0 0
    %9451 = vmatprep.subr.bf16.mxu0 0
    %9452 = vmatpush1.bf16.msra.mxu0 0
    %9453 = vmatprep.subr.bf16.mxu0 0
    %9454 = vmatpush1.bf16.msra.mxu0 0
    %9455 = vmatprep.subr.bf16.mxu0 0
    %9456 = vmatpush1.bf16.msra.mxu0 0
    %9457 = vmatprep.subr.bf16.mxu0 0
    %9458 = vmatpush1.bf16.msra.mxu0 0
    %9459 = vmatprep.mubr.bf16.mxu0 0
    %9460 = vmatmul.mubr.bf16.gmra.mrb[0].mxu0 %v9426
    %v9461 = vpop.f32.mrb[0].mxu0
    %v9462 = vadd.f32 %v8566, %v9461
    %v9463 = vpop.f32.mrb[0].mxu0
    %v9464 = vadd.f32 %v8570, %v9463
    %v9465 = vpop.f32.mrb[0].mxu0
    %v9466 = vpop.f32.mrb[0].mxu0
    %9467 = vdwg.mxu0
    %9468 = vmatprep.subr.bf16.mxu0 0
    %9469 = vmatpush1.bf16.msra.mxu0 %v8660
    %9470 = vmatprep.subr.bf16.mxu0 0
    %9471 = vmatpush1.bf16.msra.mxu0 %v8663
    %9472 = vmatprep.subr.bf16.mxu0 0
    %9473 = vmatpush1.bf16.msra.mxu0 %v8666
    %9474 = vmatprep.subr.bf16.mxu0 0
    %9475 = vmatpush1.bf16.msra.mxu0 %v8669
    %9476 = vmatprep.subr.bf16.mxu0 0
    %9477 = vmatpush1.bf16.msra.mxu0 %v8672
    %9478 = vmatprep.subr.bf16.mxu0 0
    %9479 = vmatpush1.bf16.msra.mxu0 %v8675
    %9480 = vmatprep.subr.bf16.mxu0 0
    %9481 = vmatpush1.bf16.msra.mxu0 %v8678
    %9482 = vmatprep.subr.bf16.mxu0 0
    %9483 = vmatpush1.bf16.msra.mxu0 %v8681
    %9484 = vmatprep.subr.bf16.mxu0 0
    %9485 = vmatpush1.bf16.msra.mxu0 0
    %9486 = vmatprep.subr.bf16.mxu0 0
    %9487 = vmatpush1.bf16.msra.mxu0 0
    %9488 = vmatprep.subr.bf16.mxu0 0
    %9489 = vmatpush1.bf16.msra.mxu0 0
    %9490 = vmatprep.subr.bf16.mxu0 0
    %9491 = vmatpush1.bf16.msra.mxu0 0
    %9492 = vmatprep.subr.bf16.mxu0 0
    %9493 = vmatpush1.bf16.msra.mxu0 0
    %9494 = vmatprep.subr.bf16.mxu0 0
    %9495 = vmatpush1.bf16.msra.mxu0 0
    %9496 = vmatprep.subr.bf16.mxu0 0
    %9497 = vmatpush1.bf16.msra.mxu0 0
    %9498 = vmatprep.subr.bf16.mxu0 0
    %9499 = vmatpush1.bf16.msra.mxu0 0
    %9500 = vmatprep.mubr.bf16.mxu0 0
    %9501 = vmatmul.mubr.bf16.gmra.mrb[0].mxu0 %v9426
    %v9502 = vpop.f32.mrb[0].mxu0
    %v9503 = vadd.f32 %v8574, %v9502
    %v9504 = vpop.f32.mrb[0].mxu0
    %v9505 = vpop.f32.mrb[0].mxu0
    %v9506 = vpop.f32.mrb[0].mxu0
    %9507 = vdwg.mxu0
    %v9508 = vadd.f32 %v8492, %v9462
    %v9509 = vxor.u32 %v9508, 2147483648
    %v9510 = vmul.f32 %v9509, 1.442695
    %v9511 = vpow.pop %v9510
    %v9512 = vadd.f32 %v9511, 1.0
    %v9513 = vrcp.pop %v9512
    %v9514 = vmul.f32 1.0, %v9513
    %v9515 = vadd.f32 %v8494, %v9464
    %v9516 = vxor.u32 %v9515, 2147483648
    %v9517 = vmul.f32 %v9516, 1.442695
    %v9518 = vpow.pop %v9517
    %v9519 = vadd.f32 %v9518, 1.0
    %v9520 = vrcp.pop %v9519
    %v9521 = vmul.f32 1.0, %v9520
    %v9522 = vmul.f32 %v9514, %v9503
    %v9523 = vadd.f32 %v8558, %v9522
    %v9524 = vtanh.pop %v9523
    %v9525 = vsub.f32 1.0, %v9521
    %v9526 = vmul.f32 %v9525, %v9524
    %v9527 = vmul.f32 %v9521, %v9425
    %v9528 = vadd.f32 %v9526, %v9527
    %v9529 = vlaneseq
    %v9530 = vand.u32 %v9529, 127
    %vm9531 = vcmp.lt.s32.totalorder %v9530, 32
    %9532 = vadd.xlane.f32.xlu0 %v9528
    %v9533 = vpop.xlane.xlu0 %9532
    %v9534 = vrcp.pop 32.0
    %v9535 = vmul.f32 %v9533, %v9534
    %v9536 = vsub.f32 %v9528, %v9535
    %v9537 = vsel %vm9531, %v9536, 0.0
    %v9538 = vmul.f32 %v9537, %v9537
    %9539 = vadd.xlane.f32.xlu0 %v9538
    %v9540 = vpop.xlane.xlu0 %9539
    %v9541 = vmul.f32 %v9540, %v9534
    %v9542 = vadd.f32 %v9541, 1e-05
    %v9543 = vrsqrt.pop %v9542
    %v9544 = vmul.f32 %v9537, %v9543
    %v9545 = vld [vmem:[#allocation20] sm:$0x1]
    %v9547 = vlaneseq
    %v9548 = vshrl.u32 %v9547, 7
    %v9549 = vsub.s32 0, %v9548
    %v9550 = vrot.slane %v9545, %v9549
    %v9552 = vmul.f32 %v9544, %v9550
    %v9553 = vld [vmem:[#allocation22] sm:$0x1]
    %v9555 = vlaneseq
    %v9556 = vshrl.u32 %v9555, 7
    %v9557 = vsub.s32 0, %v9556
    %v9558 = vrot.slane %v9553, %v9557
    %v9560 = vadd.f32 %v9552, %v9558
    %v9561 = vpack.c.bf16 %v9560, %v9560
    %v9562 = vld [vmem:[#allocation23] sm:$0xf]
    %v9563 = vld [vmem:[#allocation23 + $0x4] sm:$0xf]
    %v9564 = vld [vmem:[#allocation23 + $0x8] sm:$0xf]
    %v9565 = vld [vmem:[#allocation23 + $0xc] sm:$0xf]
    %v9566 = vld [vmem:[#allocation23 + $0x10] sm:$0xf]
    %v9567 = vld [vmem:[#allocation23 + $0x14] sm:$0xf]
    %v9568 = vld [vmem:[#allocation23 + $0x18] sm:$0xf]
    %v9569 = vld [vmem:[#allocation23 + $0x1c] sm:$0xf]
    %v9570 = vld [vmem:[#allocation23 + $0x20] sm:$0xf]
    %v9571 = vld [vmem:[#allocation23 + $0x24] sm:$0xf]
    %v9572 = vld [vmem:[#allocation23 + $0x28] sm:$0xf]
    %v9573 = vld [vmem:[#allocation23 + $0x2c] sm:$0xf]
    %v9574 = vld [vmem:[#allocation23 + $0x30] sm:$0xf]
    %v9575 = vld [vmem:[#allocation23 + $0x34] sm:$0xf]
    %v9576 = vld [vmem:[#allocation23 + $0x38] sm:$0xf]
    %v9577 = vld [vmem:[#allocation23 + $0x3c] sm:$0xf]
    %v9578 = vld [vmem:[#allocation25] sm:$0x1]
    %v9580 = vlaneseq
    %v9581 = vshrl.u32 %v9580, 7
    %v9582 = vsub.s32 0, %v9581
    %v9583 = vrot.slane %v9578, %v9582
    %v9601 = vunpack.c.l.b16 %v9562
    %v9602 = vunpack.c.l.b16 %v9563
    %v9603 = vunpack.c.l.b16 %v9564
    %v9604 = vunpack.c.l.b16 %v9565
    %v9605 = vunpack.c.l.b16 %v9566
    %v9606 = vunpack.c.l.b16 %v9567
    %v9607 = vunpack.c.l.b16 %v9568
    %v9608 = vunpack.c.l.b16 %v9569
    %v9609 = vunpack.c.l.b16 %v9570
    %v9610 = vunpack.c.l.b16 %v9571
    %v9611 = vunpack.c.l.b16 %v9572
    %v9612 = vunpack.c.l.b16 %v9573
    %v9613 = vunpack.c.l.b16 %v9574
    %v9614 = vunpack.c.l.b16 %v9575
    %v9615 = vunpack.c.l.b16 %v9576
    %v9616 = vunpack.c.l.b16 %v9577
    %v9617 = vpack.c.b16 %v9602, %v9601
    %v9618 = vpack.c.b16 %v9604, %v9603
    %v9619 = vpack.c.b16 %v9606, %v9605
    %v9620 = vpack.c.b16 %v9608, %v9607
    %v9621 = vpack.c.b16 %v9610, %v9609
    %v9622 = vpack.c.b16 %v9612, %v9611
    %v9623 = vpack.c.b16 %v9614, %v9613
    %v9624 = vpack.c.b16 %v9616, %v9615
    %9633 = vmatprep.subr.bf16.mxu0 0
    %9634 = vmatpush1.bf16.msra.mxu0 %v9617
    %9635 = vmatprep.subr.bf16.mxu0 0
    %9636 = vmatpush1.bf16.msra.mxu0 %v9618
    %9637 = vmatprep.subr.bf16.mxu0 0
    %9638 = vmatpush1.bf16.msra.mxu0 %v9619
    %9639 = vmatprep.subr.bf16.mxu0 0
    %9640 = vmatpush1.bf16.msra.mxu0 %v9620
    %9641 = vmatprep.subr.bf16.mxu0 0
    %9642 = vmatpush1.bf16.msra.mxu0 %v9621
    %9643 = vmatprep.subr.bf16.mxu0 0
    %9644 = vmatpush1.bf16.msra.mxu0 %v9622
    %9645 = vmatprep.subr.bf16.mxu0 0
    %9646 = vmatpush1.bf16.msra.mxu0 %v9623
    %9647 = vmatprep.subr.bf16.mxu0 0
    %9648 = vmatpush1.bf16.msra.mxu0 %v9624
    %9649 = vmatprep.subr.bf16.mxu0 0
    %9650 = vmatpush1.bf16.msra.mxu0 0
    %9651 = vmatprep.subr.bf16.mxu0 0
    %9652 = vmatpush1.bf16.msra.mxu0 0
    %9653 = vmatprep.subr.bf16.mxu0 0
    %9654 = vmatpush1.bf16.msra.mxu0 0
    %9655 = vmatprep.subr.bf16.mxu0 0
    %9656 = vmatpush1.bf16.msra.mxu0 0
    %9657 = vmatprep.subr.bf16.mxu0 0
    %9658 = vmatpush1.bf16.msra.mxu0 0
    %9659 = vmatprep.subr.bf16.mxu0 0
    %9660 = vmatpush1.bf16.msra.mxu0 0
    %9661 = vmatprep.subr.bf16.mxu0 0
    %9662 = vmatpush1.bf16.msra.mxu0 0
    %9663 = vmatprep.subr.bf16.mxu0 0
    %9664 = vmatpush1.bf16.msra.mxu0 0
    %9665 = vmatprep.mubr.bf16.mxu0 0
    %9666 = vmatmul.mubr.bf16.gmra.mrb[0].mxu0 %v9561
    %v9667 = vpop.f32.mrb[0].mxu0
    %v9668 = vadd.f32 %v9583, %v9667
    %v9669 = vpop.f32.mrb[0].mxu0
    %v9670 = vpop.f32.mrb[0].mxu0
    %v9671 = vpop.f32.mrb[0].mxu0
    %9672 = vdwg.mxu0
    %9673 = vst [vmem:[%s17] sm:$0xff] %v9668
    // Predicated region
    $region130: #{timesformer_gru_forward.1} parent=1 // pred_check
      _
    $region131: #{timesformer_gru_forward.1} parent=1 // pred_check_branch
      %9675 = sbr.rel (0) target = $region133
    $region132: #{timesformer_gru_forward.1} parent=1 // pred_region
      _
    $region133: #{timesformer_gru_forward.1} parent=1 // pred_fallthru
      _
    // Predicated region
    $region134: #{timesformer_gru_forward.1} parent=1 // pred_check
      _
    $region135: #{timesformer_gru_forward.1} parent=1 // pred_check_branch
      %9677 = sbr.rel (0) target = $region137
    $region136: #{timesformer_gru_forward.1} parent=1 // pred_region
      _
    $region137: #{timesformer_gru_forward.1} parent=1 // pred_fallthru
      _
    %9678 = vsyncpa [#allocation4], 1
    %9679 = vsyncpa [#allocation6], 1
    %9680 = vsyncpa [#allocation9], 1
    %9681 = vsyncpa [#allocation12], 1
    %9682 = vsyncpa [#allocation15], 1
    %9683 = vsyncpa [#allocation18], 1
    %9684 = vsyncpa [#allocation21], 1
    %9685 = vsyncpa [#allocation24], 1

</llo_original>
